<compile_context>
chip_gen: v7x
topology: tpu7x:2x2x1
jax: 0.10.0
libtpu: 0.0.40
codegen_flags: <defaults>
</compile_context>

<pallas_src>
import numpy as np
import jax
import jax.numpy as jnp
from jax import lax
from jax.experimental import pallas as pl
from jax.experimental.pallas import tpu as pltpu

# Fixed geometry implied by the module (fc1 expects 4608 = 32*12*12 features).
H1S, W1S, CIN = 48, 48, 3          # conv1 input
C1 = 16                            # conv1 out channels
H2S, W2S = 24, 24                  # conv2 input (after pool1)
C2 = 32                            # conv2 out channels
HO, WO = 12, 12                    # after pool2
LANES1 = W1S // 2 * C1             # 384  (w', c1) lanes of stage-1 pooled activation
LANES2 = WO * C2                   # 384  (w', c2) lanes of stage-2 pooled activation
K1 = (W1S + 2) * CIN               # 150  lane-dense padded image row width
K2 = H2S * C1                      # 384  lane-dense pooled-1 row width
N1 = 2 * LANES1                    # 768  conv1 accumulator lanes (w-parity split)
N2 = 2 * LANES2                    # 768  conv2 accumulator lanes


# ---------------------------------------------------------------------------
# Pallas kernels
# ---------------------------------------------------------------------------
def fused_conv_kernel(x_ref, m1_ref, b1_ref, m2_ref, b2_ref, o_ref, scr_ref):
    # x_ref : (Bt, 4, 13, 150) bf16 -- padded 50x(50*3) image rows grouped by (row % 4)
    # m1_ref: (3, 150, 768) bf16    -- banded conv1 weights per dy (cols ordered by w-parity)
    # b1_ref: (1, 384) f32          -- conv1 bias tiled over w'
    # m2_ref: (3, 384, 768) bf16    -- banded conv2 weights per dy
    # b2_ref: (1, 384) f32
    # o_ref : (Bt, 12, 384) bf16    -- pooled conv2 activation, (h', w'*32 + c) layout
    # scr_ref: (2, 24, 384) f32     -- pooled conv1 rows split by h'-parity, zero-padded
    bt = x_ref.shape[0]
    zeros8 = jnp.zeros((8, LANES1), jnp.float32)
    for b in range(bt):
        # ---- stage 1: conv1 + bias + ReLU + 2x2 maxpool -----------------------
        p1 = []  # pooled conv1 rows h' = 2*h'' + q, bf16 (12, 384)
        for q in range(2):
            row_max = None
            for p in range(2):                       # conv1 output row h = 4h'' + 2q + p
                acc = None
                for dy in range(3):
                    s = 2 * q + p + dy               # padded input row = 4h'' + s
                    lhs = x_ref[b, s % 4, (s // 4):(s // 4) + 12, :]
                    t = jnp.dot(lhs, m1_ref[dy],
                                preferred_element_type=jnp.float32)
                    acc = t if acc is None else acc + t
                row_max = acc if row_max is None else jnp.maximum(row_max, acc)
            pooled = jnp.maximum(row_max[:, :LANES1], row_max[:, LANES1:])  # w-pool
            pooled = jnp.maximum(pooled + b1_ref[...], 0.0)                 # bias+ReLU
            scr_ref[q, 0:8, :] = zeros8              # zero pad row below the data
            scr_ref[q, 16:24, :] = zeros8            # zero pad row above the data
            scr_ref[q, 8:20, :] = pooled             # data rows (aligned offset 8)
            p1.append(pooled.astype(jnp.bfloat16))
        # one-row-shifted views of the pooled-1 activation (zero rows at the ends)
        dn1 = scr_ref[1, 7:19, :].astype(jnp.bfloat16)   # a1 rows 2h2' - 1
        up0 = scr_ref[0, 9:21, :].astype(jnp.bfloat16)   # a1 rows 2h2' + 2
        # ---- stage 2: conv2 + bias + ReLU + 2x2 maxpool -----------------------
        lhs_sets = ((dn1, p1[0], p1[1]),   # conv2 output rows 2*h2'     (p2 = 0)
                    (p1[0], p1[1], up0))   # conv2 output rows 2*h2' + 1 (p2 = 1)
        row_max = None
        for p2 in range(2):
            acc = None
            for dy in range(3):
                t = jnp.dot(lhs_sets[p2][dy], m2_ref[dy],
                            preferred_element_type=jnp.float32)
                acc = t if acc is None else acc + t
            row_max = acc if row_max is None else jnp.maximum(row_max, acc)
        pooled = jnp.maximum(row_max[:, :LANES2], row_max[:, LANES2:])
        pooled = jnp.maximum(pooled + b2_ref[...], 0.0)
        o_ref[b, :, :] = pooled.astype(o_ref.dtype)


def fc_fc_kernel(x_ref, w1_ref, b1_ref, w2_ref, b2_ref, o_ref):
    # relu(relu(x @ w1 + b1) @ w2 + b2); hidden never leaves VMEM.  bf16 MXU, f32 epilogue.
    h = jnp.dot(x_ref[...], w1_ref[...], preferred_element_type=jnp.float32)
    h = jnp.maximum(h + b1_ref[...], 0.0)
    o = jnp.dot(h.astype(w2_ref.dtype), w2_ref[...],
                preferred_element_type=jnp.float32)
    o_ref[...] = jnp.maximum(o + b2_ref[...], 0.0).astype(o_ref.dtype)


# ---------------------------------------------------------------------------
# One-time weight re-layout (do NOT call per forward)
# ---------------------------------------------------------------------------
def _conv1_band_mats(w1):
    # w1: (16, 3, 3, 3) OIHW.  Returns (3, 150, 768):
    #   mats[dy, (w+dx)*3 + ci, wpar*384 + (w//2)*16 + co] = w1[co, ci, dy, dx]
    w1 = np.asarray(w1, np.float32)
    cout, cin = w1.shape[0], w1.shape[1]
    mats = np.zeros((3, K1, N1), np.float32)
    for dy in range(3):
        for dx in range(3):
            blk = w1[:, :, dy, dx].T                     # (cin, cout)
            for w in range(W1S):
                col0 = (w % 2) * LANES1 + (w // 2) * cout
                row0 = (w + dx) * cin
                mats[dy, row0:row0 + cin, col0:col0 + cout] = blk
    return mats


def _conv2_band_mats(w2):
    # w2: (32, 16, 3, 3) OIHW.  Returns (3, 384, 768); w-boundary (padding) is handled
    # by simply omitting out-of-range taps from the band.
    #   mats[dy, u*16 + ci, wpar*384 + (w//2)*32 + co] = w2[co, ci, dy, dx], u = w+dx-1
    w2 = np.asarray(w2, np.float32)
    cout, cin = w2.shape[0], w2.shape[1]
    mats = np.zeros((3, K2, N2), np.float32)
    for dy in range(3):
        for dx in range(3):
            blk = w2[:, :, dy, dx].T                     # (cin, cout)
            for w in range(H2S):
                u = w + dx - 1
                if u < 0 or u >= H2S:
                    continue
                col0 = (w % 2) * LANES2 + (w // 2) * cout
                row0 = u * cin
                mats[dy, row0:row0 + cin, col0:col0 + cout] = blk
    return mats


def preprocess_params(params):
    b1 = np.asarray(params["b1"], np.float32)
    b2 = np.asarray(params["b2"], np.float32)
    wfc1 = np.asarray(params["wfc1"], np.float32)        # (100, 4608), NCHW flatten cols
    wfc2 = np.asarray(params["wfc2"], np.float32)        # (50, 100)
    nh = wfc1.shape[0]
    # fc1: transpose AND permute the 4608 input columns from NCHW (c,h,w) order to our
    # NHWC (h,w,c) flatten order, so no transpose is needed at runtime.
    wfc1m = wfc1.reshape(nh, C2, HO, WO).transpose(2, 3, 1, 0).reshape(HO * WO * C2, nh)
    bf16 = jnp.bfloat16
    return {
        "m1": jnp.asarray(_conv1_band_mats(params["w1"]), dtype=bf16),    # (3,150,768)
        "b1row": jnp.asarray(np.tile(b1, W1S // 2).reshape(1, LANES1)),   # (1,384) f32
        "m2": jnp.asarray(_conv2_band_mats(params["w2"]), dtype=bf16),    # (3,384,768)
        "b2row": jnp.asarray(np.tile(b2, WO).reshape(1, LANES2)),         # (1,384) f32
        "wfc1m": jnp.asarray(wfc1m, dtype=bf16),                          # (4608,100)
        "bfc1": jnp.asarray(np.asarray(params["bfc1"], np.float32).reshape(1, -1)),
        "wfc2m": jnp.asarray(wfc2.T, dtype=bf16),                         # (100,50)
        "bfc2": jnp.asarray(np.asarray(params["bfc2"], np.float32).reshape(1, -1)),
    }


# ---------------------------------------------------------------------------
# Pallas wrappers
# ---------------------------------------------------------------------------
def _pick_block_batch(batch):
    # biggest batch block that keeps >= 2 grid steps (v7x has 2 TensorCores)
    for bt in (8, 4, 2):
        if batch % bt == 0 and batch // bt >= 2:
            return bt
    return 1


def fused_convs_pallas(xprep, m1, b1row, m2, b2row):
    batch = xprep.shape[0]
    bt = _pick_block_batch(batch)
    flops = 2 * batch * (H1S * W1S * 9 * CIN * C1 + H2S * W2S * 9 * C1 * C2)
    bytes_acc = (xprep.size * 2 + m1.size * 2 + m2.size * 2
                 + b1row.size * 4 + b2row.size * 4 + batch * HO * LANES2 * 2)
    return pl.pallas_call(
        fused_conv_kernel,
        out_shape=jax.ShapeDtypeStruct((batch, HO, LANES2), jnp.bfloat16),
        grid=(batch // bt,),
        in_specs=[
            pl.BlockSpec((bt, 4, 13, K1), lambda i: (i, 0, 0, 0)),
            pl.BlockSpec((3, K1, N1), lambda i: (0, 0, 0)),
            pl.BlockSpec((1, LANES1), lambda i: (0, 0)),
            pl.BlockSpec((3, K2, N2), lambda i: (0, 0, 0)),
            pl.BlockSpec((1, LANES2), lambda i: (0, 0)),
        ],
        out_specs=pl.BlockSpec((bt, HO, LANES2), lambda i: (i, 0, 0)),
        scratch_shapes=[pltpu.VMEM((2, 24, LANES1), jnp.float32)],
        compiler_params=pltpu.CompilerParams(dimension_semantics=("parallel",)),
        cost_estimate=pl.CostEstimate(flops=flops, transcendentals=0,
                                      bytes_accessed=bytes_acc),
    )(xprep, m1, b1row, m2, b2row)


def fc_fc_relu(x, w1, b1, w2, b2):
    batch, k = x.shape
    h1, h2 = w1.shape[1], w2.shape[1]
    flops = 2 * batch * (k * h1 + h1 * h2)
    bytes_acc = (x.size * 2 + w1.size * 2 + w2.size * 2
                 + b1.size * 4 + b2.size * 4 + batch * h2 * 4)
    return pl.pallas_call(
        fc_fc_kernel,
        out_shape=jax.ShapeDtypeStruct((batch, h2), jnp.float32),
        grid=(1,),
        in_specs=[
            pl.BlockSpec((batch, k), lambda i: (0, 0)),
            pl.BlockSpec((k, h1), lambda i: (0, 0)),
            pl.BlockSpec((1, h1), lambda i: (0, 0)),
            pl.BlockSpec((h1, h2), lambda i: (0, 0)),
            pl.BlockSpec((1, h2), lambda i: (0, 0)),
        ],
        out_specs=pl.BlockSpec((batch, h2), lambda i: (0, 0)),
        compiler_params=pltpu.CompilerParams(dimension_semantics=("arbitrary",)),
        cost_estimate=pl.CostEstimate(flops=flops, transcendentals=0,
                                      bytes_accessed=bytes_acc),
    )(x, w1, b1, w2, b2)


# ---------------------------------------------------------------------------
# Full forward pass (2 pallas_calls)
# ---------------------------------------------------------------------------
def rbg_conv_forward(x_nchw, pp):
    batch = x_nchw.shape[0]
    x = jnp.transpose(x_nchw, (0, 2, 3, 1))                       # NCHW -> NHWC
    xpad = jnp.pad(x, ((0, 0), (1, 1), (1, 1), (0, 0)))           # (B,50,50,3)
    xl = xpad.reshape(batch, H1S + 2, K1)                         # lane-dense rows
    xl = jnp.pad(xl, ((0, 0), (0, 2), (0, 0)))                    # rows 50,51 = 0
    xprep = (xl.reshape(batch, 13, 4, K1)
               .transpose(0, 2, 1, 3)                             # rows grouped by row%4
               .astype(jnp.bfloat16))                             # (B,4,13,150)
    y = fused_convs_pallas(xprep, pp["m1"], pp["b1row"], pp["m2"], pp["b2row"])
    flat = y.reshape(batch, HO * LANES2)                          # NHWC flatten (free view)
    return fc_fc_relu(flat, pp["wfc1m"], pp["bfc1"], pp["wfc2m"], pp["bfc2"])


# ---------------------------------------------------------------------------
# Pure-JAX reference (semantics check against the PyTorch module)
# ---------------------------------------------------------------------------
def reference_forward(x, params):
    def conv(x, w, b):
        y = lax.conv_general_dilated(
            x, w, window_strides=(1, 1), padding=((1, 1), (1, 1)),
            dimension_numbers=("NCHW", "OIHW", "NCHW"),
            precision=lax.Precision.HIGHEST)
        return jax.nn.relu(y + b[None, :, None, None])

    def pool(x):
        return lax.reduce_window(x, -jnp.inf, lax.max,
                                 (1, 1, 2, 2), (1, 1, 2, 2), "VALID")

    y = pool(conv(x, params["w1"], params["b1"]))
    y = pool(conv(y, params["w2"], params["b2"]))
    flat = y.reshape(x.shape[0], -1)
    h = jax.nn.relu(flat @ params["wfc1"].T + params["bfc1"])
    return jax.nn.relu(h @ params["wfc2"].T + params["bfc2"])


def init_params(key):
    ks = jax.random.split(key, 8)

    def u(k, shape, fan_in):
        bound = 1.0 / jnp.sqrt(fan_in)
        return jax.random.uniform(k, shape, jnp.float32, -bound, bound)

    return {
        "w1": u(ks[0], (16, 3, 3, 3), 3 * 9),
        "b1": u(ks[1], (16,), 3 * 9),
        "w2": u(ks[2], (32, 16, 3, 3), 16 * 9),
        "b2": u(ks[3], (32,), 16 * 9),
        "wfc1": u(ks[4], (100, 4608), 4608),
        "bfc1": u(ks[5], (100,), 4608),
        "wfc2": u(ks[6], (50, 100), 100),
        "bfc2": u(ks[7], (50,), 100),
    }


if __name__ == "__main__":
    key = jax.random.PRNGKey(0)
    kx, kp = jax.random.split(key)
    # fc1 expects 4608 = 32*12*12 features -> spatial input must be 48x48
    x = jax.random.normal(kx, (2, 3, 48, 48), dtype=jnp.float32)
    params = init_params(kp)
    pp = preprocess_params(params)          # one-time weight re-layout (banded matrices)

    fwd = jax.jit(rbg_conv_forward)
    out = jax.block_until_ready(fwd(x, pp))
    ref = jax.block_until_ready(reference_forward(x, params))

    assert out.shape == (2, 50), out.shape
    assert bool(jnp.all(jnp.isfinite(out)))
    # margin for bf16 MXU inputs (f32 accumulation keeps the error ~1e-3 here)
    assert jnp.allclose(out, ref, rtol=2e-2, atol=2e-2), float(jnp.max(jnp.abs(out - ref)))
    print("KERNEL_OK")
</pallas_src>

<mosaic_0001>
module attributes {stable_mosaic.version = 11 : i64} {
  func.func @fused_conv_kernel(%arg0: i32, %arg1: memref<1x4x13x150xbf16, #tpu.memory_space<vmem>>, %arg2: memref<3x150x768xbf16, #tpu.memory_space<vmem>>, %arg3: memref<1x384xf32, #tpu.memory_space<vmem>>, %arg4: memref<3x384x768xbf16, #tpu.memory_space<vmem>>, %arg5: memref<1x384xf32, #tpu.memory_space<vmem>>, %arg6: memref<1x12x384xbf16, #tpu.memory_space<vmem>>, %arg7: memref<2x24x384xf32, #tpu.memory_space<vmem>>) attributes {dimension_semantics = [#tpu.dimension_semantics<parallel>], iteration_bounds = array<i64: 2>, scalar_prefetch = 0 : i64, scratch_operands = 1 : i64, tpu.core_type = #tpu.core_type<tc>, window_params = [{transform_indices = @transform_0, window_bounds = array<i64: 1, 4, 13, 150>}, {pipeline_mode = #tpu.pipeline_mode<synchronous>, transform_indices = @transform_1, window_bounds = array<i64: 3, 150, 768>}, {pipeline_mode = #tpu.pipeline_mode<synchronous>, transform_indices = @transform_2, window_bounds = array<i64: 1, 384>}, {pipeline_mode = #tpu.pipeline_mode<synchronous>, transform_indices = @transform_3, window_bounds = array<i64: 3, 384, 768>}, {pipeline_mode = #tpu.pipeline_mode<synchronous>, transform_indices = @transform_4, window_bounds = array<i64: 1, 384>}, {transform_indices = @transform_5, window_bounds = array<i64: 1, 12, 384>}]} {
    %cst = arith.constant 0.000000e+00 : f32
    %0 = vector.broadcast %cst : f32 to vector<8x384xf32>
    %c0 = arith.constant 0 : index
    %c0_0 = arith.constant 0 : index
    %c0_1 = arith.constant 0 : index
    %c0_2 = arith.constant 0 : index
    %1 = vector.load %arg1[%c0, %c0_0, %c0_1, %c0_2] : memref<1x4x13x150xbf16, #tpu.memory_space<vmem>>, vector<1x1x12x150xbf16>
    %2 = vector.shape_cast %1 : vector<1x1x12x150xbf16> to vector<12x150xbf16>
    %c0_3 = arith.constant 0 : index
    %c0_4 = arith.constant 0 : index
    %c0_5 = arith.constant 0 : index
    %3 = vector.load %arg2[%c0_3, %c0_4, %c0_5] : memref<3x150x768xbf16, #tpu.memory_space<vmem>>, vector<1x150x768xbf16>
    %4 = vector.shape_cast %3 : vector<1x150x768xbf16> to vector<150x768xbf16>
    %cst_6 = arith.constant dense<0.000000e+00> : vector<12x768xf32>
    %5 = tpu.matmul %2, %4, %cst_6 {dimension_numbers = #tpu.dot_dimension_numbers<[1], [0], [0], [1], [0, 0, 1, 1], [], []>} : vector<12x150xbf16>, vector<150x768xbf16>, vector<12x768xf32> -> vector<12x768xf32>
    %c0_7 = arith.constant 0 : index
    %c1 = arith.constant 1 : index
    %c0_8 = arith.constant 0 : index
    %c0_9 = arith.constant 0 : index
    %6 = vector.load %arg1[%c0_7, %c1, %c0_8, %c0_9] : memref<1x4x13x150xbf16, #tpu.memory_space<vmem>>, vector<1x1x12x150xbf16>
    %7 = vector.shape_cast %6 : vector<1x1x12x150xbf16> to vector<12x150xbf16>
    %c1_10 = arith.constant 1 : index
    %c0_11 = arith.constant 0 : index
    %c0_12 = arith.constant 0 : index
    %8 = vector.load %arg2[%c1_10, %c0_11, %c0_12] : memref<3x150x768xbf16, #tpu.memory_space<vmem>>, vector<1x150x768xbf16>
    %9 = vector.shape_cast %8 : vector<1x150x768xbf16> to vector<150x768xbf16>
    %cst_13 = arith.constant dense<0.000000e+00> : vector<12x768xf32>
    %10 = tpu.matmul %7, %9, %cst_13 {dimension_numbers = #tpu.dot_dimension_numbers<[1], [0], [0], [1], [0, 0, 1, 1], [], []>} : vector<12x150xbf16>, vector<150x768xbf16>, vector<12x768xf32> -> vector<12x768xf32>
    %11 = arith.addf %5, %10 : vector<12x768xf32>
    %c0_14 = arith.constant 0 : index
    %c2 = arith.constant 2 : index
    %c0_15 = arith.constant 0 : index
    %c0_16 = arith.constant 0 : index
    %12 = vector.load %arg1[%c0_14, %c2, %c0_15, %c0_16] : memref<1x4x13x150xbf16, #tpu.memory_space<vmem>>, vector<1x1x12x150xbf16>
    %13 = vector.shape_cast %12 : vector<1x1x12x150xbf16> to vector<12x150xbf16>
    %c2_17 = arith.constant 2 : index
    %c0_18 = arith.constant 0 : index
    %c0_19 = arith.constant 0 : index
    %14 = vector.load %arg2[%c2_17, %c0_18, %c0_19] : memref<3x150x768xbf16, #tpu.memory_space<vmem>>, vector<1x150x768xbf16>
    %15 = vector.shape_cast %14 : vector<1x150x768xbf16> to vector<150x768xbf16>
    %cst_20 = arith.constant dense<0.000000e+00> : vector<12x768xf32>
    %16 = tpu.matmul %13, %15, %cst_20 {dimension_numbers = #tpu.dot_dimension_numbers<[1], [0], [0], [1], [0, 0, 1, 1], [], []>} : vector<12x150xbf16>, vector<150x768xbf16>, vector<12x768xf32> -> vector<12x768xf32>
    %17 = arith.addf %11, %16 : vector<12x768xf32>
    %c0_21 = arith.constant 0 : index
    %c1_22 = arith.constant 1 : index
    %c0_23 = arith.constant 0 : index
    %c0_24 = arith.constant 0 : index
    %18 = vector.load %arg1[%c0_21, %c1_22, %c0_23, %c0_24] : memref<1x4x13x150xbf16, #tpu.memory_space<vmem>>, vector<1x1x12x150xbf16>
    %19 = vector.shape_cast %18 : vector<1x1x12x150xbf16> to vector<12x150xbf16>
    %c0_25 = arith.constant 0 : index
    %c0_26 = arith.constant 0 : index
    %c0_27 = arith.constant 0 : index
    %20 = vector.load %arg2[%c0_25, %c0_26, %c0_27] : memref<3x150x768xbf16, #tpu.memory_space<vmem>>, vector<1x150x768xbf16>
    %21 = vector.shape_cast %20 : vector<1x150x768xbf16> to vector<150x768xbf16>
    %cst_28 = arith.constant dense<0.000000e+00> : vector<12x768xf32>
    %22 = tpu.matmul %19, %21, %cst_28 {dimension_numbers = #tpu.dot_dimension_numbers<[1], [0], [0], [1], [0, 0, 1, 1], [], []>} : vector<12x150xbf16>, vector<150x768xbf16>, vector<12x768xf32> -> vector<12x768xf32>
    %c0_29 = arith.constant 0 : index
    %c2_30 = arith.constant 2 : index
    %c0_31 = arith.constant 0 : index
    %c0_32 = arith.constant 0 : index
    %23 = vector.load %arg1[%c0_29, %c2_30, %c0_31, %c0_32] : memref<1x4x13x150xbf16, #tpu.memory_space<vmem>>, vector<1x1x12x150xbf16>
    %24 = vector.shape_cast %23 : vector<1x1x12x150xbf16> to vector<12x150xbf16>
    %c1_33 = arith.constant 1 : index
    %c0_34 = arith.constant 0 : index
    %c0_35 = arith.constant 0 : index
    %25 = vector.load %arg2[%c1_33, %c0_34, %c0_35] : memref<3x150x768xbf16, #tpu.memory_space<vmem>>, vector<1x150x768xbf16>
    %26 = vector.shape_cast %25 : vector<1x150x768xbf16> to vector<150x768xbf16>
    %cst_36 = arith.constant dense<0.000000e+00> : vector<12x768xf32>
    %27 = tpu.matmul %24, %26, %cst_36 {dimension_numbers = #tpu.dot_dimension_numbers<[1], [0], [0], [1], [0, 0, 1, 1], [], []>} : vector<12x150xbf16>, vector<150x768xbf16>, vector<12x768xf32> -> vector<12x768xf32>
    %28 = arith.addf %22, %27 : vector<12x768xf32>
    %c0_37 = arith.constant 0 : index
    %c3 = arith.constant 3 : index
    %c0_38 = arith.constant 0 : index
    %c0_39 = arith.constant 0 : index
    %29 = vector.load %arg1[%c0_37, %c3, %c0_38, %c0_39] : memref<1x4x13x150xbf16, #tpu.memory_space<vmem>>, vector<1x1x12x150xbf16>
    %30 = vector.shape_cast %29 : vector<1x1x12x150xbf16> to vector<12x150xbf16>
    %c2_40 = arith.constant 2 : index
    %c0_41 = arith.constant 0 : index
    %c0_42 = arith.constant 0 : index
    %31 = vector.load %arg2[%c2_40, %c0_41, %c0_42] : memref<3x150x768xbf16, #tpu.memory_space<vmem>>, vector<1x150x768xbf16>
    %32 = vector.shape_cast %31 : vector<1x150x768xbf16> to vector<150x768xbf16>
    %cst_43 = arith.constant dense<0.000000e+00> : vector<12x768xf32>
    %33 = tpu.matmul %30, %32, %cst_43 {dimension_numbers = #tpu.dot_dimension_numbers<[1], [0], [0], [1], [0, 0, 1, 1], [], []>} : vector<12x150xbf16>, vector<150x768xbf16>, vector<12x768xf32> -> vector<12x768xf32>
    %34 = arith.addf %28, %33 : vector<12x768xf32>
    %35 = arith.maximumf %17, %34 : vector<12x768xf32>
    %36 = vector.extract_strided_slice %35 {offsets = [0, 0], sizes = [12, 384], strides = [1, 1]} : vector<12x768xf32> to vector<12x384xf32>
    %37 = vector.extract_strided_slice %35 {offsets = [0, 384], sizes = [12, 384], strides = [1, 1]} : vector<12x768xf32> to vector<12x384xf32>
    %38 = arith.maximumf %36, %37 : vector<12x384xf32>
    %c0_44 = arith.constant 0 : index
    %c0_45 = arith.constant 0 : index
    %39 = vector.load %arg3[%c0_44, %c0_45] : memref<1x384xf32, #tpu.memory_space<vmem>>, vector<1x384xf32>
    %40 = vector.broadcast %39 : vector<1x384xf32> to vector<12x384xf32>
    %41 = arith.addf %38, %40 : vector<12x384xf32>
    %cst_46 = arith.constant 0.000000e+00 : f32
    %42 = vector.broadcast %cst_46 : f32 to vector<12x384xf32>
    %43 = arith.maximumf %41, %42 : vector<12x384xf32>
    %c0_47 = arith.constant 0 : index
    %c0_48 = arith.constant 0 : index
    %c0_49 = arith.constant 0 : index
    %44 = vector.load %arg7[%c0_47, %c0_48, %c0_49] : memref<2x24x384xf32, #tpu.memory_space<vmem>>, vector<1x8x384xf32>
    %45 = vector.shape_cast %44 : vector<1x8x384xf32> to vector<8x384xf32>
    %46 = vector.shape_cast %0 : vector<8x384xf32> to vector<1x8x384xf32>
    tpu.vector_store %arg7[%c0_47, %c0_48, %c0_49], %46 {strides = array<i32>} : memref<2x24x384xf32, #tpu.memory_space<vmem>>, vector<1x8x384xf32>,
    %c0_50 = arith.constant 0 : index
    %c16 = arith.constant 16 : index
    %c0_51 = arith.constant 0 : index
    %47 = vector.load %arg7[%c0_50, %c16, %c0_51] : memref<2x24x384xf32, #tpu.memory_space<vmem>>, vector<1x8x384xf32>
    %48 = vector.shape_cast %47 : vector<1x8x384xf32> to vector<8x384xf32>
    %49 = vector.shape_cast %0 : vector<8x384xf32> to vector<1x8x384xf32>
    tpu.vector_store %arg7[%c0_50, %c16, %c0_51], %49 {strides = array<i32>} : memref<2x24x384xf32, #tpu.memory_space<vmem>>, vector<1x8x384xf32>,
    %c0_52 = arith.constant 0 : index
    %c8 = arith.constant 8 : index
    %c0_53 = arith.constant 0 : index
    %50 = vector.load %arg7[%c0_52, %c8, %c0_53] : memref<2x24x384xf32, #tpu.memory_space<vmem>>, vector<1x12x384xf32>
    %51 = vector.shape_cast %50 : vector<1x12x384xf32> to vector<12x384xf32>
    %52 = vector.shape_cast %43 : vector<12x384xf32> to vector<1x12x384xf32>
    tpu.vector_store %arg7[%c0_52, %c8, %c0_53], %52 {strides = array<i32>} : memref<2x24x384xf32, #tpu.memory_space<vmem>>, vector<1x12x384xf32>,
    %53 = arith.truncf %43 : vector<12x384xf32> to vector<12x384xbf16>
    %c0_54 = arith.constant 0 : index
    %c2_55 = arith.constant 2 : index
    %c0_56 = arith.constant 0 : index
    %c0_57 = arith.constant 0 : index
    %54 = vector.load %arg1[%c0_54, %c2_55, %c0_56, %c0_57] : memref<1x4x13x150xbf16, #tpu.memory_space<vmem>>, vector<1x1x12x150xbf16>
    %55 = vector.shape_cast %54 : vector<1x1x12x150xbf16> to vector<12x150xbf16>
    %c0_58 = arith.constant 0 : index
    %c0_59 = arith.constant 0 : index
    %c0_60 = arith.constant 0 : index
    %56 = vector.load %arg2[%c0_58, %c0_59, %c0_60] : memref<3x150x768xbf16, #tpu.memory_space<vmem>>, vector<1x150x768xbf16>
    %57 = vector.shape_cast %56 : vector<1x150x768xbf16> to vector<150x768xbf16>
    %cst_61 = arith.constant dense<0.000000e+00> : vector<12x768xf32>
    %58 = tpu.matmul %55, %57, %cst_61 {dimension_numbers = #tpu.dot_dimension_numbers<[1], [0], [0], [1], [0, 0, 1, 1], [], []>} : vector<12x150xbf16>, vector<150x768xbf16>, vector<12x768xf32> -> vector<12x768xf32>
    %c0_62 = arith.constant 0 : index
    %c3_63 = arith.constant 3 : index
    %c0_64 = arith.constant 0 : index
    %c0_65 = arith.constant 0 : index
    %59 = vector.load %arg1[%c0_62, %c3_63, %c0_64, %c0_65] : memref<1x4x13x150xbf16, #tpu.memory_space<vmem>>, vector<1x1x12x150xbf16>
    %60 = vector.shape_cast %59 : vector<1x1x12x150xbf16> to vector<12x150xbf16>
    %c1_66 = arith.constant 1 : index
    %c0_67 = arith.constant 0 : index
    %c0_68 = arith.constant 0 : index
    %61 = vector.load %arg2[%c1_66, %c0_67, %c0_68] : memref<3x150x768xbf16, #tpu.memory_space<vmem>>, vector<1x150x768xbf16>
    %62 = vector.shape_cast %61 : vector<1x150x768xbf16> to vector<150x768xbf16>
    %cst_69 = arith.constant dense<0.000000e+00> : vector<12x768xf32>
    %63 = tpu.matmul %60, %62, %cst_69 {dimension_numbers = #tpu.dot_dimension_numbers<[1], [0], [0], [1], [0, 0, 1, 1], [], []>} : vector<12x150xbf16>, vector<150x768xbf16>, vector<12x768xf32> -> vector<12x768xf32>
    %64 = arith.addf %58, %63 : vector<12x768xf32>
    %c0_70 = arith.constant 0 : index
    %c0_71 = arith.constant 0 : index
    %c1_72 = arith.constant 1 : index
    %c0_73 = arith.constant 0 : index
    %65 = vector.load %arg1[%c0_70, %c0_71, %c1_72, %c0_73] : memref<1x4x13x150xbf16, #tpu.memory_space<vmem>>, vector<1x1x12x150xbf16>
    %66 = vector.shape_cast %65 : vector<1x1x12x150xbf16> to vector<12x150xbf16>
    %c2_74 = arith.constant 2 : index
    %c0_75 = arith.constant 0 : index
    %c0_76 = arith.constant 0 : index
    %67 = vector.load %arg2[%c2_74, %c0_75, %c0_76] : memref<3x150x768xbf16, #tpu.memory_space<vmem>>, vector<1x150x768xbf16>
    %68 = vector.shape_cast %67 : vector<1x150x768xbf16> to vector<150x768xbf16>
    %cst_77 = arith.constant dense<0.000000e+00> : vector<12x768xf32>
    %69 = tpu.matmul %66, %68, %cst_77 {dimension_numbers = #tpu.dot_dimension_numbers<[1], [0], [0], [1], [0, 0, 1, 1], [], []>} : vector<12x150xbf16>, vector<150x768xbf16>, vector<12x768xf32> -> vector<12x768xf32>
    %70 = arith.addf %64, %69 : vector<12x768xf32>
    %c0_78 = arith.constant 0 : index
    %c3_79 = arith.constant 3 : index
    %c0_80 = arith.constant 0 : index
    %c0_81 = arith.constant 0 : index
    %71 = vector.load %arg1[%c0_78, %c3_79, %c0_80, %c0_81] : memref<1x4x13x150xbf16, #tpu.memory_space<vmem>>, vector<1x1x12x150xbf16>
    %72 = vector.shape_cast %71 : vector<1x1x12x150xbf16> to vector<12x150xbf16>
    %c0_82 = arith.constant 0 : index
    %c0_83 = arith.constant 0 : index
    %c0_84 = arith.constant 0 : index
    %73 = vector.load %arg2[%c0_82, %c0_83, %c0_84] : memref<3x150x768xbf16, #tpu.memory_space<vmem>>, vector<1x150x768xbf16>
    %74 = vector.shape_cast %73 : vector<1x150x768xbf16> to vector<150x768xbf16>
    %cst_85 = arith.constant dense<0.000000e+00> : vector<12x768xf32>
    %75 = tpu.matmul %72, %74, %cst_85 {dimension_numbers = #tpu.dot_dimension_numbers<[1], [0], [0], [1], [0, 0, 1, 1], [], []>} : vector<12x150xbf16>, vector<150x768xbf16>, vector<12x768xf32> -> vector<12x768xf32>
    %c0_86 = arith.constant 0 : index
    %c0_87 = arith.constant 0 : index
    %c1_88 = arith.constant 1 : index
    %c0_89 = arith.constant 0 : index
    %76 = vector.load %arg1[%c0_86, %c0_87, %c1_88, %c0_89] : memref<1x4x13x150xbf16, #tpu.memory_space<vmem>>, vector<1x1x12x150xbf16>
    %77 = vector.shape_cast %76 : vector<1x1x12x150xbf16> to vector<12x150xbf16>
    %c1_90 = arith.constant 1 : index
    %c0_91 = arith.constant 0 : index
    %c0_92 = arith.constant 0 : index
    %78 = vector.load %arg2[%c1_90, %c0_91, %c0_92] : memref<3x150x768xbf16, #tpu.memory_space<vmem>>, vector<1x150x768xbf16>
    %79 = vector.shape_cast %78 : vector<1x150x768xbf16> to vector<150x768xbf16>
    %cst_93 = arith.constant dense<0.000000e+00> : vector<12x768xf32>
    %80 = tpu.matmul %77, %79, %cst_93 {dimension_numbers = #tpu.dot_dimension_numbers<[1], [0], [0], [1], [0, 0, 1, 1], [], []>} : vector<12x150xbf16>, vector<150x768xbf16>, vector<12x768xf32> -> vector<12x768xf32>
    %81 = arith.addf %75, %80 : vector<12x768xf32>
    %c0_94 = arith.constant 0 : index
    %c1_95 = arith.constant 1 : index
    %c1_96 = arith.constant 1 : index
    %c0_97 = arith.constant 0 : index
    %82 = vector.load %arg1[%c0_94, %c1_95, %c1_96, %c0_97] : memref<1x4x13x150xbf16, #tpu.memory_space<vmem>>, vector<1x1x12x150xbf16>
    %83 = vector.shape_cast %82 : vector<1x1x12x150xbf16> to vector<12x150xbf16>
    %c2_98 = arith.constant 2 : index
    %c0_99 = arith.constant 0 : index
    %c0_100 = arith.constant 0 : index
    %84 = vector.load %arg2[%c2_98, %c0_99, %c0_100] : memref<3x150x768xbf16, #tpu.memory_space<vmem>>, vector<1x150x768xbf16>
    %85 = vector.shape_cast %84 : vector<1x150x768xbf16> to vector<150x768xbf16>
    %cst_101 = arith.constant dense<0.000000e+00> : vector<12x768xf32>
    %86 = tpu.matmul %83, %85, %cst_101 {dimension_numbers = #tpu.dot_dimension_numbers<[1], [0], [0], [1], [0, 0, 1, 1], [], []>} : vector<12x150xbf16>, vector<150x768xbf16>, vector<12x768xf32> -> vector<12x768xf32>
    %87 = arith.addf %81, %86 : vector<12x768xf32>
    %88 = arith.maximumf %70, %87 : vector<12x768xf32>
    %89 = vector.extract_strided_slice %88 {offsets = [0, 0], sizes = [12, 384], strides = [1, 1]} : vector<12x768xf32> to vector<12x384xf32>
    %90 = vector.extract_strided_slice %88 {offsets = [0, 384], sizes = [12, 384], strides = [1, 1]} : vector<12x768xf32> to vector<12x384xf32>
    %91 = arith.maximumf %89, %90 : vector<12x384xf32>
    %c0_102 = arith.constant 0 : index
    %c0_103 = arith.constant 0 : index
    %92 = vector.load %arg3[%c0_102, %c0_103] : memref<1x384xf32, #tpu.memory_space<vmem>>, vector<1x384xf32>
    %93 = vector.broadcast %92 : vector<1x384xf32> to vector<12x384xf32>
    %94 = arith.addf %91, %93 : vector<12x384xf32>
    %cst_104 = arith.constant 0.000000e+00 : f32
    %95 = vector.broadcast %cst_104 : f32 to vector<12x384xf32>
    %96 = arith.maximumf %94, %95 : vector<12x384xf32>
    %c1_105 = arith.constant 1 : index
    %c0_106 = arith.constant 0 : index
    %c0_107 = arith.constant 0 : index
    %97 = vector.load %arg7[%c1_105, %c0_106, %c0_107] : memref<2x24x384xf32, #tpu.memory_space<vmem>>, vector<1x8x384xf32>
    %98 = vector.shape_cast %97 : vector<1x8x384xf32> to vector<8x384xf32>
    %99 = vector.shape_cast %0 : vector<8x384xf32> to vector<1x8x384xf32>
    tpu.vector_store %arg7[%c1_105, %c0_106, %c0_107], %99 {strides = array<i32>} : memref<2x24x384xf32, #tpu.memory_space<vmem>>, vector<1x8x384xf32>,
    %c1_108 = arith.constant 1 : index
    %c16_109 = arith.constant 16 : index
    %c0_110 = arith.constant 0 : index
    %100 = vector.load %arg7[%c1_108, %c16_109, %c0_110] : memref<2x24x384xf32, #tpu.memory_space<vmem>>, vector<1x8x384xf32>
    %101 = vector.shape_cast %100 : vector<1x8x384xf32> to vector<8x384xf32>
    %102 = vector.shape_cast %0 : vector<8x384xf32> to vector<1x8x384xf32>
    tpu.vector_store %arg7[%c1_108, %c16_109, %c0_110], %102 {strides = array<i32>} : memref<2x24x384xf32, #tpu.memory_space<vmem>>, vector<1x8x384xf32>,
    %c1_111 = arith.constant 1 : index
    %c8_112 = arith.constant 8 : index
    %c0_113 = arith.constant 0 : index
    %103 = vector.load %arg7[%c1_111, %c8_112, %c0_113] : memref<2x24x384xf32, #tpu.memory_space<vmem>>, vector<1x12x384xf32>
    %104 = vector.shape_cast %103 : vector<1x12x384xf32> to vector<12x384xf32>
    %105 = vector.shape_cast %96 : vector<12x384xf32> to vector<1x12x384xf32>
    tpu.vector_store %arg7[%c1_111, %c8_112, %c0_113], %105 {strides = array<i32>} : memref<2x24x384xf32, #tpu.memory_space<vmem>>, vector<1x12x384xf32>,
    %106 = arith.truncf %96 : vector<12x384xf32> to vector<12x384xbf16>
    %c1_114 = arith.constant 1 : index
    %c7 = arith.constant 7 : index
    %c0_115 = arith.constant 0 : index
    %107 = vector.load %arg7[%c1_114, %c7, %c0_115] : memref<2x24x384xf32, #tpu.memory_space<vmem>>, vector<1x12x384xf32>
    %108 = vector.shape_cast %107 : vector<1x12x384xf32> to vector<12x384xf32>
    %109 = arith.truncf %108 : vector<12x384xf32> to vector<12x384xbf16>
    %c0_116 = arith.constant 0 : index
    %c9 = arith.constant 9 : index
    %c0_117 = arith.constant 0 : index
    %110 = vector.load %arg7[%c0_116, %c9, %c0_117] : memref<2x24x384xf32, #tpu.memory_space<vmem>>, vector<1x12x384xf32>
    %111 = vector.shape_cast %110 : vector<1x12x384xf32> to vector<12x384xf32>
    %112 = arith.truncf %111 : vector<12x384xf32> to vector<12x384xbf16>
    %c0_118 = arith.constant 0 : index
    %c0_119 = arith.constant 0 : index
    %c0_120 = arith.constant 0 : index
    %113 = vector.load %arg4[%c0_118, %c0_119, %c0_120] : memref<3x384x768xbf16, #tpu.memory_space<vmem>>, vector<1x384x768xbf16>
    %114 = vector.shape_cast %113 : vector<1x384x768xbf16> to vector<384x768xbf16>
    %cst_121 = arith.constant dense<0.000000e+00> : vector<12x768xf32>
    %115 = tpu.matmul %109, %114, %cst_121 {dimension_numbers = #tpu.dot_dimension_numbers<[1], [0], [0], [1], [0, 0, 1, 1], [], []>} : vector<12x384xbf16>, vector<384x768xbf16>, vector<12x768xf32> -> vector<12x768xf32>
    %c1_122 = arith.constant 1 : index
    %c0_123 = arith.constant 0 : index
    %c0_124 = arith.constant 0 : index
    %116 = vector.load %arg4[%c1_122, %c0_123, %c0_124] : memref<3x384x768xbf16, #tpu.memory_space<vmem>>, vector<1x384x768xbf16>
    %117 = vector.shape_cast %116 : vector<1x384x768xbf16> to vector<384x768xbf16>
    %cst_125 = arith.constant dense<0.000000e+00> : vector<12x768xf32>
    %118 = tpu.matmul %53, %117, %cst_125 {dimension_numbers = #tpu.dot_dimension_numbers<[1], [0], [0], [1], [0, 0, 1, 1], [], []>} : vector<12x384xbf16>, vector<384x768xbf16>, vector<12x768xf32> -> vector<12x768xf32>
    %119 = arith.addf %115, %118 : vector<12x768xf32>
    %c2_126 = arith.constant 2 : index
    %c0_127 = arith.constant 0 : index
    %c0_128 = arith.constant 0 : index
    %120 = vector.load %arg4[%c2_126, %c0_127, %c0_128] : memref<3x384x768xbf16, #tpu.memory_space<vmem>>, vector<1x384x768xbf16>
    %121 = vector.shape_cast %120 : vector<1x384x768xbf16> to vector<384x768xbf16>
    %cst_129 = arith.constant dense<0.000000e+00> : vector<12x768xf32>
    %122 = tpu.matmul %106, %121, %cst_129 {dimension_numbers = #tpu.dot_dimension_numbers<[1], [0], [0], [1], [0, 0, 1, 1], [], []>} : vector<12x384xbf16>, vector<384x768xbf16>, vector<12x768xf32> -> vector<12x768xf32>
    %123 = arith.addf %119, %122 : vector<12x768xf32>
    %c0_130 = arith.constant 0 : index
    %c0_131 = arith.constant 0 : index
    %c0_132 = arith.constant 0 : index
    %124 = vector.load %arg4[%c0_130, %c0_131, %c0_132] : memref<3x384x768xbf16, #tpu.memory_space<vmem>>, vector<1x384x768xbf16>
    %125 = vector.shape_cast %124 : vector<1x384x768xbf16> to vector<384x768xbf16>
    %cst_133 = arith.constant dense<0.000000e+00> : vector<12x768xf32>
    %126 = tpu.matmul %53, %125, %cst_133 {dimension_numbers = #tpu.dot_dimension_numbers<[1], [0], [0], [1], [0, 0, 1, 1], [], []>} : vector<12x384xbf16>, vector<384x768xbf16>, vector<12x768xf32> -> vector<12x768xf32>
    %c1_134 = arith.constant 1 : index
    %c0_135 = arith.constant 0 : index
    %c0_136 = arith.constant 0 : index
    %127 = vector.load %arg4[%c1_134, %c0_135, %c0_136] : memref<3x384x768xbf16, #tpu.memory_space<vmem>>, vector<1x384x768xbf16>
    %128 = vector.shape_cast %127 : vector<1x384x768xbf16> to vector<384x768xbf16>
    %cst_137 = arith.constant dense<0.000000e+00> : vector<12x768xf32>
    %129 = tpu.matmul %106, %128, %cst_137 {dimension_numbers = #tpu.dot_dimension_numbers<[1], [0], [0], [1], [0, 0, 1, 1], [], []>} : vector<12x384xbf16>, vector<384x768xbf16>, vector<12x768xf32> -> vector<12x768xf32>
    %130 = arith.addf %126, %129 : vector<12x768xf32>
    %c2_138 = arith.constant 2 : index
    %c0_139 = arith.constant 0 : index
    %c0_140 = arith.constant 0 : index
    %131 = vector.load %arg4[%c2_138, %c0_139, %c0_140] : memref<3x384x768xbf16, #tpu.memory_space<vmem>>, vector<1x384x768xbf16>
    %132 = vector.shape_cast %131 : vector<1x384x768xbf16> to vector<384x768xbf16>
    %cst_141 = arith.constant dense<0.000000e+00> : vector<12x768xf32>
    %133 = tpu.matmul %112, %132, %cst_141 {dimension_numbers = #tpu.dot_dimension_numbers<[1], [0], [0], [1], [0, 0, 1, 1], [], []>} : vector<12x384xbf16>, vector<384x768xbf16>, vector<12x768xf32> -> vector<12x768xf32>
    %134 = arith.addf %130, %133 : vector<12x768xf32>
    %135 = arith.maximumf %123, %134 : vector<12x768xf32>
    %136 = vector.extract_strided_slice %135 {offsets = [0, 0], sizes = [12, 384], strides = [1, 1]} : vector<12x768xf32> to vector<12x384xf32>
    %137 = vector.extract_strided_slice %135 {offsets = [0, 384], sizes = [12, 384], strides = [1, 1]} : vector<12x768xf32> to vector<12x384xf32>
    %138 = arith.maximumf %136, %137 : vector<12x384xf32>
    %c0_142 = arith.constant 0 : index
    %c0_143 = arith.constant 0 : index
    %139 = vector.load %arg5[%c0_142, %c0_143] : memref<1x384xf32, #tpu.memory_space<vmem>>, vector<1x384xf32>
    %140 = vector.broadcast %139 : vector<1x384xf32> to vector<12x384xf32>
    %141 = arith.addf %138, %140 : vector<12x384xf32>
    %cst_144 = arith.constant 0.000000e+00 : f32
    %142 = vector.broadcast %cst_144 : f32 to vector<12x384xf32>
    %143 = arith.maximumf %141, %142 : vector<12x384xf32>
    %144 = arith.truncf %143 : vector<12x384xf32> to vector<12x384xbf16>
    %c0_145 = arith.constant 0 : index
    %c0_146 = arith.constant 0 : index
    %c0_147 = arith.constant 0 : index
    %145 = vector.load %arg6[%c0_145, %c0_146, %c0_147] : memref<1x12x384xbf16, #tpu.memory_space<vmem>>, vector<1x12x384xbf16>
    %146 = vector.shape_cast %145 : vector<1x12x384xbf16> to vector<12x384xbf16>
    %147 = vector.shape_cast %144 : vector<12x384xbf16> to vector<1x12x384xbf16>
    tpu.vector_store %arg6[%c0_145, %c0_146, %c0_147], %147 {strides = array<i32>} : memref<1x12x384xbf16, #tpu.memory_space<vmem>>, vector<1x12x384xbf16>,
    return
  }
  func.func @transform_0(%arg0: i32) -> (i32, i32, i32, i32) {
    %c0_i32 = arith.constant 0 : i32
    %c0_i32_0 = arith.constant 0 : i32
    %c0_i32_1 = arith.constant 0 : i32
    %c0_i32_2 = arith.constant 0 : i32
    return %arg0, %c0_i32, %c0_i32_0, %c0_i32_1 : i32, i32, i32, i32
  }
  func.func @transform_1(%arg0: i32) -> (i32, i32, i32) {
    %c0_i32 = arith.constant 0 : i32
    %c0_i32_0 = arith.constant 0 : i32
    %c0_i32_1 = arith.constant 0 : i32
    %c0_i32_2 = arith.constant 0 : i32
    return %c0_i32, %c0_i32_0, %c0_i32_1 : i32, i32, i32
  }
  func.func @transform_2(%arg0: i32) -> (i32, i32) {
    %c0_i32 = arith.constant 0 : i32
    %c0_i32_0 = arith.constant 0 : i32
    %c0_i32_1 = arith.constant 0 : i32
    return %c0_i32, %c0_i32_0 : i32, i32
  }
  func.func @transform_3(%arg0: i32) -> (i32, i32, i32) {
    %c0_i32 = arith.constant 0 : i32
    %c0_i32_0 = arith.constant 0 : i32
    %c0_i32_1 = arith.constant 0 : i32
    %c0_i32_2 = arith.constant 0 : i32
    return %c0_i32, %c0_i32_0, %c0_i32_1 : i32, i32, i32
  }
  func.func @transform_4(%arg0: i32) -> (i32, i32) {
    %c0_i32 = arith.constant 0 : i32
    %c0_i32_0 = arith.constant 0 : i32
    %c0_i32_1 = arith.constant 0 : i32
    return %c0_i32, %c0_i32_0 : i32, i32
  }
  func.func @transform_5(%arg0: i32) -> (i32, i32, i32) {
    %c0_i32 = arith.constant 0 : i32
    %c0_i32_0 = arith.constant 0 : i32
    %c0_i32_1 = arith.constant 0 : i32
    return %arg0, %c0_i32, %c0_i32_0 : i32, i32, i32
  }
}

module attributes {stable_mosaic.version = 11 : i64} {
  func.func @fc_fc_kernel(%arg0: i32, %arg1: memref<2x4608xbf16, #tpu.memory_space<vmem>>, %arg2: memref<4608x100xbf16, #tpu.memory_space<vmem>>, %arg3: memref<1x100xf32, #tpu.memory_space<vmem>>, %arg4: memref<100x50xbf16, #tpu.memory_space<vmem>>, %arg5: memref<1x50xf32, #tpu.memory_space<vmem>>, %arg6: memref<2x50xf32, #tpu.memory_space<vmem>>) attributes {dimension_semantics = [#tpu.dimension_semantics<arbitrary>], iteration_bounds = array<i64: 1>, scalar_prefetch = 0 : i64, scratch_operands = 0 : i64, tpu.core_type = #tpu.core_type<tc>, window_params = [{pipeline_mode = #tpu.pipeline_mode<synchronous>, transform_indices = @transform_0, window_bounds = array<i64: 2, 4608>}, {pipeline_mode = #tpu.pipeline_mode<synchronous>, transform_indices = @transform_1, window_bounds = array<i64: 4608, 100>}, {pipeline_mode = #tpu.pipeline_mode<synchronous>, transform_indices = @transform_2, window_bounds = array<i64: 1, 100>}, {pipeline_mode = #tpu.pipeline_mode<synchronous>, transform_indices = @transform_3, window_bounds = array<i64: 100, 50>}, {pipeline_mode = #tpu.pipeline_mode<synchronous>, transform_indices = @transform_4, window_bounds = array<i64: 1, 50>}, {pipeline_mode = #tpu.pipeline_mode<synchronous>, transform_indices = @transform_5, window_bounds = array<i64: 2, 50>}]} {
    %c0 = arith.constant 0 : index
    %c0_0 = arith.constant 0 : index
    %0 = vector.load %arg1[%c0, %c0_0] : memref<2x4608xbf16, #tpu.memory_space<vmem>>, vector<2x4608xbf16>
    %c0_1 = arith.constant 0 : index
    %c0_2 = arith.constant 0 : index
    %1 = vector.load %arg2[%c0_1, %c0_2] : memref<4608x100xbf16, #tpu.memory_space<vmem>>, vector<4608x100xbf16>
    %cst = arith.constant dense<0.000000e+00> : vector<2x100xf32>
    %2 = tpu.matmul %0, %1, %cst {dimension_numbers = #tpu.dot_dimension_numbers<[1], [0], [0], [1], [0, 0, 1, 1], [], []>} : vector<2x4608xbf16>, vector<4608x100xbf16>, vector<2x100xf32> -> vector<2x100xf32>
    %c0_3 = arith.constant 0 : index
    %c0_4 = arith.constant 0 : index
    %3 = vector.load %arg3[%c0_3, %c0_4] : memref<1x100xf32, #tpu.memory_space<vmem>>, vector<1x100xf32>
    %4 = vector.broadcast %3 : vector<1x100xf32> to vector<2x100xf32>
    %5 = arith.addf %2, %4 : vector<2x100xf32>
    %cst_5 = arith.constant 0.000000e+00 : f32
    %6 = vector.broadcast %cst_5 : f32 to vector<2x100xf32>
    %7 = arith.maximumf %5, %6 : vector<2x100xf32>
    %8 = arith.truncf %7 : vector<2x100xf32> to vector<2x100xbf16>
    %c0_6 = arith.constant 0 : index
    %c0_7 = arith.constant 0 : index
    %9 = vector.load %arg4[%c0_6, %c0_7] : memref<100x50xbf16, #tpu.memory_space<vmem>>, vector<100x50xbf16>
    %cst_8 = arith.constant dense<0.000000e+00> : vector<2x50xf32>
    %10 = tpu.matmul %8, %9, %cst_8 {dimension_numbers = #tpu.dot_dimension_numbers<[1], [0], [0], [1], [0, 0, 1, 1], [], []>} : vector<2x100xbf16>, vector<100x50xbf16>, vector<2x50xf32> -> vector<2x50xf32>
    %c0_9 = arith.constant 0 : index
    %c0_10 = arith.constant 0 : index
    %11 = vector.load %arg5[%c0_9, %c0_10] : memref<1x50xf32, #tpu.memory_space<vmem>>, vector<1x50xf32>
    %12 = vector.broadcast %11 : vector<1x50xf32> to vector<2x50xf32>
    %13 = arith.addf %10, %12 : vector<2x50xf32>
    %cst_11 = arith.constant 0.000000e+00 : f32
    %14 = vector.broadcast %cst_11 : f32 to vector<2x50xf32>
    %15 = arith.maximumf %13, %14 : vector<2x50xf32>
    %c0_12 = arith.constant 0 : index
    %c0_13 = arith.constant 0 : index
    %16 = vector.load %arg6[%c0_12, %c0_13] : memref<2x50xf32, #tpu.memory_space<vmem>>, vector<2x50xf32>
    tpu.vector_store %arg6[%c0_12, %c0_13], %15 {strides = array<i32>} : memref<2x50xf32, #tpu.memory_space<vmem>>, vector<2x50xf32>,
    return
  }
  func.func @transform_0(%arg0: i32) -> (i32, i32) {
    %c0_i32 = arith.constant 0 : i32
    %c0_i32_0 = arith.constant 0 : i32
    %c0_i32_1 = arith.constant 0 : i32
    return %c0_i32, %c0_i32_0 : i32, i32
  }
  func.func @transform_1(%arg0: i32) -> (i32, i32) {
    %c0_i32 = arith.constant 0 : i32
    %c0_i32_0 = arith.constant 0 : i32
    %c0_i32_1 = arith.constant 0 : i32
    return %c0_i32, %c0_i32_0 : i32, i32
  }
  func.func @transform_2(%arg0: i32) -> (i32, i32) {
    %c0_i32 = arith.constant 0 : i32
    %c0_i32_0 = arith.constant 0 : i32
    %c0_i32_1 = arith.constant 0 : i32
    return %c0_i32, %c0_i32_0 : i32, i32
  }
  func.func @transform_3(%arg0: i32) -> (i32, i32) {
    %c0_i32 = arith.constant 0 : i32
    %c0_i32_0 = arith.constant 0 : i32
    %c0_i32_1 = arith.constant 0 : i32
    return %c0_i32, %c0_i32_0 : i32, i32
  }
  func.func @transform_4(%arg0: i32) -> (i32, i32) {
    %c0_i32 = arith.constant 0 : i32
    %c0_i32_0 = arith.constant 0 : i32
    %c0_i32_1 = arith.constant 0 : i32
    return %c0_i32, %c0_i32_0 : i32, i32
  }
  func.func @transform_5(%arg0: i32) -> (i32, i32) {
    %c0_i32 = arith.constant 0 : i32
    %c0_i32_0 = arith.constant 0 : i32
    %c0_i32_1 = arith.constant 0 : i32
    return %c0_i32, %c0_i32_0 : i32, i32
  }
}

</mosaic_0001>

<llo_original>
// kernel: rbg_conv_forward.3
$region0: #{rbg_conv_forward.3}
  #allocation0 [shape = 'u32[]', space=smem, size = 0x4, offset = 0x4, fixed_abs, tag = 'smem constant byte address 0x4 - core index']
  #allocation1 [shape = 'u32[144,128]{1,0:T(1,128)}', space=vmem, size = 0x12000, scoped, tag = 'internal scratch']
  %s0 = inlined_call_operand.vmem [shape: bf16[2,4608], index: 0, kind: input, shape index: {}]
  %s1 = inlined_call_operand.vmem [shape: bf16[4608,100], index: 1, kind: input, shape index: {}]
  %s2 = inlined_call_operand.vmem [shape: f32[1,100], index: 2, kind: input, shape index: {}]
  %s3 = inlined_call_operand.vmem [shape: bf16[100,50], index: 3, kind: input, shape index: {}]
  %s4 = inlined_call_operand.vmem [shape: f32[1,50], index: 4, kind: input, shape index: {}]
  %s5 = inlined_call_operand.hbm [shape: f32[2,50], index: 5, kind: output, shape index: {}]
  %s6 = sld [smem:[#allocation0]]
  $region30: #{rbg_conv_forward.3} parent=0
    _
  %s8 = ssub.s32 1, %s6
  %s9 = scalar_select 0, %s8, %s6
  $region1: #{rbg_conv_forward.3} parent=0
    #allocation2 [shape = 'u8[1024]{0}', space=vmem, size = 0x400, scoped, tag = 'output window, operand 0, single buffered']
    #allocation3 [shape = 's32[1]{0}', space=sflag, size = 0x4, scoped, tag = 'scoped memory for rbg_conv_forward.3']
    %10 = vsyncpa [#allocation3], 0
    // Predicated region
    $region2: #{rbg_conv_forward.3} parent=1 // pred_check
      _
    $region3: #{rbg_conv_forward.3} parent=1 // pred_check_branch
      %12 = sbr.rel (0) target = $region5
    $region4: #{rbg_conv_forward.3} parent=1 // pred_region
      _
    $region5: #{rbg_conv_forward.3} parent=1 // pred_fallthru
      _
    // Predicated region
    $region6: #{rbg_conv_forward.3} parent=1 // pred_check
      _
    $region7: #{rbg_conv_forward.3} parent=1 // pred_check_branch
      %14 = sbr.rel (0) target = $region9
    $region8: #{rbg_conv_forward.3} parent=1 // pred_region
      _
    $region9: #{rbg_conv_forward.3} parent=1 // pred_fallthru
      _
    // Predicated region
    $region10: #{rbg_conv_forward.3} parent=1 // pred_check
      _
    $region11: #{rbg_conv_forward.3} parent=1 // pred_check_branch
      %16 = sbr.rel (0) target = $region13
    $region12: #{rbg_conv_forward.3} parent=1 // pred_region
      _
    $region13: #{rbg_conv_forward.3} parent=1 // pred_fallthru
      _
    // Predicated region
    $region14: #{rbg_conv_forward.3} parent=1 // pred_check
      _
    $region15: #{rbg_conv_forward.3} parent=1 // pred_check_branch
      %18 = sbr.rel (0) target = $region17
    $region16: #{rbg_conv_forward.3} parent=1 // pred_region
      _
    $region17: #{rbg_conv_forward.3} parent=1 // pred_fallthru
      _
    // Predicated region
    $region18: #{rbg_conv_forward.3} parent=1 // pred_check
      _
    $region19: #{rbg_conv_forward.3} parent=1 // pred_check_branch
      %20 = sbr.rel (0) target = $region21
    $region20: #{rbg_conv_forward.3} parent=1 // pred_region
      _
    $region21: #{rbg_conv_forward.3} parent=1 // pred_fallthru
      _
    %v22 = vld [vmem:[%s0] sm:$0xff]
    %v23 = vld [vmem:[%s0 + $0x8] sm:$0xff]
    %v24 = vld [vmem:[%s0 + $0x10] sm:$0xff]
    %v25 = vld [vmem:[%s0 + $0x18] sm:$0xff]
    %v26 = vld [vmem:[%s0 + $0x20] sm:$0xf]
    %v27 = vld [vmem:[%s1] sm:$0xf]
    %v28 = vld [vmem:[%s1 + $0x4] sm:$0xf]
    %v29 = vld [vmem:[%s1 + $0x8] sm:$0xf]
    %v30 = vld [vmem:[%s1 + $0xc] sm:$0xf]
    %v31 = vld [vmem:[%s1 + $0x10] sm:$0xf]
    %v32 = vld [vmem:[%s1 + $0x14] sm:$0xf]
    %v33 = vld [vmem:[%s1 + $0x18] sm:$0xf]
    %v34 = vld [vmem:[%s1 + $0x1c] sm:$0xf]
    %v35 = vld [vmem:[%s1 + $0x20] sm:$0xf]
    %v36 = vld [vmem:[%s1 + $0x24] sm:$0xf]
    %v37 = vld [vmem:[%s1 + $0x28] sm:$0xf]
    %v38 = vld [vmem:[%s1 + $0x2c] sm:$0xf]
    %v39 = vld [vmem:[%s1 + $0x30] sm:$0xf]
    %v40 = vld [vmem:[%s1 + $0x34] sm:$0xf]
    %v41 = vld [vmem:[%s1 + $0x38] sm:$0xf]
    %v42 = vld [vmem:[%s1 + $0x3c] sm:$0xf]
    %v43 = vld [vmem:[%s1 + $0x40] sm:$0xf]
    %v44 = vld [vmem:[%s1 + $0x44] sm:$0xf]
    %v45 = vld [vmem:[%s1 + $0x48] sm:$0xf]
    %v46 = vld [vmem:[%s1 + $0x4c] sm:$0xf]
    %v47 = vld [vmem:[%s1 + $0x50] sm:$0xf]
    %v48 = vld [vmem:[%s1 + $0x54] sm:$0xf]
    %v49 = vld [vmem:[%s1 + $0x58] sm:$0xf]
    %v50 = vld [vmem:[%s1 + $0x5c] sm:$0xf]
    %v51 = vld [vmem:[%s1 + $0x60] sm:$0xf]
    %v52 = vld [vmem:[%s1 + $0x64] sm:$0xf]
    %v53 = vld [vmem:[%s1 + $0x68] sm:$0xf]
    %v54 = vld [vmem:[%s1 + $0x6c] sm:$0xf]
    %v55 = vld [vmem:[%s1 + $0x70] sm:$0xf]
    %v56 = vld [vmem:[%s1 + $0x74] sm:$0xf]
    %v57 = vld [vmem:[%s1 + $0x78] sm:$0xf]
    %v58 = vld [vmem:[%s1 + $0x7c] sm:$0xf]
    %v59 = vld [vmem:[%s1 + $0x80] sm:$0xf]
    %v60 = vld [vmem:[%s1 + $0x84] sm:$0xf]
    %v61 = vld [vmem:[%s1 + $0x88] sm:$0xf]
    %v62 = vld [vmem:[%s1 + $0x8c] sm:$0xf]
    %v63 = vld [vmem:[%s1 + $0x90] sm:$0xf]
    %v64 = vld [vmem:[%s1 + $0x94] sm:$0xf]
    %v65 = vld [vmem:[%s1 + $0x98] sm:$0xf]
    %v66 = vld [vmem:[%s1 + $0x9c] sm:$0xf]
    %v67 = vld [vmem:[%s1 + $0xa0] sm:$0xf]
    %v68 = vld [vmem:[%s1 + $0xa4] sm:$0xf]
    %v69 = vld [vmem:[%s1 + $0xa8] sm:$0xf]
    %v70 = vld [vmem:[%s1 + $0xac] sm:$0xf]
    %v71 = vld [vmem:[%s1 + $0xb0] sm:$0xf]
    %v72 = vld [vmem:[%s1 + $0xb4] sm:$0xf]
    %v73 = vld [vmem:[%s1 + $0xb8] sm:$0xf]
    %v74 = vld [vmem:[%s1 + $0xbc] sm:$0xf]
    %v75 = vld [vmem:[%s1 + $0xc0] sm:$0xf]
    %v76 = vld [vmem:[%s1 + $0xc4] sm:$0xf]
    %v77 = vld [vmem:[%s1 + $0xc8] sm:$0xf]
    %v78 = vld [vmem:[%s1 + $0xcc] sm:$0xf]
    %v79 = vld [vmem:[%s1 + $0xd0] sm:$0xf]
    %v80 = vld [vmem:[%s1 + $0xd4] sm:$0xf]
    %v81 = vld [vmem:[%s1 + $0xd8] sm:$0xf]
    %v82 = vld [vmem:[%s1 + $0xdc] sm:$0xf]
    %v83 = vld [vmem:[%s1 + $0xe0] sm:$0xf]
    %v84 = vld [vmem:[%s1 + $0xe4] sm:$0xf]
    %v85 = vld [vmem:[%s1 + $0xe8] sm:$0xf]
    %v86 = vld [vmem:[%s1 + $0xec] sm:$0xf]
    %v87 = vld [vmem:[%s1 + $0xf0] sm:$0xf]
    %v88 = vld [vmem:[%s1 + $0xf4] sm:$0xf]
    %v89 = vld [vmem:[%s1 + $0xf8] sm:$0xf]
    %v90 = vld [vmem:[%s1 + $0xfc] sm:$0xf]
    %v91 = vld [vmem:[%s1 + $0x100] sm:$0xf]
    %v92 = vld [vmem:[%s1 + $0x104] sm:$0xf]
    %v93 = vld [vmem:[%s1 + $0x108] sm:$0xf]
    %v94 = vld [vmem:[%s1 + $0x10c] sm:$0xf]
    %v95 = vld [vmem:[%s1 + $0x110] sm:$0xf]
    %v96 = vld [vmem:[%s1 + $0x114] sm:$0xf]
    %v97 = vld [vmem:[%s1 + $0x118] sm:$0xf]
    %v98 = vld [vmem:[%s1 + $0x11c] sm:$0xf]
    %v99 = vld [vmem:[%s1 + $0x120] sm:$0xf]
    %v100 = vld [vmem:[%s1 + $0x124] sm:$0xf]
    %v101 = vld [vmem:[%s1 + $0x128] sm:$0xf]
    %v102 = vld [vmem:[%s1 + $0x12c] sm:$0xf]
    %v103 = vld [vmem:[%s1 + $0x130] sm:$0xf]
    %v104 = vld [vmem:[%s1 + $0x134] sm:$0xf]
    %v105 = vld [vmem:[%s1 + $0x138] sm:$0xf]
    %v106 = vld [vmem:[%s1 + $0x13c] sm:$0xf]
    %v107 = vld [vmem:[%s1 + $0x140] sm:$0xf]
    %v108 = vld [vmem:[%s1 + $0x144] sm:$0xf]
    %v109 = vld [vmem:[%s1 + $0x148] sm:$0xf]
    %v110 = vld [vmem:[%s1 + $0x14c] sm:$0xf]
    %v111 = vld [vmem:[%s1 + $0x150] sm:$0xf]
    %v112 = vld [vmem:[%s1 + $0x154] sm:$0xf]
    %v113 = vld [vmem:[%s1 + $0x158] sm:$0xf]
    %v114 = vld [vmem:[%s1 + $0x15c] sm:$0xf]
    %v115 = vld [vmem:[%s1 + $0x160] sm:$0xf]
    %v116 = vld [vmem:[%s1 + $0x164] sm:$0xf]
    %v117 = vld [vmem:[%s1 + $0x168] sm:$0xf]
    %v118 = vld [vmem:[%s1 + $0x16c] sm:$0xf]
    %v119 = vld [vmem:[%s1 + $0x170] sm:$0xf]
    %v120 = vld [vmem:[%s1 + $0x174] sm:$0xf]
    %v121 = vld [vmem:[%s1 + $0x178] sm:$0xf]
    %v122 = vld [vmem:[%s1 + $0x17c] sm:$0xf]
    %v123 = vld [vmem:[%s1 + $0x180] sm:$0xf]
    %v124 = vld [vmem:[%s1 + $0x184] sm:$0xf]
    %v125 = vld [vmem:[%s1 + $0x188] sm:$0xf]
    %v126 = vld [vmem:[%s1 + $0x18c] sm:$0xf]
    %v127 = vld [vmem:[%s1 + $0x190] sm:$0xf]
    %v128 = vld [vmem:[%s1 + $0x194] sm:$0xf]
    %v129 = vld [vmem:[%s1 + $0x198] sm:$0xf]
    %v130 = vld [vmem:[%s1 + $0x19c] sm:$0xf]
    %v131 = vld [vmem:[%s1 + $0x1a0] sm:$0xf]
    %v132 = vld [vmem:[%s1 + $0x1a4] sm:$0xf]
    %v133 = vld [vmem:[%s1 + $0x1a8] sm:$0xf]
    %v134 = vld [vmem:[%s1 + $0x1ac] sm:$0xf]
    %v135 = vld [vmem:[%s1 + $0x1b0] sm:$0xf]
    %v136 = vld [vmem:[%s1 + $0x1b4] sm:$0xf]
    %v137 = vld [vmem:[%s1 + $0x1b8] sm:$0xf]
    %v138 = vld [vmem:[%s1 + $0x1bc] sm:$0xf]
    %v139 = vld [vmem:[%s1 + $0x1c0] sm:$0xf]
    %v140 = vld [vmem:[%s1 + $0x1c4] sm:$0xf]
    %v141 = vld [vmem:[%s1 + $0x1c8] sm:$0xf]
    %v142 = vld [vmem:[%s1 + $0x1cc] sm:$0xf]
    %v143 = vld [vmem:[%s1 + $0x1d0] sm:$0xf]
    %v144 = vld [vmem:[%s1 + $0x1d4] sm:$0xf]
    %v145 = vld [vmem:[%s1 + $0x1d8] sm:$0xf]
    %v146 = vld [vmem:[%s1 + $0x1dc] sm:$0xf]
    %v147 = vld [vmem:[%s1 + $0x1e0] sm:$0xf]
    %v148 = vld [vmem:[%s1 + $0x1e4] sm:$0xf]
    %v149 = vld [vmem:[%s1 + $0x1e8] sm:$0xf]
    %v150 = vld [vmem:[%s1 + $0x1ec] sm:$0xf]
    %v151 = vld [vmem:[%s1 + $0x1f0] sm:$0xf]
    %v152 = vld [vmem:[%s1 + $0x1f4] sm:$0xf]
    %v153 = vld [vmem:[%s1 + $0x1f8] sm:$0xf]
    %v154 = vld [vmem:[%s1 + $0x1fc] sm:$0xf]
    %v155 = vld [vmem:[%s1 + $0x200] sm:$0xf]
    %v156 = vld [vmem:[%s1 + $0x204] sm:$0xf]
    %v157 = vld [vmem:[%s1 + $0x208] sm:$0xf]
    %v158 = vld [vmem:[%s1 + $0x20c] sm:$0xf]
    %v159 = vld [vmem:[%s1 + $0x210] sm:$0xf]
    %v160 = vld [vmem:[%s1 + $0x214] sm:$0xf]
    %v161 = vld [vmem:[%s1 + $0x218] sm:$0xf]
    %v162 = vld [vmem:[%s1 + $0x21c] sm:$0xf]
    %v163 = vld [vmem:[%s1 + $0x220] sm:$0xf]
    %v164 = vld [vmem:[%s1 + $0x224] sm:$0xf]
    %v165 = vld [vmem:[%s1 + $0x228] sm:$0xf]
    %v166 = vld [vmem:[%s1 + $0x22c] sm:$0xf]
    %v167 = vld [vmem:[%s1 + $0x230] sm:$0xf]
    %v168 = vld [vmem:[%s1 + $0x234] sm:$0xf]
    %v169 = vld [vmem:[%s1 + $0x238] sm:$0xf]
    %v170 = vld [vmem:[%s1 + $0x23c] sm:$0xf]
    %v171 = vld [vmem:[%s1 + $0x240] sm:$0xf]
    %v172 = vld [vmem:[%s1 + $0x244] sm:$0xf]
    %v173 = vld [vmem:[%s1 + $0x248] sm:$0xf]
    %v174 = vld [vmem:[%s1 + $0x24c] sm:$0xf]
    %v175 = vld [vmem:[%s1 + $0x250] sm:$0xf]
    %v176 = vld [vmem:[%s1 + $0x254] sm:$0xf]
    %v177 = vld [vmem:[%s1 + $0x258] sm:$0xf]
    %v178 = vld [vmem:[%s1 + $0x25c] sm:$0xf]
    %v179 = vld [vmem:[%s1 + $0x260] sm:$0xf]
    %v180 = vld [vmem:[%s1 + $0x264] sm:$0xf]
    %v181 = vld [vmem:[%s1 + $0x268] sm:$0xf]
    %v182 = vld [vmem:[%s1 + $0x26c] sm:$0xf]
    %v183 = vld [vmem:[%s1 + $0x270] sm:$0xf]
    %v184 = vld [vmem:[%s1 + $0x274] sm:$0xf]
    %v185 = vld [vmem:[%s1 + $0x278] sm:$0xf]
    %v186 = vld [vmem:[%s1 + $0x27c] sm:$0xf]
    %v187 = vld [vmem:[%s1 + $0x280] sm:$0xf]
    %v188 = vld [vmem:[%s1 + $0x284] sm:$0xf]
    %v189 = vld [vmem:[%s1 + $0x288] sm:$0xf]
    %v190 = vld [vmem:[%s1 + $0x28c] sm:$0xf]
    %v191 = vld [vmem:[%s1 + $0x290] sm:$0xf]
    %v192 = vld [vmem:[%s1 + $0x294] sm:$0xf]
    %v193 = vld [vmem:[%s1 + $0x298] sm:$0xf]
    %v194 = vld [vmem:[%s1 + $0x29c] sm:$0xf]
    %v195 = vld [vmem:[%s1 + $0x2a0] sm:$0xf]
    %v196 = vld [vmem:[%s1 + $0x2a4] sm:$0xf]
    %v197 = vld [vmem:[%s1 + $0x2a8] sm:$0xf]
    %v198 = vld [vmem:[%s1 + $0x2ac] sm:$0xf]
    %v199 = vld [vmem:[%s1 + $0x2b0] sm:$0xf]
    %v200 = vld [vmem:[%s1 + $0x2b4] sm:$0xf]
    %v201 = vld [vmem:[%s1 + $0x2b8] sm:$0xf]
    %v202 = vld [vmem:[%s1 + $0x2bc] sm:$0xf]
    %v203 = vld [vmem:[%s1 + $0x2c0] sm:$0xf]
    %v204 = vld [vmem:[%s1 + $0x2c4] sm:$0xf]
    %v205 = vld [vmem:[%s1 + $0x2c8] sm:$0xf]
    %v206 = vld [vmem:[%s1 + $0x2cc] sm:$0xf]
    %v207 = vld [vmem:[%s1 + $0x2d0] sm:$0xf]
    %v208 = vld [vmem:[%s1 + $0x2d4] sm:$0xf]
    %v209 = vld [vmem:[%s1 + $0x2d8] sm:$0xf]
    %v210 = vld [vmem:[%s1 + $0x2dc] sm:$0xf]
    %v211 = vld [vmem:[%s1 + $0x2e0] sm:$0xf]
    %v212 = vld [vmem:[%s1 + $0x2e4] sm:$0xf]
    %v213 = vld [vmem:[%s1 + $0x2e8] sm:$0xf]
    %v214 = vld [vmem:[%s1 + $0x2ec] sm:$0xf]
    %v215 = vld [vmem:[%s1 + $0x2f0] sm:$0xf]
    %v216 = vld [vmem:[%s1 + $0x2f4] sm:$0xf]
    %v217 = vld [vmem:[%s1 + $0x2f8] sm:$0xf]
    %v218 = vld [vmem:[%s1 + $0x2fc] sm:$0xf]
    %v219 = vld [vmem:[%s1 + $0x300] sm:$0xf]
    %v220 = vld [vmem:[%s1 + $0x304] sm:$0xf]
    %v221 = vld [vmem:[%s1 + $0x308] sm:$0xf]
    %v222 = vld [vmem:[%s1 + $0x30c] sm:$0xf]
    %v223 = vld [vmem:[%s1 + $0x310] sm:$0xf]
    %v224 = vld [vmem:[%s1 + $0x314] sm:$0xf]
    %v225 = vld [vmem:[%s1 + $0x318] sm:$0xf]
    %v226 = vld [vmem:[%s1 + $0x31c] sm:$0xf]
    %v227 = vld [vmem:[%s1 + $0x320] sm:$0xf]
    %v228 = vld [vmem:[%s1 + $0x324] sm:$0xf]
    %v229 = vld [vmem:[%s1 + $0x328] sm:$0xf]
    %v230 = vld [vmem:[%s1 + $0x32c] sm:$0xf]
    %v231 = vld [vmem:[%s1 + $0x330] sm:$0xf]
    %v232 = vld [vmem:[%s1 + $0x334] sm:$0xf]
    %v233 = vld [vmem:[%s1 + $0x338] sm:$0xf]
    %v234 = vld [vmem:[%s1 + $0x33c] sm:$0xf]
    %v235 = vld [vmem:[%s1 + $0x340] sm:$0xf]
    %v236 = vld [vmem:[%s1 + $0x344] sm:$0xf]
    %v237 = vld [vmem:[%s1 + $0x348] sm:$0xf]
    %v238 = vld [vmem:[%s1 + $0x34c] sm:$0xf]
    %v239 = vld [vmem:[%s1 + $0x350] sm:$0xf]
    %v240 = vld [vmem:[%s1 + $0x354] sm:$0xf]
    %v241 = vld [vmem:[%s1 + $0x358] sm:$0xf]
    %v242 = vld [vmem:[%s1 + $0x35c] sm:$0xf]
    %v243 = vld [vmem:[%s1 + $0x360] sm:$0xf]
    %v244 = vld [vmem:[%s1 + $0x364] sm:$0xf]
    %v245 = vld [vmem:[%s1 + $0x368] sm:$0xf]
    %v246 = vld [vmem:[%s1 + $0x36c] sm:$0xf]
    %v247 = vld [vmem:[%s1 + $0x370] sm:$0xf]
    %v248 = vld [vmem:[%s1 + $0x374] sm:$0xf]
    %v249 = vld [vmem:[%s1 + $0x378] sm:$0xf]
    %v250 = vld [vmem:[%s1 + $0x37c] sm:$0xf]
    %v251 = vld [vmem:[%s1 + $0x380] sm:$0xf]
    %v252 = vld [vmem:[%s1 + $0x384] sm:$0xf]
    %v253 = vld [vmem:[%s1 + $0x388] sm:$0xf]
    %v254 = vld [vmem:[%s1 + $0x38c] sm:$0xf]
    %v255 = vld [vmem:[%s1 + $0x390] sm:$0xf]
    %v256 = vld [vmem:[%s1 + $0x394] sm:$0xf]
    %v257 = vld [vmem:[%s1 + $0x398] sm:$0xf]
    %v258 = vld [vmem:[%s1 + $0x39c] sm:$0xf]
    %v259 = vld [vmem:[%s1 + $0x3a0] sm:$0xf]
    %v260 = vld [vmem:[%s1 + $0x3a4] sm:$0xf]
    %v261 = vld [vmem:[%s1 + $0x3a8] sm:$0xf]
    %v262 = vld [vmem:[%s1 + $0x3ac] sm:$0xf]
    %v263 = vld [vmem:[%s1 + $0x3b0] sm:$0xf]
    %v264 = vld [vmem:[%s1 + $0x3b4] sm:$0xf]
    %v265 = vld [vmem:[%s1 + $0x3b8] sm:$0xf]
    %v266 = vld [vmem:[%s1 + $0x3bc] sm:$0xf]
    %v267 = vld [vmem:[%s1 + $0x3c0] sm:$0xf]
    %v268 = vld [vmem:[%s1 + $0x3c4] sm:$0xf]
    %v269 = vld [vmem:[%s1 + $0x3c8] sm:$0xf]
    %v270 = vld [vmem:[%s1 + $0x3cc] sm:$0xf]
    %v271 = vld [vmem:[%s1 + $0x3d0] sm:$0xf]
    %v272 = vld [vmem:[%s1 + $0x3d4] sm:$0xf]
    %v273 = vld [vmem:[%s1 + $0x3d8] sm:$0xf]
    %v274 = vld [vmem:[%s1 + $0x3dc] sm:$0xf]
    %v275 = vld [vmem:[%s1 + $0x3e0] sm:$0xf]
    %v276 = vld [vmem:[%s1 + $0x3e4] sm:$0xf]
    %v277 = vld [vmem:[%s1 + $0x3e8] sm:$0xf]
    %v278 = vld [vmem:[%s1 + $0x3ec] sm:$0xf]
    %v279 = vld [vmem:[%s1 + $0x3f0] sm:$0xf]
    %v280 = vld [vmem:[%s1 + $0x3f4] sm:$0xf]
    %v281 = vld [vmem:[%s1 + $0x3f8] sm:$0xf]
    %v282 = vld [vmem:[%s1 + $0x3fc] sm:$0xf]
    %v283 = vld [vmem:[%s1 + $0x400] sm:$0xf]
    %v284 = vld [vmem:[%s1 + $0x404] sm:$0xf]
    %v285 = vld [vmem:[%s1 + $0x408] sm:$0xf]
    %v286 = vld [vmem:[%s1 + $0x40c] sm:$0xf]
    %v287 = vld [vmem:[%s1 + $0x410] sm:$0xf]
    %v288 = vld [vmem:[%s1 + $0x414] sm:$0xf]
    %v289 = vld [vmem:[%s1 + $0x418] sm:$0xf]
    %v290 = vld [vmem:[%s1 + $0x41c] sm:$0xf]
    %v291 = vld [vmem:[%s1 + $0x420] sm:$0xf]
    %v292 = vld [vmem:[%s1 + $0x424] sm:$0xf]
    %v293 = vld [vmem:[%s1 + $0x428] sm:$0xf]
    %v294 = vld [vmem:[%s1 + $0x42c] sm:$0xf]
    %v295 = vld [vmem:[%s1 + $0x430] sm:$0xf]
    %v296 = vld [vmem:[%s1 + $0x434] sm:$0xf]
    %v297 = vld [vmem:[%s1 + $0x438] sm:$0xf]
    %v298 = vld [vmem:[%s1 + $0x43c] sm:$0xf]
    %v299 = vld [vmem:[%s1 + $0x440] sm:$0xf]
    %v300 = vld [vmem:[%s1 + $0x444] sm:$0xf]
    %v301 = vld [vmem:[%s1 + $0x448] sm:$0xf]
    %v302 = vld [vmem:[%s1 + $0x44c] sm:$0xf]
    %v303 = vld [vmem:[%s1 + $0x450] sm:$0xf]
    %v304 = vld [vmem:[%s1 + $0x454] sm:$0xf]
    %v305 = vld [vmem:[%s1 + $0x458] sm:$0xf]
    %v306 = vld [vmem:[%s1 + $0x45c] sm:$0xf]
    %v307 = vld [vmem:[%s1 + $0x460] sm:$0xf]
    %v308 = vld [vmem:[%s1 + $0x464] sm:$0xf]
    %v309 = vld [vmem:[%s1 + $0x468] sm:$0xf]
    %v310 = vld [vmem:[%s1 + $0x46c] sm:$0xf]
    %v311 = vld [vmem:[%s1 + $0x470] sm:$0xf]
    %v312 = vld [vmem:[%s1 + $0x474] sm:$0xf]
    %v313 = vld [vmem:[%s1 + $0x478] sm:$0xf]
    %v314 = vld [vmem:[%s1 + $0x47c] sm:$0xf]
    %v315 = vld [vmem:[%s1 + $0x480] sm:$0xf]
    %v316 = vld [vmem:[%s1 + $0x484] sm:$0xf]
    %v317 = vld [vmem:[%s1 + $0x488] sm:$0xf]
    %v318 = vld [vmem:[%s1 + $0x48c] sm:$0xf]
    %v319 = vld [vmem:[%s1 + $0x490] sm:$0xf]
    %v320 = vld [vmem:[%s1 + $0x494] sm:$0xf]
    %v321 = vld [vmem:[%s1 + $0x498] sm:$0xf]
    %v322 = vld [vmem:[%s1 + $0x49c] sm:$0xf]
    %v323 = vld [vmem:[%s1 + $0x4a0] sm:$0xf]
    %v324 = vld [vmem:[%s1 + $0x4a4] sm:$0xf]
    %v325 = vld [vmem:[%s1 + $0x4a8] sm:$0xf]
    %v326 = vld [vmem:[%s1 + $0x4ac] sm:$0xf]
    %v327 = vld [vmem:[%s1 + $0x4b0] sm:$0xf]
    %v328 = vld [vmem:[%s1 + $0x4b4] sm:$0xf]
    %v329 = vld [vmem:[%s1 + $0x4b8] sm:$0xf]
    %v330 = vld [vmem:[%s1 + $0x4bc] sm:$0xf]
    %v331 = vld [vmem:[%s1 + $0x4c0] sm:$0xf]
    %v332 = vld [vmem:[%s1 + $0x4c4] sm:$0xf]
    %v333 = vld [vmem:[%s1 + $0x4c8] sm:$0xf]
    %v334 = vld [vmem:[%s1 + $0x4cc] sm:$0xf]
    %v335 = vld [vmem:[%s1 + $0x4d0] sm:$0xf]
    %v336 = vld [vmem:[%s1 + $0x4d4] sm:$0xf]
    %v337 = vld [vmem:[%s1 + $0x4d8] sm:$0xf]
    %v338 = vld [vmem:[%s1 + $0x4dc] sm:$0xf]
    %v339 = vld [vmem:[%s1 + $0x4e0] sm:$0xf]
    %v340 = vld [vmem:[%s1 + $0x4e4] sm:$0xf]
    %v341 = vld [vmem:[%s1 + $0x4e8] sm:$0xf]
    %v342 = vld [vmem:[%s1 + $0x4ec] sm:$0xf]
    %v343 = vld [vmem:[%s1 + $0x4f0] sm:$0xf]
    %v344 = vld [vmem:[%s1 + $0x4f4] sm:$0xf]
    %v345 = vld [vmem:[%s1 + $0x4f8] sm:$0xf]
    %v346 = vld [vmem:[%s1 + $0x4fc] sm:$0xf]
    %v347 = vld [vmem:[%s1 + $0x500] sm:$0xf]
    %v348 = vld [vmem:[%s1 + $0x504] sm:$0xf]
    %v349 = vld [vmem:[%s1 + $0x508] sm:$0xf]
    %v350 = vld [vmem:[%s1 + $0x50c] sm:$0xf]
    %v351 = vld [vmem:[%s1 + $0x510] sm:$0xf]
    %v352 = vld [vmem:[%s1 + $0x514] sm:$0xf]
    %v353 = vld [vmem:[%s1 + $0x518] sm:$0xf]
    %v354 = vld [vmem:[%s1 + $0x51c] sm:$0xf]
    %v355 = vld [vmem:[%s1 + $0x520] sm:$0xf]
    %v356 = vld [vmem:[%s1 + $0x524] sm:$0xf]
    %v357 = vld [vmem:[%s1 + $0x528] sm:$0xf]
    %v358 = vld [vmem:[%s1 + $0x52c] sm:$0xf]
    %v359 = vld [vmem:[%s1 + $0x530] sm:$0xf]
    %v360 = vld [vmem:[%s1 + $0x534] sm:$0xf]
    %v361 = vld [vmem:[%s1 + $0x538] sm:$0xf]
    %v362 = vld [vmem:[%s1 + $0x53c] sm:$0xf]
    %v363 = vld [vmem:[%s1 + $0x540] sm:$0xf]
    %v364 = vld [vmem:[%s1 + $0x544] sm:$0xf]
    %v365 = vld [vmem:[%s1 + $0x548] sm:$0xf]
    %v366 = vld [vmem:[%s1 + $0x54c] sm:$0xf]
    %v367 = vld [vmem:[%s1 + $0x550] sm:$0xf]
    %v368 = vld [vmem:[%s1 + $0x554] sm:$0xf]
    %v369 = vld [vmem:[%s1 + $0x558] sm:$0xf]
    %v370 = vld [vmem:[%s1 + $0x55c] sm:$0xf]
    %v371 = vld [vmem:[%s1 + $0x560] sm:$0xf]
    %v372 = vld [vmem:[%s1 + $0x564] sm:$0xf]
    %v373 = vld [vmem:[%s1 + $0x568] sm:$0xf]
    %v374 = vld [vmem:[%s1 + $0x56c] sm:$0xf]
    %v375 = vld [vmem:[%s1 + $0x570] sm:$0xf]
    %v376 = vld [vmem:[%s1 + $0x574] sm:$0xf]
    %v377 = vld [vmem:[%s1 + $0x578] sm:$0xf]
    %v378 = vld [vmem:[%s1 + $0x57c] sm:$0xf]
    %v379 = vld [vmem:[%s1 + $0x580] sm:$0xf]
    %v380 = vld [vmem:[%s1 + $0x584] sm:$0xf]
    %v381 = vld [vmem:[%s1 + $0x588] sm:$0xf]
    %v382 = vld [vmem:[%s1 + $0x58c] sm:$0xf]
    %v383 = vld [vmem:[%s1 + $0x590] sm:$0xf]
    %v384 = vld [vmem:[%s1 + $0x594] sm:$0xf]
    %v385 = vld [vmem:[%s1 + $0x598] sm:$0xf]
    %v386 = vld [vmem:[%s1 + $0x59c] sm:$0xf]
    %v387 = vld [vmem:[%s1 + $0x5a0] sm:$0xf]
    %v388 = vld [vmem:[%s1 + $0x5a4] sm:$0xf]
    %v389 = vld [vmem:[%s1 + $0x5a8] sm:$0xf]
    %v390 = vld [vmem:[%s1 + $0x5ac] sm:$0xf]
    %v391 = vld [vmem:[%s1 + $0x5b0] sm:$0xf]
    %v392 = vld [vmem:[%s1 + $0x5b4] sm:$0xf]
    %v393 = vld [vmem:[%s1 + $0x5b8] sm:$0xf]
    %v394 = vld [vmem:[%s1 + $0x5bc] sm:$0xf]
    %v395 = vld [vmem:[%s1 + $0x5c0] sm:$0xf]
    %v396 = vld [vmem:[%s1 + $0x5c4] sm:$0xf]
    %v397 = vld [vmem:[%s1 + $0x5c8] sm:$0xf]
    %v398 = vld [vmem:[%s1 + $0x5cc] sm:$0xf]
    %v399 = vld [vmem:[%s1 + $0x5d0] sm:$0xf]
    %v400 = vld [vmem:[%s1 + $0x5d4] sm:$0xf]
    %v401 = vld [vmem:[%s1 + $0x5d8] sm:$0xf]
    %v402 = vld [vmem:[%s1 + $0x5dc] sm:$0xf]
    %v403 = vld [vmem:[%s1 + $0x5e0] sm:$0xf]
    %v404 = vld [vmem:[%s1 + $0x5e4] sm:$0xf]
    %v405 = vld [vmem:[%s1 + $0x5e8] sm:$0xf]
    %v406 = vld [vmem:[%s1 + $0x5ec] sm:$0xf]
    %v407 = vld [vmem:[%s1 + $0x5f0] sm:$0xf]
    %v408 = vld [vmem:[%s1 + $0x5f4] sm:$0xf]
    %v409 = vld [vmem:[%s1 + $0x5f8] sm:$0xf]
    %v410 = vld [vmem:[%s1 + $0x5fc] sm:$0xf]
    %v411 = vld [vmem:[%s1 + $0x600] sm:$0xf]
    %v412 = vld [vmem:[%s1 + $0x604] sm:$0xf]
    %v413 = vld [vmem:[%s1 + $0x608] sm:$0xf]
    %v414 = vld [vmem:[%s1 + $0x60c] sm:$0xf]
    %v415 = vld [vmem:[%s1 + $0x610] sm:$0xf]
    %v416 = vld [vmem:[%s1 + $0x614] sm:$0xf]
    %v417 = vld [vmem:[%s1 + $0x618] sm:$0xf]
    %v418 = vld [vmem:[%s1 + $0x61c] sm:$0xf]
    %v419 = vld [vmem:[%s1 + $0x620] sm:$0xf]
    %v420 = vld [vmem:[%s1 + $0x624] sm:$0xf]
    %v421 = vld [vmem:[%s1 + $0x628] sm:$0xf]
    %v422 = vld [vmem:[%s1 + $0x62c] sm:$0xf]
    %v423 = vld [vmem:[%s1 + $0x630] sm:$0xf]
    %v424 = vld [vmem:[%s1 + $0x634] sm:$0xf]
    %v425 = vld [vmem:[%s1 + $0x638] sm:$0xf]
    %v426 = vld [vmem:[%s1 + $0x63c] sm:$0xf]
    %v427 = vld [vmem:[%s1 + $0x640] sm:$0xf]
    %v428 = vld [vmem:[%s1 + $0x644] sm:$0xf]
    %v429 = vld [vmem:[%s1 + $0x648] sm:$0xf]
    %v430 = vld [vmem:[%s1 + $0x64c] sm:$0xf]
    %v431 = vld [vmem:[%s1 + $0x650] sm:$0xf]
    %v432 = vld [vmem:[%s1 + $0x654] sm:$0xf]
    %v433 = vld [vmem:[%s1 + $0x658] sm:$0xf]
    %v434 = vld [vmem:[%s1 + $0x65c] sm:$0xf]
    %v435 = vld [vmem:[%s1 + $0x660] sm:$0xf]
    %v436 = vld [vmem:[%s1 + $0x664] sm:$0xf]
    %v437 = vld [vmem:[%s1 + $0x668] sm:$0xf]
    %v438 = vld [vmem:[%s1 + $0x66c] sm:$0xf]
    %v439 = vld [vmem:[%s1 + $0x670] sm:$0xf]
    %v440 = vld [vmem:[%s1 + $0x674] sm:$0xf]
    %v441 = vld [vmem:[%s1 + $0x678] sm:$0xf]
    %v442 = vld [vmem:[%s1 + $0x67c] sm:$0xf]
    %v443 = vld [vmem:[%s1 + $0x680] sm:$0xf]
    %v444 = vld [vmem:[%s1 + $0x684] sm:$0xf]
    %v445 = vld [vmem:[%s1 + $0x688] sm:$0xf]
    %v446 = vld [vmem:[%s1 + $0x68c] sm:$0xf]
    %v447 = vld [vmem:[%s1 + $0x690] sm:$0xf]
    %v448 = vld [vmem:[%s1 + $0x694] sm:$0xf]
    %v449 = vld [vmem:[%s1 + $0x698] sm:$0xf]
    %v450 = vld [vmem:[%s1 + $0x69c] sm:$0xf]
    %v451 = vld [vmem:[%s1 + $0x6a0] sm:$0xf]
    %v452 = vld [vmem:[%s1 + $0x6a4] sm:$0xf]
    %v453 = vld [vmem:[%s1 + $0x6a8] sm:$0xf]
    %v454 = vld [vmem:[%s1 + $0x6ac] sm:$0xf]
    %v455 = vld [vmem:[%s1 + $0x6b0] sm:$0xf]
    %v456 = vld [vmem:[%s1 + $0x6b4] sm:$0xf]
    %v457 = vld [vmem:[%s1 + $0x6b8] sm:$0xf]
    %v458 = vld [vmem:[%s1 + $0x6bc] sm:$0xf]
    %v459 = vld [vmem:[%s1 + $0x6c0] sm:$0xf]
    %v460 = vld [vmem:[%s1 + $0x6c4] sm:$0xf]
    %v461 = vld [vmem:[%s1 + $0x6c8] sm:$0xf]
    %v462 = vld [vmem:[%s1 + $0x6cc] sm:$0xf]
    %v463 = vld [vmem:[%s1 + $0x6d0] sm:$0xf]
    %v464 = vld [vmem:[%s1 + $0x6d4] sm:$0xf]
    %v465 = vld [vmem:[%s1 + $0x6d8] sm:$0xf]
    %v466 = vld [vmem:[%s1 + $0x6dc] sm:$0xf]
    %v467 = vld [vmem:[%s1 + $0x6e0] sm:$0xf]
    %v468 = vld [vmem:[%s1 + $0x6e4] sm:$0xf]
    %v469 = vld [vmem:[%s1 + $0x6e8] sm:$0xf]
    %v470 = vld [vmem:[%s1 + $0x6ec] sm:$0xf]
    %v471 = vld [vmem:[%s1 + $0x6f0] sm:$0xf]
    %v472 = vld [vmem:[%s1 + $0x6f4] sm:$0xf]
    %v473 = vld [vmem:[%s1 + $0x6f8] sm:$0xf]
    %v474 = vld [vmem:[%s1 + $0x6fc] sm:$0xf]
    %v475 = vld [vmem:[%s1 + $0x700] sm:$0xf]
    %v476 = vld [vmem:[%s1 + $0x704] sm:$0xf]
    %v477 = vld [vmem:[%s1 + $0x708] sm:$0xf]
    %v478 = vld [vmem:[%s1 + $0x70c] sm:$0xf]
    %v479 = vld [vmem:[%s1 + $0x710] sm:$0xf]
    %v480 = vld [vmem:[%s1 + $0x714] sm:$0xf]
    %v481 = vld [vmem:[%s1 + $0x718] sm:$0xf]
    %v482 = vld [vmem:[%s1 + $0x71c] sm:$0xf]
    %v483 = vld [vmem:[%s1 + $0x720] sm:$0xf]
    %v484 = vld [vmem:[%s1 + $0x724] sm:$0xf]
    %v485 = vld [vmem:[%s1 + $0x728] sm:$0xf]
    %v486 = vld [vmem:[%s1 + $0x72c] sm:$0xf]
    %v487 = vld [vmem:[%s1 + $0x730] sm:$0xf]
    %v488 = vld [vmem:[%s1 + $0x734] sm:$0xf]
    %v489 = vld [vmem:[%s1 + $0x738] sm:$0xf]
    %v490 = vld [vmem:[%s1 + $0x73c] sm:$0xf]
    %v491 = vld [vmem:[%s1 + $0x740] sm:$0xf]
    %v492 = vld [vmem:[%s1 + $0x744] sm:$0xf]
    %v493 = vld [vmem:[%s1 + $0x748] sm:$0xf]
    %v494 = vld [vmem:[%s1 + $0x74c] sm:$0xf]
    %v495 = vld [vmem:[%s1 + $0x750] sm:$0xf]
    %v496 = vld [vmem:[%s1 + $0x754] sm:$0xf]
    %v497 = vld [vmem:[%s1 + $0x758] sm:$0xf]
    %v498 = vld [vmem:[%s1 + $0x75c] sm:$0xf]
    %v499 = vld [vmem:[%s1 + $0x760] sm:$0xf]
    %v500 = vld [vmem:[%s1 + $0x764] sm:$0xf]
    %v501 = vld [vmem:[%s1 + $0x768] sm:$0xf]
    %v502 = vld [vmem:[%s1 + $0x76c] sm:$0xf]
    %v503 = vld [vmem:[%s1 + $0x770] sm:$0xf]
    %v504 = vld [vmem:[%s1 + $0x774] sm:$0xf]
    %v505 = vld [vmem:[%s1 + $0x778] sm:$0xf]
    %v506 = vld [vmem:[%s1 + $0x77c] sm:$0xf]
    %v507 = vld [vmem:[%s1 + $0x780] sm:$0xf]
    %v508 = vld [vmem:[%s1 + $0x784] sm:$0xf]
    %v509 = vld [vmem:[%s1 + $0x788] sm:$0xf]
    %v510 = vld [vmem:[%s1 + $0x78c] sm:$0xf]
    %v511 = vld [vmem:[%s1 + $0x790] sm:$0xf]
    %v512 = vld [vmem:[%s1 + $0x794] sm:$0xf]
    %v513 = vld [vmem:[%s1 + $0x798] sm:$0xf]
    %v514 = vld [vmem:[%s1 + $0x79c] sm:$0xf]
    %v515 = vld [vmem:[%s1 + $0x7a0] sm:$0xf]
    %v516 = vld [vmem:[%s1 + $0x7a4] sm:$0xf]
    %v517 = vld [vmem:[%s1 + $0x7a8] sm:$0xf]
    %v518 = vld [vmem:[%s1 + $0x7ac] sm:$0xf]
    %v519 = vld [vmem:[%s1 + $0x7b0] sm:$0xf]
    %v520 = vld [vmem:[%s1 + $0x7b4] sm:$0xf]
    %v521 = vld [vmem:[%s1 + $0x7b8] sm:$0xf]
    %v522 = vld [vmem:[%s1 + $0x7bc] sm:$0xf]
    %v523 = vld [vmem:[%s1 + $0x7c0] sm:$0xf]
    %v524 = vld [vmem:[%s1 + $0x7c4] sm:$0xf]
    %v525 = vld [vmem:[%s1 + $0x7c8] sm:$0xf]
    %v526 = vld [vmem:[%s1 + $0x7cc] sm:$0xf]
    %v527 = vld [vmem:[%s1 + $0x7d0] sm:$0xf]
    %v528 = vld [vmem:[%s1 + $0x7d4] sm:$0xf]
    %v529 = vld [vmem:[%s1 + $0x7d8] sm:$0xf]
    %v530 = vld [vmem:[%s1 + $0x7dc] sm:$0xf]
    %v531 = vld [vmem:[%s1 + $0x7e0] sm:$0xf]
    %v532 = vld [vmem:[%s1 + $0x7e4] sm:$0xf]
    %v533 = vld [vmem:[%s1 + $0x7e8] sm:$0xf]
    %v534 = vld [vmem:[%s1 + $0x7ec] sm:$0xf]
    %v535 = vld [vmem:[%s1 + $0x7f0] sm:$0xf]
    %v536 = vld [vmem:[%s1 + $0x7f4] sm:$0xf]
    %v537 = vld [vmem:[%s1 + $0x7f8] sm:$0xf]
    %v538 = vld [vmem:[%s1 + $0x7fc] sm:$0xf]
    %v539 = vld [vmem:[%s1 + $0x800] sm:$0xf]
    %v540 = vld [vmem:[%s1 + $0x804] sm:$0xf]
    %v541 = vld [vmem:[%s1 + $0x808] sm:$0xf]
    %v542 = vld [vmem:[%s1 + $0x80c] sm:$0xf]
    %v543 = vld [vmem:[%s1 + $0x810] sm:$0xf]
    %v544 = vld [vmem:[%s1 + $0x814] sm:$0xf]
    %v545 = vld [vmem:[%s1 + $0x818] sm:$0xf]
    %v546 = vld [vmem:[%s1 + $0x81c] sm:$0xf]
    %v547 = vld [vmem:[%s1 + $0x820] sm:$0xf]
    %v548 = vld [vmem:[%s1 + $0x824] sm:$0xf]
    %v549 = vld [vmem:[%s1 + $0x828] sm:$0xf]
    %v550 = vld [vmem:[%s1 + $0x82c] sm:$0xf]
    %v551 = vld [vmem:[%s1 + $0x830] sm:$0xf]
    %v552 = vld [vmem:[%s1 + $0x834] sm:$0xf]
    %v553 = vld [vmem:[%s1 + $0x838] sm:$0xf]
    %v554 = vld [vmem:[%s1 + $0x83c] sm:$0xf]
    %v555 = vld [vmem:[%s1 + $0x840] sm:$0xf]
    %v556 = vld [vmem:[%s1 + $0x844] sm:$0xf]
    %v557 = vld [vmem:[%s1 + $0x848] sm:$0xf]
    %v558 = vld [vmem:[%s1 + $0x84c] sm:$0xf]
    %v559 = vld [vmem:[%s1 + $0x850] sm:$0xf]
    %v560 = vld [vmem:[%s1 + $0x854] sm:$0xf]
    %v561 = vld [vmem:[%s1 + $0x858] sm:$0xf]
    %v562 = vld [vmem:[%s1 + $0x85c] sm:$0xf]
    %v563 = vld [vmem:[%s1 + $0x860] sm:$0xf]
    %v564 = vld [vmem:[%s1 + $0x864] sm:$0xf]
    %v565 = vld [vmem:[%s1 + $0x868] sm:$0xf]
    %v566 = vld [vmem:[%s1 + $0x86c] sm:$0xf]
    %v567 = vld [vmem:[%s1 + $0x870] sm:$0xf]
    %v568 = vld [vmem:[%s1 + $0x874] sm:$0xf]
    %v569 = vld [vmem:[%s1 + $0x878] sm:$0xf]
    %v570 = vld [vmem:[%s1 + $0x87c] sm:$0xf]
    %v571 = vld [vmem:[%s1 + $0x880] sm:$0xf]
    %v572 = vld [vmem:[%s1 + $0x884] sm:$0xf]
    %v573 = vld [vmem:[%s1 + $0x888] sm:$0xf]
    %v574 = vld [vmem:[%s1 + $0x88c] sm:$0xf]
    %v575 = vld [vmem:[%s1 + $0x890] sm:$0xf]
    %v576 = vld [vmem:[%s1 + $0x894] sm:$0xf]
    %v577 = vld [vmem:[%s1 + $0x898] sm:$0xf]
    %v578 = vld [vmem:[%s1 + $0x89c] sm:$0xf]
    %v579 = vld [vmem:[%s1 + $0x8a0] sm:$0xf]
    %v580 = vld [vmem:[%s1 + $0x8a4] sm:$0xf]
    %v581 = vld [vmem:[%s1 + $0x8a8] sm:$0xf]
    %v582 = vld [vmem:[%s1 + $0x8ac] sm:$0xf]
    %v583 = vld [vmem:[%s1 + $0x8b0] sm:$0xf]
    %v584 = vld [vmem:[%s1 + $0x8b4] sm:$0xf]
    %v585 = vld [vmem:[%s1 + $0x8b8] sm:$0xf]
    %v586 = vld [vmem:[%s1 + $0x8bc] sm:$0xf]
    %v587 = vld [vmem:[%s1 + $0x8c0] sm:$0xf]
    %v588 = vld [vmem:[%s1 + $0x8c4] sm:$0xf]
    %v589 = vld [vmem:[%s1 + $0x8c8] sm:$0xf]
    %v590 = vld [vmem:[%s1 + $0x8cc] sm:$0xf]
    %v591 = vld [vmem:[%s1 + $0x8d0] sm:$0xf]
    %v592 = vld [vmem:[%s1 + $0x8d4] sm:$0xf]
    %v593 = vld [vmem:[%s1 + $0x8d8] sm:$0xf]
    %v594 = vld [vmem:[%s1 + $0x8dc] sm:$0xf]
    %v595 = vld [vmem:[%s1 + $0x8e0] sm:$0xf]
    %v596 = vld [vmem:[%s1 + $0x8e4] sm:$0xf]
    %v597 = vld [vmem:[%s1 + $0x8e8] sm:$0xf]
    %v598 = vld [vmem:[%s1 + $0x8ec] sm:$0xf]
    %v599 = vld [vmem:[%s1 + $0x8f0] sm:$0xf]
    %v600 = vld [vmem:[%s1 + $0x8f4] sm:$0xf]
    %v601 = vld [vmem:[%s1 + $0x8f8] sm:$0xf]
    %v602 = vld [vmem:[%s1 + $0x8fc] sm:$0xf]
    %v603 = vld [vmem:[%s2] sm:$0x1]
    %v605 = vlaneseq
    %v606 = vshrl.u32 %v605, 7
    %v607 = vsub.s32 0, %v606
    %v608 = vrot.slane %v603, %v607
    %v615 = vcombine.high %v22, %v22
    %v617 = vunpack.c.l.s4 1966171168
    %v618 = vunpack.c.0.s8 %v617
    %v619 = vlaneseq
    %v620 = vshrl.u32 %v619, 7
    %v621 = vsub.s32 %v618, %v620
    %v622 = vrot.slane %v22, %v621
    %v624 = vunpack.c.l.s4 1966171168
    %v625 = vunpack.c.0.s8 %v624
    %v626 = vlaneseq
    %v627 = vshrl.u32 %v626, 7
    %v628 = vsub.s32 %v625, %v627
    %v629 = vrot.slane %v615, %v628
    %v630 = vcombine.high %v622, %v622
    %v631 = vcombine.high %v629, %v629
    %v633 = vunpack.c.l.s4 1966171168
    %v634 = vunpack.c.0.s8 %v633
    %v635 = vlaneseq
    %v636 = vshrl.u32 %v635, 7
    %v637 = vsub.s32 %v634, %v636
    %v638 = vrot.slane %v622, %v637
    %v640 = vunpack.c.l.s4 1966171168
    %v641 = vunpack.c.0.s8 %v640
    %v642 = vlaneseq
    %v643 = vshrl.u32 %v642, 7
    %v644 = vsub.s32 %v641, %v643
    %v645 = vrot.slane %v629, %v644
    %v647 = vunpack.c.l.s4 1966171168
    %v648 = vunpack.c.0.s8 %v647
    %v649 = vlaneseq
    %v650 = vshrl.u32 %v649, 7
    %v651 = vsub.s32 %v648, %v650
    %v652 = vrot.slane %v630, %v651
    %v654 = vunpack.c.l.s4 1966171168
    %v655 = vunpack.c.0.s8 %v654
    %v656 = vlaneseq
    %v657 = vshrl.u32 %v656, 7
    %v658 = vsub.s32 %v655, %v657
    %v659 = vrot.slane %v631, %v658
    %v660 = vcombine.high %v638, %v638
    %v661 = vcombine.high %v645, %v645
    %v662 = vcombine.high %v652, %v652
    %v663 = vcombine.high %v659, %v659
    %v664 = vcombine.high %v23, %v23
    %v666 = vunpack.c.l.s4 1966171168
    %v667 = vunpack.c.0.s8 %v666
    %v668 = vlaneseq
    %v669 = vshrl.u32 %v668, 7
    %v670 = vsub.s32 %v667, %v669
    %v671 = vrot.slane %v23, %v670
    %v673 = vunpack.c.l.s4 1966171168
    %v674 = vunpack.c.0.s8 %v673
    %v675 = vlaneseq
    %v676 = vshrl.u32 %v675, 7
    %v677 = vsub.s32 %v674, %v676
    %v678 = vrot.slane %v664, %v677
    %v679 = vcombine.high %v671, %v671
    %v680 = vcombine.high %v678, %v678
    %v682 = vunpack.c.l.s4 1966171168
    %v683 = vunpack.c.0.s8 %v682
    %v684 = vlaneseq
    %v685 = vshrl.u32 %v684, 7
    %v686 = vsub.s32 %v683, %v685
    %v687 = vrot.slane %v671, %v686
    %v689 = vunpack.c.l.s4 1966171168
    %v690 = vunpack.c.0.s8 %v689
    %v691 = vlaneseq
    %v692 = vshrl.u32 %v691, 7
    %v693 = vsub.s32 %v690, %v692
    %v694 = vrot.slane %v678, %v693
    %v696 = vunpack.c.l.s4 1966171168
    %v697 = vunpack.c.0.s8 %v696
    %v698 = vlaneseq
    %v699 = vshrl.u32 %v698, 7
    %v700 = vsub.s32 %v697, %v699
    %v701 = vrot.slane %v679, %v700
    %v703 = vunpack.c.l.s4 1966171168
    %v704 = vunpack.c.0.s8 %v703
    %v705 = vlaneseq
    %v706 = vshrl.u32 %v705, 7
    %v707 = vsub.s32 %v704, %v706
    %v708 = vrot.slane %v680, %v707
    %v709 = vcombine.high %v687, %v687
    %v710 = vcombine.high %v694, %v694
    %v711 = vcombine.high %v701, %v701
    %v712 = vcombine.high %v708, %v708
    %v713 = vcombine.high %v24, %v24
    %v715 = vunpack.c.l.s4 1966171168
    %v716 = vunpack.c.0.s8 %v715
    %v717 = vlaneseq
    %v718 = vshrl.u32 %v717, 7
    %v719 = vsub.s32 %v716, %v718
    %v720 = vrot.slane %v24, %v719
    %v722 = vunpack.c.l.s4 1966171168
    %v723 = vunpack.c.0.s8 %v722
    %v724 = vlaneseq
    %v725 = vshrl.u32 %v724, 7
    %v726 = vsub.s32 %v723, %v725
    %v727 = vrot.slane %v713, %v726
    %v728 = vcombine.high %v720, %v720
    %v729 = vcombine.high %v727, %v727
    %v731 = vunpack.c.l.s4 1966171168
    %v732 = vunpack.c.0.s8 %v731
    %v733 = vlaneseq
    %v734 = vshrl.u32 %v733, 7
    %v735 = vsub.s32 %v732, %v734
    %v736 = vrot.slane %v720, %v735
    %v738 = vunpack.c.l.s4 1966171168
    %v739 = vunpack.c.0.s8 %v738
    %v740 = vlaneseq
    %v741 = vshrl.u32 %v740, 7
    %v742 = vsub.s32 %v739, %v741
    %v743 = vrot.slane %v727, %v742
    %v745 = vunpack.c.l.s4 1966171168
    %v746 = vunpack.c.0.s8 %v745
    %v747 = vlaneseq
    %v748 = vshrl.u32 %v747, 7
    %v749 = vsub.s32 %v746, %v748
    %v750 = vrot.slane %v728, %v749
    %v752 = vunpack.c.l.s4 1966171168
    %v753 = vunpack.c.0.s8 %v752
    %v754 = vlaneseq
    %v755 = vshrl.u32 %v754, 7
    %v756 = vsub.s32 %v753, %v755
    %v757 = vrot.slane %v729, %v756
    %v758 = vcombine.high %v736, %v736
    %v759 = vcombine.high %v743, %v743
    %v760 = vcombine.high %v750, %v750
    %v761 = vcombine.high %v757, %v757
    %v762 = vcombine.high %v25, %v25
    %v764 = vunpack.c.l.s4 1966171168
    %v765 = vunpack.c.0.s8 %v764
    %v766 = vlaneseq
    %v767 = vshrl.u32 %v766, 7
    %v768 = vsub.s32 %v765, %v767
    %v769 = vrot.slane %v25, %v768
    %v771 = vunpack.c.l.s4 1966171168
    %v772 = vunpack.c.0.s8 %v771
    %v773 = vlaneseq
    %v774 = vshrl.u32 %v773, 7
    %v775 = vsub.s32 %v772, %v774
    %v776 = vrot.slane %v762, %v775
    %v777 = vcombine.high %v769, %v769
    %v778 = vcombine.high %v776, %v776
    %v780 = vunpack.c.l.s4 1966171168
    %v781 = vunpack.c.0.s8 %v780
    %v782 = vlaneseq
    %v783 = vshrl.u32 %v782, 7
    %v784 = vsub.s32 %v781, %v783
    %v785 = vrot.slane %v769, %v784
    %v787 = vunpack.c.l.s4 1966171168
    %v788 = vunpack.c.0.s8 %v787
    %v789 = vlaneseq
    %v790 = vshrl.u32 %v789, 7
    %v791 = vsub.s32 %v788, %v790
    %v792 = vrot.slane %v776, %v791
    %v794 = vunpack.c.l.s4 1966171168
    %v795 = vunpack.c.0.s8 %v794
    %v796 = vlaneseq
    %v797 = vshrl.u32 %v796, 7
    %v798 = vsub.s32 %v795, %v797
    %v799 = vrot.slane %v777, %v798
    %v801 = vunpack.c.l.s4 1966171168
    %v802 = vunpack.c.0.s8 %v801
    %v803 = vlaneseq
    %v804 = vshrl.u32 %v803, 7
    %v805 = vsub.s32 %v802, %v804
    %v806 = vrot.slane %v778, %v805
    %v807 = vcombine.high %v785, %v785
    %v808 = vcombine.high %v792, %v792
    %v809 = vcombine.high %v799, %v799
    %v810 = vcombine.high %v806, %v806
    %v812 = vunpack.c.l.s4 1966171168
    %v813 = vunpack.c.0.s8 %v812
    %v814 = vlaneseq
    %v815 = vshrl.u32 %v814, 7
    %v816 = vsub.s32 %v813, %v815
    %v817 = vrot.slane %v26, %v816
    %v818 = vcombine.high %v817, %v817
    %v820 = vunpack.c.l.s4 1966171168
    %v821 = vunpack.c.0.s8 %v820
    %v822 = vlaneseq
    %v823 = vshrl.u32 %v822, 7
    %v824 = vsub.s32 %v821, %v823
    %v825 = vrot.slane %v817, %v824
    %v827 = vunpack.c.l.s4 1966171168
    %v828 = vunpack.c.0.s8 %v827
    %v829 = vlaneseq
    %v830 = vshrl.u32 %v829, 7
    %v831 = vsub.s32 %v828, %v830
    %v832 = vrot.slane %v818, %v831
    %v833 = vcombine.high %v825, %v825
    %v834 = vcombine.high %v832, %v832
    %v1447 = vunpack.c.l.b16 %v27
    %v1448 = vunpack.c.l.b16 %v28
    %v1449 = vunpack.c.l.b16 %v29
    %v1450 = vunpack.c.l.b16 %v30
    %v1451 = vunpack.c.l.b16 %v31
    %v1452 = vunpack.c.l.b16 %v32
    %v1453 = vunpack.c.l.b16 %v33
    %v1454 = vunpack.c.l.b16 %v34
    %v1455 = vunpack.c.l.b16 %v35
    %v1456 = vunpack.c.l.b16 %v36
    %v1457 = vunpack.c.l.b16 %v37
    %v1458 = vunpack.c.l.b16 %v38
    %v1459 = vunpack.c.l.b16 %v39
    %v1460 = vunpack.c.l.b16 %v40
    %v1461 = vunpack.c.l.b16 %v41
    %v1462 = vunpack.c.l.b16 %v42
    %v1463 = vunpack.c.l.b16 %v43
    %v1464 = vunpack.c.l.b16 %v44
    %v1465 = vunpack.c.l.b16 %v45
    %v1466 = vunpack.c.l.b16 %v46
    %v1467 = vunpack.c.l.b16 %v47
    %v1468 = vunpack.c.l.b16 %v48
    %v1469 = vunpack.c.l.b16 %v49
    %v1470 = vunpack.c.l.b16 %v50
    %v1471 = vunpack.c.l.b16 %v51
    %v1472 = vunpack.c.l.b16 %v52
    %v1473 = vunpack.c.l.b16 %v53
    %v1474 = vunpack.c.l.b16 %v54
    %v1475 = vunpack.c.l.b16 %v55
    %v1476 = vunpack.c.l.b16 %v56
    %v1477 = vunpack.c.l.b16 %v57
    %v1478 = vunpack.c.l.b16 %v58
    %v1479 = vunpack.c.l.b16 %v59
    %v1480 = vunpack.c.l.b16 %v60
    %v1481 = vunpack.c.l.b16 %v61
    %v1482 = vunpack.c.l.b16 %v62
    %v1483 = vunpack.c.l.b16 %v63
    %v1484 = vunpack.c.l.b16 %v64
    %v1485 = vunpack.c.l.b16 %v65
    %v1486 = vunpack.c.l.b16 %v66
    %v1487 = vunpack.c.l.b16 %v67
    %v1488 = vunpack.c.l.b16 %v68
    %v1489 = vunpack.c.l.b16 %v69
    %v1490 = vunpack.c.l.b16 %v70
    %v1491 = vunpack.c.l.b16 %v71
    %v1492 = vunpack.c.l.b16 %v72
    %v1493 = vunpack.c.l.b16 %v73
    %v1494 = vunpack.c.l.b16 %v74
    %v1495 = vunpack.c.l.b16 %v75
    %v1496 = vunpack.c.l.b16 %v76
    %v1497 = vunpack.c.l.b16 %v77
    %v1498 = vunpack.c.l.b16 %v78
    %v1499 = vunpack.c.l.b16 %v79
    %v1500 = vunpack.c.l.b16 %v80
    %v1501 = vunpack.c.l.b16 %v81
    %v1502 = vunpack.c.l.b16 %v82
    %v1503 = vunpack.c.l.b16 %v83
    %v1504 = vunpack.c.l.b16 %v84
    %v1505 = vunpack.c.l.b16 %v85
    %v1506 = vunpack.c.l.b16 %v86
    %v1507 = vunpack.c.l.b16 %v87
    %v1508 = vunpack.c.l.b16 %v88
    %v1509 = vunpack.c.l.b16 %v89
    %v1510 = vunpack.c.l.b16 %v90
    %v1511 = vunpack.c.l.b16 %v91
    %v1512 = vunpack.c.l.b16 %v92
    %v1513 = vunpack.c.l.b16 %v93
    %v1514 = vunpack.c.l.b16 %v94
    %v1515 = vunpack.c.l.b16 %v95
    %v1516 = vunpack.c.l.b16 %v96
    %v1517 = vunpack.c.l.b16 %v97
    %v1518 = vunpack.c.l.b16 %v98
    %v1519 = vunpack.c.l.b16 %v99
    %v1520 = vunpack.c.l.b16 %v100
    %v1521 = vunpack.c.l.b16 %v101
    %v1522 = vunpack.c.l.b16 %v102
    %v1523 = vunpack.c.l.b16 %v103
    %v1524 = vunpack.c.l.b16 %v104
    %v1525 = vunpack.c.l.b16 %v105
    %v1526 = vunpack.c.l.b16 %v106
    %v1527 = vunpack.c.l.b16 %v107
    %v1528 = vunpack.c.l.b16 %v108
    %v1529 = vunpack.c.l.b16 %v109
    %v1530 = vunpack.c.l.b16 %v110
    %v1531 = vunpack.c.l.b16 %v111
    %v1532 = vunpack.c.l.b16 %v112
    %v1533 = vunpack.c.l.b16 %v113
    %v1534 = vunpack.c.l.b16 %v114
    %v1535 = vunpack.c.l.b16 %v115
    %v1536 = vunpack.c.l.b16 %v116
    %v1537 = vunpack.c.l.b16 %v117
    %v1538 = vunpack.c.l.b16 %v118
    %v1539 = vunpack.c.l.b16 %v119
    %v1540 = vunpack.c.l.b16 %v120
    %v1541 = vunpack.c.l.b16 %v121
    %v1542 = vunpack.c.l.b16 %v122
    %v1543 = vunpack.c.l.b16 %v123
    %v1544 = vunpack.c.l.b16 %v124
    %v1545 = vunpack.c.l.b16 %v125
    %v1546 = vunpack.c.l.b16 %v126
    %v1547 = vunpack.c.l.b16 %v127
    %v1548 = vunpack.c.l.b16 %v128
    %v1549 = vunpack.c.l.b16 %v129
    %v1550 = vunpack.c.l.b16 %v130
    %v1551 = vunpack.c.l.b16 %v131
    %v1552 = vunpack.c.l.b16 %v132
    %v1553 = vunpack.c.l.b16 %v133
    %v1554 = vunpack.c.l.b16 %v134
    %v1555 = vunpack.c.l.b16 %v135
    %v1556 = vunpack.c.l.b16 %v136
    %v1557 = vunpack.c.l.b16 %v137
    %v1558 = vunpack.c.l.b16 %v138
    %v1559 = vunpack.c.l.b16 %v139
    %v1560 = vunpack.c.l.b16 %v140
    %v1561 = vunpack.c.l.b16 %v141
    %v1562 = vunpack.c.l.b16 %v142
    %v1563 = vunpack.c.l.b16 %v143
    %v1564 = vunpack.c.l.b16 %v144
    %v1565 = vunpack.c.l.b16 %v145
    %v1566 = vunpack.c.l.b16 %v146
    %v1567 = vunpack.c.l.b16 %v147
    %v1568 = vunpack.c.l.b16 %v148
    %v1569 = vunpack.c.l.b16 %v149
    %v1570 = vunpack.c.l.b16 %v150
    %v1571 = vunpack.c.l.b16 %v151
    %v1572 = vunpack.c.l.b16 %v152
    %v1573 = vunpack.c.l.b16 %v153
    %v1574 = vunpack.c.l.b16 %v154
    %v1575 = vunpack.c.l.b16 %v155
    %v1576 = vunpack.c.l.b16 %v156
    %v1577 = vunpack.c.l.b16 %v157
    %v1578 = vunpack.c.l.b16 %v158
    %v1579 = vunpack.c.l.b16 %v159
    %v1580 = vunpack.c.l.b16 %v160
    %v1581 = vunpack.c.l.b16 %v161
    %v1582 = vunpack.c.l.b16 %v162
    %v1583 = vunpack.c.l.b16 %v163
    %v1584 = vunpack.c.l.b16 %v164
    %v1585 = vunpack.c.l.b16 %v165
    %v1586 = vunpack.c.l.b16 %v166
    %v1587 = vunpack.c.l.b16 %v167
    %v1588 = vunpack.c.l.b16 %v168
    %v1589 = vunpack.c.l.b16 %v169
    %v1590 = vunpack.c.l.b16 %v170
    %v1591 = vunpack.c.l.b16 %v171
    %v1592 = vunpack.c.l.b16 %v172
    %v1593 = vunpack.c.l.b16 %v173
    %v1594 = vunpack.c.l.b16 %v174
    %v1595 = vunpack.c.l.b16 %v175
    %v1596 = vunpack.c.l.b16 %v176
    %v1597 = vunpack.c.l.b16 %v177
    %v1598 = vunpack.c.l.b16 %v178
    %v1599 = vunpack.c.l.b16 %v179
    %v1600 = vunpack.c.l.b16 %v180
    %v1601 = vunpack.c.l.b16 %v181
    %v1602 = vunpack.c.l.b16 %v182
    %v1603 = vunpack.c.l.b16 %v183
    %v1604 = vunpack.c.l.b16 %v184
    %v1605 = vunpack.c.l.b16 %v185
    %v1606 = vunpack.c.l.b16 %v186
    %v1607 = vunpack.c.l.b16 %v187
    %v1608 = vunpack.c.l.b16 %v188
    %v1609 = vunpack.c.l.b16 %v189
    %v1610 = vunpack.c.l.b16 %v190
    %v1611 = vunpack.c.l.b16 %v191
    %v1612 = vunpack.c.l.b16 %v192
    %v1613 = vunpack.c.l.b16 %v193
    %v1614 = vunpack.c.l.b16 %v194
    %v1615 = vunpack.c.l.b16 %v195
    %v1616 = vunpack.c.l.b16 %v196
    %v1617 = vunpack.c.l.b16 %v197
    %v1618 = vunpack.c.l.b16 %v198
    %v1619 = vunpack.c.l.b16 %v199
    %v1620 = vunpack.c.l.b16 %v200
    %v1621 = vunpack.c.l.b16 %v201
    %v1622 = vunpack.c.l.b16 %v202
    %v1623 = vunpack.c.l.b16 %v203
    %v1624 = vunpack.c.l.b16 %v204
    %v1625 = vunpack.c.l.b16 %v205
    %v1626 = vunpack.c.l.b16 %v206
    %v1627 = vunpack.c.l.b16 %v207
    %v1628 = vunpack.c.l.b16 %v208
    %v1629 = vunpack.c.l.b16 %v209
    %v1630 = vunpack.c.l.b16 %v210
    %v1631 = vunpack.c.l.b16 %v211
    %v1632 = vunpack.c.l.b16 %v212
    %v1633 = vunpack.c.l.b16 %v213
    %v1634 = vunpack.c.l.b16 %v214
    %v1635 = vunpack.c.l.b16 %v215
    %v1636 = vunpack.c.l.b16 %v216
    %v1637 = vunpack.c.l.b16 %v217
    %v1638 = vunpack.c.l.b16 %v218
    %v1639 = vunpack.c.l.b16 %v219
    %v1640 = vunpack.c.l.b16 %v220
    %v1641 = vunpack.c.l.b16 %v221
    %v1642 = vunpack.c.l.b16 %v222
    %v1643 = vunpack.c.l.b16 %v223
    %v1644 = vunpack.c.l.b16 %v224
    %v1645 = vunpack.c.l.b16 %v225
    %v1646 = vunpack.c.l.b16 %v226
    %v1647 = vunpack.c.l.b16 %v227
    %v1648 = vunpack.c.l.b16 %v228
    %v1649 = vunpack.c.l.b16 %v229
    %v1650 = vunpack.c.l.b16 %v230
    %v1651 = vunpack.c.l.b16 %v231
    %v1652 = vunpack.c.l.b16 %v232
    %v1653 = vunpack.c.l.b16 %v233
    %v1654 = vunpack.c.l.b16 %v234
    %v1655 = vunpack.c.l.b16 %v235
    %v1656 = vunpack.c.l.b16 %v236
    %v1657 = vunpack.c.l.b16 %v237
    %v1658 = vunpack.c.l.b16 %v238
    %v1659 = vunpack.c.l.b16 %v239
    %v1660 = vunpack.c.l.b16 %v240
    %v1661 = vunpack.c.l.b16 %v241
    %v1662 = vunpack.c.l.b16 %v242
    %v1663 = vunpack.c.l.b16 %v243
    %v1664 = vunpack.c.l.b16 %v244
    %v1665 = vunpack.c.l.b16 %v245
    %v1666 = vunpack.c.l.b16 %v246
    %v1667 = vunpack.c.l.b16 %v247
    %v1668 = vunpack.c.l.b16 %v248
    %v1669 = vunpack.c.l.b16 %v249
    %v1670 = vunpack.c.l.b16 %v250
    %v1671 = vunpack.c.l.b16 %v251
    %v1672 = vunpack.c.l.b16 %v252
    %v1673 = vunpack.c.l.b16 %v253
    %v1674 = vunpack.c.l.b16 %v254
    %v1675 = vunpack.c.l.b16 %v255
    %v1676 = vunpack.c.l.b16 %v256
    %v1677 = vunpack.c.l.b16 %v257
    %v1678 = vunpack.c.l.b16 %v258
    %v1679 = vunpack.c.l.b16 %v259
    %v1680 = vunpack.c.l.b16 %v260
    %v1681 = vunpack.c.l.b16 %v261
    %v1682 = vunpack.c.l.b16 %v262
    %v1683 = vunpack.c.l.b16 %v263
    %v1684 = vunpack.c.l.b16 %v264
    %v1685 = vunpack.c.l.b16 %v265
    %v1686 = vunpack.c.l.b16 %v266
    %v1687 = vunpack.c.l.b16 %v267
    %v1688 = vunpack.c.l.b16 %v268
    %v1689 = vunpack.c.l.b16 %v269
    %v1690 = vunpack.c.l.b16 %v270
    %v1691 = vunpack.c.l.b16 %v271
    %v1692 = vunpack.c.l.b16 %v272
    %v1693 = vunpack.c.l.b16 %v273
    %v1694 = vunpack.c.l.b16 %v274
    %v1695 = vunpack.c.l.b16 %v275
    %v1696 = vunpack.c.l.b16 %v276
    %v1697 = vunpack.c.l.b16 %v277
    %v1698 = vunpack.c.l.b16 %v278
    %v1699 = vunpack.c.l.b16 %v279
    %v1700 = vunpack.c.l.b16 %v280
    %v1701 = vunpack.c.l.b16 %v281
    %v1702 = vunpack.c.l.b16 %v282
    %v1703 = vunpack.c.l.b16 %v283
    %v1704 = vunpack.c.l.b16 %v284
    %v1705 = vunpack.c.l.b16 %v285
    %v1706 = vunpack.c.l.b16 %v286
    %v1707 = vunpack.c.l.b16 %v287
    %v1708 = vunpack.c.l.b16 %v288
    %v1709 = vunpack.c.l.b16 %v289
    %v1710 = vunpack.c.l.b16 %v290
    %v1711 = vunpack.c.l.b16 %v291
    %v1712 = vunpack.c.l.b16 %v292
    %v1713 = vunpack.c.l.b16 %v293
    %v1714 = vunpack.c.l.b16 %v294
    %v1715 = vunpack.c.l.b16 %v295
    %v1716 = vunpack.c.l.b16 %v296
    %v1717 = vunpack.c.l.b16 %v297
    %v1718 = vunpack.c.l.b16 %v298
    %v1719 = vunpack.c.l.b16 %v299
    %v1720 = vunpack.c.l.b16 %v300
    %v1721 = vunpack.c.l.b16 %v301
    %v1722 = vunpack.c.l.b16 %v302
    %v1723 = vunpack.c.l.b16 %v303
    %v1724 = vunpack.c.l.b16 %v304
    %v1725 = vunpack.c.l.b16 %v305
    %v1726 = vunpack.c.l.b16 %v306
    %v1727 = vunpack.c.l.b16 %v307
    %v1728 = vunpack.c.l.b16 %v308
    %v1729 = vunpack.c.l.b16 %v309
    %v1730 = vunpack.c.l.b16 %v310
    %v1731 = vunpack.c.l.b16 %v311
    %v1732 = vunpack.c.l.b16 %v312
    %v1733 = vunpack.c.l.b16 %v313
    %v1734 = vunpack.c.l.b16 %v314
    %v1735 = vunpack.c.l.b16 %v315
    %v1736 = vunpack.c.l.b16 %v316
    %v1737 = vunpack.c.l.b16 %v317
    %v1738 = vunpack.c.l.b16 %v318
    %v1739 = vunpack.c.l.b16 %v319
    %v1740 = vunpack.c.l.b16 %v320
    %v1741 = vunpack.c.l.b16 %v321
    %v1742 = vunpack.c.l.b16 %v322
    %v1743 = vunpack.c.l.b16 %v323
    %v1744 = vunpack.c.l.b16 %v324
    %v1745 = vunpack.c.l.b16 %v325
    %v1746 = vunpack.c.l.b16 %v326
    %v1747 = vunpack.c.l.b16 %v327
    %v1748 = vunpack.c.l.b16 %v328
    %v1749 = vunpack.c.l.b16 %v329
    %v1750 = vunpack.c.l.b16 %v330
    %v1751 = vunpack.c.l.b16 %v331
    %v1752 = vunpack.c.l.b16 %v332
    %v1753 = vunpack.c.l.b16 %v333
    %v1754 = vunpack.c.l.b16 %v334
    %v1755 = vunpack.c.l.b16 %v335
    %v1756 = vunpack.c.l.b16 %v336
    %v1757 = vunpack.c.l.b16 %v337
    %v1758 = vunpack.c.l.b16 %v338
    %v1759 = vunpack.c.l.b16 %v339
    %v1760 = vunpack.c.l.b16 %v340
    %v1761 = vunpack.c.l.b16 %v341
    %v1762 = vunpack.c.l.b16 %v342
    %v1763 = vunpack.c.l.b16 %v343
    %v1764 = vunpack.c.l.b16 %v344
    %v1765 = vunpack.c.l.b16 %v345
    %v1766 = vunpack.c.l.b16 %v346
    %v1767 = vunpack.c.l.b16 %v347
    %v1768 = vunpack.c.l.b16 %v348
    %v1769 = vunpack.c.l.b16 %v349
    %v1770 = vunpack.c.l.b16 %v350
    %v1771 = vunpack.c.l.b16 %v351
    %v1772 = vunpack.c.l.b16 %v352
    %v1773 = vunpack.c.l.b16 %v353
    %v1774 = vunpack.c.l.b16 %v354
    %v1775 = vunpack.c.l.b16 %v355
    %v1776 = vunpack.c.l.b16 %v356
    %v1777 = vunpack.c.l.b16 %v357
    %v1778 = vunpack.c.l.b16 %v358
    %v1779 = vunpack.c.l.b16 %v359
    %v1780 = vunpack.c.l.b16 %v360
    %v1781 = vunpack.c.l.b16 %v361
    %v1782 = vunpack.c.l.b16 %v362
    %v1783 = vunpack.c.l.b16 %v363
    %v1784 = vunpack.c.l.b16 %v364
    %v1785 = vunpack.c.l.b16 %v365
    %v1786 = vunpack.c.l.b16 %v366
    %v1787 = vunpack.c.l.b16 %v367
    %v1788 = vunpack.c.l.b16 %v368
    %v1789 = vunpack.c.l.b16 %v369
    %v1790 = vunpack.c.l.b16 %v370
    %v1791 = vunpack.c.l.b16 %v371
    %v1792 = vunpack.c.l.b16 %v372
    %v1793 = vunpack.c.l.b16 %v373
    %v1794 = vunpack.c.l.b16 %v374
    %v1795 = vunpack.c.l.b16 %v375
    %v1796 = vunpack.c.l.b16 %v376
    %v1797 = vunpack.c.l.b16 %v377
    %v1798 = vunpack.c.l.b16 %v378
    %v1799 = vunpack.c.l.b16 %v379
    %v1800 = vunpack.c.l.b16 %v380
    %v1801 = vunpack.c.l.b16 %v381
    %v1802 = vunpack.c.l.b16 %v382
    %v1803 = vunpack.c.l.b16 %v383
    %v1804 = vunpack.c.l.b16 %v384
    %v1805 = vunpack.c.l.b16 %v385
    %v1806 = vunpack.c.l.b16 %v386
    %v1807 = vunpack.c.l.b16 %v387
    %v1808 = vunpack.c.l.b16 %v388
    %v1809 = vunpack.c.l.b16 %v389
    %v1810 = vunpack.c.l.b16 %v390
    %v1811 = vunpack.c.l.b16 %v391
    %v1812 = vunpack.c.l.b16 %v392
    %v1813 = vunpack.c.l.b16 %v393
    %v1814 = vunpack.c.l.b16 %v394
    %v1815 = vunpack.c.l.b16 %v395
    %v1816 = vunpack.c.l.b16 %v396
    %v1817 = vunpack.c.l.b16 %v397
    %v1818 = vunpack.c.l.b16 %v398
    %v1819 = vunpack.c.l.b16 %v399
    %v1820 = vunpack.c.l.b16 %v400
    %v1821 = vunpack.c.l.b16 %v401
    %v1822 = vunpack.c.l.b16 %v402
    %v1823 = vunpack.c.l.b16 %v403
    %v1824 = vunpack.c.l.b16 %v404
    %v1825 = vunpack.c.l.b16 %v405
    %v1826 = vunpack.c.l.b16 %v406
    %v1827 = vunpack.c.l.b16 %v407
    %v1828 = vunpack.c.l.b16 %v408
    %v1829 = vunpack.c.l.b16 %v409
    %v1830 = vunpack.c.l.b16 %v410
    %v1831 = vunpack.c.l.b16 %v411
    %v1832 = vunpack.c.l.b16 %v412
    %v1833 = vunpack.c.l.b16 %v413
    %v1834 = vunpack.c.l.b16 %v414
    %v1835 = vunpack.c.l.b16 %v415
    %v1836 = vunpack.c.l.b16 %v416
    %v1837 = vunpack.c.l.b16 %v417
    %v1838 = vunpack.c.l.b16 %v418
    %v1839 = vunpack.c.l.b16 %v419
    %v1840 = vunpack.c.l.b16 %v420
    %v1841 = vunpack.c.l.b16 %v421
    %v1842 = vunpack.c.l.b16 %v422
    %v1843 = vunpack.c.l.b16 %v423
    %v1844 = vunpack.c.l.b16 %v424
    %v1845 = vunpack.c.l.b16 %v425
    %v1846 = vunpack.c.l.b16 %v426
    %v1847 = vunpack.c.l.b16 %v427
    %v1848 = vunpack.c.l.b16 %v428
    %v1849 = vunpack.c.l.b16 %v429
    %v1850 = vunpack.c.l.b16 %v430
    %v1851 = vunpack.c.l.b16 %v431
    %v1852 = vunpack.c.l.b16 %v432
    %v1853 = vunpack.c.l.b16 %v433
    %v1854 = vunpack.c.l.b16 %v434
    %v1855 = vunpack.c.l.b16 %v435
    %v1856 = vunpack.c.l.b16 %v436
    %v1857 = vunpack.c.l.b16 %v437
    %v1858 = vunpack.c.l.b16 %v438
    %v1859 = vunpack.c.l.b16 %v439
    %v1860 = vunpack.c.l.b16 %v440
    %v1861 = vunpack.c.l.b16 %v441
    %v1862 = vunpack.c.l.b16 %v442
    %v1863 = vunpack.c.l.b16 %v443
    %v1864 = vunpack.c.l.b16 %v444
    %v1865 = vunpack.c.l.b16 %v445
    %v1866 = vunpack.c.l.b16 %v446
    %v1867 = vunpack.c.l.b16 %v447
    %v1868 = vunpack.c.l.b16 %v448
    %v1869 = vunpack.c.l.b16 %v449
    %v1870 = vunpack.c.l.b16 %v450
    %v1871 = vunpack.c.l.b16 %v451
    %v1872 = vunpack.c.l.b16 %v452
    %v1873 = vunpack.c.l.b16 %v453
    %v1874 = vunpack.c.l.b16 %v454
    %v1875 = vunpack.c.l.b16 %v455
    %v1876 = vunpack.c.l.b16 %v456
    %v1877 = vunpack.c.l.b16 %v457
    %v1878 = vunpack.c.l.b16 %v458
    %v1879 = vunpack.c.l.b16 %v459
    %v1880 = vunpack.c.l.b16 %v460
    %v1881 = vunpack.c.l.b16 %v461
    %v1882 = vunpack.c.l.b16 %v462
    %v1883 = vunpack.c.l.b16 %v463
    %v1884 = vunpack.c.l.b16 %v464
    %v1885 = vunpack.c.l.b16 %v465
    %v1886 = vunpack.c.l.b16 %v466
    %v1887 = vunpack.c.l.b16 %v467
    %v1888 = vunpack.c.l.b16 %v468
    %v1889 = vunpack.c.l.b16 %v469
    %v1890 = vunpack.c.l.b16 %v470
    %v1891 = vunpack.c.l.b16 %v471
    %v1892 = vunpack.c.l.b16 %v472
    %v1893 = vunpack.c.l.b16 %v473
    %v1894 = vunpack.c.l.b16 %v474
    %v1895 = vunpack.c.l.b16 %v475
    %v1896 = vunpack.c.l.b16 %v476
    %v1897 = vunpack.c.l.b16 %v477
    %v1898 = vunpack.c.l.b16 %v478
    %v1899 = vunpack.c.l.b16 %v479
    %v1900 = vunpack.c.l.b16 %v480
    %v1901 = vunpack.c.l.b16 %v481
    %v1902 = vunpack.c.l.b16 %v482
    %v1903 = vunpack.c.l.b16 %v483
    %v1904 = vunpack.c.l.b16 %v484
    %v1905 = vunpack.c.l.b16 %v485
    %v1906 = vunpack.c.l.b16 %v486
    %v1907 = vunpack.c.l.b16 %v487
    %v1908 = vunpack.c.l.b16 %v488
    %v1909 = vunpack.c.l.b16 %v489
    %v1910 = vunpack.c.l.b16 %v490
    %v1911 = vunpack.c.l.b16 %v491
    %v1912 = vunpack.c.l.b16 %v492
    %v1913 = vunpack.c.l.b16 %v493
    %v1914 = vunpack.c.l.b16 %v494
    %v1915 = vunpack.c.l.b16 %v495
    %v1916 = vunpack.c.l.b16 %v496
    %v1917 = vunpack.c.l.b16 %v497
    %v1918 = vunpack.c.l.b16 %v498
    %v1919 = vunpack.c.l.b16 %v499
    %v1920 = vunpack.c.l.b16 %v500
    %v1921 = vunpack.c.l.b16 %v501
    %v1922 = vunpack.c.l.b16 %v502
    %v1923 = vunpack.c.l.b16 %v503
    %v1924 = vunpack.c.l.b16 %v504
    %v1925 = vunpack.c.l.b16 %v505
    %v1926 = vunpack.c.l.b16 %v506
    %v1927 = vunpack.c.l.b16 %v507
    %v1928 = vunpack.c.l.b16 %v508
    %v1929 = vunpack.c.l.b16 %v509
    %v1930 = vunpack.c.l.b16 %v510
    %v1931 = vunpack.c.l.b16 %v511
    %v1932 = vunpack.c.l.b16 %v512
    %v1933 = vunpack.c.l.b16 %v513
    %v1934 = vunpack.c.l.b16 %v514
    %v1935 = vunpack.c.l.b16 %v515
    %v1936 = vunpack.c.l.b16 %v516
    %v1937 = vunpack.c.l.b16 %v517
    %v1938 = vunpack.c.l.b16 %v518
    %v1939 = vunpack.c.l.b16 %v519
    %v1940 = vunpack.c.l.b16 %v520
    %v1941 = vunpack.c.l.b16 %v521
    %v1942 = vunpack.c.l.b16 %v522
    %v1943 = vunpack.c.l.b16 %v523
    %v1944 = vunpack.c.l.b16 %v524
    %v1945 = vunpack.c.l.b16 %v525
    %v1946 = vunpack.c.l.b16 %v526
    %v1947 = vunpack.c.l.b16 %v527
    %v1948 = vunpack.c.l.b16 %v528
    %v1949 = vunpack.c.l.b16 %v529
    %v1950 = vunpack.c.l.b16 %v530
    %v1951 = vunpack.c.l.b16 %v531
    %v1952 = vunpack.c.l.b16 %v532
    %v1953 = vunpack.c.l.b16 %v533
    %v1954 = vunpack.c.l.b16 %v534
    %v1955 = vunpack.c.l.b16 %v535
    %v1956 = vunpack.c.l.b16 %v536
    %v1957 = vunpack.c.l.b16 %v537
    %v1958 = vunpack.c.l.b16 %v538
    %v1959 = vunpack.c.l.b16 %v539
    %v1960 = vunpack.c.l.b16 %v540
    %v1961 = vunpack.c.l.b16 %v541
    %v1962 = vunpack.c.l.b16 %v542
    %v1963 = vunpack.c.l.b16 %v543
    %v1964 = vunpack.c.l.b16 %v544
    %v1965 = vunpack.c.l.b16 %v545
    %v1966 = vunpack.c.l.b16 %v546
    %v1967 = vunpack.c.l.b16 %v547
    %v1968 = vunpack.c.l.b16 %v548
    %v1969 = vunpack.c.l.b16 %v549
    %v1970 = vunpack.c.l.b16 %v550
    %v1971 = vunpack.c.l.b16 %v551
    %v1972 = vunpack.c.l.b16 %v552
    %v1973 = vunpack.c.l.b16 %v553
    %v1974 = vunpack.c.l.b16 %v554
    %v1975 = vunpack.c.l.b16 %v555
    %v1976 = vunpack.c.l.b16 %v556
    %v1977 = vunpack.c.l.b16 %v557
    %v1978 = vunpack.c.l.b16 %v558
    %v1979 = vunpack.c.l.b16 %v559
    %v1980 = vunpack.c.l.b16 %v560
    %v1981 = vunpack.c.l.b16 %v561
    %v1982 = vunpack.c.l.b16 %v562
    %v1983 = vunpack.c.l.b16 %v563
    %v1984 = vunpack.c.l.b16 %v564
    %v1985 = vunpack.c.l.b16 %v565
    %v1986 = vunpack.c.l.b16 %v566
    %v1987 = vunpack.c.l.b16 %v567
    %v1988 = vunpack.c.l.b16 %v568
    %v1989 = vunpack.c.l.b16 %v569
    %v1990 = vunpack.c.l.b16 %v570
    %v1991 = vunpack.c.l.b16 %v571
    %v1992 = vunpack.c.l.b16 %v572
    %v1993 = vunpack.c.l.b16 %v573
    %v1994 = vunpack.c.l.b16 %v574
    %v1995 = vunpack.c.l.b16 %v575
    %v1996 = vunpack.c.l.b16 %v576
    %v1997 = vunpack.c.l.b16 %v577
    %v1998 = vunpack.c.l.b16 %v578
    %v1999 = vunpack.c.l.b16 %v579
    %v2000 = vunpack.c.l.b16 %v580
    %v2001 = vunpack.c.l.b16 %v581
    %v2002 = vunpack.c.l.b16 %v582
    %v2003 = vunpack.c.l.b16 %v583
    %v2004 = vunpack.c.l.b16 %v584
    %v2005 = vunpack.c.l.b16 %v585
    %v2006 = vunpack.c.l.b16 %v586
    %v2007 = vunpack.c.l.b16 %v587
    %v2008 = vunpack.c.l.b16 %v588
    %v2009 = vunpack.c.l.b16 %v589
    %v2010 = vunpack.c.l.b16 %v590
    %v2011 = vunpack.c.l.b16 %v591
    %v2012 = vunpack.c.l.b16 %v592
    %v2013 = vunpack.c.l.b16 %v593
    %v2014 = vunpack.c.l.b16 %v594
    %v2015 = vunpack.c.l.b16 %v595
    %v2016 = vunpack.c.l.b16 %v596
    %v2017 = vunpack.c.l.b16 %v597
    %v2018 = vunpack.c.l.b16 %v598
    %v2019 = vunpack.c.l.b16 %v599
    %v2020 = vunpack.c.l.b16 %v600
    %v2021 = vunpack.c.l.b16 %v601
    %v2022 = vunpack.c.l.b16 %v602
    %v2023 = vpack.c.b16 %v1448, %v1447
    %v2024 = vpack.c.b16 %v1450, %v1449
    %v2025 = vpack.c.b16 %v1452, %v1451
    %v2026 = vpack.c.b16 %v1454, %v1453
    %v2027 = vpack.c.b16 %v1456, %v1455
    %v2028 = vpack.c.b16 %v1458, %v1457
    %v2029 = vpack.c.b16 %v1460, %v1459
    %v2030 = vpack.c.b16 %v1462, %v1461
    %v2031 = vpack.c.b16 %v1464, %v1463
    %v2032 = vpack.c.b16 %v1466, %v1465
    %v2033 = vpack.c.b16 %v1468, %v1467
    %v2034 = vpack.c.b16 %v1470, %v1469
    %v2035 = vpack.c.b16 %v1472, %v1471
    %v2036 = vpack.c.b16 %v1474, %v1473
    %v2037 = vpack.c.b16 %v1476, %v1475
    %v2038 = vpack.c.b16 %v1478, %v1477
    %v2039 = vpack.c.b16 %v1480, %v1479
    %v2040 = vpack.c.b16 %v1482, %v1481
    %v2041 = vpack.c.b16 %v1484, %v1483
    %v2042 = vpack.c.b16 %v1486, %v1485
    %v2043 = vpack.c.b16 %v1488, %v1487
    %v2044 = vpack.c.b16 %v1490, %v1489
    %v2045 = vpack.c.b16 %v1492, %v1491
    %v2046 = vpack.c.b16 %v1494, %v1493
    %v2047 = vpack.c.b16 %v1496, %v1495
    %v2048 = vpack.c.b16 %v1498, %v1497
    %v2049 = vpack.c.b16 %v1500, %v1499
    %v2050 = vpack.c.b16 %v1502, %v1501
    %v2051 = vpack.c.b16 %v1504, %v1503
    %v2052 = vpack.c.b16 %v1506, %v1505
    %v2053 = vpack.c.b16 %v1508, %v1507
    %v2054 = vpack.c.b16 %v1510, %v1509
    %v2055 = vpack.c.b16 %v1512, %v1511
    %v2056 = vpack.c.b16 %v1514, %v1513
    %v2057 = vpack.c.b16 %v1516, %v1515
    %v2058 = vpack.c.b16 %v1518, %v1517
    %v2059 = vpack.c.b16 %v1520, %v1519
    %v2060 = vpack.c.b16 %v1522, %v1521
    %v2061 = vpack.c.b16 %v1524, %v1523
    %v2062 = vpack.c.b16 %v1526, %v1525
    %v2063 = vpack.c.b16 %v1528, %v1527
    %v2064 = vpack.c.b16 %v1530, %v1529
    %v2065 = vpack.c.b16 %v1532, %v1531
    %v2066 = vpack.c.b16 %v1534, %v1533
    %v2067 = vpack.c.b16 %v1536, %v1535
    %v2068 = vpack.c.b16 %v1538, %v1537
    %v2069 = vpack.c.b16 %v1540, %v1539
    %v2070 = vpack.c.b16 %v1542, %v1541
    %v2071 = vpack.c.b16 %v1544, %v1543
    %v2072 = vpack.c.b16 %v1546, %v1545
    %v2073 = vpack.c.b16 %v1548, %v1547
    %v2074 = vpack.c.b16 %v1550, %v1549
    %v2075 = vpack.c.b16 %v1552, %v1551
    %v2076 = vpack.c.b16 %v1554, %v1553
    %v2077 = vpack.c.b16 %v1556, %v1555
    %v2078 = vpack.c.b16 %v1558, %v1557
    %v2079 = vpack.c.b16 %v1560, %v1559
    %v2080 = vpack.c.b16 %v1562, %v1561
    %v2081 = vpack.c.b16 %v1564, %v1563
    %v2082 = vpack.c.b16 %v1566, %v1565
    %v2083 = vpack.c.b16 %v1568, %v1567
    %v2084 = vpack.c.b16 %v1570, %v1569
    %v2085 = vpack.c.b16 %v1572, %v1571
    %v2086 = vpack.c.b16 %v1574, %v1573
    %v2087 = vpack.c.b16 %v1576, %v1575
    %v2088 = vpack.c.b16 %v1578, %v1577
    %v2089 = vpack.c.b16 %v1580, %v1579
    %v2090 = vpack.c.b16 %v1582, %v1581
    %v2091 = vpack.c.b16 %v1584, %v1583
    %v2092 = vpack.c.b16 %v1586, %v1585
    %v2093 = vpack.c.b16 %v1588, %v1587
    %v2094 = vpack.c.b16 %v1590, %v1589
    %v2095 = vpack.c.b16 %v1592, %v1591
    %v2096 = vpack.c.b16 %v1594, %v1593
    %v2097 = vpack.c.b16 %v1596, %v1595
    %v2098 = vpack.c.b16 %v1598, %v1597
    %v2099 = vpack.c.b16 %v1600, %v1599
    %v2100 = vpack.c.b16 %v1602, %v1601
    %v2101 = vpack.c.b16 %v1604, %v1603
    %v2102 = vpack.c.b16 %v1606, %v1605
    %v2103 = vpack.c.b16 %v1608, %v1607
    %v2104 = vpack.c.b16 %v1610, %v1609
    %v2105 = vpack.c.b16 %v1612, %v1611
    %v2106 = vpack.c.b16 %v1614, %v1613
    %v2107 = vpack.c.b16 %v1616, %v1615
    %v2108 = vpack.c.b16 %v1618, %v1617
    %v2109 = vpack.c.b16 %v1620, %v1619
    %v2110 = vpack.c.b16 %v1622, %v1621
    %v2111 = vpack.c.b16 %v1624, %v1623
    %v2112 = vpack.c.b16 %v1626, %v1625
    %v2113 = vpack.c.b16 %v1628, %v1627
    %v2114 = vpack.c.b16 %v1630, %v1629
    %v2115 = vpack.c.b16 %v1632, %v1631
    %v2116 = vpack.c.b16 %v1634, %v1633
    %v2117 = vpack.c.b16 %v1636, %v1635
    %v2118 = vpack.c.b16 %v1638, %v1637
    %v2119 = vpack.c.b16 %v1640, %v1639
    %v2120 = vpack.c.b16 %v1642, %v1641
    %v2121 = vpack.c.b16 %v1644, %v1643
    %v2122 = vpack.c.b16 %v1646, %v1645
    %v2123 = vpack.c.b16 %v1648, %v1647
    %v2124 = vpack.c.b16 %v1650, %v1649
    %v2125 = vpack.c.b16 %v1652, %v1651
    %v2126 = vpack.c.b16 %v1654, %v1653
    %v2127 = vpack.c.b16 %v1656, %v1655
    %v2128 = vpack.c.b16 %v1658, %v1657
    %v2129 = vpack.c.b16 %v1660, %v1659
    %v2130 = vpack.c.b16 %v1662, %v1661
    %v2131 = vpack.c.b16 %v1664, %v1663
    %v2132 = vpack.c.b16 %v1666, %v1665
    %v2133 = vpack.c.b16 %v1668, %v1667
    %v2134 = vpack.c.b16 %v1670, %v1669
    %v2135 = vpack.c.b16 %v1672, %v1671
    %v2136 = vpack.c.b16 %v1674, %v1673
    %v2137 = vpack.c.b16 %v1676, %v1675
    %v2138 = vpack.c.b16 %v1678, %v1677
    %v2139 = vpack.c.b16 %v1680, %v1679
    %v2140 = vpack.c.b16 %v1682, %v1681
    %v2141 = vpack.c.b16 %v1684, %v1683
    %v2142 = vpack.c.b16 %v1686, %v1685
    %v2143 = vpack.c.b16 %v1688, %v1687
    %v2144 = vpack.c.b16 %v1690, %v1689
    %v2145 = vpack.c.b16 %v1692, %v1691
    %v2146 = vpack.c.b16 %v1694, %v1693
    %v2147 = vpack.c.b16 %v1696, %v1695
    %v2148 = vpack.c.b16 %v1698, %v1697
    %v2149 = vpack.c.b16 %v1700, %v1699
    %v2150 = vpack.c.b16 %v1702, %v1701
    %v2151 = vpack.c.b16 %v1704, %v1703
    %v2152 = vpack.c.b16 %v1706, %v1705
    %v2153 = vpack.c.b16 %v1708, %v1707
    %v2154 = vpack.c.b16 %v1710, %v1709
    %v2155 = vpack.c.b16 %v1712, %v1711
    %v2156 = vpack.c.b16 %v1714, %v1713
    %v2157 = vpack.c.b16 %v1716, %v1715
    %v2158 = vpack.c.b16 %v1718, %v1717
    %v2159 = vpack.c.b16 %v1720, %v1719
    %v2160 = vpack.c.b16 %v1722, %v1721
    %v2161 = vpack.c.b16 %v1724, %v1723
    %v2162 = vpack.c.b16 %v1726, %v1725
    %v2163 = vpack.c.b16 %v1728, %v1727
    %v2164 = vpack.c.b16 %v1730, %v1729
    %v2165 = vpack.c.b16 %v1732, %v1731
    %v2166 = vpack.c.b16 %v1734, %v1733
    %v2167 = vpack.c.b16 %v1736, %v1735
    %v2168 = vpack.c.b16 %v1738, %v1737
    %v2169 = vpack.c.b16 %v1740, %v1739
    %v2170 = vpack.c.b16 %v1742, %v1741
    %v2171 = vpack.c.b16 %v1744, %v1743
    %v2172 = vpack.c.b16 %v1746, %v1745
    %v2173 = vpack.c.b16 %v1748, %v1747
    %v2174 = vpack.c.b16 %v1750, %v1749
    %v2175 = vpack.c.b16 %v1752, %v1751
    %v2176 = vpack.c.b16 %v1754, %v1753
    %v2177 = vpack.c.b16 %v1756, %v1755
    %v2178 = vpack.c.b16 %v1758, %v1757
    %v2179 = vpack.c.b16 %v1760, %v1759
    %v2180 = vpack.c.b16 %v1762, %v1761
    %v2181 = vpack.c.b16 %v1764, %v1763
    %v2182 = vpack.c.b16 %v1766, %v1765
    %v2183 = vpack.c.b16 %v1768, %v1767
    %v2184 = vpack.c.b16 %v1770, %v1769
    %v2185 = vpack.c.b16 %v1772, %v1771
    %v2186 = vpack.c.b16 %v1774, %v1773
    %v2187 = vpack.c.b16 %v1776, %v1775
    %v2188 = vpack.c.b16 %v1778, %v1777
    %v2189 = vpack.c.b16 %v1780, %v1779
    %v2190 = vpack.c.b16 %v1782, %v1781
    %v2191 = vpack.c.b16 %v1784, %v1783
    %v2192 = vpack.c.b16 %v1786, %v1785
    %v2193 = vpack.c.b16 %v1788, %v1787
    %v2194 = vpack.c.b16 %v1790, %v1789
    %v2195 = vpack.c.b16 %v1792, %v1791
    %v2196 = vpack.c.b16 %v1794, %v1793
    %v2197 = vpack.c.b16 %v1796, %v1795
    %v2198 = vpack.c.b16 %v1798, %v1797
    %v2199 = vpack.c.b16 %v1800, %v1799
    %v2200 = vpack.c.b16 %v1802, %v1801
    %v2201 = vpack.c.b16 %v1804, %v1803
    %v2202 = vpack.c.b16 %v1806, %v1805
    %v2203 = vpack.c.b16 %v1808, %v1807
    %v2204 = vpack.c.b16 %v1810, %v1809
    %v2205 = vpack.c.b16 %v1812, %v1811
    %v2206 = vpack.c.b16 %v1814, %v1813
    %v2207 = vpack.c.b16 %v1816, %v1815
    %v2208 = vpack.c.b16 %v1818, %v1817
    %v2209 = vpack.c.b16 %v1820, %v1819
    %v2210 = vpack.c.b16 %v1822, %v1821
    %v2211 = vpack.c.b16 %v1824, %v1823
    %v2212 = vpack.c.b16 %v1826, %v1825
    %v2213 = vpack.c.b16 %v1828, %v1827
    %v2214 = vpack.c.b16 %v1830, %v1829
    %v2215 = vpack.c.b16 %v1832, %v1831
    %v2216 = vpack.c.b16 %v1834, %v1833
    %v2217 = vpack.c.b16 %v1836, %v1835
    %v2218 = vpack.c.b16 %v1838, %v1837
    %v2219 = vpack.c.b16 %v1840, %v1839
    %v2220 = vpack.c.b16 %v1842, %v1841
    %v2221 = vpack.c.b16 %v1844, %v1843
    %v2222 = vpack.c.b16 %v1846, %v1845
    %v2223 = vpack.c.b16 %v1848, %v1847
    %v2224 = vpack.c.b16 %v1850, %v1849
    %v2225 = vpack.c.b16 %v1852, %v1851
    %v2226 = vpack.c.b16 %v1854, %v1853
    %v2227 = vpack.c.b16 %v1856, %v1855
    %v2228 = vpack.c.b16 %v1858, %v1857
    %v2229 = vpack.c.b16 %v1860, %v1859
    %v2230 = vpack.c.b16 %v1862, %v1861
    %v2231 = vpack.c.b16 %v1864, %v1863
    %v2232 = vpack.c.b16 %v1866, %v1865
    %v2233 = vpack.c.b16 %v1868, %v1867
    %v2234 = vpack.c.b16 %v1870, %v1869
    %v2235 = vpack.c.b16 %v1872, %v1871
    %v2236 = vpack.c.b16 %v1874, %v1873
    %v2237 = vpack.c.b16 %v1876, %v1875
    %v2238 = vpack.c.b16 %v1878, %v1877
    %v2239 = vpack.c.b16 %v1880, %v1879
    %v2240 = vpack.c.b16 %v1882, %v1881
    %v2241 = vpack.c.b16 %v1884, %v1883
    %v2242 = vpack.c.b16 %v1886, %v1885
    %v2243 = vpack.c.b16 %v1888, %v1887
    %v2244 = vpack.c.b16 %v1890, %v1889
    %v2245 = vpack.c.b16 %v1892, %v1891
    %v2246 = vpack.c.b16 %v1894, %v1893
    %v2247 = vpack.c.b16 %v1896, %v1895
    %v2248 = vpack.c.b16 %v1898, %v1897
    %v2249 = vpack.c.b16 %v1900, %v1899
    %v2250 = vpack.c.b16 %v1902, %v1901
    %v2251 = vpack.c.b16 %v1904, %v1903
    %v2252 = vpack.c.b16 %v1906, %v1905
    %v2253 = vpack.c.b16 %v1908, %v1907
    %v2254 = vpack.c.b16 %v1910, %v1909
    %v2255 = vpack.c.b16 %v1912, %v1911
    %v2256 = vpack.c.b16 %v1914, %v1913
    %v2257 = vpack.c.b16 %v1916, %v1915
    %v2258 = vpack.c.b16 %v1918, %v1917
    %v2259 = vpack.c.b16 %v1920, %v1919
    %v2260 = vpack.c.b16 %v1922, %v1921
    %v2261 = vpack.c.b16 %v1924, %v1923
    %v2262 = vpack.c.b16 %v1926, %v1925
    %v2263 = vpack.c.b16 %v1928, %v1927
    %v2264 = vpack.c.b16 %v1930, %v1929
    %v2265 = vpack.c.b16 %v1932, %v1931
    %v2266 = vpack.c.b16 %v1934, %v1933
    %v2267 = vpack.c.b16 %v1936, %v1935
    %v2268 = vpack.c.b16 %v1938, %v1937
    %v2269 = vpack.c.b16 %v1940, %v1939
    %v2270 = vpack.c.b16 %v1942, %v1941
    %v2271 = vpack.c.b16 %v1944, %v1943
    %v2272 = vpack.c.b16 %v1946, %v1945
    %v2273 = vpack.c.b16 %v1948, %v1947
    %v2274 = vpack.c.b16 %v1950, %v1949
    %v2275 = vpack.c.b16 %v1952, %v1951
    %v2276 = vpack.c.b16 %v1954, %v1953
    %v2277 = vpack.c.b16 %v1956, %v1955
    %v2278 = vpack.c.b16 %v1958, %v1957
    %v2279 = vpack.c.b16 %v1960, %v1959
    %v2280 = vpack.c.b16 %v1962, %v1961
    %v2281 = vpack.c.b16 %v1964, %v1963
    %v2282 = vpack.c.b16 %v1966, %v1965
    %v2283 = vpack.c.b16 %v1968, %v1967
    %v2284 = vpack.c.b16 %v1970, %v1969
    %v2285 = vpack.c.b16 %v1972, %v1971
    %v2286 = vpack.c.b16 %v1974, %v1973
    %v2287 = vpack.c.b16 %v1976, %v1975
    %v2288 = vpack.c.b16 %v1978, %v1977
    %v2289 = vpack.c.b16 %v1980, %v1979
    %v2290 = vpack.c.b16 %v1982, %v1981
    %v2291 = vpack.c.b16 %v1984, %v1983
    %v2292 = vpack.c.b16 %v1986, %v1985
    %v2293 = vpack.c.b16 %v1988, %v1987
    %v2294 = vpack.c.b16 %v1990, %v1989
    %v2295 = vpack.c.b16 %v1992, %v1991
    %v2296 = vpack.c.b16 %v1994, %v1993
    %v2297 = vpack.c.b16 %v1996, %v1995
    %v2298 = vpack.c.b16 %v1998, %v1997
    %v2299 = vpack.c.b16 %v2000, %v1999
    %v2300 = vpack.c.b16 %v2002, %v2001
    %v2301 = vpack.c.b16 %v2004, %v2003
    %v2302 = vpack.c.b16 %v2006, %v2005
    %v2303 = vpack.c.b16 %v2008, %v2007
    %v2304 = vpack.c.b16 %v2010, %v2009
    %v2305 = vpack.c.b16 %v2012, %v2011
    %v2306 = vpack.c.b16 %v2014, %v2013
    %v2307 = vpack.c.b16 %v2016, %v2015
    %v2308 = vpack.c.b16 %v2018, %v2017
    %v2309 = vpack.c.b16 %v2020, %v2019
    %v2310 = vpack.c.b16 %v2022, %v2021
    %2599 = vmatprep.subr.bf16.mxu0 0
    %2600 = vmatpush1.bf16.msra.mxu0 %v2023
    %2601 = vmatprep.subr.bf16.mxu0 0
    %2602 = vmatpush1.bf16.msra.mxu0 %v2024
    %2603 = vmatprep.subr.bf16.mxu0 0
    %2604 = vmatpush1.bf16.msra.mxu0 %v2025
    %2605 = vmatprep.subr.bf16.mxu0 0
    %2606 = vmatpush1.bf16.msra.mxu0 %v2026
    %2607 = vmatprep.subr.bf16.mxu0 0
    %2608 = vmatpush1.bf16.msra.mxu0 %v2027
    %2609 = vmatprep.subr.bf16.mxu0 0
    %2610 = vmatpush1.bf16.msra.mxu0 %v2028
    %2611 = vmatprep.subr.bf16.mxu0 0
    %2612 = vmatpush1.bf16.msra.mxu0 %v2029
    %2613 = vmatprep.subr.bf16.mxu0 0
    %2614 = vmatpush1.bf16.msra.mxu0 %v2030
    %2615 = vmatprep.subr.bf16.mxu0 0
    %2616 = vmatpush1.bf16.msra.mxu0 %v2031
    %2617 = vmatprep.subr.bf16.mxu0 0
    %2618 = vmatpush1.bf16.msra.mxu0 %v2032
    %2619 = vmatprep.subr.bf16.mxu0 0
    %2620 = vmatpush1.bf16.msra.mxu0 %v2033
    %2621 = vmatprep.subr.bf16.mxu0 0
    %2622 = vmatpush1.bf16.msra.mxu0 %v2034
    %2623 = vmatprep.subr.bf16.mxu0 0
    %2624 = vmatpush1.bf16.msra.mxu0 %v2035
    %2625 = vmatprep.subr.bf16.mxu0 0
    %2626 = vmatpush1.bf16.msra.mxu0 %v2036
    %2627 = vmatprep.subr.bf16.mxu0 0
    %2628 = vmatpush1.bf16.msra.mxu0 %v2037
    %2629 = vmatprep.subr.bf16.mxu0 0
    %2630 = vmatpush1.bf16.msra.mxu0 %v2038
    %2631 = vmatprep.mubr.bf16.mxu0 %v652
    %2632 = vmatmul.mubr.bf16.gmra.mrb[0].mxu0 %v638
    %v2633 = vpop.f32.mrb[0].mxu0
    %v2634 = vadd.f32 %v608, %v2633
    %v2635 = vpop.f32.mrb[0].mxu0
    %v2636 = vpop.f32.mrb[0].mxu0
    %v2637 = vpop.f32.mrb[0].mxu0
    %2638 = vdwg.mxu0
    %2639 = vmatprep.subr.bf16.mxu0 0
    %2640 = vmatpush1.bf16.msra.mxu0 %v2039
    %2641 = vmatprep.subr.bf16.mxu0 0
    %2642 = vmatpush1.bf16.msra.mxu0 %v2040
    %2643 = vmatprep.subr.bf16.mxu0 0
    %2644 = vmatpush1.bf16.msra.mxu0 %v2041
    %2645 = vmatprep.subr.bf16.mxu0 0
    %2646 = vmatpush1.bf16.msra.mxu0 %v2042
    %2647 = vmatprep.subr.bf16.mxu0 0
    %2648 = vmatpush1.bf16.msra.mxu0 %v2043
    %2649 = vmatprep.subr.bf16.mxu0 0
    %2650 = vmatpush1.bf16.msra.mxu0 %v2044
    %2651 = vmatprep.subr.bf16.mxu0 0
    %2652 = vmatpush1.bf16.msra.mxu0 %v2045
    %2653 = vmatprep.subr.bf16.mxu0 0
    %2654 = vmatpush1.bf16.msra.mxu0 %v2046
    %2655 = vmatprep.subr.bf16.mxu0 0
    %2656 = vmatpush1.bf16.msra.mxu0 %v2047
    %2657 = vmatprep.subr.bf16.mxu0 0
    %2658 = vmatpush1.bf16.msra.mxu0 %v2048
    %2659 = vmatprep.subr.bf16.mxu0 0
    %2660 = vmatpush1.bf16.msra.mxu0 %v2049
    %2661 = vmatprep.subr.bf16.mxu0 0
    %2662 = vmatpush1.bf16.msra.mxu0 %v2050
    %2663 = vmatprep.subr.bf16.mxu0 0
    %2664 = vmatpush1.bf16.msra.mxu0 %v2051
    %2665 = vmatprep.subr.bf16.mxu0 0
    %2666 = vmatpush1.bf16.msra.mxu0 %v2052
    %2667 = vmatprep.subr.bf16.mxu0 0
    %2668 = vmatpush1.bf16.msra.mxu0 %v2053
    %2669 = vmatprep.subr.bf16.mxu0 0
    %2670 = vmatpush1.bf16.msra.mxu0 %v2054
    %2671 = vmatprep.mubr.bf16.mxu0 %v662
    %2672 = vmatmul.mubr.bf16.gmra.mrb[0].mxu0 %v660
    %v2673 = vpop.f32.mrb[0].mxu0
    %v2674 = vadd.f32 %v2634, %v2673
    %v2675 = vpop.f32.mrb[0].mxu0
    %v2676 = vpop.f32.mrb[0].mxu0
    %v2677 = vpop.f32.mrb[0].mxu0
    %2678 = vdwg.mxu0
    %2679 = vmatprep.subr.bf16.mxu0 0
    %2680 = vmatpush1.bf16.msra.mxu0 %v2055
    %2681 = vmatprep.subr.bf16.mxu0 0
    %2682 = vmatpush1.bf16.msra.mxu0 %v2056
    %2683 = vmatprep.subr.bf16.mxu0 0
    %2684 = vmatpush1.bf16.msra.mxu0 %v2057
    %2685 = vmatprep.subr.bf16.mxu0 0
    %2686 = vmatpush1.bf16.msra.mxu0 %v2058
    %2687 = vmatprep.subr.bf16.mxu0 0
    %2688 = vmatpush1.bf16.msra.mxu0 %v2059
    %2689 = vmatprep.subr.bf16.mxu0 0
    %2690 = vmatpush1.bf16.msra.mxu0 %v2060
    %2691 = vmatprep.subr.bf16.mxu0 0
    %2692 = vmatpush1.bf16.msra.mxu0 %v2061
    %2693 = vmatprep.subr.bf16.mxu0 0
    %2694 = vmatpush1.bf16.msra.mxu0 %v2062
    %2695 = vmatprep.subr.bf16.mxu0 0
    %2696 = vmatpush1.bf16.msra.mxu0 %v2063
    %2697 = vmatprep.subr.bf16.mxu0 0
    %2698 = vmatpush1.bf16.msra.mxu0 %v2064
    %2699 = vmatprep.subr.bf16.mxu0 0
    %2700 = vmatpush1.bf16.msra.mxu0 %v2065
    %2701 = vmatprep.subr.bf16.mxu0 0
    %2702 = vmatpush1.bf16.msra.mxu0 %v2066
    %2703 = vmatprep.subr.bf16.mxu0 0
    %2704 = vmatpush1.bf16.msra.mxu0 %v2067
    %2705 = vmatprep.subr.bf16.mxu0 0
    %2706 = vmatpush1.bf16.msra.mxu0 %v2068
    %2707 = vmatprep.subr.bf16.mxu0 0
    %2708 = vmatpush1.bf16.msra.mxu0 %v2069
    %2709 = vmatprep.subr.bf16.mxu0 0
    %2710 = vmatpush1.bf16.msra.mxu0 %v2070
    %2711 = vmatprep.mubr.bf16.mxu0 %v659
    %2712 = vmatmul.mubr.bf16.gmra.mrb[0].mxu0 %v645
    %v2713 = vpop.f32.mrb[0].mxu0
    %v2714 = vadd.f32 %v2674, %v2713
    %v2715 = vpop.f32.mrb[0].mxu0
    %v2716 = vpop.f32.mrb[0].mxu0
    %v2717 = vpop.f32.mrb[0].mxu0
    %2718 = vdwg.mxu0
    %2719 = vmatprep.subr.bf16.mxu0 0
    %2720 = vmatpush1.bf16.msra.mxu0 %v2071
    %2721 = vmatprep.subr.bf16.mxu0 0
    %2722 = vmatpush1.bf16.msra.mxu0 %v2072
    %2723 = vmatprep.subr.bf16.mxu0 0
    %2724 = vmatpush1.bf16.msra.mxu0 %v2073
    %2725 = vmatprep.subr.bf16.mxu0 0
    %2726 = vmatpush1.bf16.msra.mxu0 %v2074
    %2727 = vmatprep.subr.bf16.mxu0 0
    %2728 = vmatpush1.bf16.msra.mxu0 %v2075
    %2729 = vmatprep.subr.bf16.mxu0 0
    %2730 = vmatpush1.bf16.msra.mxu0 %v2076
    %2731 = vmatprep.subr.bf16.mxu0 0
    %2732 = vmatpush1.bf16.msra.mxu0 %v2077
    %2733 = vmatprep.subr.bf16.mxu0 0
    %2734 = vmatpush1.bf16.msra.mxu0 %v2078
    %2735 = vmatprep.subr.bf16.mxu0 0
    %2736 = vmatpush1.bf16.msra.mxu0 %v2079
    %2737 = vmatprep.subr.bf16.mxu0 0
    %2738 = vmatpush1.bf16.msra.mxu0 %v2080
    %2739 = vmatprep.subr.bf16.mxu0 0
    %2740 = vmatpush1.bf16.msra.mxu0 %v2081
    %2741 = vmatprep.subr.bf16.mxu0 0
    %2742 = vmatpush1.bf16.msra.mxu0 %v2082
    %2743 = vmatprep.subr.bf16.mxu0 0
    %2744 = vmatpush1.bf16.msra.mxu0 %v2083
    %2745 = vmatprep.subr.bf16.mxu0 0
    %2746 = vmatpush1.bf16.msra.mxu0 %v2084
    %2747 = vmatprep.subr.bf16.mxu0 0
    %2748 = vmatpush1.bf16.msra.mxu0 %v2085
    %2749 = vmatprep.subr.bf16.mxu0 0
    %2750 = vmatpush1.bf16.msra.mxu0 %v2086
    %2751 = vmatprep.mubr.bf16.mxu0 %v663
    %2752 = vmatmul.mubr.bf16.gmra.mrb[0].mxu0 %v661
    %v2753 = vpop.f32.mrb[0].mxu0
    %v2754 = vadd.f32 %v2714, %v2753
    %v2755 = vpop.f32.mrb[0].mxu0
    %v2756 = vpop.f32.mrb[0].mxu0
    %v2757 = vpop.f32.mrb[0].mxu0
    %2758 = vdwg.mxu0
    %2759 = vmatprep.subr.bf16.mxu0 0
    %2760 = vmatpush1.bf16.msra.mxu0 %v2087
    %2761 = vmatprep.subr.bf16.mxu0 0
    %2762 = vmatpush1.bf16.msra.mxu0 %v2088
    %2763 = vmatprep.subr.bf16.mxu0 0
    %2764 = vmatpush1.bf16.msra.mxu0 %v2089
    %2765 = vmatprep.subr.bf16.mxu0 0
    %2766 = vmatpush1.bf16.msra.mxu0 %v2090
    %2767 = vmatprep.subr.bf16.mxu0 0
    %2768 = vmatpush1.bf16.msra.mxu0 %v2091
    %2769 = vmatprep.subr.bf16.mxu0 0
    %2770 = vmatpush1.bf16.msra.mxu0 %v2092
    %2771 = vmatprep.subr.bf16.mxu0 0
    %2772 = vmatpush1.bf16.msra.mxu0 %v2093
    %2773 = vmatprep.subr.bf16.mxu0 0
    %2774 = vmatpush1.bf16.msra.mxu0 %v2094
    %2775 = vmatprep.subr.bf16.mxu0 0
    %2776 = vmatpush1.bf16.msra.mxu0 %v2095
    %2777 = vmatprep.subr.bf16.mxu0 0
    %2778 = vmatpush1.bf16.msra.mxu0 %v2096
    %2779 = vmatprep.subr.bf16.mxu0 0
    %2780 = vmatpush1.bf16.msra.mxu0 %v2097
    %2781 = vmatprep.subr.bf16.mxu0 0
    %2782 = vmatpush1.bf16.msra.mxu0 %v2098
    %2783 = vmatprep.subr.bf16.mxu0 0
    %2784 = vmatpush1.bf16.msra.mxu0 %v2099
    %2785 = vmatprep.subr.bf16.mxu0 0
    %2786 = vmatpush1.bf16.msra.mxu0 %v2100
    %2787 = vmatprep.subr.bf16.mxu0 0
    %2788 = vmatpush1.bf16.msra.mxu0 %v2101
    %2789 = vmatprep.subr.bf16.mxu0 0
    %2790 = vmatpush1.bf16.msra.mxu0 %v2102
    %2791 = vmatprep.mubr.bf16.mxu0 %v701
    %2792 = vmatmul.mubr.bf16.gmra.mrb[0].mxu0 %v687
    %v2793 = vpop.f32.mrb[0].mxu0
    %v2794 = vadd.f32 %v2754, %v2793
    %v2795 = vpop.f32.mrb[0].mxu0
    %v2796 = vpop.f32.mrb[0].mxu0
    %v2797 = vpop.f32.mrb[0].mxu0
    %2798 = vdwg.mxu0
    %2799 = vmatprep.subr.bf16.mxu0 0
    %2800 = vmatpush1.bf16.msra.mxu0 %v2103
    %2801 = vmatprep.subr.bf16.mxu0 0
    %2802 = vmatpush1.bf16.msra.mxu0 %v2104
    %2803 = vmatprep.subr.bf16.mxu0 0
    %2804 = vmatpush1.bf16.msra.mxu0 %v2105
    %2805 = vmatprep.subr.bf16.mxu0 0
    %2806 = vmatpush1.bf16.msra.mxu0 %v2106
    %2807 = vmatprep.subr.bf16.mxu0 0
    %2808 = vmatpush1.bf16.msra.mxu0 %v2107
    %2809 = vmatprep.subr.bf16.mxu0 0
    %2810 = vmatpush1.bf16.msra.mxu0 %v2108
    %2811 = vmatprep.subr.bf16.mxu0 0
    %2812 = vmatpush1.bf16.msra.mxu0 %v2109
    %2813 = vmatprep.subr.bf16.mxu0 0
    %2814 = vmatpush1.bf16.msra.mxu0 %v2110
    %2815 = vmatprep.subr.bf16.mxu0 0
    %2816 = vmatpush1.bf16.msra.mxu0 %v2111
    %2817 = vmatprep.subr.bf16.mxu0 0
    %2818 = vmatpush1.bf16.msra.mxu0 %v2112
    %2819 = vmatprep.subr.bf16.mxu0 0
    %2820 = vmatpush1.bf16.msra.mxu0 %v2113
    %2821 = vmatprep.subr.bf16.mxu0 0
    %2822 = vmatpush1.bf16.msra.mxu0 %v2114
    %2823 = vmatprep.subr.bf16.mxu0 0
    %2824 = vmatpush1.bf16.msra.mxu0 %v2115
    %2825 = vmatprep.subr.bf16.mxu0 0
    %2826 = vmatpush1.bf16.msra.mxu0 %v2116
    %2827 = vmatprep.subr.bf16.mxu0 0
    %2828 = vmatpush1.bf16.msra.mxu0 %v2117
    %2829 = vmatprep.subr.bf16.mxu0 0
    %2830 = vmatpush1.bf16.msra.mxu0 %v2118
    %2831 = vmatprep.mubr.bf16.mxu0 %v711
    %2832 = vmatmul.mubr.bf16.gmra.mrb[0].mxu0 %v709
    %v2833 = vpop.f32.mrb[0].mxu0
    %v2834 = vadd.f32 %v2794, %v2833
    %v2835 = vpop.f32.mrb[0].mxu0
    %v2836 = vpop.f32.mrb[0].mxu0
    %v2837 = vpop.f32.mrb[0].mxu0
    %2838 = vdwg.mxu0
    %2839 = vmatprep.subr.bf16.mxu0 0
    %2840 = vmatpush1.bf16.msra.mxu0 %v2119
    %2841 = vmatprep.subr.bf16.mxu0 0
    %2842 = vmatpush1.bf16.msra.mxu0 %v2120
    %2843 = vmatprep.subr.bf16.mxu0 0
    %2844 = vmatpush1.bf16.msra.mxu0 %v2121
    %2845 = vmatprep.subr.bf16.mxu0 0
    %2846 = vmatpush1.bf16.msra.mxu0 %v2122
    %2847 = vmatprep.subr.bf16.mxu0 0
    %2848 = vmatpush1.bf16.msra.mxu0 %v2123
    %2849 = vmatprep.subr.bf16.mxu0 0
    %2850 = vmatpush1.bf16.msra.mxu0 %v2124
    %2851 = vmatprep.subr.bf16.mxu0 0
    %2852 = vmatpush1.bf16.msra.mxu0 %v2125
    %2853 = vmatprep.subr.bf16.mxu0 0
    %2854 = vmatpush1.bf16.msra.mxu0 %v2126
    %2855 = vmatprep.subr.bf16.mxu0 0
    %2856 = vmatpush1.bf16.msra.mxu0 %v2127
    %2857 = vmatprep.subr.bf16.mxu0 0
    %2858 = vmatpush1.bf16.msra.mxu0 %v2128
    %2859 = vmatprep.subr.bf16.mxu0 0
    %2860 = vmatpush1.bf16.msra.mxu0 %v2129
    %2861 = vmatprep.subr.bf16.mxu0 0
    %2862 = vmatpush1.bf16.msra.mxu0 %v2130
    %2863 = vmatprep.subr.bf16.mxu0 0
    %2864 = vmatpush1.bf16.msra.mxu0 %v2131
    %2865 = vmatprep.subr.bf16.mxu0 0
    %2866 = vmatpush1.bf16.msra.mxu0 %v2132
    %2867 = vmatprep.subr.bf16.mxu0 0
    %2868 = vmatpush1.bf16.msra.mxu0 %v2133
    %2869 = vmatprep.subr.bf16.mxu0 0
    %2870 = vmatpush1.bf16.msra.mxu0 %v2134
    %2871 = vmatprep.mubr.bf16.mxu0 %v708
    %2872 = vmatmul.mubr.bf16.gmra.mrb[0].mxu0 %v694
    %v2873 = vpop.f32.mrb[0].mxu0
    %v2874 = vadd.f32 %v2834, %v2873
    %v2875 = vpop.f32.mrb[0].mxu0
    %v2876 = vpop.f32.mrb[0].mxu0
    %v2877 = vpop.f32.mrb[0].mxu0
    %2878 = vdwg.mxu0
    %2879 = vmatprep.subr.bf16.mxu0 0
    %2880 = vmatpush1.bf16.msra.mxu0 %v2135
    %2881 = vmatprep.subr.bf16.mxu0 0
    %2882 = vmatpush1.bf16.msra.mxu0 %v2136
    %2883 = vmatprep.subr.bf16.mxu0 0
    %2884 = vmatpush1.bf16.msra.mxu0 %v2137
    %2885 = vmatprep.subr.bf16.mxu0 0
    %2886 = vmatpush1.bf16.msra.mxu0 %v2138
    %2887 = vmatprep.subr.bf16.mxu0 0
    %2888 = vmatpush1.bf16.msra.mxu0 %v2139
    %2889 = vmatprep.subr.bf16.mxu0 0
    %2890 = vmatpush1.bf16.msra.mxu0 %v2140
    %2891 = vmatprep.subr.bf16.mxu0 0
    %2892 = vmatpush1.bf16.msra.mxu0 %v2141
    %2893 = vmatprep.subr.bf16.mxu0 0
    %2894 = vmatpush1.bf16.msra.mxu0 %v2142
    %2895 = vmatprep.subr.bf16.mxu0 0
    %2896 = vmatpush1.bf16.msra.mxu0 %v2143
    %2897 = vmatprep.subr.bf16.mxu0 0
    %2898 = vmatpush1.bf16.msra.mxu0 %v2144
    %2899 = vmatprep.subr.bf16.mxu0 0
    %2900 = vmatpush1.bf16.msra.mxu0 %v2145
    %2901 = vmatprep.subr.bf16.mxu0 0
    %2902 = vmatpush1.bf16.msra.mxu0 %v2146
    %2903 = vmatprep.subr.bf16.mxu0 0
    %2904 = vmatpush1.bf16.msra.mxu0 %v2147
    %2905 = vmatprep.subr.bf16.mxu0 0
    %2906 = vmatpush1.bf16.msra.mxu0 %v2148
    %2907 = vmatprep.subr.bf16.mxu0 0
    %2908 = vmatpush1.bf16.msra.mxu0 %v2149
    %2909 = vmatprep.subr.bf16.mxu0 0
    %2910 = vmatpush1.bf16.msra.mxu0 %v2150
    %2911 = vmatprep.mubr.bf16.mxu0 %v712
    %2912 = vmatmul.mubr.bf16.gmra.mrb[0].mxu0 %v710
    %v2913 = vpop.f32.mrb[0].mxu0
    %v2914 = vadd.f32 %v2874, %v2913
    %v2915 = vpop.f32.mrb[0].mxu0
    %v2916 = vpop.f32.mrb[0].mxu0
    %v2917 = vpop.f32.mrb[0].mxu0
    %2918 = vdwg.mxu0
    %2919 = vmatprep.subr.bf16.mxu0 0
    %2920 = vmatpush1.bf16.msra.mxu0 %v2151
    %2921 = vmatprep.subr.bf16.mxu0 0
    %2922 = vmatpush1.bf16.msra.mxu0 %v2152
    %2923 = vmatprep.subr.bf16.mxu0 0
    %2924 = vmatpush1.bf16.msra.mxu0 %v2153
    %2925 = vmatprep.subr.bf16.mxu0 0
    %2926 = vmatpush1.bf16.msra.mxu0 %v2154
    %2927 = vmatprep.subr.bf16.mxu0 0
    %2928 = vmatpush1.bf16.msra.mxu0 %v2155
    %2929 = vmatprep.subr.bf16.mxu0 0
    %2930 = vmatpush1.bf16.msra.mxu0 %v2156
    %2931 = vmatprep.subr.bf16.mxu0 0
    %2932 = vmatpush1.bf16.msra.mxu0 %v2157
    %2933 = vmatprep.subr.bf16.mxu0 0
    %2934 = vmatpush1.bf16.msra.mxu0 %v2158
    %2935 = vmatprep.subr.bf16.mxu0 0
    %2936 = vmatpush1.bf16.msra.mxu0 %v2159
    %2937 = vmatprep.subr.bf16.mxu0 0
    %2938 = vmatpush1.bf16.msra.mxu0 %v2160
    %2939 = vmatprep.subr.bf16.mxu0 0
    %2940 = vmatpush1.bf16.msra.mxu0 %v2161
    %2941 = vmatprep.subr.bf16.mxu0 0
    %2942 = vmatpush1.bf16.msra.mxu0 %v2162
    %2943 = vmatprep.subr.bf16.mxu0 0
    %2944 = vmatpush1.bf16.msra.mxu0 %v2163
    %2945 = vmatprep.subr.bf16.mxu0 0
    %2946 = vmatpush1.bf16.msra.mxu0 %v2164
    %2947 = vmatprep.subr.bf16.mxu0 0
    %2948 = vmatpush1.bf16.msra.mxu0 %v2165
    %2949 = vmatprep.subr.bf16.mxu0 0
    %2950 = vmatpush1.bf16.msra.mxu0 %v2166
    %2951 = vmatprep.mubr.bf16.mxu0 %v750
    %2952 = vmatmul.mubr.bf16.gmra.mrb[0].mxu0 %v736
    %v2953 = vpop.f32.mrb[0].mxu0
    %v2954 = vadd.f32 %v2914, %v2953
    %v2955 = vpop.f32.mrb[0].mxu0
    %v2956 = vpop.f32.mrb[0].mxu0
    %v2957 = vpop.f32.mrb[0].mxu0
    %2958 = vdwg.mxu0
    %2959 = vmatprep.subr.bf16.mxu0 0
    %2960 = vmatpush1.bf16.msra.mxu0 %v2167
    %2961 = vmatprep.subr.bf16.mxu0 0
    %2962 = vmatpush1.bf16.msra.mxu0 %v2168
    %2963 = vmatprep.subr.bf16.mxu0 0
    %2964 = vmatpush1.bf16.msra.mxu0 %v2169
    %2965 = vmatprep.subr.bf16.mxu0 0
    %2966 = vmatpush1.bf16.msra.mxu0 %v2170
    %2967 = vmatprep.subr.bf16.mxu0 0
    %2968 = vmatpush1.bf16.msra.mxu0 %v2171
    %2969 = vmatprep.subr.bf16.mxu0 0
    %2970 = vmatpush1.bf16.msra.mxu0 %v2172
    %2971 = vmatprep.subr.bf16.mxu0 0
    %2972 = vmatpush1.bf16.msra.mxu0 %v2173
    %2973 = vmatprep.subr.bf16.mxu0 0
    %2974 = vmatpush1.bf16.msra.mxu0 %v2174
    %2975 = vmatprep.subr.bf16.mxu0 0
    %2976 = vmatpush1.bf16.msra.mxu0 %v2175
    %2977 = vmatprep.subr.bf16.mxu0 0
    %2978 = vmatpush1.bf16.msra.mxu0 %v2176
    %2979 = vmatprep.subr.bf16.mxu0 0
    %2980 = vmatpush1.bf16.msra.mxu0 %v2177
    %2981 = vmatprep.subr.bf16.mxu0 0
    %2982 = vmatpush1.bf16.msra.mxu0 %v2178
    %2983 = vmatprep.subr.bf16.mxu0 0
    %2984 = vmatpush1.bf16.msra.mxu0 %v2179
    %2985 = vmatprep.subr.bf16.mxu0 0
    %2986 = vmatpush1.bf16.msra.mxu0 %v2180
    %2987 = vmatprep.subr.bf16.mxu0 0
    %2988 = vmatpush1.bf16.msra.mxu0 %v2181
    %2989 = vmatprep.subr.bf16.mxu0 0
    %2990 = vmatpush1.bf16.msra.mxu0 %v2182
    %2991 = vmatprep.mubr.bf16.mxu0 %v760
    %2992 = vmatmul.mubr.bf16.gmra.mrb[0].mxu0 %v758
    %v2993 = vpop.f32.mrb[0].mxu0
    %v2994 = vadd.f32 %v2954, %v2993
    %v2995 = vpop.f32.mrb[0].mxu0
    %v2996 = vpop.f32.mrb[0].mxu0
    %v2997 = vpop.f32.mrb[0].mxu0
    %2998 = vdwg.mxu0
    %2999 = vmatprep.subr.bf16.mxu0 0
    %3000 = vmatpush1.bf16.msra.mxu0 %v2183
    %3001 = vmatprep.subr.bf16.mxu0 0
    %3002 = vmatpush1.bf16.msra.mxu0 %v2184
    %3003 = vmatprep.subr.bf16.mxu0 0
    %3004 = vmatpush1.bf16.msra.mxu0 %v2185
    %3005 = vmatprep.subr.bf16.mxu0 0
    %3006 = vmatpush1.bf16.msra.mxu0 %v2186
    %3007 = vmatprep.subr.bf16.mxu0 0
    %3008 = vmatpush1.bf16.msra.mxu0 %v2187
    %3009 = vmatprep.subr.bf16.mxu0 0
    %3010 = vmatpush1.bf16.msra.mxu0 %v2188
    %3011 = vmatprep.subr.bf16.mxu0 0
    %3012 = vmatpush1.bf16.msra.mxu0 %v2189
    %3013 = vmatprep.subr.bf16.mxu0 0
    %3014 = vmatpush1.bf16.msra.mxu0 %v2190
    %3015 = vmatprep.subr.bf16.mxu0 0
    %3016 = vmatpush1.bf16.msra.mxu0 %v2191
    %3017 = vmatprep.subr.bf16.mxu0 0
    %3018 = vmatpush1.bf16.msra.mxu0 %v2192
    %3019 = vmatprep.subr.bf16.mxu0 0
    %3020 = vmatpush1.bf16.msra.mxu0 %v2193
    %3021 = vmatprep.subr.bf16.mxu0 0
    %3022 = vmatpush1.bf16.msra.mxu0 %v2194
    %3023 = vmatprep.subr.bf16.mxu0 0
    %3024 = vmatpush1.bf16.msra.mxu0 %v2195
    %3025 = vmatprep.subr.bf16.mxu0 0
    %3026 = vmatpush1.bf16.msra.mxu0 %v2196
    %3027 = vmatprep.subr.bf16.mxu0 0
    %3028 = vmatpush1.bf16.msra.mxu0 %v2197
    %3029 = vmatprep.subr.bf16.mxu0 0
    %3030 = vmatpush1.bf16.msra.mxu0 %v2198
    %3031 = vmatprep.mubr.bf16.mxu0 %v757
    %3032 = vmatmul.mubr.bf16.gmra.mrb[0].mxu0 %v743
    %v3033 = vpop.f32.mrb[0].mxu0
    %v3034 = vadd.f32 %v2994, %v3033
    %v3035 = vpop.f32.mrb[0].mxu0
    %v3036 = vpop.f32.mrb[0].mxu0
    %v3037 = vpop.f32.mrb[0].mxu0
    %3038 = vdwg.mxu0
    %3039 = vmatprep.subr.bf16.mxu0 0
    %3040 = vmatpush1.bf16.msra.mxu0 %v2199
    %3041 = vmatprep.subr.bf16.mxu0 0
    %3042 = vmatpush1.bf16.msra.mxu0 %v2200
    %3043 = vmatprep.subr.bf16.mxu0 0
    %3044 = vmatpush1.bf16.msra.mxu0 %v2201
    %3045 = vmatprep.subr.bf16.mxu0 0
    %3046 = vmatpush1.bf16.msra.mxu0 %v2202
    %3047 = vmatprep.subr.bf16.mxu0 0
    %3048 = vmatpush1.bf16.msra.mxu0 %v2203
    %3049 = vmatprep.subr.bf16.mxu0 0
    %3050 = vmatpush1.bf16.msra.mxu0 %v2204
    %3051 = vmatprep.subr.bf16.mxu0 0
    %3052 = vmatpush1.bf16.msra.mxu0 %v2205
    %3053 = vmatprep.subr.bf16.mxu0 0
    %3054 = vmatpush1.bf16.msra.mxu0 %v2206
    %3055 = vmatprep.subr.bf16.mxu0 0
    %3056 = vmatpush1.bf16.msra.mxu0 %v2207
    %3057 = vmatprep.subr.bf16.mxu0 0
    %3058 = vmatpush1.bf16.msra.mxu0 %v2208
    %3059 = vmatprep.subr.bf16.mxu0 0
    %3060 = vmatpush1.bf16.msra.mxu0 %v2209
    %3061 = vmatprep.subr.bf16.mxu0 0
    %3062 = vmatpush1.bf16.msra.mxu0 %v2210
    %3063 = vmatprep.subr.bf16.mxu0 0
    %3064 = vmatpush1.bf16.msra.mxu0 %v2211
    %3065 = vmatprep.subr.bf16.mxu0 0
    %3066 = vmatpush1.bf16.msra.mxu0 %v2212
    %3067 = vmatprep.subr.bf16.mxu0 0
    %3068 = vmatpush1.bf16.msra.mxu0 %v2213
    %3069 = vmatprep.subr.bf16.mxu0 0
    %3070 = vmatpush1.bf16.msra.mxu0 %v2214
    %3071 = vmatprep.mubr.bf16.mxu0 %v761
    %3072 = vmatmul.mubr.bf16.gmra.mrb[0].mxu0 %v759
    %v3073 = vpop.f32.mrb[0].mxu0
    %v3074 = vadd.f32 %v3034, %v3073
    %v3075 = vpop.f32.mrb[0].mxu0
    %v3076 = vpop.f32.mrb[0].mxu0
    %v3077 = vpop.f32.mrb[0].mxu0
    %3078 = vdwg.mxu0
    %3079 = vmatprep.subr.bf16.mxu0 0
    %3080 = vmatpush1.bf16.msra.mxu0 %v2215
    %3081 = vmatprep.subr.bf16.mxu0 0
    %3082 = vmatpush1.bf16.msra.mxu0 %v2216
    %3083 = vmatprep.subr.bf16.mxu0 0
    %3084 = vmatpush1.bf16.msra.mxu0 %v2217
    %3085 = vmatprep.subr.bf16.mxu0 0
    %3086 = vmatpush1.bf16.msra.mxu0 %v2218
    %3087 = vmatprep.subr.bf16.mxu0 0
    %3088 = vmatpush1.bf16.msra.mxu0 %v2219
    %3089 = vmatprep.subr.bf16.mxu0 0
    %3090 = vmatpush1.bf16.msra.mxu0 %v2220
    %3091 = vmatprep.subr.bf16.mxu0 0
    %3092 = vmatpush1.bf16.msra.mxu0 %v2221
    %3093 = vmatprep.subr.bf16.mxu0 0
    %3094 = vmatpush1.bf16.msra.mxu0 %v2222
    %3095 = vmatprep.subr.bf16.mxu0 0
    %3096 = vmatpush1.bf16.msra.mxu0 %v2223
    %3097 = vmatprep.subr.bf16.mxu0 0
    %3098 = vmatpush1.bf16.msra.mxu0 %v2224
    %3099 = vmatprep.subr.bf16.mxu0 0
    %3100 = vmatpush1.bf16.msra.mxu0 %v2225
    %3101 = vmatprep.subr.bf16.mxu0 0
    %3102 = vmatpush1.bf16.msra.mxu0 %v2226
    %3103 = vmatprep.subr.bf16.mxu0 0
    %3104 = vmatpush1.bf16.msra.mxu0 %v2227
    %3105 = vmatprep.subr.bf16.mxu0 0
    %3106 = vmatpush1.bf16.msra.mxu0 %v2228
    %3107 = vmatprep.subr.bf16.mxu0 0
    %3108 = vmatpush1.bf16.msra.mxu0 %v2229
    %3109 = vmatprep.subr.bf16.mxu0 0
    %3110 = vmatpush1.bf16.msra.mxu0 %v2230
    %3111 = vmatprep.mubr.bf16.mxu0 %v799
    %3112 = vmatmul.mubr.bf16.gmra.mrb[0].mxu0 %v785
    %v3113 = vpop.f32.mrb[0].mxu0
    %v3114 = vadd.f32 %v3074, %v3113
    %v3115 = vpop.f32.mrb[0].mxu0
    %v3116 = vpop.f32.mrb[0].mxu0
    %v3117 = vpop.f32.mrb[0].mxu0
    %3118 = vdwg.mxu0
    %3119 = vmatprep.subr.bf16.mxu0 0
    %3120 = vmatpush1.bf16.msra.mxu0 %v2231
    %3121 = vmatprep.subr.bf16.mxu0 0
    %3122 = vmatpush1.bf16.msra.mxu0 %v2232
    %3123 = vmatprep.subr.bf16.mxu0 0
    %3124 = vmatpush1.bf16.msra.mxu0 %v2233
    %3125 = vmatprep.subr.bf16.mxu0 0
    %3126 = vmatpush1.bf16.msra.mxu0 %v2234
    %3127 = vmatprep.subr.bf16.mxu0 0
    %3128 = vmatpush1.bf16.msra.mxu0 %v2235
    %3129 = vmatprep.subr.bf16.mxu0 0
    %3130 = vmatpush1.bf16.msra.mxu0 %v2236
    %3131 = vmatprep.subr.bf16.mxu0 0
    %3132 = vmatpush1.bf16.msra.mxu0 %v2237
    %3133 = vmatprep.subr.bf16.mxu0 0
    %3134 = vmatpush1.bf16.msra.mxu0 %v2238
    %3135 = vmatprep.subr.bf16.mxu0 0
    %3136 = vmatpush1.bf16.msra.mxu0 %v2239
    %3137 = vmatprep.subr.bf16.mxu0 0
    %3138 = vmatpush1.bf16.msra.mxu0 %v2240
    %3139 = vmatprep.subr.bf16.mxu0 0
    %3140 = vmatpush1.bf16.msra.mxu0 %v2241
    %3141 = vmatprep.subr.bf16.mxu0 0
    %3142 = vmatpush1.bf16.msra.mxu0 %v2242
    %3143 = vmatprep.subr.bf16.mxu0 0
    %3144 = vmatpush1.bf16.msra.mxu0 %v2243
    %3145 = vmatprep.subr.bf16.mxu0 0
    %3146 = vmatpush1.bf16.msra.mxu0 %v2244
    %3147 = vmatprep.subr.bf16.mxu0 0
    %3148 = vmatpush1.bf16.msra.mxu0 %v2245
    %3149 = vmatprep.subr.bf16.mxu0 0
    %3150 = vmatpush1.bf16.msra.mxu0 %v2246
    %3151 = vmatprep.mubr.bf16.mxu0 %v809
    %3152 = vmatmul.mubr.bf16.gmra.mrb[0].mxu0 %v807
    %v3153 = vpop.f32.mrb[0].mxu0
    %v3154 = vadd.f32 %v3114, %v3153
    %v3155 = vpop.f32.mrb[0].mxu0
    %v3156 = vpop.f32.mrb[0].mxu0
    %v3157 = vpop.f32.mrb[0].mxu0
    %3158 = vdwg.mxu0
    %3159 = vmatprep.subr.bf16.mxu0 0
    %3160 = vmatpush1.bf16.msra.mxu0 %v2247
    %3161 = vmatprep.subr.bf16.mxu0 0
    %3162 = vmatpush1.bf16.msra.mxu0 %v2248
    %3163 = vmatprep.subr.bf16.mxu0 0
    %3164 = vmatpush1.bf16.msra.mxu0 %v2249
    %3165 = vmatprep.subr.bf16.mxu0 0
    %3166 = vmatpush1.bf16.msra.mxu0 %v2250
    %3167 = vmatprep.subr.bf16.mxu0 0
    %3168 = vmatpush1.bf16.msra.mxu0 %v2251
    %3169 = vmatprep.subr.bf16.mxu0 0
    %3170 = vmatpush1.bf16.msra.mxu0 %v2252
    %3171 = vmatprep.subr.bf16.mxu0 0
    %3172 = vmatpush1.bf16.msra.mxu0 %v2253
    %3173 = vmatprep.subr.bf16.mxu0 0
    %3174 = vmatpush1.bf16.msra.mxu0 %v2254
    %3175 = vmatprep.subr.bf16.mxu0 0
    %3176 = vmatpush1.bf16.msra.mxu0 %v2255
    %3177 = vmatprep.subr.bf16.mxu0 0
    %3178 = vmatpush1.bf16.msra.mxu0 %v2256
    %3179 = vmatprep.subr.bf16.mxu0 0
    %3180 = vmatpush1.bf16.msra.mxu0 %v2257
    %3181 = vmatprep.subr.bf16.mxu0 0
    %3182 = vmatpush1.bf16.msra.mxu0 %v2258
    %3183 = vmatprep.subr.bf16.mxu0 0
    %3184 = vmatpush1.bf16.msra.mxu0 %v2259
    %3185 = vmatprep.subr.bf16.mxu0 0
    %3186 = vmatpush1.bf16.msra.mxu0 %v2260
    %3187 = vmatprep.subr.bf16.mxu0 0
    %3188 = vmatpush1.bf16.msra.mxu0 %v2261
    %3189 = vmatprep.subr.bf16.mxu0 0
    %3190 = vmatpush1.bf16.msra.mxu0 %v2262
    %3191 = vmatprep.mubr.bf16.mxu0 %v806
    %3192 = vmatmul.mubr.bf16.gmra.mrb[0].mxu0 %v792
    %v3193 = vpop.f32.mrb[0].mxu0
    %v3194 = vadd.f32 %v3154, %v3193
    %v3195 = vpop.f32.mrb[0].mxu0
    %v3196 = vpop.f32.mrb[0].mxu0
    %v3197 = vpop.f32.mrb[0].mxu0
    %3198 = vdwg.mxu0
    %3199 = vmatprep.subr.bf16.mxu0 0
    %3200 = vmatpush1.bf16.msra.mxu0 %v2263
    %3201 = vmatprep.subr.bf16.mxu0 0
    %3202 = vmatpush1.bf16.msra.mxu0 %v2264
    %3203 = vmatprep.subr.bf16.mxu0 0
    %3204 = vmatpush1.bf16.msra.mxu0 %v2265
    %3205 = vmatprep.subr.bf16.mxu0 0
    %3206 = vmatpush1.bf16.msra.mxu0 %v2266
    %3207 = vmatprep.subr.bf16.mxu0 0
    %3208 = vmatpush1.bf16.msra.mxu0 %v2267
    %3209 = vmatprep.subr.bf16.mxu0 0
    %3210 = vmatpush1.bf16.msra.mxu0 %v2268
    %3211 = vmatprep.subr.bf16.mxu0 0
    %3212 = vmatpush1.bf16.msra.mxu0 %v2269
    %3213 = vmatprep.subr.bf16.mxu0 0
    %3214 = vmatpush1.bf16.msra.mxu0 %v2270
    %3215 = vmatprep.subr.bf16.mxu0 0
    %3216 = vmatpush1.bf16.msra.mxu0 %v2271
    %3217 = vmatprep.subr.bf16.mxu0 0
    %3218 = vmatpush1.bf16.msra.mxu0 %v2272
    %3219 = vmatprep.subr.bf16.mxu0 0
    %3220 = vmatpush1.bf16.msra.mxu0 %v2273
    %3221 = vmatprep.subr.bf16.mxu0 0
    %3222 = vmatpush1.bf16.msra.mxu0 %v2274
    %3223 = vmatprep.subr.bf16.mxu0 0
    %3224 = vmatpush1.bf16.msra.mxu0 %v2275
    %3225 = vmatprep.subr.bf16.mxu0 0
    %3226 = vmatpush1.bf16.msra.mxu0 %v2276
    %3227 = vmatprep.subr.bf16.mxu0 0
    %3228 = vmatpush1.bf16.msra.mxu0 %v2277
    %3229 = vmatprep.subr.bf16.mxu0 0
    %3230 = vmatpush1.bf16.msra.mxu0 %v2278
    %3231 = vmatprep.mubr.bf16.mxu0 %v810
    %3232 = vmatmul.mubr.bf16.gmra.mrb[0].mxu0 %v808
    %v3233 = vpop.f32.mrb[0].mxu0
    %v3234 = vadd.f32 %v3194, %v3233
    %v3235 = vpop.f32.mrb[0].mxu0
    %v3236 = vpop.f32.mrb[0].mxu0
    %v3237 = vpop.f32.mrb[0].mxu0
    %3238 = vdwg.mxu0
    %3239 = vmatprep.subr.bf16.mxu0 0
    %3240 = vmatpush1.bf16.msra.mxu0 %v2279
    %3241 = vmatprep.subr.bf16.mxu0 0
    %3242 = vmatpush1.bf16.msra.mxu0 %v2280
    %3243 = vmatprep.subr.bf16.mxu0 0
    %3244 = vmatpush1.bf16.msra.mxu0 %v2281
    %3245 = vmatprep.subr.bf16.mxu0 0
    %3246 = vmatpush1.bf16.msra.mxu0 %v2282
    %3247 = vmatprep.subr.bf16.mxu0 0
    %3248 = vmatpush1.bf16.msra.mxu0 %v2283
    %3249 = vmatprep.subr.bf16.mxu0 0
    %3250 = vmatpush1.bf16.msra.mxu0 %v2284
    %3251 = vmatprep.subr.bf16.mxu0 0
    %3252 = vmatpush1.bf16.msra.mxu0 %v2285
    %3253 = vmatprep.subr.bf16.mxu0 0
    %3254 = vmatpush1.bf16.msra.mxu0 %v2286
    %3255 = vmatprep.subr.bf16.mxu0 0
    %3256 = vmatpush1.bf16.msra.mxu0 %v2287
    %3257 = vmatprep.subr.bf16.mxu0 0
    %3258 = vmatpush1.bf16.msra.mxu0 %v2288
    %3259 = vmatprep.subr.bf16.mxu0 0
    %3260 = vmatpush1.bf16.msra.mxu0 %v2289
    %3261 = vmatprep.subr.bf16.mxu0 0
    %3262 = vmatpush1.bf16.msra.mxu0 %v2290
    %3263 = vmatprep.subr.bf16.mxu0 0
    %3264 = vmatpush1.bf16.msra.mxu0 %v2291
    %3265 = vmatprep.subr.bf16.mxu0 0
    %3266 = vmatpush1.bf16.msra.mxu0 %v2292
    %3267 = vmatprep.subr.bf16.mxu0 0
    %3268 = vmatpush1.bf16.msra.mxu0 %v2293
    %3269 = vmatprep.subr.bf16.mxu0 0
    %3270 = vmatpush1.bf16.msra.mxu0 %v2294
    %3271 = vmatprep.mubr.bf16.mxu0 %v832
    %3272 = vmatmul.mubr.bf16.gmra.mrb[0].mxu0 %v825
    %v3273 = vpop.f32.mrb[0].mxu0
    %v3274 = vadd.f32 %v3234, %v3273
    %v3275 = vpop.f32.mrb[0].mxu0
    %v3276 = vpop.f32.mrb[0].mxu0
    %v3277 = vpop.f32.mrb[0].mxu0
    %3278 = vdwg.mxu0
    %3279 = vmatprep.subr.bf16.mxu0 0
    %3280 = vmatpush1.bf16.msra.mxu0 %v2295
    %3281 = vmatprep.subr.bf16.mxu0 0
    %3282 = vmatpush1.bf16.msra.mxu0 %v2296
    %3283 = vmatprep.subr.bf16.mxu0 0
    %3284 = vmatpush1.bf16.msra.mxu0 %v2297
    %3285 = vmatprep.subr.bf16.mxu0 0
    %3286 = vmatpush1.bf16.msra.mxu0 %v2298
    %3287 = vmatprep.subr.bf16.mxu0 0
    %3288 = vmatpush1.bf16.msra.mxu0 %v2299
    %3289 = vmatprep.subr.bf16.mxu0 0
    %3290 = vmatpush1.bf16.msra.mxu0 %v2300
    %3291 = vmatprep.subr.bf16.mxu0 0
    %3292 = vmatpush1.bf16.msra.mxu0 %v2301
    %3293 = vmatprep.subr.bf16.mxu0 0
    %3294 = vmatpush1.bf16.msra.mxu0 %v2302
    %3295 = vmatprep.subr.bf16.mxu0 0
    %3296 = vmatpush1.bf16.msra.mxu0 %v2303
    %3297 = vmatprep.subr.bf16.mxu0 0
    %3298 = vmatpush1.bf16.msra.mxu0 %v2304
    %3299 = vmatprep.subr.bf16.mxu0 0
    %3300 = vmatpush1.bf16.msra.mxu0 %v2305
    %3301 = vmatprep.subr.bf16.mxu0 0
    %3302 = vmatpush1.bf16.msra.mxu0 %v2306
    %3303 = vmatprep.subr.bf16.mxu0 0
    %3304 = vmatpush1.bf16.msra.mxu0 %v2307
    %3305 = vmatprep.subr.bf16.mxu0 0
    %3306 = vmatpush1.bf16.msra.mxu0 %v2308
    %3307 = vmatprep.subr.bf16.mxu0 0
    %3308 = vmatpush1.bf16.msra.mxu0 %v2309
    %3309 = vmatprep.subr.bf16.mxu0 0
    %3310 = vmatpush1.bf16.msra.mxu0 %v2310
    %3311 = vmatprep.mubr.bf16.mxu0 %v834
    %3312 = vmatmul.mubr.bf16.gmra.mrb[0].mxu0 %v833
    %v3313 = vpop.f32.mrb[0].mxu0
    %v3314 = vadd.f32 %v3274, %v3313
    %v3315 = vpop.f32.mrb[0].mxu0
    %v3316 = vpop.f32.mrb[0].mxu0
    %v3317 = vpop.f32.mrb[0].mxu0
    %3318 = vdwg.mxu0
    %v3319 = vmax.f32 %v3314, 0.0
    %v3320 = vpack.c.bf16 %v3319, %v3319
    %v3321 = vld [vmem:[%s3] sm:$0xf]
    %v3322 = vld [vmem:[%s3 + $0x4] sm:$0xf]
    %v3323 = vld [vmem:[%s3 + $0x8] sm:$0xf]
    %v3324 = vld [vmem:[%s3 + $0xc] sm:$0xf]
    %v3325 = vld [vmem:[%s3 + $0x10] sm:$0xf]
    %v3326 = vld [vmem:[%s3 + $0x14] sm:$0xf]
    %v3327 = vld [vmem:[%s3 + $0x18] sm:$0xf]
    %v3328 = vld [vmem:[%s3 + $0x1c] sm:$0xf]
    %v3329 = vld [vmem:[%s3 + $0x20] sm:$0xf]
    %v3330 = vld [vmem:[%s3 + $0x24] sm:$0xf]
    %v3331 = vld [vmem:[%s3 + $0x28] sm:$0xf]
    %v3332 = vld [vmem:[%s3 + $0x2c] sm:$0xf]
    %v3333 = vld [vmem:[%s3 + $0x30] sm:$0x3]
    %v3334 = vld [vmem:[%s4] sm:$0x1]
    %v3336 = vlaneseq
    %v3337 = vshrl.u32 %v3336, 7
    %v3338 = vsub.s32 0, %v3337
    %v3339 = vrot.slane %v3334, %v3338
    %v3354 = vunpack.c.l.b16 %v3321
    %v3355 = vunpack.c.l.b16 %v3322
    %v3356 = vunpack.c.l.b16 %v3323
    %v3357 = vunpack.c.l.b16 %v3324
    %v3358 = vunpack.c.l.b16 %v3325
    %v3359 = vunpack.c.l.b16 %v3326
    %v3360 = vunpack.c.l.b16 %v3327
    %v3361 = vunpack.c.l.b16 %v3328
    %v3362 = vunpack.c.l.b16 %v3329
    %v3363 = vunpack.c.l.b16 %v3330
    %v3364 = vunpack.c.l.b16 %v3331
    %v3365 = vunpack.c.l.b16 %v3332
    %v3366 = vunpack.c.l.b16 %v3333
    %v3367 = vpack.c.b16 %v3355, %v3354
    %v3368 = vpack.c.b16 %v3357, %v3356
    %v3369 = vpack.c.b16 %v3359, %v3358
    %v3370 = vpack.c.b16 %v3361, %v3360
    %v3371 = vpack.c.b16 %v3363, %v3362
    %v3372 = vpack.c.b16 %v3365, %v3364
    %v3373 = vpack.c.b16 %v3366, %v3366
    %vm3380 = vcmask 818176
    %v3382 = vsel %vm3380, %v3320, 0
    %vm3384 = vcmask 1041408
    %v3386 = vsel %vm3384, %v3373, 0
    %3388 = vmatprep.subr.bf16.mxu0 0
    %3389 = vmatpush1.bf16.msra.mxu0 %v3367
    %3390 = vmatprep.subr.bf16.mxu0 0
    %3391 = vmatpush1.bf16.msra.mxu0 %v3368
    %3392 = vmatprep.subr.bf16.mxu0 0
    %3393 = vmatpush1.bf16.msra.mxu0 %v3369
    %3394 = vmatprep.subr.bf16.mxu0 0
    %3395 = vmatpush1.bf16.msra.mxu0 %v3370
    %3396 = vmatprep.subr.bf16.mxu0 0
    %3397 = vmatpush1.bf16.msra.mxu0 %v3371
    %3398 = vmatprep.subr.bf16.mxu0 0
    %3399 = vmatpush1.bf16.msra.mxu0 %v3372
    %3400 = vmatprep.subr.bf16.mxu0 0
    %3401 = vmatpush1.bf16.msra.mxu0 %v3386
    %3402 = vmatprep.subr.bf16.mxu0 0
    %3403 = vmatpush1.bf16.msra.mxu0 0
    %3404 = vmatprep.subr.bf16.mxu0 0
    %3405 = vmatpush1.bf16.msra.mxu0 0
    %3406 = vmatprep.subr.bf16.mxu0 0
    %3407 = vmatpush1.bf16.msra.mxu0 0
    %3408 = vmatprep.subr.bf16.mxu0 0
    %3409 = vmatpush1.bf16.msra.mxu0 0
    %3410 = vmatprep.subr.bf16.mxu0 0
    %3411 = vmatpush1.bf16.msra.mxu0 0
    %3412 = vmatprep.subr.bf16.mxu0 0
    %3413 = vmatpush1.bf16.msra.mxu0 0
    %3414 = vmatprep.subr.bf16.mxu0 0
    %3415 = vmatpush1.bf16.msra.mxu0 0
    %3416 = vmatprep.subr.bf16.mxu0 0
    %3417 = vmatpush1.bf16.msra.mxu0 0
    %3418 = vmatprep.subr.bf16.mxu0 0
    %3419 = vmatpush1.bf16.msra.mxu0 0
    %3420 = vmatprep.mubr.bf16.mxu0 0
    %3421 = vmatmul.mubr.bf16.gmra.mrb[0].mxu0 %v3382
    %v3422 = vpop.f32.mrb[0].mxu0
    %v3423 = vadd.f32 %v3339, %v3422
    %v3424 = vpop.f32.mrb[0].mxu0
    %v3425 = vpop.f32.mrb[0].mxu0
    %v3426 = vpop.f32.mrb[0].mxu0
    %3427 = vdwg.mxu0
    %v3428 = vmax.f32 %v3423, 0.0
    %vm3429 = vcmask 402432
    %3430 = vst.msk [vmem:[#allocation2] sm:$0x3] %vm3429, %v3428
    // Predicated region
    $region22: #{rbg_conv_forward.3} parent=1 // pred_check
      _
    $region23: #{rbg_conv_forward.3} parent=1 // pred_check_branch
      %3432 = sbr.rel (0) target = $region25
    $region24: #{rbg_conv_forward.3} parent=1 // pred_region
      %s3434 = ssub.s32 32, 32
      %3435 = vsyncadd [#allocation3], %s3434
      %s3437 = sshll.u32 [#allocation2], 4
      %s3438 = int_to_ptr.vmem [resolvable:$true] %s3437
      %3440 = dma.vmem_to_hbm [thread:$0]  %s3438, 32, %s5, [#allocation3]
    $region25: #{rbg_conv_forward.3} parent=1 // pred_fallthru
      _
    // Predicated region
    $region26: #{rbg_conv_forward.3} parent=1 // pred_check
      _
    $region27: #{rbg_conv_forward.3} parent=1 // pred_check_branch
      %3442 = sbr.rel (0) target = $region29
    $region28: #{rbg_conv_forward.3} parent=1 // pred_region
      %3443 = dma.done [#allocation3], 32
    $region29: #{rbg_conv_forward.3} parent=1 // pred_fallthru
      _
    %3444 = vsyncpa [#allocation3], 1

// kernel: rbg_conv_forward.2
$region0: #{rbg_conv_forward.2}
  #allocation0 [shape = 'u32[]', space=smem, size = 0x4, offset = 0x4, fixed_abs, tag = 'smem constant byte address 0x4 - core index']
  #allocation1 [shape = 'u32[144,128]{1,0:T(1,128)}', space=vmem, size = 0x12000, scoped, tag = 'internal scratch']
  #allocation2 [shape = 'f32[2,24,384]{2,1,0:T(8,128)}', space=vmem, size = 0x12000, scoped, tag = 'scratch operand']
  %s0 = inlined_call_operand.vmem [shape: bf16[2,4,13,150], index: 0, kind: input, shape index: {}]
  %s1 = inlined_call_operand.hbm [shape: bf16[3,150,768], index: 1, kind: input, shape index: {}]
  %s2 = inlined_call_operand.hbm [shape: f32[1,384], index: 2, kind: input, shape index: {}]
  %s3 = inlined_call_operand.hbm [shape: bf16[3,384,768], index: 3, kind: input, shape index: {}]
  %s4 = inlined_call_operand.hbm [shape: f32[1,384], index: 4, kind: input, shape index: {}]
  %s5 = inlined_call_operand.vmem [shape: bf16[2,12,384], index: 5, kind: output, shape index: {}]
  %s6 = sld [smem:[#allocation0]]
  $region69: #{rbg_conv_forward.2} parent=0
    _
  %s8 = ssub.s32 1, %s6
  %s9 = scalar_select 0, %s8, %s6
  $region1: #{rbg_conv_forward.2} parent=0
    #allocation3 [shape = 'u8[700416]{0}', space=vmem, size = 0xab000, scoped, tag = 'input window, operand 1, single buffered']
    #allocation4 [shape = 's32[2]{0}', space=sflag, size = 0x8, scoped, tag = 'scoped memory for rbg_conv_forward.2']
    #allocation5 [shape = 'u8[1536]{0}', space=vmem, size = 0x800, scoped, tag = 'input window, operand 2, single buffered']
    #allocation6 [shape = 's32[1]{0}', space=sflag, size = 0x4, scoped, tag = 'scoped memory for rbg_conv_forward.2']
    #allocation7 [shape = 'u8[1769472]{0}', space=vmem, size = 0x1b0000, scoped, tag = 'input window, operand 3, single buffered']
    #allocation8 [shape = 'u8[1536]{0}', space=vmem, size = 0x800, scoped, tag = 'input window, operand 4, single buffered']
    #allocation9 [shape = 's32[1]{0}', space=sflag, size = 0x4, scoped, tag = 'scoped memory for rbg_conv_forward.2']
    %10 = vsyncpa [#allocation4], 0
    %11 = vsyncpa [#allocation6], 0
    %12 = vsyncpa [#allocation9], 0
    loop: start=0, step=1, limit=4
    $region2: #{rbg_conv_forward.2} parent=1 // loop_pre_header
      _
    $region3: #{rbg_conv_forward.2} parent=1 // loop_header
      %s14 = sphi 0, %s18
      %p15 = scmp.ge.s32.totalorder %s14, 4
      %s24 = sphi 0, %s26
      %s27 = sphi 0, %s24
      %s28 = sphi 0, %s27
      %s44 = sphi 0, %s28
      %s48 = sphi 0, %s48
      %s50 = sphi 0, %s48
      %s51 = sphi 0, %s50
      %s65 = sphi 0, %s51
      %s69 = sphi 0, %s69
      %s71 = sphi 0, %s69
      %s72 = sphi 0, %s71
      %s86 = sphi 0, %s72
      %s90 = sphi 0, %s90
      %s92 = sphi 0, %s90
      %s93 = sphi 0, %s92
      %s107 = sphi 0, %s93
      %s111 = sphi 0, %s111
      %s113 = sphi 0, %s111
      %s114 = sphi 0, %s113
      %s128 = sphi 0, %s114
      %s134 = sphi 0, %s136
      %s137 = sphi 0, %s134
      %s138 = sphi 0, %s137
      %s154 = sphi 0, %s138
    $region4: #{rbg_conv_forward.2} parent=1 // loop_header_branch
      %17 = sbr.rel (%p15) target = $region8
    $region5: #{rbg_conv_forward.2} parent=1 // loop_body
      %s19 = ssub.s32 %s14, 1
      %s20 = ssub.s32 %s14, 2
      %s21 = sadd.s32 %s14, 1
      %s22 = ssub.s32 %s14, %s21
      %p23 = scmp.eq.s32.totalorder %s22, 0
      %s25 = sadd.s32 %s24, 1
      %s26 = scalar_select %p23, %s24, %s25
      %p29 = pneg %p23
      %p30 = scmp.eq.s32.totalorder %s14, 1
      %p31 = por %p29, %p30
      %p32 = scmp.ne.s32.totalorder %s24, %s27
      %p33 = scmp.eq.s32.totalorder %s14, 0
      %p34 = por %p32, %p33
      %p35 = scmp.ne.s32.totalorder %s24, %s27
      %p36 = scmp.eq.s32.totalorder %s19, 1
      %p37 = por %p35, %p36
      %p38 = scmp.ne.s32.totalorder %s27, %s28
      %p39 = scmp.eq.s32.totalorder %s19, 0
      %p40 = por %p38, %p39
      %p41 = scmp.ne.s32.totalorder %s27, %s28
      %p42 = scmp.eq.s32.totalorder %s20, 1
      %p43 = por %p41, %p42
      %p45 = scmp.ne.s32.totalorder %s28, %s44
      %p46 = scmp.eq.s32.totalorder %s20, 0
      %p47 = por %p45, %p46
      %s49 = sadd.s32 %s48, 1
      %p52 = scmp.eq.s32.totalorder %s14, 1
      %p53 = scmp.ne.s32.totalorder %s48, %s50
      %p54 = scmp.eq.s32.totalorder %s14, 0
      %p55 = por %p53, %p54
      %p56 = scmp.ne.s32.totalorder %s48, %s50
      %p57 = scmp.eq.s32.totalorder %s19, 1
      %p58 = por %p56, %p57
      %p59 = scmp.ne.s32.totalorder %s50, %s51
      %p60 = scmp.eq.s32.totalorder %s19, 0
      %p61 = por %p59, %p60
      %p62 = scmp.ne.s32.totalorder %s50, %s51
      %p63 = scmp.eq.s32.totalorder %s20, 1
      %p64 = por %p62, %p63
      %p66 = scmp.ne.s32.totalorder %s51, %s65
      %p67 = scmp.eq.s32.totalorder %s20, 0
      %p68 = por %p66, %p67
      %s70 = sadd.s32 %s69, 1
      %p73 = scmp.eq.s32.totalorder %s14, 1
      %p74 = scmp.ne.s32.totalorder %s69, %s71
      %p75 = scmp.eq.s32.totalorder %s14, 0
      %p76 = por %p74, %p75
      %p77 = scmp.ne.s32.totalorder %s69, %s71
      %p78 = scmp.eq.s32.totalorder %s19, 1
      %p79 = por %p77, %p78
      %p80 = scmp.ne.s32.totalorder %s71, %s72
      %p81 = scmp.eq.s32.totalorder %s19, 0
      %p82 = por %p80, %p81
      %p83 = scmp.ne.s32.totalorder %s71, %s72
      %p84 = scmp.eq.s32.totalorder %s20, 1
      %p85 = por %p83, %p84
      %p87 = scmp.ne.s32.totalorder %s72, %s86
      %p88 = scmp.eq.s32.totalorder %s20, 0
      %p89 = por %p87, %p88
      %s91 = sadd.s32 %s90, 1
      %p94 = scmp.eq.s32.totalorder %s14, 1
      %p95 = scmp.ne.s32.totalorder %s90, %s92
      %p96 = scmp.eq.s32.totalorder %s14, 0
      %p97 = por %p95, %p96
      %p98 = scmp.ne.s32.totalorder %s90, %s92
      %p99 = scmp.eq.s32.totalorder %s19, 1
      %p100 = por %p98, %p99
      %p101 = scmp.ne.s32.totalorder %s92, %s93
      %p102 = scmp.eq.s32.totalorder %s19, 0
      %p103 = por %p101, %p102
      %p104 = scmp.ne.s32.totalorder %s92, %s93
      %p105 = scmp.eq.s32.totalorder %s20, 1
      %p106 = por %p104, %p105
      %p108 = scmp.ne.s32.totalorder %s93, %s107
      %p109 = scmp.eq.s32.totalorder %s20, 0
      %p110 = por %p108, %p109
      %s112 = sadd.s32 %s111, 1
      %p115 = scmp.eq.s32.totalorder %s14, 1
      %p116 = scmp.ne.s32.totalorder %s111, %s113
      %p117 = scmp.eq.s32.totalorder %s14, 0
      %p118 = por %p116, %p117
      %p119 = scmp.ne.s32.totalorder %s111, %s113
      %p120 = scmp.eq.s32.totalorder %s19, 1
      %p121 = por %p119, %p120
      %p122 = scmp.ne.s32.totalorder %s113, %s114
      %p123 = scmp.eq.s32.totalorder %s19, 0
      %p124 = por %p122, %p123
      %p125 = scmp.ne.s32.totalorder %s113, %s114
      %p126 = scmp.eq.s32.totalorder %s20, 1
      %p127 = por %p125, %p126
      %p129 = scmp.ne.s32.totalorder %s114, %s128
      %p130 = scmp.eq.s32.totalorder %s20, 0
      %p131 = por %p129, %p130
      %s132 = ssub.s32 %s14, %s21
      %p133 = scmp.eq.s32.totalorder %s132, 0
      %s135 = sadd.s32 %s134, 1
      %s136 = scalar_select %p133, %s134, %s135
      %p139 = pneg %p133
      %p140 = scmp.eq.s32.totalorder %s14, 1
      %p141 = por %p139, %p140
      %p142 = scmp.ne.s32.totalorder %s134, %s137
      %p143 = scmp.eq.s32.totalorder %s14, 0
      %p144 = por %p142, %p143
      %p145 = scmp.ne.s32.totalorder %s134, %s137
      %p146 = scmp.eq.s32.totalorder %s19, 1
      %p147 = por %p145, %p146
      %p148 = scmp.ne.s32.totalorder %s137, %s138
      %p149 = scmp.eq.s32.totalorder %s19, 0
      %p150 = por %p148, %p149
      %p151 = scmp.ne.s32.totalorder %s137, %s138
      %p152 = scmp.eq.s32.totalorder %s20, 1
      %p153 = por %p151, %p152
      %p155 = scmp.ne.s32.totalorder %s138, %s154
      %p156 = scmp.eq.s32.totalorder %s20, 0
      %p157 = por %p155, %p156
      %p158 = scmp.le.s32.totalorder 1, %s14
      %p159 = scmp.lt.s32.totalorder %s14, 3
      %p160 = pnand %p158, %p159
      %p161 = pneg %p160
      // Predicated region
      $region9: #{rbg_conv_forward.2} parent=5 // pred_check
        _
      $region10: #{rbg_conv_forward.2} parent=5 // pred_check_branch
        %163 = sbr.rel (%p160) target = $region12
      $region11: #{rbg_conv_forward.2} parent=5 // pred_region
        %s164 = ssub.s32 %s14, 1
        // Predicated region
        $region13: #{rbg_conv_forward.2} parent=11 // pred_check
          %p165 = pneg %p61
        $region14: #{rbg_conv_forward.2} parent=11 // pred_check_branch
          %167 = sbr.rel (%p165) target = $region16
        $region15: #{rbg_conv_forward.2} parent=11 // pred_region
          %s169 = ssub.s32 21888, 21888
          %170 = vsyncadd [#allocation4], %s169
          %s171 = sshll.u32 [#allocation3], 4
          %s172 = int_to_ptr.vmem [resolvable:$true] %s171
          %177 = dma.hbm_to_vmem [thread:$0]  %s1, 21888, %s172, [#allocation4], 384, 384, 24
        $region16: #{rbg_conv_forward.2} parent=11 // pred_fallthru
          _
        // Predicated region
        $region17: #{rbg_conv_forward.2} parent=11 // pred_check
          %p178 = pneg %p82
        $region18: #{rbg_conv_forward.2} parent=11 // pred_check_branch
          %180 = sbr.rel (%p178) target = $region20
        $region19: #{rbg_conv_forward.2} parent=11 // pred_region
          %s182 = ssub.s32 48, 48
          %183 = vsyncadd [#allocation6], %s182
          %s185 = sshll.u32 [#allocation5], 4
          %s186 = int_to_ptr.vmem [resolvable:$true] %s185
          %188 = dma.hbm_to_vmem [thread:$0]  %s2, 48, %s186, [#allocation6]
        $region20: #{rbg_conv_forward.2} parent=11 // pred_fallthru
          _
        // Predicated region
        $region21: #{rbg_conv_forward.2} parent=11 // pred_check
          %p189 = pneg %p103
        $region22: #{rbg_conv_forward.2} parent=11 // pred_check_branch
          %191 = sbr.rel (%p189) target = $region24
        $region23: #{rbg_conv_forward.2} parent=11 // pred_region
          %s193 = ssub.s32 55296, 55296
          %194 = vsyncadd [#allocation6], %s193
          %s195 = sshll.u32 [#allocation7], 4
          %s196 = int_to_ptr.vmem [resolvable:$true] %s195
          %201 = dma.hbm_to_vmem [thread:$0]  %s3, 55296, %s196, [#allocation6], 384, 384, 24
        $region24: #{rbg_conv_forward.2} parent=11 // pred_fallthru
          _
        // Predicated region
        $region25: #{rbg_conv_forward.2} parent=11 // pred_check
          %p202 = pneg %p124
        $region26: #{rbg_conv_forward.2} parent=11 // pred_check_branch
          %204 = sbr.rel (%p202) target = $region28
        $region27: #{rbg_conv_forward.2} parent=11 // pred_region
          %s206 = ssub.s32 48, 48
          %207 = vsyncadd [#allocation9], %s206
          %s209 = sshll.u32 [#allocation8], 4
          %s210 = int_to_ptr.vmem [resolvable:$true] %s209
          %212 = dma.hbm_to_vmem [thread:$0]  %s4, 48, %s210, [#allocation9]
        $region28: #{rbg_conv_forward.2} parent=11 // pred_fallthru
          _
      $region12: #{rbg_conv_forward.2} parent=5 // pred_fallthru
        _
      %p213 = scmp.lt.s32.totalorder %s14, 2
      // Predicated region
      $region29: #{rbg_conv_forward.2} parent=5 // pred_check
        %p214 = pneg %p213
      $region30: #{rbg_conv_forward.2} parent=5 // pred_check_branch
        %216 = sbr.rel (%p214) target = $region32
      $region31: #{rbg_conv_forward.2} parent=5 // pred_region
        // Predicated region
        $region33: #{rbg_conv_forward.2} parent=31 // pred_check
          %p217 = pneg %p34
        $region34: #{rbg_conv_forward.2} parent=31 // pred_check_branch
          %219 = sbr.rel (%p217) target = $region36
        $region35: #{rbg_conv_forward.2} parent=31 // pred_region
          %p220 = scmp.lt.s32.totalorder %s14, 1
          %s221 = scalar_select %p220, %s14, 1
          %s222 = smul.addr %s221, 16
          %s223 = smul.addr %s222, 4
          %s224 = scalar_lea.vmem %s0, %s223
        $region36: #{rbg_conv_forward.2} parent=31 // pred_fallthru
          _
      $region32: #{rbg_conv_forward.2} parent=5 // pred_fallthru
        _
      %p225 = scmp.le.s32.totalorder 1, %s14
      %p226 = scmp.lt.s32.totalorder %s14, 3
      %p227 = pnand %p225, %p226
      %p228 = pneg %p227
      // Predicated region
      $region37: #{rbg_conv_forward.2} parent=5 // pred_check
        _
      $region38: #{rbg_conv_forward.2} parent=5 // pred_check_branch
        %230 = sbr.rel (%p227) target = $region40
      $region39: #{rbg_conv_forward.2} parent=5 // pred_region
        %s231 = ssub.s32 %s14, 1
        // Predicated region
        $region41: #{rbg_conv_forward.2} parent=39 // pred_check
          %p232 = pneg %p61
        $region42: #{rbg_conv_forward.2} parent=39 // pred_check_branch
          %234 = sbr.rel (%p232) target = $region44
        $region43: #{rbg_conv_forward.2} parent=39 // pred_region
          %235 = dma.done [#allocation4], 21888
        $region44: #{rbg_conv_forward.2} parent=39 // pred_fallthru
          _
        // Predicated region
        $region45: #{rbg_conv_forward.2} parent=39 // pred_check
          %p236 = pneg %p82
        $region46: #{rbg_conv_forward.2} parent=39 // pred_check_branch
          %238 = sbr.rel (%p236) target = $region48
        $region47: #{rbg_conv_forward.2} parent=39 // pred_region
          %239 = dma.done [#allocation6], 48
        $region48: #{rbg_conv_forward.2} parent=39 // pred_fallthru
          _
        // Predicated region
        $region49: #{rbg_conv_forward.2} parent=39 // pred_check
          %p240 = pneg %p103
        $region50: #{rbg_conv_forward.2} parent=39 // pred_check_branch
          %242 = sbr.rel (%p240) target = $region52
        $region51: #{rbg_conv_forward.2} parent=39 // pred_region
          %243 = dma.done [#allocation6], 55296
        $region52: #{rbg_conv_forward.2} parent=39 // pred_fallthru
          _
        // Predicated region
        $region53: #{rbg_conv_forward.2} parent=39 // pred_check
          %p244 = pneg %p124
        $region54: #{rbg_conv_forward.2} parent=39 // pred_check_branch
          %246 = sbr.rel (%p244) target = $region56
        $region55: #{rbg_conv_forward.2} parent=39 // pred_region
          %247 = dma.done [#allocation9], 48
        $region56: #{rbg_conv_forward.2} parent=39 // pred_fallthru
          _
        %p248 = scmp.lt.s32.totalorder %s19, 1
        %s249 = scalar_select %p248, %s19, 1
        %s250 = smul.addr %s249, 16
        %s251 = smul.addr %s250, 4
        %s252 = scalar_lea.vmem %s0, %s251
        %p253 = pneg %p40
        %p254 = pneg %p37
        %p255 = pneg %p61
        %p256 = pneg %p58
        %p257 = pneg %p82
        %p258 = pneg %p79
        %p259 = pneg %p103
        %p260 = pneg %p100
        %p261 = pneg %p124
        %p262 = pneg %p121
        %p263 = pneg %p150
        %p264 = pneg %p147
        %p265 = scmp.lt.s32.totalorder %s19, 1
        %s266 = scalar_select %p265, %s19, 1
        %s267 = smul.addr %s266, 6
        %s268 = smul.addr %s267, 4
        %s269 = scalar_lea.vmem %s5, %s268
        %p270 = scmp.lt.s32.totalorder %s19, 1
        %s271 = scalar_select %p270, %s19, 1
        %s272 = smul.addr %s271, 16
        %s273 = smul.addr %s272, 4
        %s274 = scalar_lea.vmem %s0, %s273
        %p275 = scmp.lt.s32.totalorder %s19, 1
        %s276 = scalar_select %p275, %s19, 1
        %s277 = smul.addr %s276, 6
        %s278 = smul.addr %s277, 4
        %s279 = scalar_lea.vmem %s5, %s278
        %v281 = vld [vmem:[%s274] sm:$0xff]
        %v282 = vld [vmem:[%s274 + $0x8] sm:$0x33]
        %v283 = vld [vmem:[#allocation3] sm:$0xff]
        %v284 = vld [vmem:[#allocation3 + $0x8] sm:$0xff]
        %v285 = vld [vmem:[#allocation3 + $0x10] sm:$0xff]
        %v286 = vld [vmem:[#allocation3 + $0x18] sm:$0xff]
        %v287 = vld [vmem:[#allocation3 + $0x20] sm:$0xff]
        %v288 = vld [vmem:[#allocation3 + $0x28] sm:$0xff]
        %v289 = vld [vmem:[#allocation3 + $0x30] sm:$0xff]
        %v290 = vld [vmem:[#allocation3 + $0x38] sm:$0xff]
        %v291 = vld [vmem:[#allocation3 + $0x40] sm:$0xff]
        %v292 = vld [vmem:[#allocation3 + $0x48] sm:$0xff]
        %v293 = vld [vmem:[#allocation3 + $0x50] sm:$0xff]
        %v294 = vld [vmem:[#allocation3 + $0x58] sm:$0xff]
        %v295 = vld [vmem:[#allocation3 + $0x60] sm:$0xff]
        %v296 = vld [vmem:[#allocation3 + $0x68] sm:$0xff]
        %v297 = vld [vmem:[#allocation3 + $0x70] sm:$0xff]
        %v298 = vld [vmem:[#allocation3 + $0x78] sm:$0xff]
        %v299 = vld [vmem:[#allocation3 + $0x80] sm:$0xff]
        %v300 = vld [vmem:[#allocation3 + $0x88] sm:$0xff]
        %v301 = vld [vmem:[#allocation3 + $0x90] sm:$0xff]
        %v302 = vld [vmem:[#allocation3 + $0x98] sm:$0xff]
        %v303 = vld [vmem:[#allocation3 + $0xa0] sm:$0xff]
        %v304 = vld [vmem:[#allocation3 + $0xa8] sm:$0xff]
        %v305 = vld [vmem:[#allocation3 + $0xb0] sm:$0xff]
        %v306 = vld [vmem:[#allocation3 + $0xb8] sm:$0xff]
        %v307 = vld [vmem:[#allocation3 + $0xc0] sm:$0xff]
        %v308 = vld [vmem:[#allocation3 + $0xc8] sm:$0xff]
        %v309 = vld [vmem:[#allocation3 + $0xd0] sm:$0xff]
        %v310 = vld [vmem:[#allocation3 + $0xd8] sm:$0xff]
        %v311 = vld [vmem:[#allocation3 + $0xe0] sm:$0xff]
        %v312 = vld [vmem:[#allocation3 + $0xe8] sm:$0xff]
        %v313 = vld [vmem:[#allocation3 + $0xf0] sm:$0xff]
        %v314 = vld [vmem:[#allocation3 + $0xf8] sm:$0xff]
        %v315 = vld [vmem:[#allocation3 + $0x100] sm:$0xff]
        %v316 = vld [vmem:[#allocation3 + $0x108] sm:$0xff]
        %v317 = vld [vmem:[#allocation3 + $0x110] sm:$0xff]
        %v318 = vld [vmem:[#allocation3 + $0x118] sm:$0xff]
        %v319 = vld [vmem:[#allocation3 + $0x120] sm:$0xff]
        %v320 = vld [vmem:[#allocation3 + $0x128] sm:$0xff]
        %v321 = vld [vmem:[#allocation3 + $0x130] sm:$0xff]
        %v322 = vld [vmem:[#allocation3 + $0x138] sm:$0xff]
        %v323 = vld [vmem:[#allocation3 + $0x140] sm:$0xff]
        %v324 = vld [vmem:[#allocation3 + $0x148] sm:$0xff]
        %v325 = vld [vmem:[#allocation3 + $0x150] sm:$0xff]
        %v326 = vld [vmem:[#allocation3 + $0x158] sm:$0xff]
        %v327 = vld [vmem:[#allocation3 + $0x160] sm:$0xff]
        %v328 = vld [vmem:[#allocation3 + $0x168] sm:$0xff]
        %v329 = vld [vmem:[#allocation3 + $0x170] sm:$0xff]
        %v330 = vld [vmem:[#allocation3 + $0x178] sm:$0xff]
        %v331 = vld [vmem:[#allocation3 + $0x180] sm:$0xff]
        %v332 = vld [vmem:[#allocation3 + $0x188] sm:$0xff]
        %v333 = vld [vmem:[#allocation3 + $0x190] sm:$0xff]
        %v334 = vld [vmem:[#allocation3 + $0x198] sm:$0xff]
        %v335 = vld [vmem:[#allocation3 + $0x1a0] sm:$0xff]
        %v336 = vld [vmem:[#allocation3 + $0x1a8] sm:$0xff]
        %v337 = vld [vmem:[#allocation3 + $0x1b0] sm:$0x77]
        %v338 = vld [vmem:[#allocation3 + $0x1b8] sm:$0x77]
        %v339 = vld [vmem:[#allocation3 + $0x1c0] sm:$0x77]
        %s340 = scalar_lea.vmem %s274, 16
        %v341 = vld [vmem:[%s340] sm:$0xff]
        %v342 = vld [vmem:[%s340 + $0x8] sm:$0x33]
        %s343 = scalar_lea.vmem [#allocation3], 456
        %v344 = vld [vmem:[%s343] sm:$0xff]
        %v345 = vld [vmem:[%s343 + $0x8] sm:$0xff]
        %v346 = vld [vmem:[%s343 + $0x10] sm:$0xff]
        %v347 = vld [vmem:[%s343 + $0x18] sm:$0xff]
        %v348 = vld [vmem:[%s343 + $0x20] sm:$0xff]
        %v349 = vld [vmem:[%s343 + $0x28] sm:$0xff]
        %v350 = vld [vmem:[%s343 + $0x30] sm:$0xff]
        %v351 = vld [vmem:[%s343 + $0x38] sm:$0xff]
        %v352 = vld [vmem:[%s343 + $0x40] sm:$0xff]
        %v353 = vld [vmem:[%s343 + $0x48] sm:$0xff]
        %v354 = vld [vmem:[%s343 + $0x50] sm:$0xff]
        %v355 = vld [vmem:[%s343 + $0x58] sm:$0xff]
        %v356 = vld [vmem:[%s343 + $0x60] sm:$0xff]
        %v357 = vld [vmem:[%s343 + $0x68] sm:$0xff]
        %v358 = vld [vmem:[%s343 + $0x70] sm:$0xff]
        %v359 = vld [vmem:[%s343 + $0x78] sm:$0xff]
        %v360 = vld [vmem:[%s343 + $0x80] sm:$0xff]
        %v361 = vld [vmem:[%s343 + $0x88] sm:$0xff]
        %v362 = vld [vmem:[%s343 + $0x90] sm:$0xff]
        %v363 = vld [vmem:[%s343 + $0x98] sm:$0xff]
        %v364 = vld [vmem:[%s343 + $0xa0] sm:$0xff]
        %v365 = vld [vmem:[%s343 + $0xa8] sm:$0xff]
        %v366 = vld [vmem:[%s343 + $0xb0] sm:$0xff]
        %v367 = vld [vmem:[%s343 + $0xb8] sm:$0xff]
        %v368 = vld [vmem:[%s343 + $0xc0] sm:$0xff]
        %v369 = vld [vmem:[%s343 + $0xc8] sm:$0xff]
        %v370 = vld [vmem:[%s343 + $0xd0] sm:$0xff]
        %v371 = vld [vmem:[%s343 + $0xd8] sm:$0xff]
        %v372 = vld [vmem:[%s343 + $0xe0] sm:$0xff]
        %v373 = vld [vmem:[%s343 + $0xe8] sm:$0xff]
        %v374 = vld [vmem:[%s343 + $0xf0] sm:$0xff]
        %v375 = vld [vmem:[%s343 + $0xf8] sm:$0xff]
        %v376 = vld [vmem:[%s343 + $0x100] sm:$0xff]
        %v377 = vld [vmem:[%s343 + $0x108] sm:$0xff]
        %v378 = vld [vmem:[%s343 + $0x110] sm:$0xff]
        %v379 = vld [vmem:[%s343 + $0x118] sm:$0xff]
        %v380 = vld [vmem:[%s343 + $0x120] sm:$0xff]
        %v381 = vld [vmem:[%s343 + $0x128] sm:$0xff]
        %v382 = vld [vmem:[%s343 + $0x130] sm:$0xff]
        %v383 = vld [vmem:[%s343 + $0x138] sm:$0xff]
        %v384 = vld [vmem:[%s343 + $0x140] sm:$0xff]
        %v385 = vld [vmem:[%s343 + $0x148] sm:$0xff]
        %v386 = vld [vmem:[%s343 + $0x150] sm:$0xff]
        %v387 = vld [vmem:[%s343 + $0x158] sm:$0xff]
        %v388 = vld [vmem:[%s343 + $0x160] sm:$0xff]
        %v389 = vld [vmem:[%s343 + $0x168] sm:$0xff]
        %v390 = vld [vmem:[%s343 + $0x170] sm:$0xff]
        %v391 = vld [vmem:[%s343 + $0x178] sm:$0xff]
        %v392 = vld [vmem:[%s343 + $0x180] sm:$0xff]
        %v393 = vld [vmem:[%s343 + $0x188] sm:$0xff]
        %v394 = vld [vmem:[%s343 + $0x190] sm:$0xff]
        %v395 = vld [vmem:[%s343 + $0x198] sm:$0xff]
        %v396 = vld [vmem:[%s343 + $0x1a0] sm:$0xff]
        %v397 = vld [vmem:[%s343 + $0x1a8] sm:$0xff]
        %v398 = vld [vmem:[%s343 + $0x1b0] sm:$0x77]
        %v399 = vld [vmem:[%s343 + $0x1b8] sm:$0x77]
        %v400 = vld [vmem:[%s343 + $0x1c0] sm:$0x77]
        %v403 = vunpack.c.l.b16 %v341
        %v404 = vunpack.c.h.b16 %v341
        %v405 = vunpack.c.l.b16 %v342
        %v406 = vunpack.c.h.b16 %v342
        %v407 = vpack.c.b16 %v405, %v403
        %v408 = vpack.c.b16 %v406, %v404
        %v467 = vunpack.c.l.b16 %v344
        %v468 = vunpack.c.h.b16 %v344
        %v469 = vunpack.c.l.b16 %v345
        %v470 = vunpack.c.h.b16 %v345
        %v471 = vunpack.c.l.b16 %v346
        %v472 = vunpack.c.h.b16 %v346
        %v473 = vunpack.c.l.b16 %v347
        %v474 = vunpack.c.h.b16 %v347
        %v475 = vunpack.c.l.b16 %v348
        %v476 = vunpack.c.h.b16 %v348
        %v477 = vunpack.c.l.b16 %v349
        %v478 = vunpack.c.h.b16 %v349
        %v479 = vunpack.c.l.b16 %v350
        %v480 = vunpack.c.h.b16 %v350
        %v481 = vunpack.c.l.b16 %v351
        %v482 = vunpack.c.h.b16 %v351
        %v483 = vunpack.c.l.b16 %v352
        %v484 = vunpack.c.h.b16 %v352
        %v485 = vunpack.c.l.b16 %v353
        %v486 = vunpack.c.h.b16 %v353
        %v487 = vunpack.c.l.b16 %v354
        %v488 = vunpack.c.h.b16 %v354
        %v489 = vunpack.c.l.b16 %v355
        %v490 = vunpack.c.h.b16 %v355
        %v491 = vunpack.c.l.b16 %v356
        %v492 = vunpack.c.h.b16 %v356
        %v493 = vunpack.c.l.b16 %v357
        %v494 = vunpack.c.h.b16 %v357
        %v495 = vunpack.c.l.b16 %v358
        %v496 = vunpack.c.h.b16 %v358
        %v497 = vunpack.c.l.b16 %v359
        %v498 = vunpack.c.h.b16 %v359
        %v499 = vunpack.c.l.b16 %v360
        %v500 = vunpack.c.h.b16 %v360
        %v501 = vunpack.c.l.b16 %v361
        %v502 = vunpack.c.h.b16 %v361
        %v503 = vunpack.c.l.b16 %v362
        %v504 = vunpack.c.h.b16 %v362
        %v505 = vunpack.c.l.b16 %v363
        %v506 = vunpack.c.h.b16 %v363
        %v507 = vunpack.c.l.b16 %v364
        %v508 = vunpack.c.h.b16 %v364
        %v509 = vunpack.c.l.b16 %v365
        %v510 = vunpack.c.h.b16 %v365
        %v511 = vunpack.c.l.b16 %v366
        %v512 = vunpack.c.h.b16 %v366
        %v513 = vunpack.c.l.b16 %v367
        %v514 = vunpack.c.h.b16 %v367
        %v515 = vunpack.c.l.b16 %v368
        %v516 = vunpack.c.h.b16 %v368
        %v517 = vunpack.c.l.b16 %v369
        %v518 = vunpack.c.h.b16 %v369
        %v519 = vunpack.c.l.b16 %v370
        %v520 = vunpack.c.h.b16 %v370
        %v521 = vunpack.c.l.b16 %v371
        %v522 = vunpack.c.h.b16 %v371
        %v523 = vunpack.c.l.b16 %v372
        %v524 = vunpack.c.h.b16 %v372
        %v525 = vunpack.c.l.b16 %v373
        %v526 = vunpack.c.h.b16 %v373
        %v527 = vunpack.c.l.b16 %v374
        %v528 = vunpack.c.h.b16 %v374
        %v529 = vunpack.c.l.b16 %v375
        %v530 = vunpack.c.h.b16 %v375
        %v531 = vunpack.c.l.b16 %v376
        %v532 = vunpack.c.h.b16 %v376
        %v533 = vunpack.c.l.b16 %v377
        %v534 = vunpack.c.h.b16 %v377
        %v535 = vunpack.c.l.b16 %v378
        %v536 = vunpack.c.h.b16 %v378
        %v537 = vunpack.c.l.b16 %v379
        %v538 = vunpack.c.h.b16 %v379
        %v539 = vunpack.c.l.b16 %v380
        %v540 = vunpack.c.h.b16 %v380
        %v541 = vunpack.c.l.b16 %v381
        %v542 = vunpack.c.h.b16 %v381
        %v543 = vunpack.c.l.b16 %v382
        %v544 = vunpack.c.h.b16 %v382
        %v545 = vunpack.c.l.b16 %v383
        %v546 = vunpack.c.h.b16 %v383
        %v547 = vunpack.c.l.b16 %v384
        %v548 = vunpack.c.h.b16 %v384
        %v549 = vunpack.c.l.b16 %v385
        %v550 = vunpack.c.h.b16 %v385
        %v551 = vunpack.c.l.b16 %v386
        %v552 = vunpack.c.h.b16 %v386
        %v553 = vunpack.c.l.b16 %v387
        %v554 = vunpack.c.h.b16 %v387
        %v555 = vunpack.c.l.b16 %v388
        %v556 = vunpack.c.h.b16 %v388
        %v557 = vunpack.c.l.b16 %v389
        %v558 = vunpack.c.h.b16 %v389
        %v559 = vunpack.c.l.b16 %v390
        %v560 = vunpack.c.h.b16 %v390
        %v561 = vunpack.c.l.b16 %v391
        %v562 = vunpack.c.h.b16 %v391
        %v563 = vunpack.c.l.b16 %v392
        %v564 = vunpack.c.h.b16 %v392
        %v565 = vunpack.c.l.b16 %v393
        %v566 = vunpack.c.h.b16 %v393
        %v567 = vunpack.c.l.b16 %v394
        %v568 = vunpack.c.h.b16 %v394
        %v569 = vunpack.c.l.b16 %v395
        %v570 = vunpack.c.h.b16 %v395
        %v571 = vunpack.c.l.b16 %v396
        %v572 = vunpack.c.h.b16 %v396
        %v573 = vunpack.c.l.b16 %v397
        %v574 = vunpack.c.h.b16 %v397
        %v575 = vunpack.c.l.b16 %v398
        %v576 = vunpack.c.h.b16 %v398
        %v577 = vunpack.c.l.b16 %v399
        %v578 = vunpack.c.h.b16 %v399
        %v579 = vunpack.c.l.b16 %v400
        %v580 = vunpack.c.h.b16 %v400
        %v581 = vpack.c.b16 %v473, %v467
        %v582 = vpack.c.b16 %v474, %v468
        %v583 = vpack.c.b16 %v475, %v469
        %v584 = vpack.c.b16 %v476, %v470
        %v585 = vpack.c.b16 %v477, %v471
        %v586 = vpack.c.b16 %v478, %v472
        %v587 = vpack.c.b16 %v485, %v479
        %v588 = vpack.c.b16 %v486, %v480
        %v589 = vpack.c.b16 %v487, %v481
        %v590 = vpack.c.b16 %v488, %v482
        %v591 = vpack.c.b16 %v489, %v483
        %v592 = vpack.c.b16 %v490, %v484
        %v593 = vpack.c.b16 %v497, %v491
        %v594 = vpack.c.b16 %v498, %v492
        %v595 = vpack.c.b16 %v499, %v493
        %v596 = vpack.c.b16 %v500, %v494
        %v597 = vpack.c.b16 %v501, %v495
        %v598 = vpack.c.b16 %v502, %v496
        %v599 = vpack.c.b16 %v509, %v503
        %v600 = vpack.c.b16 %v510, %v504
        %v601 = vpack.c.b16 %v511, %v505
        %v602 = vpack.c.b16 %v512, %v506
        %v603 = vpack.c.b16 %v513, %v507
        %v604 = vpack.c.b16 %v514, %v508
        %v605 = vpack.c.b16 %v521, %v515
        %v606 = vpack.c.b16 %v522, %v516
        %v607 = vpack.c.b16 %v523, %v517
        %v608 = vpack.c.b16 %v524, %v518
        %v609 = vpack.c.b16 %v525, %v519
        %v610 = vpack.c.b16 %v526, %v520
        %v611 = vpack.c.b16 %v533, %v527
        %v612 = vpack.c.b16 %v534, %v528
        %v613 = vpack.c.b16 %v535, %v529
        %v614 = vpack.c.b16 %v536, %v530
        %v615 = vpack.c.b16 %v537, %v531
        %v616 = vpack.c.b16 %v538, %v532
        %v617 = vpack.c.b16 %v545, %v539
        %v618 = vpack.c.b16 %v546, %v540
        %v619 = vpack.c.b16 %v547, %v541
        %v620 = vpack.c.b16 %v548, %v542
        %v621 = vpack.c.b16 %v549, %v543
        %v622 = vpack.c.b16 %v550, %v544
        %v623 = vpack.c.b16 %v557, %v551
        %v624 = vpack.c.b16 %v558, %v552
        %v625 = vpack.c.b16 %v559, %v553
        %v626 = vpack.c.b16 %v560, %v554
        %v627 = vpack.c.b16 %v561, %v555
        %v628 = vpack.c.b16 %v562, %v556
        %v629 = vpack.c.b16 %v569, %v563
        %v630 = vpack.c.b16 %v570, %v564
        %v631 = vpack.c.b16 %v571, %v565
        %v632 = vpack.c.b16 %v572, %v566
        %v633 = vpack.c.b16 %v573, %v567
        %v634 = vpack.c.b16 %v574, %v568
        %v635 = vpack.c.b16 %v575, %v575
        %v636 = vpack.c.b16 %v576, %v576
        %v637 = vpack.c.b16 %v577, %v577
        %v638 = vpack.c.b16 %v578, %v578
        %v639 = vpack.c.b16 %v579, %v579
        %v640 = vpack.c.b16 %v580, %v580
        %vm695 = vcmask 179200
        %v697 = vsel %vm695, %v408, 0
        %vm699 = vcmask 1042432
        %v701 = vsel %vm699, %v635, 0
        %v704 = vsel %vm699, %v636, 0
        %v707 = vsel %vm699, %v637, 0
        %v710 = vsel %vm699, %v638, 0
        %v713 = vsel %vm699, %v639, 0
        %v716 = vsel %vm699, %v640, 0
        %718 = vmatprep.subr.bf16.mxu0 %v582
        %719 = vmatpush1.bf16.msra.mxu0 %v581
        %720 = vmatprep.subr.bf16.mxu0 %v588
        %721 = vmatpush1.bf16.msra.mxu0 %v587
        %722 = vmatprep.subr.bf16.mxu0 %v594
        %723 = vmatpush1.bf16.msra.mxu0 %v593
        %724 = vmatprep.subr.bf16.mxu0 %v600
        %725 = vmatpush1.bf16.msra.mxu0 %v599
        %726 = vmatprep.subr.bf16.mxu0 %v606
        %727 = vmatpush1.bf16.msra.mxu0 %v605
        %728 = vmatprep.subr.bf16.mxu0 %v612
        %729 = vmatpush1.bf16.msra.mxu0 %v611
        %730 = vmatprep.subr.bf16.mxu0 %v618
        %731 = vmatpush1.bf16.msra.mxu0 %v617
        %732 = vmatprep.subr.bf16.mxu0 %v624
        %733 = vmatpush1.bf16.msra.mxu0 %v623
        %734 = vmatprep.subr.bf16.mxu0 %v630
        %735 = vmatpush1.bf16.msra.mxu0 %v629
        %736 = vmatprep.subr.bf16.mxu0 %v704
        %737 = vmatpush1.bf16.msra.mxu0 %v701
        %738 = vmatprep.subr.bf16.mxu0 0
        %739 = vmatpush1.bf16.msra.mxu0 0
        %740 = vmatprep.subr.bf16.mxu0 0
        %741 = vmatpush1.bf16.msra.mxu0 0
        %742 = vmatprep.subr.bf16.mxu0 0
        %743 = vmatpush1.bf16.msra.mxu0 0
        %744 = vmatprep.subr.bf16.mxu0 0
        %745 = vmatpush1.bf16.msra.mxu0 0
        %746 = vmatprep.subr.bf16.mxu0 0
        %747 = vmatpush1.bf16.msra.mxu0 0
        %748 = vmatprep.subr.bf16.mxu0 0
        %749 = vmatpush1.bf16.msra.mxu0 0
        %750 = vmatprep.mubr.bf16.mxu0 %v697
        %751 = vmatmul.mubr.bf16.gmra.mrb[0].mxu0 %v407
        %v752 = vpop.f32.mrb[0].mxu0
        %v753 = vadd.f32 0.0, %v752
        %v754 = vpop.f32.mrb[0].mxu0
        %v755 = vadd.f32 0.0, %v754
        %v756 = vpop.f32.mrb[0].mxu0
        %v757 = vadd.f32 0.0, %v756
        %v758 = vpop.f32.mrb[0].mxu0
        %v759 = vadd.f32 0.0, %v758
        %760 = vdwg.mxu0
        %761 = vmatprep.subr.bf16.mxu0 %v584
        %762 = vmatpush1.bf16.msra.mxu0 %v583
        %763 = vmatprep.subr.bf16.mxu0 %v590
        %764 = vmatpush1.bf16.msra.mxu0 %v589
        %765 = vmatprep.subr.bf16.mxu0 %v596
        %766 = vmatpush1.bf16.msra.mxu0 %v595
        %767 = vmatprep.subr.bf16.mxu0 %v602
        %768 = vmatpush1.bf16.msra.mxu0 %v601
        %769 = vmatprep.subr.bf16.mxu0 %v608
        %770 = vmatpush1.bf16.msra.mxu0 %v607
        %771 = vmatprep.subr.bf16.mxu0 %v614
        %772 = vmatpush1.bf16.msra.mxu0 %v613
        %773 = vmatprep.subr.bf16.mxu0 %v620
        %774 = vmatpush1.bf16.msra.mxu0 %v619
        %775 = vmatprep.subr.bf16.mxu0 %v626
        %776 = vmatpush1.bf16.msra.mxu0 %v625
        %777 = vmatprep.subr.bf16.mxu0 %v632
        %778 = vmatpush1.bf16.msra.mxu0 %v631
        %779 = vmatprep.subr.bf16.mxu0 %v710
        %780 = vmatpush1.bf16.msra.mxu0 %v707
        %781 = vmatprep.subr.bf16.mxu0 0
        %782 = vmatpush1.bf16.msra.mxu0 0
        %783 = vmatprep.subr.bf16.mxu0 0
        %784 = vmatpush1.bf16.msra.mxu0 0
        %785 = vmatprep.subr.bf16.mxu0 0
        %786 = vmatpush1.bf16.msra.mxu0 0
        %787 = vmatprep.subr.bf16.mxu0 0
        %788 = vmatpush1.bf16.msra.mxu0 0
        %789 = vmatprep.subr.bf16.mxu0 0
        %790 = vmatpush1.bf16.msra.mxu0 0
        %791 = vmatprep.subr.bf16.mxu0 0
        %792 = vmatpush1.bf16.msra.mxu0 0
        %793 = vmatprep.mubr.bf16.mxu0 %v697
        %794 = vmatmul.mubr.bf16.gmra.mrb[0].mxu0 %v407
        %v795 = vpop.f32.mrb[0].mxu0
        %v796 = vadd.f32 0.0, %v795
        %v797 = vpop.f32.mrb[0].mxu0
        %v798 = vadd.f32 0.0, %v797
        %v799 = vpop.f32.mrb[0].mxu0
        %v800 = vadd.f32 0.0, %v799
        %v801 = vpop.f32.mrb[0].mxu0
        %v802 = vadd.f32 0.0, %v801
        %803 = vdwg.mxu0
        %804 = vmatprep.subr.bf16.mxu0 %v586
        %805 = vmatpush1.bf16.msra.mxu0 %v585
        %806 = vmatprep.subr.bf16.mxu0 %v592
        %807 = vmatpush1.bf16.msra.mxu0 %v591
        %808 = vmatprep.subr.bf16.mxu0 %v598
        %809 = vmatpush1.bf16.msra.mxu0 %v597
        %810 = vmatprep.subr.bf16.mxu0 %v604
        %811 = vmatpush1.bf16.msra.mxu0 %v603
        %812 = vmatprep.subr.bf16.mxu0 %v610
        %813 = vmatpush1.bf16.msra.mxu0 %v609
        %814 = vmatprep.subr.bf16.mxu0 %v616
        %815 = vmatpush1.bf16.msra.mxu0 %v615
        %816 = vmatprep.subr.bf16.mxu0 %v622
        %817 = vmatpush1.bf16.msra.mxu0 %v621
        %818 = vmatprep.subr.bf16.mxu0 %v628
        %819 = vmatpush1.bf16.msra.mxu0 %v627
        %820 = vmatprep.subr.bf16.mxu0 %v634
        %821 = vmatpush1.bf16.msra.mxu0 %v633
        %822 = vmatprep.subr.bf16.mxu0 %v716
        %823 = vmatpush1.bf16.msra.mxu0 %v713
        %824 = vmatprep.subr.bf16.mxu0 0
        %825 = vmatpush1.bf16.msra.mxu0 0
        %826 = vmatprep.subr.bf16.mxu0 0
        %827 = vmatpush1.bf16.msra.mxu0 0
        %828 = vmatprep.subr.bf16.mxu0 0
        %829 = vmatpush1.bf16.msra.mxu0 0
        %830 = vmatprep.subr.bf16.mxu0 0
        %831 = vmatpush1.bf16.msra.mxu0 0
        %832 = vmatprep.subr.bf16.mxu0 0
        %833 = vmatpush1.bf16.msra.mxu0 0
        %834 = vmatprep.subr.bf16.mxu0 0
        %835 = vmatpush1.bf16.msra.mxu0 0
        %836 = vmatprep.mubr.bf16.mxu0 %v697
        %837 = vmatmul.mubr.bf16.gmra.mrb[0].mxu0 %v407
        %v838 = vpop.f32.mrb[0].mxu0
        %v839 = vadd.f32 0.0, %v838
        %v840 = vpop.f32.mrb[0].mxu0
        %v841 = vadd.f32 0.0, %v840
        %v842 = vpop.f32.mrb[0].mxu0
        %v843 = vadd.f32 0.0, %v842
        %v844 = vpop.f32.mrb[0].mxu0
        %v845 = vadd.f32 0.0, %v844
        %846 = vdwg.mxu0
        %v849 = vunpack.c.l.b16 %v281
        %v850 = vunpack.c.h.b16 %v281
        %v851 = vunpack.c.l.b16 %v282
        %v852 = vunpack.c.h.b16 %v282
        %v853 = vpack.c.b16 %v851, %v849
        %v854 = vpack.c.b16 %v852, %v850
        %v913 = vunpack.c.l.b16 %v283
        %v914 = vunpack.c.h.b16 %v283
        %v915 = vunpack.c.l.b16 %v284
        %v916 = vunpack.c.h.b16 %v284
        %v917 = vunpack.c.l.b16 %v285
        %v918 = vunpack.c.h.b16 %v285
        %v919 = vunpack.c.l.b16 %v286
        %v920 = vunpack.c.h.b16 %v286
        %v921 = vunpack.c.l.b16 %v287
        %v922 = vunpack.c.h.b16 %v287
        %v923 = vunpack.c.l.b16 %v288
        %v924 = vunpack.c.h.b16 %v288
        %v925 = vunpack.c.l.b16 %v289
        %v926 = vunpack.c.h.b16 %v289
        %v927 = vunpack.c.l.b16 %v290
        %v928 = vunpack.c.h.b16 %v290
        %v929 = vunpack.c.l.b16 %v291
        %v930 = vunpack.c.h.b16 %v291
        %v931 = vunpack.c.l.b16 %v292
        %v932 = vunpack.c.h.b16 %v292
        %v933 = vunpack.c.l.b16 %v293
        %v934 = vunpack.c.h.b16 %v293
        %v935 = vunpack.c.l.b16 %v294
        %v936 = vunpack.c.h.b16 %v294
        %v937 = vunpack.c.l.b16 %v295
        %v938 = vunpack.c.h.b16 %v295
        %v939 = vunpack.c.l.b16 %v296
        %v940 = vunpack.c.h.b16 %v296
        %v941 = vunpack.c.l.b16 %v297
        %v942 = vunpack.c.h.b16 %v297
        %v943 = vunpack.c.l.b16 %v298
        %v944 = vunpack.c.h.b16 %v298
        %v945 = vunpack.c.l.b16 %v299
        %v946 = vunpack.c.h.b16 %v299
        %v947 = vunpack.c.l.b16 %v300
        %v948 = vunpack.c.h.b16 %v300
        %v949 = vunpack.c.l.b16 %v301
        %v950 = vunpack.c.h.b16 %v301
        %v951 = vunpack.c.l.b16 %v302
        %v952 = vunpack.c.h.b16 %v302
        %v953 = vunpack.c.l.b16 %v303
        %v954 = vunpack.c.h.b16 %v303
        %v955 = vunpack.c.l.b16 %v304
        %v956 = vunpack.c.h.b16 %v304
        %v957 = vunpack.c.l.b16 %v305
        %v958 = vunpack.c.h.b16 %v305
        %v959 = vunpack.c.l.b16 %v306
        %v960 = vunpack.c.h.b16 %v306
        %v961 = vunpack.c.l.b16 %v307
        %v962 = vunpack.c.h.b16 %v307
        %v963 = vunpack.c.l.b16 %v308
        %v964 = vunpack.c.h.b16 %v308
        %v965 = vunpack.c.l.b16 %v309
        %v966 = vunpack.c.h.b16 %v309
        %v967 = vunpack.c.l.b16 %v310
        %v968 = vunpack.c.h.b16 %v310
        %v969 = vunpack.c.l.b16 %v311
        %v970 = vunpack.c.h.b16 %v311
        %v971 = vunpack.c.l.b16 %v312
        %v972 = vunpack.c.h.b16 %v312
        %v973 = vunpack.c.l.b16 %v313
        %v974 = vunpack.c.h.b16 %v313
        %v975 = vunpack.c.l.b16 %v314
        %v976 = vunpack.c.h.b16 %v314
        %v977 = vunpack.c.l.b16 %v315
        %v978 = vunpack.c.h.b16 %v315
        %v979 = vunpack.c.l.b16 %v316
        %v980 = vunpack.c.h.b16 %v316
        %v981 = vunpack.c.l.b16 %v317
        %v982 = vunpack.c.h.b16 %v317
        %v983 = vunpack.c.l.b16 %v318
        %v984 = vunpack.c.h.b16 %v318
        %v985 = vunpack.c.l.b16 %v319
        %v986 = vunpack.c.h.b16 %v319
        %v987 = vunpack.c.l.b16 %v320
        %v988 = vunpack.c.h.b16 %v320
        %v989 = vunpack.c.l.b16 %v321
        %v990 = vunpack.c.h.b16 %v321
        %v991 = vunpack.c.l.b16 %v322
        %v992 = vunpack.c.h.b16 %v322
        %v993 = vunpack.c.l.b16 %v323
        %v994 = vunpack.c.h.b16 %v323
        %v995 = vunpack.c.l.b16 %v324
        %v996 = vunpack.c.h.b16 %v324
        %v997 = vunpack.c.l.b16 %v325
        %v998 = vunpack.c.h.b16 %v325
        %v999 = vunpack.c.l.b16 %v326
        %v1000 = vunpack.c.h.b16 %v326
        %v1001 = vunpack.c.l.b16 %v327
        %v1002 = vunpack.c.h.b16 %v327
        %v1003 = vunpack.c.l.b16 %v328
        %v1004 = vunpack.c.h.b16 %v328
        %v1005 = vunpack.c.l.b16 %v329
        %v1006 = vunpack.c.h.b16 %v329
        %v1007 = vunpack.c.l.b16 %v330
        %v1008 = vunpack.c.h.b16 %v330
        %v1009 = vunpack.c.l.b16 %v331
        %v1010 = vunpack.c.h.b16 %v331
        %v1011 = vunpack.c.l.b16 %v332
        %v1012 = vunpack.c.h.b16 %v332
        %v1013 = vunpack.c.l.b16 %v333
        %v1014 = vunpack.c.h.b16 %v333
        %v1015 = vunpack.c.l.b16 %v334
        %v1016 = vunpack.c.h.b16 %v334
        %v1017 = vunpack.c.l.b16 %v335
        %v1018 = vunpack.c.h.b16 %v335
        %v1019 = vunpack.c.l.b16 %v336
        %v1020 = vunpack.c.h.b16 %v336
        %v1021 = vunpack.c.l.b16 %v337
        %v1022 = vunpack.c.h.b16 %v337
        %v1023 = vunpack.c.l.b16 %v338
        %v1024 = vunpack.c.h.b16 %v338
        %v1025 = vunpack.c.l.b16 %v339
        %v1026 = vunpack.c.h.b16 %v339
        %v1027 = vpack.c.b16 %v919, %v913
        %v1028 = vpack.c.b16 %v920, %v914
        %v1029 = vpack.c.b16 %v921, %v915
        %v1030 = vpack.c.b16 %v922, %v916
        %v1031 = vpack.c.b16 %v923, %v917
        %v1032 = vpack.c.b16 %v924, %v918
        %v1033 = vpack.c.b16 %v931, %v925
        %v1034 = vpack.c.b16 %v932, %v926
        %v1035 = vpack.c.b16 %v933, %v927
        %v1036 = vpack.c.b16 %v934, %v928
        %v1037 = vpack.c.b16 %v935, %v929
        %v1038 = vpack.c.b16 %v936, %v930
        %v1039 = vpack.c.b16 %v943, %v937
        %v1040 = vpack.c.b16 %v944, %v938
        %v1041 = vpack.c.b16 %v945, %v939
        %v1042 = vpack.c.b16 %v946, %v940
        %v1043 = vpack.c.b16 %v947, %v941
        %v1044 = vpack.c.b16 %v948, %v942
        %v1045 = vpack.c.b16 %v955, %v949
        %v1046 = vpack.c.b16 %v956, %v950
        %v1047 = vpack.c.b16 %v957, %v951
        %v1048 = vpack.c.b16 %v958, %v952
        %v1049 = vpack.c.b16 %v959, %v953
        %v1050 = vpack.c.b16 %v960, %v954
        %v1051 = vpack.c.b16 %v967, %v961
        %v1052 = vpack.c.b16 %v968, %v962
        %v1053 = vpack.c.b16 %v969, %v963
        %v1054 = vpack.c.b16 %v970, %v964
        %v1055 = vpack.c.b16 %v971, %v965
        %v1056 = vpack.c.b16 %v972, %v966
        %v1057 = vpack.c.b16 %v979, %v973
        %v1058 = vpack.c.b16 %v980, %v974
        %v1059 = vpack.c.b16 %v981, %v975
        %v1060 = vpack.c.b16 %v982, %v976
        %v1061 = vpack.c.b16 %v983, %v977
        %v1062 = vpack.c.b16 %v984, %v978
        %v1063 = vpack.c.b16 %v991, %v985
        %v1064 = vpack.c.b16 %v992, %v986
        %v1065 = vpack.c.b16 %v993, %v987
        %v1066 = vpack.c.b16 %v994, %v988
        %v1067 = vpack.c.b16 %v995, %v989
        %v1068 = vpack.c.b16 %v996, %v990
        %v1069 = vpack.c.b16 %v1003, %v997
        %v1070 = vpack.c.b16 %v1004, %v998
        %v1071 = vpack.c.b16 %v1005, %v999
        %v1072 = vpack.c.b16 %v1006, %v1000
        %v1073 = vpack.c.b16 %v1007, %v1001
        %v1074 = vpack.c.b16 %v1008, %v1002
        %v1075 = vpack.c.b16 %v1015, %v1009
        %v1076 = vpack.c.b16 %v1016, %v1010
        %v1077 = vpack.c.b16 %v1017, %v1011
        %v1078 = vpack.c.b16 %v1018, %v1012
        %v1079 = vpack.c.b16 %v1019, %v1013
        %v1080 = vpack.c.b16 %v1020, %v1014
        %v1081 = vpack.c.b16 %v1021, %v1021
        %v1082 = vpack.c.b16 %v1022, %v1022
        %v1083 = vpack.c.b16 %v1023, %v1023
        %v1084 = vpack.c.b16 %v1024, %v1024
        %v1085 = vpack.c.b16 %v1025, %v1025
        %v1086 = vpack.c.b16 %v1026, %v1026
        %v1142 = vsel %vm695, %v854, 0
        %v1145 = vsel %vm699, %v1081, 0
        %v1148 = vsel %vm699, %v1082, 0
        %v1151 = vsel %vm699, %v1083, 0
        %v1154 = vsel %vm699, %v1084, 0
        %v1157 = vsel %vm699, %v1085, 0
        %v1160 = vsel %vm699, %v1086, 0
        %1162 = vmatprep.subr.bf16.mxu0 %v1028
        %1163 = vmatpush1.bf16.msra.mxu0 %v1027
        %1164 = vmatprep.subr.bf16.mxu0 %v1034
        %1165 = vmatpush1.bf16.msra.mxu0 %v1033
        %1166 = vmatprep.subr.bf16.mxu0 %v1040
        %1167 = vmatpush1.bf16.msra.mxu0 %v1039
        %1168 = vmatprep.subr.bf16.mxu0 %v1046
        %1169 = vmatpush1.bf16.msra.mxu0 %v1045
        %1170 = vmatprep.subr.bf16.mxu0 %v1052
        %1171 = vmatpush1.bf16.msra.mxu0 %v1051
        %1172 = vmatprep.subr.bf16.mxu0 %v1058
        %1173 = vmatpush1.bf16.msra.mxu0 %v1057
        %1174 = vmatprep.subr.bf16.mxu0 %v1064
        %1175 = vmatpush1.bf16.msra.mxu0 %v1063
        %1176 = vmatprep.subr.bf16.mxu0 %v1070
        %1177 = vmatpush1.bf16.msra.mxu0 %v1069
        %1178 = vmatprep.subr.bf16.mxu0 %v1076
        %1179 = vmatpush1.bf16.msra.mxu0 %v1075
        %1180 = vmatprep.subr.bf16.mxu0 %v1148
        %1181 = vmatpush1.bf16.msra.mxu0 %v1145
        %1182 = vmatprep.subr.bf16.mxu0 0
        %1183 = vmatpush1.bf16.msra.mxu0 0
        %1184 = vmatprep.subr.bf16.mxu0 0
        %1185 = vmatpush1.bf16.msra.mxu0 0
        %1186 = vmatprep.subr.bf16.mxu0 0
        %1187 = vmatpush1.bf16.msra.mxu0 0
        %1188 = vmatprep.subr.bf16.mxu0 0
        %1189 = vmatpush1.bf16.msra.mxu0 0
        %1190 = vmatprep.subr.bf16.mxu0 0
        %1191 = vmatpush1.bf16.msra.mxu0 0
        %1192 = vmatprep.subr.bf16.mxu0 0
        %1193 = vmatpush1.bf16.msra.mxu0 0
        %1194 = vmatprep.mubr.bf16.mxu0 %v1142
        %1195 = vmatmul.mubr.bf16.gmra.mrb[0].mxu0 %v853
        %v1196 = vpop.f32.mrb[0].mxu0
        %v1197 = vadd.f32 %v753, %v1196
        %v1198 = vpop.f32.mrb[0].mxu0
        %v1199 = vadd.f32 %v755, %v1198
        %v1200 = vpop.f32.mrb[0].mxu0
        %v1201 = vadd.f32 %v757, %v1200
        %v1202 = vpop.f32.mrb[0].mxu0
        %v1203 = vadd.f32 %v759, %v1202
        %1204 = vdwg.mxu0
        %1205 = vmatprep.subr.bf16.mxu0 %v1030
        %1206 = vmatpush1.bf16.msra.mxu0 %v1029
        %1207 = vmatprep.subr.bf16.mxu0 %v1036
        %1208 = vmatpush1.bf16.msra.mxu0 %v1035
        %1209 = vmatprep.subr.bf16.mxu0 %v1042
        %1210 = vmatpush1.bf16.msra.mxu0 %v1041
        %1211 = vmatprep.subr.bf16.mxu0 %v1048
        %1212 = vmatpush1.bf16.msra.mxu0 %v1047
        %1213 = vmatprep.subr.bf16.mxu0 %v1054
        %1214 = vmatpush1.bf16.msra.mxu0 %v1053
        %1215 = vmatprep.subr.bf16.mxu0 %v1060
        %1216 = vmatpush1.bf16.msra.mxu0 %v1059
        %1217 = vmatprep.subr.bf16.mxu0 %v1066
        %1218 = vmatpush1.bf16.msra.mxu0 %v1065
        %1219 = vmatprep.subr.bf16.mxu0 %v1072
        %1220 = vmatpush1.bf16.msra.mxu0 %v1071
        %1221 = vmatprep.subr.bf16.mxu0 %v1078
        %1222 = vmatpush1.bf16.msra.mxu0 %v1077
        %1223 = vmatprep.subr.bf16.mxu0 %v1154
        %1224 = vmatpush1.bf16.msra.mxu0 %v1151
        %1225 = vmatprep.subr.bf16.mxu0 0
        %1226 = vmatpush1.bf16.msra.mxu0 0
        %1227 = vmatprep.subr.bf16.mxu0 0
        %1228 = vmatpush1.bf16.msra.mxu0 0
        %1229 = vmatprep.subr.bf16.mxu0 0
        %1230 = vmatpush1.bf16.msra.mxu0 0
        %1231 = vmatprep.subr.bf16.mxu0 0
        %1232 = vmatpush1.bf16.msra.mxu0 0
        %1233 = vmatprep.subr.bf16.mxu0 0
        %1234 = vmatpush1.bf16.msra.mxu0 0
        %1235 = vmatprep.subr.bf16.mxu0 0
        %1236 = vmatpush1.bf16.msra.mxu0 0
        %1237 = vmatprep.mubr.bf16.mxu0 %v1142
        %1238 = vmatmul.mubr.bf16.gmra.mrb[0].mxu0 %v853
        %v1239 = vpop.f32.mrb[0].mxu0
        %v1240 = vadd.f32 %v796, %v1239
        %v1241 = vpop.f32.mrb[0].mxu0
        %v1242 = vadd.f32 %v798, %v1241
        %v1243 = vpop.f32.mrb[0].mxu0
        %v1244 = vadd.f32 %v800, %v1243
        %v1245 = vpop.f32.mrb[0].mxu0
        %v1246 = vadd.f32 %v802, %v1245
        %1247 = vdwg.mxu0
        %1248 = vmatprep.subr.bf16.mxu0 %v1032
        %1249 = vmatpush1.bf16.msra.mxu0 %v1031
        %1250 = vmatprep.subr.bf16.mxu0 %v1038
        %1251 = vmatpush1.bf16.msra.mxu0 %v1037
        %1252 = vmatprep.subr.bf16.mxu0 %v1044
        %1253 = vmatpush1.bf16.msra.mxu0 %v1043
        %1254 = vmatprep.subr.bf16.mxu0 %v1050
        %1255 = vmatpush1.bf16.msra.mxu0 %v1049
        %1256 = vmatprep.subr.bf16.mxu0 %v1056
        %1257 = vmatpush1.bf16.msra.mxu0 %v1055
        %1258 = vmatprep.subr.bf16.mxu0 %v1062
        %1259 = vmatpush1.bf16.msra.mxu0 %v1061
        %1260 = vmatprep.subr.bf16.mxu0 %v1068
        %1261 = vmatpush1.bf16.msra.mxu0 %v1067
        %1262 = vmatprep.subr.bf16.mxu0 %v1074
        %1263 = vmatpush1.bf16.msra.mxu0 %v1073
        %1264 = vmatprep.subr.bf16.mxu0 %v1080
        %1265 = vmatpush1.bf16.msra.mxu0 %v1079
        %1266 = vmatprep.subr.bf16.mxu0 %v1160
        %1267 = vmatpush1.bf16.msra.mxu0 %v1157
        %1268 = vmatprep.subr.bf16.mxu0 0
        %1269 = vmatpush1.bf16.msra.mxu0 0
        %1270 = vmatprep.subr.bf16.mxu0 0
        %1271 = vmatpush1.bf16.msra.mxu0 0
        %1272 = vmatprep.subr.bf16.mxu0 0
        %1273 = vmatpush1.bf16.msra.mxu0 0
        %1274 = vmatprep.subr.bf16.mxu0 0
        %1275 = vmatpush1.bf16.msra.mxu0 0
        %1276 = vmatprep.subr.bf16.mxu0 0
        %1277 = vmatpush1.bf16.msra.mxu0 0
        %1278 = vmatprep.subr.bf16.mxu0 0
        %1279 = vmatpush1.bf16.msra.mxu0 0
        %1280 = vmatprep.mubr.bf16.mxu0 %v1142
        %1281 = vmatmul.mubr.bf16.gmra.mrb[0].mxu0 %v853
        %v1282 = vpop.f32.mrb[0].mxu0
        %v1283 = vadd.f32 %v839, %v1282
        %v1284 = vpop.f32.mrb[0].mxu0
        %v1285 = vadd.f32 %v841, %v1284
        %v1286 = vpop.f32.mrb[0].mxu0
        %v1287 = vadd.f32 %v843, %v1286
        %v1288 = vpop.f32.mrb[0].mxu0
        %v1289 = vadd.f32 %v845, %v1288
        %1290 = vdwg.mxu0
        %s1291 = scalar_lea.vmem %s274, 32
        %v1292 = vld [vmem:[%s1291] sm:$0xff]
        %v1293 = vld [vmem:[%s1291 + $0x8] sm:$0x33]
        %s1294 = scalar_lea.vmem [#allocation3], 912
        %v1295 = vld [vmem:[%s1294] sm:$0xff]
        %v1296 = vld [vmem:[%s1294 + $0x8] sm:$0xff]
        %v1297 = vld [vmem:[%s1294 + $0x10] sm:$0xff]
        %v1298 = vld [vmem:[%s1294 + $0x18] sm:$0xff]
        %v1299 = vld [vmem:[%s1294 + $0x20] sm:$0xff]
        %v1300 = vld [vmem:[%s1294 + $0x28] sm:$0xff]
        %v1301 = vld [vmem:[%s1294 + $0x30] sm:$0xff]
        %v1302 = vld [vmem:[%s1294 + $0x38] sm:$0xff]
        %v1303 = vld [vmem:[%s1294 + $0x40] sm:$0xff]
        %v1304 = vld [vmem:[%s1294 + $0x48] sm:$0xff]
        %v1305 = vld [vmem:[%s1294 + $0x50] sm:$0xff]
        %v1306 = vld [vmem:[%s1294 + $0x58] sm:$0xff]
        %v1307 = vld [vmem:[%s1294 + $0x60] sm:$0xff]
        %v1308 = vld [vmem:[%s1294 + $0x68] sm:$0xff]
        %v1309 = vld [vmem:[%s1294 + $0x70] sm:$0xff]
        %v1310 = vld [vmem:[%s1294 + $0x78] sm:$0xff]
        %v1311 = vld [vmem:[%s1294 + $0x80] sm:$0xff]
        %v1312 = vld [vmem:[%s1294 + $0x88] sm:$0xff]
        %v1313 = vld [vmem:[%s1294 + $0x90] sm:$0xff]
        %v1314 = vld [vmem:[%s1294 + $0x98] sm:$0xff]
        %v1315 = vld [vmem:[%s1294 + $0xa0] sm:$0xff]
        %v1316 = vld [vmem:[%s1294 + $0xa8] sm:$0xff]
        %v1317 = vld [vmem:[%s1294 + $0xb0] sm:$0xff]
        %v1318 = vld [vmem:[%s1294 + $0xb8] sm:$0xff]
        %v1319 = vld [vmem:[%s1294 + $0xc0] sm:$0xff]
        %v1320 = vld [vmem:[%s1294 + $0xc8] sm:$0xff]
        %v1321 = vld [vmem:[%s1294 + $0xd0] sm:$0xff]
        %v1322 = vld [vmem:[%s1294 + $0xd8] sm:$0xff]
        %v1323 = vld [vmem:[%s1294 + $0xe0] sm:$0xff]
        %v1324 = vld [vmem:[%s1294 + $0xe8] sm:$0xff]
        %v1325 = vld [vmem:[%s1294 + $0xf0] sm:$0xff]
        %v1326 = vld [vmem:[%s1294 + $0xf8] sm:$0xff]
        %v1327 = vld [vmem:[%s1294 + $0x100] sm:$0xff]
        %v1328 = vld [vmem:[%s1294 + $0x108] sm:$0xff]
        %v1329 = vld [vmem:[%s1294 + $0x110] sm:$0xff]
        %v1330 = vld [vmem:[%s1294 + $0x118] sm:$0xff]
        %v1331 = vld [vmem:[%s1294 + $0x120] sm:$0xff]
        %v1332 = vld [vmem:[%s1294 + $0x128] sm:$0xff]
        %v1333 = vld [vmem:[%s1294 + $0x130] sm:$0xff]
        %v1334 = vld [vmem:[%s1294 + $0x138] sm:$0xff]
        %v1335 = vld [vmem:[%s1294 + $0x140] sm:$0xff]
        %v1336 = vld [vmem:[%s1294 + $0x148] sm:$0xff]
        %v1337 = vld [vmem:[%s1294 + $0x150] sm:$0xff]
        %v1338 = vld [vmem:[%s1294 + $0x158] sm:$0xff]
        %v1339 = vld [vmem:[%s1294 + $0x160] sm:$0xff]
        %v1340 = vld [vmem:[%s1294 + $0x168] sm:$0xff]
        %v1341 = vld [vmem:[%s1294 + $0x170] sm:$0xff]
        %v1342 = vld [vmem:[%s1294 + $0x178] sm:$0xff]
        %v1343 = vld [vmem:[%s1294 + $0x180] sm:$0xff]
        %v1344 = vld [vmem:[%s1294 + $0x188] sm:$0xff]
        %v1345 = vld [vmem:[%s1294 + $0x190] sm:$0xff]
        %v1346 = vld [vmem:[%s1294 + $0x198] sm:$0xff]
        %v1347 = vld [vmem:[%s1294 + $0x1a0] sm:$0xff]
        %v1348 = vld [vmem:[%s1294 + $0x1a8] sm:$0xff]
        %v1349 = vld [vmem:[%s1294 + $0x1b0] sm:$0x77]
        %v1350 = vld [vmem:[%s1294 + $0x1b8] sm:$0x77]
        %v1351 = vld [vmem:[%s1294 + $0x1c0] sm:$0x77]
        %v1354 = vunpack.c.l.b16 %v1292
        %v1355 = vunpack.c.h.b16 %v1292
        %v1356 = vunpack.c.l.b16 %v1293
        %v1357 = vunpack.c.h.b16 %v1293
        %v1358 = vpack.c.b16 %v1356, %v1354
        %v1359 = vpack.c.b16 %v1357, %v1355
        %v1418 = vunpack.c.l.b16 %v1295
        %v1419 = vunpack.c.h.b16 %v1295
        %v1420 = vunpack.c.l.b16 %v1296
        %v1421 = vunpack.c.h.b16 %v1296
        %v1422 = vunpack.c.l.b16 %v1297
        %v1423 = vunpack.c.h.b16 %v1297
        %v1424 = vunpack.c.l.b16 %v1298
        %v1425 = vunpack.c.h.b16 %v1298
        %v1426 = vunpack.c.l.b16 %v1299
        %v1427 = vunpack.c.h.b16 %v1299
        %v1428 = vunpack.c.l.b16 %v1300
        %v1429 = vunpack.c.h.b16 %v1300
        %v1430 = vunpack.c.l.b16 %v1301
        %v1431 = vunpack.c.h.b16 %v1301
        %v1432 = vunpack.c.l.b16 %v1302
        %v1433 = vunpack.c.h.b16 %v1302
        %v1434 = vunpack.c.l.b16 %v1303
        %v1435 = vunpack.c.h.b16 %v1303
        %v1436 = vunpack.c.l.b16 %v1304
        %v1437 = vunpack.c.h.b16 %v1304
        %v1438 = vunpack.c.l.b16 %v1305
        %v1439 = vunpack.c.h.b16 %v1305
        %v1440 = vunpack.c.l.b16 %v1306
        %v1441 = vunpack.c.h.b16 %v1306
        %v1442 = vunpack.c.l.b16 %v1307
        %v1443 = vunpack.c.h.b16 %v1307
        %v1444 = vunpack.c.l.b16 %v1308
        %v1445 = vunpack.c.h.b16 %v1308
        %v1446 = vunpack.c.l.b16 %v1309
        %v1447 = vunpack.c.h.b16 %v1309
        %v1448 = vunpack.c.l.b16 %v1310
        %v1449 = vunpack.c.h.b16 %v1310
        %v1450 = vunpack.c.l.b16 %v1311
        %v1451 = vunpack.c.h.b16 %v1311
        %v1452 = vunpack.c.l.b16 %v1312
        %v1453 = vunpack.c.h.b16 %v1312
        %v1454 = vunpack.c.l.b16 %v1313
        %v1455 = vunpack.c.h.b16 %v1313
        %v1456 = vunpack.c.l.b16 %v1314
        %v1457 = vunpack.c.h.b16 %v1314
        %v1458 = vunpack.c.l.b16 %v1315
        %v1459 = vunpack.c.h.b16 %v1315
        %v1460 = vunpack.c.l.b16 %v1316
        %v1461 = vunpack.c.h.b16 %v1316
        %v1462 = vunpack.c.l.b16 %v1317
        %v1463 = vunpack.c.h.b16 %v1317
        %v1464 = vunpack.c.l.b16 %v1318
        %v1465 = vunpack.c.h.b16 %v1318
        %v1466 = vunpack.c.l.b16 %v1319
        %v1467 = vunpack.c.h.b16 %v1319
        %v1468 = vunpack.c.l.b16 %v1320
        %v1469 = vunpack.c.h.b16 %v1320
        %v1470 = vunpack.c.l.b16 %v1321
        %v1471 = vunpack.c.h.b16 %v1321
        %v1472 = vunpack.c.l.b16 %v1322
        %v1473 = vunpack.c.h.b16 %v1322
        %v1474 = vunpack.c.l.b16 %v1323
        %v1475 = vunpack.c.h.b16 %v1323
        %v1476 = vunpack.c.l.b16 %v1324
        %v1477 = vunpack.c.h.b16 %v1324
        %v1478 = vunpack.c.l.b16 %v1325
        %v1479 = vunpack.c.h.b16 %v1325
        %v1480 = vunpack.c.l.b16 %v1326
        %v1481 = vunpack.c.h.b16 %v1326
        %v1482 = vunpack.c.l.b16 %v1327
        %v1483 = vunpack.c.h.b16 %v1327
        %v1484 = vunpack.c.l.b16 %v1328
        %v1485 = vunpack.c.h.b16 %v1328
        %v1486 = vunpack.c.l.b16 %v1329
        %v1487 = vunpack.c.h.b16 %v1329
        %v1488 = vunpack.c.l.b16 %v1330
        %v1489 = vunpack.c.h.b16 %v1330
        %v1490 = vunpack.c.l.b16 %v1331
        %v1491 = vunpack.c.h.b16 %v1331
        %v1492 = vunpack.c.l.b16 %v1332
        %v1493 = vunpack.c.h.b16 %v1332
        %v1494 = vunpack.c.l.b16 %v1333
        %v1495 = vunpack.c.h.b16 %v1333
        %v1496 = vunpack.c.l.b16 %v1334
        %v1497 = vunpack.c.h.b16 %v1334
        %v1498 = vunpack.c.l.b16 %v1335
        %v1499 = vunpack.c.h.b16 %v1335
        %v1500 = vunpack.c.l.b16 %v1336
        %v1501 = vunpack.c.h.b16 %v1336
        %v1502 = vunpack.c.l.b16 %v1337
        %v1503 = vunpack.c.h.b16 %v1337
        %v1504 = vunpack.c.l.b16 %v1338
        %v1505 = vunpack.c.h.b16 %v1338
        %v1506 = vunpack.c.l.b16 %v1339
        %v1507 = vunpack.c.h.b16 %v1339
        %v1508 = vunpack.c.l.b16 %v1340
        %v1509 = vunpack.c.h.b16 %v1340
        %v1510 = vunpack.c.l.b16 %v1341
        %v1511 = vunpack.c.h.b16 %v1341
        %v1512 = vunpack.c.l.b16 %v1342
        %v1513 = vunpack.c.h.b16 %v1342
        %v1514 = vunpack.c.l.b16 %v1343
        %v1515 = vunpack.c.h.b16 %v1343
        %v1516 = vunpack.c.l.b16 %v1344
        %v1517 = vunpack.c.h.b16 %v1344
        %v1518 = vunpack.c.l.b16 %v1345
        %v1519 = vunpack.c.h.b16 %v1345
        %v1520 = vunpack.c.l.b16 %v1346
        %v1521 = vunpack.c.h.b16 %v1346
        %v1522 = vunpack.c.l.b16 %v1347
        %v1523 = vunpack.c.h.b16 %v1347
        %v1524 = vunpack.c.l.b16 %v1348
        %v1525 = vunpack.c.h.b16 %v1348
        %v1526 = vunpack.c.l.b16 %v1349
        %v1527 = vunpack.c.h.b16 %v1349
        %v1528 = vunpack.c.l.b16 %v1350
        %v1529 = vunpack.c.h.b16 %v1350
        %v1530 = vunpack.c.l.b16 %v1351
        %v1531 = vunpack.c.h.b16 %v1351
        %v1532 = vpack.c.b16 %v1424, %v1418
        %v1533 = vpack.c.b16 %v1425, %v1419
        %v1534 = vpack.c.b16 %v1426, %v1420
        %v1535 = vpack.c.b16 %v1427, %v1421
        %v1536 = vpack.c.b16 %v1428, %v1422
        %v1537 = vpack.c.b16 %v1429, %v1423
        %v1538 = vpack.c.b16 %v1436, %v1430
        %v1539 = vpack.c.b16 %v1437, %v1431
        %v1540 = vpack.c.b16 %v1438, %v1432
        %v1541 = vpack.c.b16 %v1439, %v1433
        %v1542 = vpack.c.b16 %v1440, %v1434
        %v1543 = vpack.c.b16 %v1441, %v1435
        %v1544 = vpack.c.b16 %v1448, %v1442
        %v1545 = vpack.c.b16 %v1449, %v1443
        %v1546 = vpack.c.b16 %v1450, %v1444
        %v1547 = vpack.c.b16 %v1451, %v1445
        %v1548 = vpack.c.b16 %v1452, %v1446
        %v1549 = vpack.c.b16 %v1453, %v1447
        %v1550 = vpack.c.b16 %v1460, %v1454
        %v1551 = vpack.c.b16 %v1461, %v1455
        %v1552 = vpack.c.b16 %v1462, %v1456
        %v1553 = vpack.c.b16 %v1463, %v1457
        %v1554 = vpack.c.b16 %v1464, %v1458
        %v1555 = vpack.c.b16 %v1465, %v1459
        %v1556 = vpack.c.b16 %v1472, %v1466
        %v1557 = vpack.c.b16 %v1473, %v1467
        %v1558 = vpack.c.b16 %v1474, %v1468
        %v1559 = vpack.c.b16 %v1475, %v1469
        %v1560 = vpack.c.b16 %v1476, %v1470
        %v1561 = vpack.c.b16 %v1477, %v1471
        %v1562 = vpack.c.b16 %v1484, %v1478
        %v1563 = vpack.c.b16 %v1485, %v1479
        %v1564 = vpack.c.b16 %v1486, %v1480
        %v1565 = vpack.c.b16 %v1487, %v1481
        %v1566 = vpack.c.b16 %v1488, %v1482
        %v1567 = vpack.c.b16 %v1489, %v1483
        %v1568 = vpack.c.b16 %v1496, %v1490
        %v1569 = vpack.c.b16 %v1497, %v1491
        %v1570 = vpack.c.b16 %v1498, %v1492
        %v1571 = vpack.c.b16 %v1499, %v1493
        %v1572 = vpack.c.b16 %v1500, %v1494
        %v1573 = vpack.c.b16 %v1501, %v1495
        %v1574 = vpack.c.b16 %v1508, %v1502
        %v1575 = vpack.c.b16 %v1509, %v1503
        %v1576 = vpack.c.b16 %v1510, %v1504
        %v1577 = vpack.c.b16 %v1511, %v1505
        %v1578 = vpack.c.b16 %v1512, %v1506
        %v1579 = vpack.c.b16 %v1513, %v1507
        %v1580 = vpack.c.b16 %v1520, %v1514
        %v1581 = vpack.c.b16 %v1521, %v1515
        %v1582 = vpack.c.b16 %v1522, %v1516
        %v1583 = vpack.c.b16 %v1523, %v1517
        %v1584 = vpack.c.b16 %v1524, %v1518
        %v1585 = vpack.c.b16 %v1525, %v1519
        %v1586 = vpack.c.b16 %v1526, %v1526
        %v1587 = vpack.c.b16 %v1527, %v1527
        %v1588 = vpack.c.b16 %v1528, %v1528
        %v1589 = vpack.c.b16 %v1529, %v1529
        %v1590 = vpack.c.b16 %v1530, %v1530
        %v1591 = vpack.c.b16 %v1531, %v1531
        %v1647 = vsel %vm695, %v1359, 0
        %v1650 = vsel %vm699, %v1586, 0
        %v1653 = vsel %vm699, %v1587, 0
        %v1656 = vsel %vm699, %v1588, 0
        %v1659 = vsel %vm699, %v1589, 0
        %v1662 = vsel %vm699, %v1590, 0
        %v1665 = vsel %vm699, %v1591, 0
        %1667 = vmatprep.subr.bf16.mxu0 %v1533
        %1668 = vmatpush1.bf16.msra.mxu0 %v1532
        %1669 = vmatprep.subr.bf16.mxu0 %v1539
        %1670 = vmatpush1.bf16.msra.mxu0 %v1538
        %1671 = vmatprep.subr.bf16.mxu0 %v1545
        %1672 = vmatpush1.bf16.msra.mxu0 %v1544
        %1673 = vmatprep.subr.bf16.mxu0 %v1551
        %1674 = vmatpush1.bf16.msra.mxu0 %v1550
        %1675 = vmatprep.subr.bf16.mxu0 %v1557
        %1676 = vmatpush1.bf16.msra.mxu0 %v1556
        %1677 = vmatprep.subr.bf16.mxu0 %v1563
        %1678 = vmatpush1.bf16.msra.mxu0 %v1562
        %1679 = vmatprep.subr.bf16.mxu0 %v1569
        %1680 = vmatpush1.bf16.msra.mxu0 %v1568
        %1681 = vmatprep.subr.bf16.mxu0 %v1575
        %1682 = vmatpush1.bf16.msra.mxu0 %v1574
        %1683 = vmatprep.subr.bf16.mxu0 %v1581
        %1684 = vmatpush1.bf16.msra.mxu0 %v1580
        %1685 = vmatprep.subr.bf16.mxu0 %v1653
        %1686 = vmatpush1.bf16.msra.mxu0 %v1650
        %1687 = vmatprep.subr.bf16.mxu0 0
        %1688 = vmatpush1.bf16.msra.mxu0 0
        %1689 = vmatprep.subr.bf16.mxu0 0
        %1690 = vmatpush1.bf16.msra.mxu0 0
        %1691 = vmatprep.subr.bf16.mxu0 0
        %1692 = vmatpush1.bf16.msra.mxu0 0
        %1693 = vmatprep.subr.bf16.mxu0 0
        %1694 = vmatpush1.bf16.msra.mxu0 0
        %1695 = vmatprep.subr.bf16.mxu0 0
        %1696 = vmatpush1.bf16.msra.mxu0 0
        %1697 = vmatprep.subr.bf16.mxu0 0
        %1698 = vmatpush1.bf16.msra.mxu0 0
        %1699 = vmatprep.mubr.bf16.mxu0 %v1647
        %1700 = vmatmul.mubr.bf16.gmra.mrb[0].mxu0 %v1358
        %v1701 = vpop.f32.mrb[0].mxu0
        %v1702 = vadd.f32 0.0, %v1701
        %v1703 = vpop.f32.mrb[0].mxu0
        %v1704 = vadd.f32 0.0, %v1703
        %v1705 = vpop.f32.mrb[0].mxu0
        %v1706 = vadd.f32 0.0, %v1705
        %v1707 = vpop.f32.mrb[0].mxu0
        %v1708 = vadd.f32 0.0, %v1707
        %1709 = vdwg.mxu0
        %1710 = vmatprep.subr.bf16.mxu0 %v1535
        %1711 = vmatpush1.bf16.msra.mxu0 %v1534
        %1712 = vmatprep.subr.bf16.mxu0 %v1541
        %1713 = vmatpush1.bf16.msra.mxu0 %v1540
        %1714 = vmatprep.subr.bf16.mxu0 %v1547
        %1715 = vmatpush1.bf16.msra.mxu0 %v1546
        %1716 = vmatprep.subr.bf16.mxu0 %v1553
        %1717 = vmatpush1.bf16.msra.mxu0 %v1552
        %1718 = vmatprep.subr.bf16.mxu0 %v1559
        %1719 = vmatpush1.bf16.msra.mxu0 %v1558
        %1720 = vmatprep.subr.bf16.mxu0 %v1565
        %1721 = vmatpush1.bf16.msra.mxu0 %v1564
        %1722 = vmatprep.subr.bf16.mxu0 %v1571
        %1723 = vmatpush1.bf16.msra.mxu0 %v1570
        %1724 = vmatprep.subr.bf16.mxu0 %v1577
        %1725 = vmatpush1.bf16.msra.mxu0 %v1576
        %1726 = vmatprep.subr.bf16.mxu0 %v1583
        %1727 = vmatpush1.bf16.msra.mxu0 %v1582
        %1728 = vmatprep.subr.bf16.mxu0 %v1659
        %1729 = vmatpush1.bf16.msra.mxu0 %v1656
        %1730 = vmatprep.subr.bf16.mxu0 0
        %1731 = vmatpush1.bf16.msra.mxu0 0
        %1732 = vmatprep.subr.bf16.mxu0 0
        %1733 = vmatpush1.bf16.msra.mxu0 0
        %1734 = vmatprep.subr.bf16.mxu0 0
        %1735 = vmatpush1.bf16.msra.mxu0 0
        %1736 = vmatprep.subr.bf16.mxu0 0
        %1737 = vmatpush1.bf16.msra.mxu0 0
        %1738 = vmatprep.subr.bf16.mxu0 0
        %1739 = vmatpush1.bf16.msra.mxu0 0
        %1740 = vmatprep.subr.bf16.mxu0 0
        %1741 = vmatpush1.bf16.msra.mxu0 0
        %1742 = vmatprep.mubr.bf16.mxu0 %v1647
        %1743 = vmatmul.mubr.bf16.gmra.mrb[0].mxu0 %v1358
        %v1744 = vpop.f32.mrb[0].mxu0
        %v1745 = vadd.f32 0.0, %v1744
        %v1746 = vpop.f32.mrb[0].mxu0
        %v1747 = vadd.f32 0.0, %v1746
        %v1748 = vpop.f32.mrb[0].mxu0
        %v1749 = vadd.f32 0.0, %v1748
        %v1750 = vpop.f32.mrb[0].mxu0
        %v1751 = vadd.f32 0.0, %v1750
        %1752 = vdwg.mxu0
        %1753 = vmatprep.subr.bf16.mxu0 %v1537
        %1754 = vmatpush1.bf16.msra.mxu0 %v1536
        %1755 = vmatprep.subr.bf16.mxu0 %v1543
        %1756 = vmatpush1.bf16.msra.mxu0 %v1542
        %1757 = vmatprep.subr.bf16.mxu0 %v1549
        %1758 = vmatpush1.bf16.msra.mxu0 %v1548
        %1759 = vmatprep.subr.bf16.mxu0 %v1555
        %1760 = vmatpush1.bf16.msra.mxu0 %v1554
        %1761 = vmatprep.subr.bf16.mxu0 %v1561
        %1762 = vmatpush1.bf16.msra.mxu0 %v1560
        %1763 = vmatprep.subr.bf16.mxu0 %v1567
        %1764 = vmatpush1.bf16.msra.mxu0 %v1566
        %1765 = vmatprep.subr.bf16.mxu0 %v1573
        %1766 = vmatpush1.bf16.msra.mxu0 %v1572
        %1767 = vmatprep.subr.bf16.mxu0 %v1579
        %1768 = vmatpush1.bf16.msra.mxu0 %v1578
        %1769 = vmatprep.subr.bf16.mxu0 %v1585
        %1770 = vmatpush1.bf16.msra.mxu0 %v1584
        %1771 = vmatprep.subr.bf16.mxu0 %v1665
        %1772 = vmatpush1.bf16.msra.mxu0 %v1662
        %1773 = vmatprep.subr.bf16.mxu0 0
        %1774 = vmatpush1.bf16.msra.mxu0 0
        %1775 = vmatprep.subr.bf16.mxu0 0
        %1776 = vmatpush1.bf16.msra.mxu0 0
        %1777 = vmatprep.subr.bf16.mxu0 0
        %1778 = vmatpush1.bf16.msra.mxu0 0
        %1779 = vmatprep.subr.bf16.mxu0 0
        %1780 = vmatpush1.bf16.msra.mxu0 0
        %1781 = vmatprep.subr.bf16.mxu0 0
        %1782 = vmatpush1.bf16.msra.mxu0 0
        %1783 = vmatprep.subr.bf16.mxu0 0
        %1784 = vmatpush1.bf16.msra.mxu0 0
        %1785 = vmatprep.mubr.bf16.mxu0 %v1647
        %1786 = vmatmul.mubr.bf16.gmra.mrb[0].mxu0 %v1358
        %v1787 = vpop.f32.mrb[0].mxu0
        %v1788 = vadd.f32 0.0, %v1787
        %v1789 = vpop.f32.mrb[0].mxu0
        %v1790 = vadd.f32 0.0, %v1789
        %v1791 = vpop.f32.mrb[0].mxu0
        %v1792 = vadd.f32 0.0, %v1791
        %v1793 = vpop.f32.mrb[0].mxu0
        %v1794 = vadd.f32 0.0, %v1793
        %1795 = vdwg.mxu0
        %v1796 = vadd.f32 %v1197, %v1702
        %v1797 = vadd.f32 %v1199, %v1704
        %v1798 = vadd.f32 %v1240, %v1745
        %v1799 = vadd.f32 %v1242, %v1747
        %v1800 = vadd.f32 %v1283, %v1788
        %v1801 = vadd.f32 %v1285, %v1790
        %v1802 = vadd.f32 %v1201, %v1706
        %v1803 = vadd.f32 %v1203, %v1708
        %v1804 = vadd.f32 %v1244, %v1749
        %v1805 = vadd.f32 %v1246, %v1751
        %v1806 = vadd.f32 %v1287, %v1792
        %v1807 = vadd.f32 %v1289, %v1794
        %1808 = vmatprep.subr.bf16.mxu0 %v582
        %1809 = vmatpush1.bf16.msra.mxu0 %v581
        %1810 = vmatprep.subr.bf16.mxu0 %v588
        %1811 = vmatpush1.bf16.msra.mxu0 %v587
        %1812 = vmatprep.subr.bf16.mxu0 %v594
        %1813 = vmatpush1.bf16.msra.mxu0 %v593
        %1814 = vmatprep.subr.bf16.mxu0 %v600
        %1815 = vmatpush1.bf16.msra.mxu0 %v599
        %1816 = vmatprep.subr.bf16.mxu0 %v606
        %1817 = vmatpush1.bf16.msra.mxu0 %v605
        %1818 = vmatprep.subr.bf16.mxu0 %v612
        %1819 = vmatpush1.bf16.msra.mxu0 %v611
        %1820 = vmatprep.subr.bf16.mxu0 %v618
        %1821 = vmatpush1.bf16.msra.mxu0 %v617
        %1822 = vmatprep.subr.bf16.mxu0 %v624
        %1823 = vmatpush1.bf16.msra.mxu0 %v623
        %1824 = vmatprep.subr.bf16.mxu0 %v630
        %1825 = vmatpush1.bf16.msra.mxu0 %v629
        %1826 = vmatprep.subr.bf16.mxu0 %v704
        %1827 = vmatpush1.bf16.msra.mxu0 %v701
        %1828 = vmatprep.subr.bf16.mxu0 0
        %1829 = vmatpush1.bf16.msra.mxu0 0
        %1830 = vmatprep.subr.bf16.mxu0 0
        %1831 = vmatpush1.bf16.msra.mxu0 0
        %1832 = vmatprep.subr.bf16.mxu0 0
        %1833 = vmatpush1.bf16.msra.mxu0 0
        %1834 = vmatprep.subr.bf16.mxu0 0
        %1835 = vmatpush1.bf16.msra.mxu0 0
        %1836 = vmatprep.subr.bf16.mxu0 0
        %1837 = vmatpush1.bf16.msra.mxu0 0
        %1838 = vmatprep.subr.bf16.mxu0 0
        %1839 = vmatpush1.bf16.msra.mxu0 0
        %1840 = vmatprep.mubr.bf16.mxu0 %v1647
        %1841 = vmatmul.mubr.bf16.gmra.mrb[0].mxu0 %v1358
        %v1842 = vpop.f32.mrb[0].mxu0
        %v1843 = vadd.f32 0.0, %v1842
        %v1844 = vpop.f32.mrb[0].mxu0
        %v1845 = vadd.f32 0.0, %v1844
        %v1846 = vpop.f32.mrb[0].mxu0
        %v1847 = vadd.f32 0.0, %v1846
        %v1848 = vpop.f32.mrb[0].mxu0
        %v1849 = vadd.f32 0.0, %v1848
        %1850 = vdwg.mxu0
        %1851 = vmatprep.subr.bf16.mxu0 %v584
        %1852 = vmatpush1.bf16.msra.mxu0 %v583
        %1853 = vmatprep.subr.bf16.mxu0 %v590
        %1854 = vmatpush1.bf16.msra.mxu0 %v589
        %1855 = vmatprep.subr.bf16.mxu0 %v596
        %1856 = vmatpush1.bf16.msra.mxu0 %v595
        %1857 = vmatprep.subr.bf16.mxu0 %v602
        %1858 = vmatpush1.bf16.msra.mxu0 %v601
        %1859 = vmatprep.subr.bf16.mxu0 %v608
        %1860 = vmatpush1.bf16.msra.mxu0 %v607
        %1861 = vmatprep.subr.bf16.mxu0 %v614
        %1862 = vmatpush1.bf16.msra.mxu0 %v613
        %1863 = vmatprep.subr.bf16.mxu0 %v620
        %1864 = vmatpush1.bf16.msra.mxu0 %v619
        %1865 = vmatprep.subr.bf16.mxu0 %v626
        %1866 = vmatpush1.bf16.msra.mxu0 %v625
        %1867 = vmatprep.subr.bf16.mxu0 %v632
        %1868 = vmatpush1.bf16.msra.mxu0 %v631
        %1869 = vmatprep.subr.bf16.mxu0 %v710
        %1870 = vmatpush1.bf16.msra.mxu0 %v707
        %1871 = vmatprep.subr.bf16.mxu0 0
        %1872 = vmatpush1.bf16.msra.mxu0 0
        %1873 = vmatprep.subr.bf16.mxu0 0
        %1874 = vmatpush1.bf16.msra.mxu0 0
        %1875 = vmatprep.subr.bf16.mxu0 0
        %1876 = vmatpush1.bf16.msra.mxu0 0
        %1877 = vmatprep.subr.bf16.mxu0 0
        %1878 = vmatpush1.bf16.msra.mxu0 0
        %1879 = vmatprep.subr.bf16.mxu0 0
        %1880 = vmatpush1.bf16.msra.mxu0 0
        %1881 = vmatprep.subr.bf16.mxu0 0
        %1882 = vmatpush1.bf16.msra.mxu0 0
        %1883 = vmatprep.mubr.bf16.mxu0 %v1647
        %1884 = vmatmul.mubr.bf16.gmra.mrb[0].mxu0 %v1358
        %v1885 = vpop.f32.mrb[0].mxu0
        %v1886 = vadd.f32 0.0, %v1885
        %v1887 = vpop.f32.mrb[0].mxu0
        %v1888 = vadd.f32 0.0, %v1887
        %v1889 = vpop.f32.mrb[0].mxu0
        %v1890 = vadd.f32 0.0, %v1889
        %v1891 = vpop.f32.mrb[0].mxu0
        %v1892 = vadd.f32 0.0, %v1891
        %1893 = vdwg.mxu0
        %1894 = vmatprep.subr.bf16.mxu0 %v586
        %1895 = vmatpush1.bf16.msra.mxu0 %v585
        %1896 = vmatprep.subr.bf16.mxu0 %v592
        %1897 = vmatpush1.bf16.msra.mxu0 %v591
        %1898 = vmatprep.subr.bf16.mxu0 %v598
        %1899 = vmatpush1.bf16.msra.mxu0 %v597
        %1900 = vmatprep.subr.bf16.mxu0 %v604
        %1901 = vmatpush1.bf16.msra.mxu0 %v603
        %1902 = vmatprep.subr.bf16.mxu0 %v610
        %1903 = vmatpush1.bf16.msra.mxu0 %v609
        %1904 = vmatprep.subr.bf16.mxu0 %v616
        %1905 = vmatpush1.bf16.msra.mxu0 %v615
        %1906 = vmatprep.subr.bf16.mxu0 %v622
        %1907 = vmatpush1.bf16.msra.mxu0 %v621
        %1908 = vmatprep.subr.bf16.mxu0 %v628
        %1909 = vmatpush1.bf16.msra.mxu0 %v627
        %1910 = vmatprep.subr.bf16.mxu0 %v634
        %1911 = vmatpush1.bf16.msra.mxu0 %v633
        %1912 = vmatprep.subr.bf16.mxu0 %v716
        %1913 = vmatpush1.bf16.msra.mxu0 %v713
        %1914 = vmatprep.subr.bf16.mxu0 0
        %1915 = vmatpush1.bf16.msra.mxu0 0
        %1916 = vmatprep.subr.bf16.mxu0 0
        %1917 = vmatpush1.bf16.msra.mxu0 0
        %1918 = vmatprep.subr.bf16.mxu0 0
        %1919 = vmatpush1.bf16.msra.mxu0 0
        %1920 = vmatprep.subr.bf16.mxu0 0
        %1921 = vmatpush1.bf16.msra.mxu0 0
        %1922 = vmatprep.subr.bf16.mxu0 0
        %1923 = vmatpush1.bf16.msra.mxu0 0
        %1924 = vmatprep.subr.bf16.mxu0 0
        %1925 = vmatpush1.bf16.msra.mxu0 0
        %1926 = vmatprep.mubr.bf16.mxu0 %v1647
        %1927 = vmatmul.mubr.bf16.gmra.mrb[0].mxu0 %v1358
        %v1928 = vpop.f32.mrb[0].mxu0
        %v1929 = vadd.f32 0.0, %v1928
        %v1930 = vpop.f32.mrb[0].mxu0
        %v1931 = vadd.f32 0.0, %v1930
        %v1932 = vpop.f32.mrb[0].mxu0
        %v1933 = vadd.f32 0.0, %v1932
        %v1934 = vpop.f32.mrb[0].mxu0
        %v1935 = vadd.f32 0.0, %v1934
        %1936 = vdwg.mxu0
        %1937 = vmatprep.subr.bf16.mxu0 %v1028
        %1938 = vmatpush1.bf16.msra.mxu0 %v1027
        %1939 = vmatprep.subr.bf16.mxu0 %v1034
        %1940 = vmatpush1.bf16.msra.mxu0 %v1033
        %1941 = vmatprep.subr.bf16.mxu0 %v1040
        %1942 = vmatpush1.bf16.msra.mxu0 %v1039
        %1943 = vmatprep.subr.bf16.mxu0 %v1046
        %1944 = vmatpush1.bf16.msra.mxu0 %v1045
        %1945 = vmatprep.subr.bf16.mxu0 %v1052
        %1946 = vmatpush1.bf16.msra.mxu0 %v1051
        %1947 = vmatprep.subr.bf16.mxu0 %v1058
        %1948 = vmatpush1.bf16.msra.mxu0 %v1057
        %1949 = vmatprep.subr.bf16.mxu0 %v1064
        %1950 = vmatpush1.bf16.msra.mxu0 %v1063
        %1951 = vmatprep.subr.bf16.mxu0 %v1070
        %1952 = vmatpush1.bf16.msra.mxu0 %v1069
        %1953 = vmatprep.subr.bf16.mxu0 %v1076
        %1954 = vmatpush1.bf16.msra.mxu0 %v1075
        %1955 = vmatprep.subr.bf16.mxu0 %v1148
        %1956 = vmatpush1.bf16.msra.mxu0 %v1145
        %1957 = vmatprep.subr.bf16.mxu0 0
        %1958 = vmatpush1.bf16.msra.mxu0 0
        %1959 = vmatprep.subr.bf16.mxu0 0
        %1960 = vmatpush1.bf16.msra.mxu0 0
        %1961 = vmatprep.subr.bf16.mxu0 0
        %1962 = vmatpush1.bf16.msra.mxu0 0
        %1963 = vmatprep.subr.bf16.mxu0 0
        %1964 = vmatpush1.bf16.msra.mxu0 0
        %1965 = vmatprep.subr.bf16.mxu0 0
        %1966 = vmatpush1.bf16.msra.mxu0 0
        %1967 = vmatprep.subr.bf16.mxu0 0
        %1968 = vmatpush1.bf16.msra.mxu0 0
        %1969 = vmatprep.mubr.bf16.mxu0 %v697
        %1970 = vmatmul.mubr.bf16.gmra.mrb[0].mxu0 %v407
        %v1971 = vpop.f32.mrb[0].mxu0
        %v1972 = vadd.f32 %v1843, %v1971
        %v1973 = vpop.f32.mrb[0].mxu0
        %v1974 = vadd.f32 %v1845, %v1973
        %v1975 = vpop.f32.mrb[0].mxu0
        %v1976 = vadd.f32 %v1847, %v1975
        %v1977 = vpop.f32.mrb[0].mxu0
        %v1978 = vadd.f32 %v1849, %v1977
        %1979 = vdwg.mxu0
        %1980 = vmatprep.subr.bf16.mxu0 %v1030
        %1981 = vmatpush1.bf16.msra.mxu0 %v1029
        %1982 = vmatprep.subr.bf16.mxu0 %v1036
        %1983 = vmatpush1.bf16.msra.mxu0 %v1035
        %1984 = vmatprep.subr.bf16.mxu0 %v1042
        %1985 = vmatpush1.bf16.msra.mxu0 %v1041
        %1986 = vmatprep.subr.bf16.mxu0 %v1048
        %1987 = vmatpush1.bf16.msra.mxu0 %v1047
        %1988 = vmatprep.subr.bf16.mxu0 %v1054
        %1989 = vmatpush1.bf16.msra.mxu0 %v1053
        %1990 = vmatprep.subr.bf16.mxu0 %v1060
        %1991 = vmatpush1.bf16.msra.mxu0 %v1059
        %1992 = vmatprep.subr.bf16.mxu0 %v1066
        %1993 = vmatpush1.bf16.msra.mxu0 %v1065
        %1994 = vmatprep.subr.bf16.mxu0 %v1072
        %1995 = vmatpush1.bf16.msra.mxu0 %v1071
        %1996 = vmatprep.subr.bf16.mxu0 %v1078
        %1997 = vmatpush1.bf16.msra.mxu0 %v1077
        %1998 = vmatprep.subr.bf16.mxu0 %v1154
        %1999 = vmatpush1.bf16.msra.mxu0 %v1151
        %2000 = vmatprep.subr.bf16.mxu0 0
        %2001 = vmatpush1.bf16.msra.mxu0 0
        %2002 = vmatprep.subr.bf16.mxu0 0
        %2003 = vmatpush1.bf16.msra.mxu0 0
        %2004 = vmatprep.subr.bf16.mxu0 0
        %2005 = vmatpush1.bf16.msra.mxu0 0
        %2006 = vmatprep.subr.bf16.mxu0 0
        %2007 = vmatpush1.bf16.msra.mxu0 0
        %2008 = vmatprep.subr.bf16.mxu0 0
        %2009 = vmatpush1.bf16.msra.mxu0 0
        %2010 = vmatprep.subr.bf16.mxu0 0
        %2011 = vmatpush1.bf16.msra.mxu0 0
        %2012 = vmatprep.mubr.bf16.mxu0 %v697
        %2013 = vmatmul.mubr.bf16.gmra.mrb[0].mxu0 %v407
        %v2014 = vpop.f32.mrb[0].mxu0
        %v2015 = vadd.f32 %v1886, %v2014
        %v2016 = vpop.f32.mrb[0].mxu0
        %v2017 = vadd.f32 %v1888, %v2016
        %v2018 = vpop.f32.mrb[0].mxu0
        %v2019 = vadd.f32 %v1890, %v2018
        %v2020 = vpop.f32.mrb[0].mxu0
        %v2021 = vadd.f32 %v1892, %v2020
        %2022 = vdwg.mxu0
        %2023 = vmatprep.subr.bf16.mxu0 %v1032
        %2024 = vmatpush1.bf16.msra.mxu0 %v1031
        %2025 = vmatprep.subr.bf16.mxu0 %v1038
        %2026 = vmatpush1.bf16.msra.mxu0 %v1037
        %2027 = vmatprep.subr.bf16.mxu0 %v1044
        %2028 = vmatpush1.bf16.msra.mxu0 %v1043
        %2029 = vmatprep.subr.bf16.mxu0 %v1050
        %2030 = vmatpush1.bf16.msra.mxu0 %v1049
        %2031 = vmatprep.subr.bf16.mxu0 %v1056
        %2032 = vmatpush1.bf16.msra.mxu0 %v1055
        %2033 = vmatprep.subr.bf16.mxu0 %v1062
        %2034 = vmatpush1.bf16.msra.mxu0 %v1061
        %2035 = vmatprep.subr.bf16.mxu0 %v1068
        %2036 = vmatpush1.bf16.msra.mxu0 %v1067
        %2037 = vmatprep.subr.bf16.mxu0 %v1074
        %2038 = vmatpush1.bf16.msra.mxu0 %v1073
        %2039 = vmatprep.subr.bf16.mxu0 %v1080
        %2040 = vmatpush1.bf16.msra.mxu0 %v1079
        %2041 = vmatprep.subr.bf16.mxu0 %v1160
        %2042 = vmatpush1.bf16.msra.mxu0 %v1157
        %2043 = vmatprep.subr.bf16.mxu0 0
        %2044 = vmatpush1.bf16.msra.mxu0 0
        %2045 = vmatprep.subr.bf16.mxu0 0
        %2046 = vmatpush1.bf16.msra.mxu0 0
        %2047 = vmatprep.subr.bf16.mxu0 0
        %2048 = vmatpush1.bf16.msra.mxu0 0
        %2049 = vmatprep.subr.bf16.mxu0 0
        %2050 = vmatpush1.bf16.msra.mxu0 0
        %2051 = vmatprep.subr.bf16.mxu0 0
        %2052 = vmatpush1.bf16.msra.mxu0 0
        %2053 = vmatprep.subr.bf16.mxu0 0
        %2054 = vmatpush1.bf16.msra.mxu0 0
        %2055 = vmatprep.mubr.bf16.mxu0 %v697
        %2056 = vmatmul.mubr.bf16.gmra.mrb[0].mxu0 %v407
        %v2057 = vpop.f32.mrb[0].mxu0
        %v2058 = vadd.f32 %v1929, %v2057
        %v2059 = vpop.f32.mrb[0].mxu0
        %v2060 = vadd.f32 %v1931, %v2059
        %v2061 = vpop.f32.mrb[0].mxu0
        %v2062 = vadd.f32 %v1933, %v2061
        %v2063 = vpop.f32.mrb[0].mxu0
        %v2064 = vadd.f32 %v1935, %v2063
        %2065 = vdwg.mxu0
        %s2066 = scalar_lea.vmem %s274, 48
        %v2067 = vld [vmem:[%s2066] sm:$0xff]
        %v2068 = vld [vmem:[%s2066 + $0x8] sm:$0x33]
        %v2071 = vunpack.c.l.b16 %v2067
        %v2072 = vunpack.c.h.b16 %v2067
        %v2073 = vunpack.c.l.b16 %v2068
        %v2074 = vunpack.c.h.b16 %v2068
        %v2075 = vpack.c.b16 %v2073, %v2071
        %v2076 = vpack.c.b16 %v2074, %v2072
        %v2079 = vsel %vm695, %v2076, 0
        %2081 = vmatprep.subr.bf16.mxu0 %v1533
        %2082 = vmatpush1.bf16.msra.mxu0 %v1532
        %2083 = vmatprep.subr.bf16.mxu0 %v1539
        %2084 = vmatpush1.bf16.msra.mxu0 %v1538
        %2085 = vmatprep.subr.bf16.mxu0 %v1545
        %2086 = vmatpush1.bf16.msra.mxu0 %v1544
        %2087 = vmatprep.subr.bf16.mxu0 %v1551
        %2088 = vmatpush1.bf16.msra.mxu0 %v1550
        %2089 = vmatprep.subr.bf16.mxu0 %v1557
        %2090 = vmatpush1.bf16.msra.mxu0 %v1556
        %2091 = vmatprep.subr.bf16.mxu0 %v1563
        %2092 = vmatpush1.bf16.msra.mxu0 %v1562
        %2093 = vmatprep.subr.bf16.mxu0 %v1569
        %2094 = vmatpush1.bf16.msra.mxu0 %v1568
        %2095 = vmatprep.subr.bf16.mxu0 %v1575
        %2096 = vmatpush1.bf16.msra.mxu0 %v1574
        %2097 = vmatprep.subr.bf16.mxu0 %v1581
        %2098 = vmatpush1.bf16.msra.mxu0 %v1580
        %2099 = vmatprep.subr.bf16.mxu0 %v1653
        %2100 = vmatpush1.bf16.msra.mxu0 %v1650
        %2101 = vmatprep.subr.bf16.mxu0 0
        %2102 = vmatpush1.bf16.msra.mxu0 0
        %2103 = vmatprep.subr.bf16.mxu0 0
        %2104 = vmatpush1.bf16.msra.mxu0 0
        %2105 = vmatprep.subr.bf16.mxu0 0
        %2106 = vmatpush1.bf16.msra.mxu0 0
        %2107 = vmatprep.subr.bf16.mxu0 0
        %2108 = vmatpush1.bf16.msra.mxu0 0
        %2109 = vmatprep.subr.bf16.mxu0 0
        %2110 = vmatpush1.bf16.msra.mxu0 0
        %2111 = vmatprep.subr.bf16.mxu0 0
        %2112 = vmatpush1.bf16.msra.mxu0 0
        %2113 = vmatprep.mubr.bf16.mxu0 %v2079
        %2114 = vmatmul.mubr.bf16.gmra.mrb[0].mxu0 %v2075
        %v2115 = vpop.f32.mrb[0].mxu0
        %v2116 = vadd.f32 0.0, %v2115
        %v2117 = vpop.f32.mrb[0].mxu0
        %v2118 = vadd.f32 0.0, %v2117
        %v2119 = vpop.f32.mrb[0].mxu0
        %v2120 = vadd.f32 0.0, %v2119
        %v2121 = vpop.f32.mrb[0].mxu0
        %v2122 = vadd.f32 0.0, %v2121
        %2123 = vdwg.mxu0
        %2124 = vmatprep.subr.bf16.mxu0 %v1535
        %2125 = vmatpush1.bf16.msra.mxu0 %v1534
        %2126 = vmatprep.subr.bf16.mxu0 %v1541
        %2127 = vmatpush1.bf16.msra.mxu0 %v1540
        %2128 = vmatprep.subr.bf16.mxu0 %v1547
        %2129 = vmatpush1.bf16.msra.mxu0 %v1546
        %2130 = vmatprep.subr.bf16.mxu0 %v1553
        %2131 = vmatpush1.bf16.msra.mxu0 %v1552
        %2132 = vmatprep.subr.bf16.mxu0 %v1559
        %2133 = vmatpush1.bf16.msra.mxu0 %v1558
        %2134 = vmatprep.subr.bf16.mxu0 %v1565
        %2135 = vmatpush1.bf16.msra.mxu0 %v1564
        %2136 = vmatprep.subr.bf16.mxu0 %v1571
        %2137 = vmatpush1.bf16.msra.mxu0 %v1570
        %2138 = vmatprep.subr.bf16.mxu0 %v1577
        %2139 = vmatpush1.bf16.msra.mxu0 %v1576
        %2140 = vmatprep.subr.bf16.mxu0 %v1583
        %2141 = vmatpush1.bf16.msra.mxu0 %v1582
        %2142 = vmatprep.subr.bf16.mxu0 %v1659
        %2143 = vmatpush1.bf16.msra.mxu0 %v1656
        %2144 = vmatprep.subr.bf16.mxu0 0
        %2145 = vmatpush1.bf16.msra.mxu0 0
        %2146 = vmatprep.subr.bf16.mxu0 0
        %2147 = vmatpush1.bf16.msra.mxu0 0
        %2148 = vmatprep.subr.bf16.mxu0 0
        %2149 = vmatpush1.bf16.msra.mxu0 0
        %2150 = vmatprep.subr.bf16.mxu0 0
        %2151 = vmatpush1.bf16.msra.mxu0 0
        %2152 = vmatprep.subr.bf16.mxu0 0
        %2153 = vmatpush1.bf16.msra.mxu0 0
        %2154 = vmatprep.subr.bf16.mxu0 0
        %2155 = vmatpush1.bf16.msra.mxu0 0
        %2156 = vmatprep.mubr.bf16.mxu0 %v2079
        %2157 = vmatmul.mubr.bf16.gmra.mrb[0].mxu0 %v2075
        %v2158 = vpop.f32.mrb[0].mxu0
        %v2159 = vadd.f32 0.0, %v2158
        %v2160 = vpop.f32.mrb[0].mxu0
        %v2161 = vadd.f32 0.0, %v2160
        %v2162 = vpop.f32.mrb[0].mxu0
        %v2163 = vadd.f32 0.0, %v2162
        %v2164 = vpop.f32.mrb[0].mxu0
        %v2165 = vadd.f32 0.0, %v2164
        %2166 = vdwg.mxu0
        %2167 = vmatprep.subr.bf16.mxu0 %v1537
        %2168 = vmatpush1.bf16.msra.mxu0 %v1536
        %2169 = vmatprep.subr.bf16.mxu0 %v1543
        %2170 = vmatpush1.bf16.msra.mxu0 %v1542
        %2171 = vmatprep.subr.bf16.mxu0 %v1549
        %2172 = vmatpush1.bf16.msra.mxu0 %v1548
        %2173 = vmatprep.subr.bf16.mxu0 %v1555
        %2174 = vmatpush1.bf16.msra.mxu0 %v1554
        %2175 = vmatprep.subr.bf16.mxu0 %v1561
        %2176 = vmatpush1.bf16.msra.mxu0 %v1560
        %2177 = vmatprep.subr.bf16.mxu0 %v1567
        %2178 = vmatpush1.bf16.msra.mxu0 %v1566
        %2179 = vmatprep.subr.bf16.mxu0 %v1573
        %2180 = vmatpush1.bf16.msra.mxu0 %v1572
        %2181 = vmatprep.subr.bf16.mxu0 %v1579
        %2182 = vmatpush1.bf16.msra.mxu0 %v1578
        %2183 = vmatprep.subr.bf16.mxu0 %v1585
        %2184 = vmatpush1.bf16.msra.mxu0 %v1584
        %2185 = vmatprep.subr.bf16.mxu0 %v1665
        %2186 = vmatpush1.bf16.msra.mxu0 %v1662
        %2187 = vmatprep.subr.bf16.mxu0 0
        %2188 = vmatpush1.bf16.msra.mxu0 0
        %2189 = vmatprep.subr.bf16.mxu0 0
        %2190 = vmatpush1.bf16.msra.mxu0 0
        %2191 = vmatprep.subr.bf16.mxu0 0
        %2192 = vmatpush1.bf16.msra.mxu0 0
        %2193 = vmatprep.subr.bf16.mxu0 0
        %2194 = vmatpush1.bf16.msra.mxu0 0
        %2195 = vmatprep.subr.bf16.mxu0 0
        %2196 = vmatpush1.bf16.msra.mxu0 0
        %2197 = vmatprep.subr.bf16.mxu0 0
        %2198 = vmatpush1.bf16.msra.mxu0 0
        %2199 = vmatprep.mubr.bf16.mxu0 %v2079
        %2200 = vmatmul.mubr.bf16.gmra.mrb[0].mxu0 %v2075
        %v2201 = vpop.f32.mrb[0].mxu0
        %v2202 = vadd.f32 0.0, %v2201
        %v2203 = vpop.f32.mrb[0].mxu0
        %v2204 = vadd.f32 0.0, %v2203
        %v2205 = vpop.f32.mrb[0].mxu0
        %v2206 = vadd.f32 0.0, %v2205
        %v2207 = vpop.f32.mrb[0].mxu0
        %v2208 = vadd.f32 0.0, %v2207
        %2209 = vdwg.mxu0
        %v2210 = vadd.f32 %v1972, %v2116
        %v2211 = vadd.f32 %v1974, %v2118
        %v2212 = vadd.f32 %v2015, %v2159
        %v2213 = vadd.f32 %v2017, %v2161
        %v2214 = vadd.f32 %v2058, %v2202
        %v2215 = vadd.f32 %v2060, %v2204
        %v2216 = vadd.f32 %v1976, %v2120
        %v2217 = vadd.f32 %v1978, %v2122
        %v2218 = vadd.f32 %v2019, %v2163
        %v2219 = vadd.f32 %v2021, %v2165
        %v2220 = vadd.f32 %v2062, %v2206
        %v2221 = vadd.f32 %v2064, %v2208
        %v2222 = vmax.f32 %v1796, %v2210
        %v2223 = vmax.f32 %v1797, %v2211
        %v2224 = vmax.f32 %v1798, %v2212
        %v2225 = vmax.f32 %v1799, %v2213
        %v2226 = vmax.f32 %v1800, %v2214
        %v2227 = vmax.f32 %v1801, %v2215
        %v2228 = vmax.f32 %v1802, %v2216
        %v2229 = vmax.f32 %v1803, %v2217
        %v2230 = vmax.f32 %v1804, %v2218
        %v2231 = vmax.f32 %v1805, %v2219
        %v2232 = vmax.f32 %v1806, %v2220
        %v2233 = vmax.f32 %v1807, %v2221
        %v2234 = vmax.f32 %v2222, %v2225
        %v2235 = vmax.f32 %v2223, %v2226
        %v2236 = vmax.f32 %v2224, %v2227
        %v2237 = vmax.f32 %v2228, %v2231
        %v2238 = vmax.f32 %v2229, %v2232
        %v2239 = vmax.f32 %v2230, %v2233
        %v2240 = vld [vmem:[#allocation5] sm:$0x7]
        %v2242 = vlaneseq
        %v2243 = vshrl.u32 %v2242, 7
        %v2244 = vsub.s32 0, %v2243
        %v2245 = vrot.slane %v2240, %v2244
        %v2246 = vlaneseq
        %v2247 = vshrl.u32 %v2246, 7
        %v2248 = vsub.s32 1, %v2247
        %v2249 = vrot.slane %v2240, %v2248
        %v2250 = vlaneseq
        %v2251 = vshrl.u32 %v2250, 7
        %v2252 = vsub.s32 2, %v2251
        %v2253 = vrot.slane %v2240, %v2252
        %v2257 = vadd.f32 %v2234, %v2245
        %v2258 = vadd.f32 %v2235, %v2249
        %v2259 = vadd.f32 %v2236, %v2253
        %v2260 = vadd.f32 %v2237, %v2245
        %v2261 = vadd.f32 %v2238, %v2249
        %v2262 = vadd.f32 %v2239, %v2253
        %v2263 = vmax.f32 %v2257, 0.0
        %v2264 = vmax.f32 %v2258, 0.0
        %v2265 = vmax.f32 %v2259, 0.0
        %v2266 = vmax.f32 %v2260, 0.0
        %v2267 = vmax.f32 %v2261, 0.0
        %v2268 = vmax.f32 %v2262, 0.0
        %2269 = vst [vmem:[#allocation2] sm:$0xff] 0.0
        %2270 = vst [vmem:[#allocation2 + $0x8] sm:$0xff] 0.0
        %2271 = vst [vmem:[#allocation2 + $0x10] sm:$0xff] 0.0
        %2272 = vst [vmem:[#allocation2 + $0x30] sm:$0xff] 0.0
        %2273 = vst [vmem:[#allocation2 + $0x38] sm:$0xff] 0.0
        %2274 = vst [vmem:[#allocation2 + $0x40] sm:$0xff] 0.0
        %2275 = vst [vmem:[#allocation2 + $0x18] sm:$0xff] %v2263
        %2276 = vst [vmem:[#allocation2 + $0x20] sm:$0xff] %v2264
        %2277 = vst [vmem:[#allocation2 + $0x28] sm:$0xff] %v2265
        %2278 = vst [vmem:[#allocation2 + $0x30] sm:$0xf] %v2266
        %2279 = vst [vmem:[#allocation2 + $0x38] sm:$0xf] %v2267
        %2280 = vst [vmem:[#allocation2 + $0x40] sm:$0xf] %v2268
        %v2281 = vpack.c.bf16 %v2266, %v2263
        %v2282 = vpack.c.bf16 %v2267, %v2264
        %v2283 = vpack.c.bf16 %v2268, %v2265
        %v2284 = vld [vmem:[%s1291] sm:$0xff]
        %v2285 = vld [vmem:[%s1291 + $0x8] sm:$0x33]
        %v2286 = vld [vmem:[#allocation3] sm:$0xff]
        %v2287 = vld [vmem:[#allocation3 + $0x8] sm:$0xff]
        %v2288 = vld [vmem:[#allocation3 + $0x10] sm:$0xff]
        %v2289 = vld [vmem:[#allocation3 + $0x18] sm:$0xff]
        %v2290 = vld [vmem:[#allocation3 + $0x20] sm:$0xff]
        %v2291 = vld [vmem:[#allocation3 + $0x28] sm:$0xff]
        %v2292 = vld [vmem:[#allocation3 + $0x30] sm:$0xff]
        %v2293 = vld [vmem:[#allocation3 + $0x38] sm:$0xff]
        %v2294 = vld [vmem:[#allocation3 + $0x40] sm:$0xff]
        %v2295 = vld [vmem:[#allocation3 + $0x48] sm:$0xff]
        %v2296 = vld [vmem:[#allocation3 + $0x50] sm:$0xff]
        %v2297 = vld [vmem:[#allocation3 + $0x58] sm:$0xff]
        %v2298 = vld [vmem:[#allocation3 + $0x60] sm:$0xff]
        %v2299 = vld [vmem:[#allocation3 + $0x68] sm:$0xff]
        %v2300 = vld [vmem:[#allocation3 + $0x70] sm:$0xff]
        %v2301 = vld [vmem:[#allocation3 + $0x78] sm:$0xff]
        %v2302 = vld [vmem:[#allocation3 + $0x80] sm:$0xff]
        %v2303 = vld [vmem:[#allocation3 + $0x88] sm:$0xff]
        %v2304 = vld [vmem:[#allocation3 + $0x90] sm:$0xff]
        %v2305 = vld [vmem:[#allocation3 + $0x98] sm:$0xff]
        %v2306 = vld [vmem:[#allocation3 + $0xa0] sm:$0xff]
        %v2307 = vld [vmem:[#allocation3 + $0xa8] sm:$0xff]
        %v2308 = vld [vmem:[#allocation3 + $0xb0] sm:$0xff]
        %v2309 = vld [vmem:[#allocation3 + $0xb8] sm:$0xff]
        %v2310 = vld [vmem:[#allocation3 + $0xc0] sm:$0xff]
        %v2311 = vld [vmem:[#allocation3 + $0xc8] sm:$0xff]
        %v2312 = vld [vmem:[#allocation3 + $0xd0] sm:$0xff]
        %v2313 = vld [vmem:[#allocation3 + $0xd8] sm:$0xff]
        %v2314 = vld [vmem:[#allocation3 + $0xe0] sm:$0xff]
        %v2315 = vld [vmem:[#allocation3 + $0xe8] sm:$0xff]
        %v2316 = vld [vmem:[#allocation3 + $0xf0] sm:$0xff]
        %v2317 = vld [vmem:[#allocation3 + $0xf8] sm:$0xff]
        %v2318 = vld [vmem:[#allocation3 + $0x100] sm:$0xff]
        %v2319 = vld [vmem:[#allocation3 + $0x108] sm:$0xff]
        %v2320 = vld [vmem:[#allocation3 + $0x110] sm:$0xff]
        %v2321 = vld [vmem:[#allocation3 + $0x118] sm:$0xff]
        %v2322 = vld [vmem:[#allocation3 + $0x120] sm:$0xff]
        %v2323 = vld [vmem:[#allocation3 + $0x128] sm:$0xff]
        %v2324 = vld [vmem:[#allocation3 + $0x130] sm:$0xff]
        %v2325 = vld [vmem:[#allocation3 + $0x138] sm:$0xff]
        %v2326 = vld [vmem:[#allocation3 + $0x140] sm:$0xff]
        %v2327 = vld [vmem:[#allocation3 + $0x148] sm:$0xff]
        %v2328 = vld [vmem:[#allocation3 + $0x150] sm:$0xff]
        %v2329 = vld [vmem:[#allocation3 + $0x158] sm:$0xff]
        %v2330 = vld [vmem:[#allocation3 + $0x160] sm:$0xff]
        %v2331 = vld [vmem:[#allocation3 + $0x168] sm:$0xff]
        %v2332 = vld [vmem:[#allocation3 + $0x170] sm:$0xff]
        %v2333 = vld [vmem:[#allocation3 + $0x178] sm:$0xff]
        %v2334 = vld [vmem:[#allocation3 + $0x180] sm:$0xff]
        %v2335 = vld [vmem:[#allocation3 + $0x188] sm:$0xff]
        %v2336 = vld [vmem:[#allocation3 + $0x190] sm:$0xff]
        %v2337 = vld [vmem:[#allocation3 + $0x198] sm:$0xff]
        %v2338 = vld [vmem:[#allocation3 + $0x1a0] sm:$0xff]
        %v2339 = vld [vmem:[#allocation3 + $0x1a8] sm:$0xff]
        %v2340 = vld [vmem:[#allocation3 + $0x1b0] sm:$0x77]
        %v2341 = vld [vmem:[#allocation3 + $0x1b8] sm:$0x77]
        %v2342 = vld [vmem:[#allocation3 + $0x1c0] sm:$0x77]
        %v2343 = vld [vmem:[%s2066] sm:$0xff]
        %v2344 = vld [vmem:[%s2066 + $0x8] sm:$0x33]
        %v2345 = vld [vmem:[%s343] sm:$0xff]
        %v2346 = vld [vmem:[%s343 + $0x8] sm:$0xff]
        %v2347 = vld [vmem:[%s343 + $0x10] sm:$0xff]
        %v2348 = vld [vmem:[%s343 + $0x18] sm:$0xff]
        %v2349 = vld [vmem:[%s343 + $0x20] sm:$0xff]
        %v2350 = vld [vmem:[%s343 + $0x28] sm:$0xff]
        %v2351 = vld [vmem:[%s343 + $0x30] sm:$0xff]
        %v2352 = vld [vmem:[%s343 + $0x38] sm:$0xff]
        %v2353 = vld [vmem:[%s343 + $0x40] sm:$0xff]
        %v2354 = vld [vmem:[%s343 + $0x48] sm:$0xff]
        %v2355 = vld [vmem:[%s343 + $0x50] sm:$0xff]
        %v2356 = vld [vmem:[%s343 + $0x58] sm:$0xff]
        %v2357 = vld [vmem:[%s343 + $0x60] sm:$0xff]
        %v2358 = vld [vmem:[%s343 + $0x68] sm:$0xff]
        %v2359 = vld [vmem:[%s343 + $0x70] sm:$0xff]
        %v2360 = vld [vmem:[%s343 + $0x78] sm:$0xff]
        %v2361 = vld [vmem:[%s343 + $0x80] sm:$0xff]
        %v2362 = vld [vmem:[%s343 + $0x88] sm:$0xff]
        %v2363 = vld [vmem:[%s343 + $0x90] sm:$0xff]
        %v2364 = vld [vmem:[%s343 + $0x98] sm:$0xff]
        %v2365 = vld [vmem:[%s343 + $0xa0] sm:$0xff]
        %v2366 = vld [vmem:[%s343 + $0xa8] sm:$0xff]
        %v2367 = vld [vmem:[%s343 + $0xb0] sm:$0xff]
        %v2368 = vld [vmem:[%s343 + $0xb8] sm:$0xff]
        %v2369 = vld [vmem:[%s343 + $0xc0] sm:$0xff]
        %v2370 = vld [vmem:[%s343 + $0xc8] sm:$0xff]
        %v2371 = vld [vmem:[%s343 + $0xd0] sm:$0xff]
        %v2372 = vld [vmem:[%s343 + $0xd8] sm:$0xff]
        %v2373 = vld [vmem:[%s343 + $0xe0] sm:$0xff]
        %v2374 = vld [vmem:[%s343 + $0xe8] sm:$0xff]
        %v2375 = vld [vmem:[%s343 + $0xf0] sm:$0xff]
        %v2376 = vld [vmem:[%s343 + $0xf8] sm:$0xff]
        %v2377 = vld [vmem:[%s343 + $0x100] sm:$0xff]
        %v2378 = vld [vmem:[%s343 + $0x108] sm:$0xff]
        %v2379 = vld [vmem:[%s343 + $0x110] sm:$0xff]
        %v2380 = vld [vmem:[%s343 + $0x118] sm:$0xff]
        %v2381 = vld [vmem:[%s343 + $0x120] sm:$0xff]
        %v2382 = vld [vmem:[%s343 + $0x128] sm:$0xff]
        %v2383 = vld [vmem:[%s343 + $0x130] sm:$0xff]
        %v2384 = vld [vmem:[%s343 + $0x138] sm:$0xff]
        %v2385 = vld [vmem:[%s343 + $0x140] sm:$0xff]
        %v2386 = vld [vmem:[%s343 + $0x148] sm:$0xff]
        %v2387 = vld [vmem:[%s343 + $0x150] sm:$0xff]
        %v2388 = vld [vmem:[%s343 + $0x158] sm:$0xff]
        %v2389 = vld [vmem:[%s343 + $0x160] sm:$0xff]
        %v2390 = vld [vmem:[%s343 + $0x168] sm:$0xff]
        %v2391 = vld [vmem:[%s343 + $0x170] sm:$0xff]
        %v2392 = vld [vmem:[%s343 + $0x178] sm:$0xff]
        %v2393 = vld [vmem:[%s343 + $0x180] sm:$0xff]
        %v2394 = vld [vmem:[%s343 + $0x188] sm:$0xff]
        %v2395 = vld [vmem:[%s343 + $0x190] sm:$0xff]
        %v2396 = vld [vmem:[%s343 + $0x198] sm:$0xff]
        %v2397 = vld [vmem:[%s343 + $0x1a0] sm:$0xff]
        %v2398 = vld [vmem:[%s343 + $0x1a8] sm:$0xff]
        %v2399 = vld [vmem:[%s343 + $0x1b0] sm:$0x77]
        %v2400 = vld [vmem:[%s343 + $0x1b8] sm:$0x77]
        %v2401 = vld [vmem:[%s343 + $0x1c0] sm:$0x77]
        %v2404 = vunpack.c.l.b16 %v2343
        %v2405 = vunpack.c.h.b16 %v2343
        %v2406 = vunpack.c.l.b16 %v2344
        %v2407 = vunpack.c.h.b16 %v2344
        %v2408 = vpack.c.b16 %v2406, %v2404
        %v2409 = vpack.c.b16 %v2407, %v2405
        %v2468 = vunpack.c.l.b16 %v2345
        %v2469 = vunpack.c.h.b16 %v2345
        %v2470 = vunpack.c.l.b16 %v2346
        %v2471 = vunpack.c.h.b16 %v2346
        %v2472 = vunpack.c.l.b16 %v2347
        %v2473 = vunpack.c.h.b16 %v2347
        %v2474 = vunpack.c.l.b16 %v2348
        %v2475 = vunpack.c.h.b16 %v2348
        %v2476 = vunpack.c.l.b16 %v2349
        %v2477 = vunpack.c.h.b16 %v2349
        %v2478 = vunpack.c.l.b16 %v2350
        %v2479 = vunpack.c.h.b16 %v2350
        %v2480 = vunpack.c.l.b16 %v2351
        %v2481 = vunpack.c.h.b16 %v2351
        %v2482 = vunpack.c.l.b16 %v2352
        %v2483 = vunpack.c.h.b16 %v2352
        %v2484 = vunpack.c.l.b16 %v2353
        %v2485 = vunpack.c.h.b16 %v2353
        %v2486 = vunpack.c.l.b16 %v2354
        %v2487 = vunpack.c.h.b16 %v2354
        %v2488 = vunpack.c.l.b16 %v2355
        %v2489 = vunpack.c.h.b16 %v2355
        %v2490 = vunpack.c.l.b16 %v2356
        %v2491 = vunpack.c.h.b16 %v2356
        %v2492 = vunpack.c.l.b16 %v2357
        %v2493 = vunpack.c.h.b16 %v2357
        %v2494 = vunpack.c.l.b16 %v2358
        %v2495 = vunpack.c.h.b16 %v2358
        %v2496 = vunpack.c.l.b16 %v2359
        %v2497 = vunpack.c.h.b16 %v2359
        %v2498 = vunpack.c.l.b16 %v2360
        %v2499 = vunpack.c.h.b16 %v2360
        %v2500 = vunpack.c.l.b16 %v2361
        %v2501 = vunpack.c.h.b16 %v2361
        %v2502 = vunpack.c.l.b16 %v2362
        %v2503 = vunpack.c.h.b16 %v2362
        %v2504 = vunpack.c.l.b16 %v2363
        %v2505 = vunpack.c.h.b16 %v2363
        %v2506 = vunpack.c.l.b16 %v2364
        %v2507 = vunpack.c.h.b16 %v2364
        %v2508 = vunpack.c.l.b16 %v2365
        %v2509 = vunpack.c.h.b16 %v2365
        %v2510 = vunpack.c.l.b16 %v2366
        %v2511 = vunpack.c.h.b16 %v2366
        %v2512 = vunpack.c.l.b16 %v2367
        %v2513 = vunpack.c.h.b16 %v2367
        %v2514 = vunpack.c.l.b16 %v2368
        %v2515 = vunpack.c.h.b16 %v2368
        %v2516 = vunpack.c.l.b16 %v2369
        %v2517 = vunpack.c.h.b16 %v2369
        %v2518 = vunpack.c.l.b16 %v2370
        %v2519 = vunpack.c.h.b16 %v2370
        %v2520 = vunpack.c.l.b16 %v2371
        %v2521 = vunpack.c.h.b16 %v2371
        %v2522 = vunpack.c.l.b16 %v2372
        %v2523 = vunpack.c.h.b16 %v2372
        %v2524 = vunpack.c.l.b16 %v2373
        %v2525 = vunpack.c.h.b16 %v2373
        %v2526 = vunpack.c.l.b16 %v2374
        %v2527 = vunpack.c.h.b16 %v2374
        %v2528 = vunpack.c.l.b16 %v2375
        %v2529 = vunpack.c.h.b16 %v2375
        %v2530 = vunpack.c.l.b16 %v2376
        %v2531 = vunpack.c.h.b16 %v2376
        %v2532 = vunpack.c.l.b16 %v2377
        %v2533 = vunpack.c.h.b16 %v2377
        %v2534 = vunpack.c.l.b16 %v2378
        %v2535 = vunpack.c.h.b16 %v2378
        %v2536 = vunpack.c.l.b16 %v2379
        %v2537 = vunpack.c.h.b16 %v2379
        %v2538 = vunpack.c.l.b16 %v2380
        %v2539 = vunpack.c.h.b16 %v2380
        %v2540 = vunpack.c.l.b16 %v2381
        %v2541 = vunpack.c.h.b16 %v2381
        %v2542 = vunpack.c.l.b16 %v2382
        %v2543 = vunpack.c.h.b16 %v2382
        %v2544 = vunpack.c.l.b16 %v2383
        %v2545 = vunpack.c.h.b16 %v2383
        %v2546 = vunpack.c.l.b16 %v2384
        %v2547 = vunpack.c.h.b16 %v2384
        %v2548 = vunpack.c.l.b16 %v2385
        %v2549 = vunpack.c.h.b16 %v2385
        %v2550 = vunpack.c.l.b16 %v2386
        %v2551 = vunpack.c.h.b16 %v2386
        %v2552 = vunpack.c.l.b16 %v2387
        %v2553 = vunpack.c.h.b16 %v2387
        %v2554 = vunpack.c.l.b16 %v2388
        %v2555 = vunpack.c.h.b16 %v2388
        %v2556 = vunpack.c.l.b16 %v2389
        %v2557 = vunpack.c.h.b16 %v2389
        %v2558 = vunpack.c.l.b16 %v2390
        %v2559 = vunpack.c.h.b16 %v2390
        %v2560 = vunpack.c.l.b16 %v2391
        %v2561 = vunpack.c.h.b16 %v2391
        %v2562 = vunpack.c.l.b16 %v2392
        %v2563 = vunpack.c.h.b16 %v2392
        %v2564 = vunpack.c.l.b16 %v2393
        %v2565 = vunpack.c.h.b16 %v2393
        %v2566 = vunpack.c.l.b16 %v2394
        %v2567 = vunpack.c.h.b16 %v2394
        %v2568 = vunpack.c.l.b16 %v2395
        %v2569 = vunpack.c.h.b16 %v2395
        %v2570 = vunpack.c.l.b16 %v2396
        %v2571 = vunpack.c.h.b16 %v2396
        %v2572 = vunpack.c.l.b16 %v2397
        %v2573 = vunpack.c.h.b16 %v2397
        %v2574 = vunpack.c.l.b16 %v2398
        %v2575 = vunpack.c.h.b16 %v2398
        %v2576 = vunpack.c.l.b16 %v2399
        %v2577 = vunpack.c.h.b16 %v2399
        %v2578 = vunpack.c.l.b16 %v2400
        %v2579 = vunpack.c.h.b16 %v2400
        %v2580 = vunpack.c.l.b16 %v2401
        %v2581 = vunpack.c.h.b16 %v2401
        %v2582 = vpack.c.b16 %v2474, %v2468
        %v2583 = vpack.c.b16 %v2475, %v2469
        %v2584 = vpack.c.b16 %v2476, %v2470
        %v2585 = vpack.c.b16 %v2477, %v2471
        %v2586 = vpack.c.b16 %v2478, %v2472
        %v2587 = vpack.c.b16 %v2479, %v2473
        %v2588 = vpack.c.b16 %v2486, %v2480
        %v2589 = vpack.c.b16 %v2487, %v2481
        %v2590 = vpack.c.b16 %v2488, %v2482
        %v2591 = vpack.c.b16 %v2489, %v2483
        %v2592 = vpack.c.b16 %v2490, %v2484
        %v2593 = vpack.c.b16 %v2491, %v2485
        %v2594 = vpack.c.b16 %v2498, %v2492
        %v2595 = vpack.c.b16 %v2499, %v2493
        %v2596 = vpack.c.b16 %v2500, %v2494
        %v2597 = vpack.c.b16 %v2501, %v2495
        %v2598 = vpack.c.b16 %v2502, %v2496
        %v2599 = vpack.c.b16 %v2503, %v2497
        %v2600 = vpack.c.b16 %v2510, %v2504
        %v2601 = vpack.c.b16 %v2511, %v2505
        %v2602 = vpack.c.b16 %v2512, %v2506
        %v2603 = vpack.c.b16 %v2513, %v2507
        %v2604 = vpack.c.b16 %v2514, %v2508
        %v2605 = vpack.c.b16 %v2515, %v2509
        %v2606 = vpack.c.b16 %v2522, %v2516
        %v2607 = vpack.c.b16 %v2523, %v2517
        %v2608 = vpack.c.b16 %v2524, %v2518
        %v2609 = vpack.c.b16 %v2525, %v2519
        %v2610 = vpack.c.b16 %v2526, %v2520
        %v2611 = vpack.c.b16 %v2527, %v2521
        %v2612 = vpack.c.b16 %v2534, %v2528
        %v2613 = vpack.c.b16 %v2535, %v2529
        %v2614 = vpack.c.b16 %v2536, %v2530
        %v2615 = vpack.c.b16 %v2537, %v2531
        %v2616 = vpack.c.b16 %v2538, %v2532
        %v2617 = vpack.c.b16 %v2539, %v2533
        %v2618 = vpack.c.b16 %v2546, %v2540
        %v2619 = vpack.c.b16 %v2547, %v2541
        %v2620 = vpack.c.b16 %v2548, %v2542
        %v2621 = vpack.c.b16 %v2549, %v2543
        %v2622 = vpack.c.b16 %v2550, %v2544
        %v2623 = vpack.c.b16 %v2551, %v2545
        %v2624 = vpack.c.b16 %v2558, %v2552
        %v2625 = vpack.c.b16 %v2559, %v2553
        %v2626 = vpack.c.b16 %v2560, %v2554
        %v2627 = vpack.c.b16 %v2561, %v2555
        %v2628 = vpack.c.b16 %v2562, %v2556
        %v2629 = vpack.c.b16 %v2563, %v2557
        %v2630 = vpack.c.b16 %v2570, %v2564
        %v2631 = vpack.c.b16 %v2571, %v2565
        %v2632 = vpack.c.b16 %v2572, %v2566
        %v2633 = vpack.c.b16 %v2573, %v2567
        %v2634 = vpack.c.b16 %v2574, %v2568
        %v2635 = vpack.c.b16 %v2575, %v2569
        %v2636 = vpack.c.b16 %v2576, %v2576
        %v2637 = vpack.c.b16 %v2577, %v2577
        %v2638 = vpack.c.b16 %v2578, %v2578
        %v2639 = vpack.c.b16 %v2579, %v2579
        %v2640 = vpack.c.b16 %v2580, %v2580
        %v2641 = vpack.c.b16 %v2581, %v2581
        %v2697 = vsel %vm695, %v2409, 0
        %v2700 = vsel %vm699, %v2636, 0
        %v2703 = vsel %vm699, %v2637, 0
        %v2706 = vsel %vm699, %v2638, 0
        %v2709 = vsel %vm699, %v2639, 0
        %v2712 = vsel %vm699, %v2640, 0
        %v2715 = vsel %vm699, %v2641, 0
        %2717 = vmatprep.subr.bf16.mxu0 %v2583
        %2718 = vmatpush1.bf16.msra.mxu0 %v2582
        %2719 = vmatprep.subr.bf16.mxu0 %v2589
        %2720 = vmatpush1.bf16.msra.mxu0 %v2588
        %2721 = vmatprep.subr.bf16.mxu0 %v2595
        %2722 = vmatpush1.bf16.msra.mxu0 %v2594
        %2723 = vmatprep.subr.bf16.mxu0 %v2601
        %2724 = vmatpush1.bf16.msra.mxu0 %v2600
        %2725 = vmatprep.subr.bf16.mxu0 %v2607
        %2726 = vmatpush1.bf16.msra.mxu0 %v2606
        %2727 = vmatprep.subr.bf16.mxu0 %v2613
        %2728 = vmatpush1.bf16.msra.mxu0 %v2612
        %2729 = vmatprep.subr.bf16.mxu0 %v2619
        %2730 = vmatpush1.bf16.msra.mxu0 %v2618
        %2731 = vmatprep.subr.bf16.mxu0 %v2625
        %2732 = vmatpush1.bf16.msra.mxu0 %v2624
        %2733 = vmatprep.subr.bf16.mxu0 %v2631
        %2734 = vmatpush1.bf16.msra.mxu0 %v2630
        %2735 = vmatprep.subr.bf16.mxu0 %v2703
        %2736 = vmatpush1.bf16.msra.mxu0 %v2700
        %2737 = vmatprep.subr.bf16.mxu0 0
        %2738 = vmatpush1.bf16.msra.mxu0 0
        %2739 = vmatprep.subr.bf16.mxu0 0
        %2740 = vmatpush1.bf16.msra.mxu0 0
        %2741 = vmatprep.subr.bf16.mxu0 0
        %2742 = vmatpush1.bf16.msra.mxu0 0
        %2743 = vmatprep.subr.bf16.mxu0 0
        %2744 = vmatpush1.bf16.msra.mxu0 0
        %2745 = vmatprep.subr.bf16.mxu0 0
        %2746 = vmatpush1.bf16.msra.mxu0 0
        %2747 = vmatprep.subr.bf16.mxu0 0
        %2748 = vmatpush1.bf16.msra.mxu0 0
        %2749 = vmatprep.mubr.bf16.mxu0 %v2697
        %2750 = vmatmul.mubr.bf16.gmra.mrb[0].mxu0 %v2408
        %v2751 = vpop.f32.mrb[0].mxu0
        %v2752 = vadd.f32 0.0, %v2751
        %v2753 = vpop.f32.mrb[0].mxu0
        %v2754 = vadd.f32 0.0, %v2753
        %v2755 = vpop.f32.mrb[0].mxu0
        %v2756 = vadd.f32 0.0, %v2755
        %v2757 = vpop.f32.mrb[0].mxu0
        %v2758 = vadd.f32 0.0, %v2757
        %2759 = vdwg.mxu0
        %2760 = vmatprep.subr.bf16.mxu0 %v2585
        %2761 = vmatpush1.bf16.msra.mxu0 %v2584
        %2762 = vmatprep.subr.bf16.mxu0 %v2591
        %2763 = vmatpush1.bf16.msra.mxu0 %v2590
        %2764 = vmatprep.subr.bf16.mxu0 %v2597
        %2765 = vmatpush1.bf16.msra.mxu0 %v2596
        %2766 = vmatprep.subr.bf16.mxu0 %v2603
        %2767 = vmatpush1.bf16.msra.mxu0 %v2602
        %2768 = vmatprep.subr.bf16.mxu0 %v2609
        %2769 = vmatpush1.bf16.msra.mxu0 %v2608
        %2770 = vmatprep.subr.bf16.mxu0 %v2615
        %2771 = vmatpush1.bf16.msra.mxu0 %v2614
        %2772 = vmatprep.subr.bf16.mxu0 %v2621
        %2773 = vmatpush1.bf16.msra.mxu0 %v2620
        %2774 = vmatprep.subr.bf16.mxu0 %v2627
        %2775 = vmatpush1.bf16.msra.mxu0 %v2626
        %2776 = vmatprep.subr.bf16.mxu0 %v2633
        %2777 = vmatpush1.bf16.msra.mxu0 %v2632
        %2778 = vmatprep.subr.bf16.mxu0 %v2709
        %2779 = vmatpush1.bf16.msra.mxu0 %v2706
        %2780 = vmatprep.subr.bf16.mxu0 0
        %2781 = vmatpush1.bf16.msra.mxu0 0
        %2782 = vmatprep.subr.bf16.mxu0 0
        %2783 = vmatpush1.bf16.msra.mxu0 0
        %2784 = vmatprep.subr.bf16.mxu0 0
        %2785 = vmatpush1.bf16.msra.mxu0 0
        %2786 = vmatprep.subr.bf16.mxu0 0
        %2787 = vmatpush1.bf16.msra.mxu0 0
        %2788 = vmatprep.subr.bf16.mxu0 0
        %2789 = vmatpush1.bf16.msra.mxu0 0
        %2790 = vmatprep.subr.bf16.mxu0 0
        %2791 = vmatpush1.bf16.msra.mxu0 0
        %2792 = vmatprep.mubr.bf16.mxu0 %v2697
        %2793 = vmatmul.mubr.bf16.gmra.mrb[0].mxu0 %v2408
        %v2794 = vpop.f32.mrb[0].mxu0
        %v2795 = vadd.f32 0.0, %v2794
        %v2796 = vpop.f32.mrb[0].mxu0
        %v2797 = vadd.f32 0.0, %v2796
        %v2798 = vpop.f32.mrb[0].mxu0
        %v2799 = vadd.f32 0.0, %v2798
        %v2800 = vpop.f32.mrb[0].mxu0
        %v2801 = vadd.f32 0.0, %v2800
        %2802 = vdwg.mxu0
        %2803 = vmatprep.subr.bf16.mxu0 %v2587
        %2804 = vmatpush1.bf16.msra.mxu0 %v2586
        %2805 = vmatprep.subr.bf16.mxu0 %v2593
        %2806 = vmatpush1.bf16.msra.mxu0 %v2592
        %2807 = vmatprep.subr.bf16.mxu0 %v2599
        %2808 = vmatpush1.bf16.msra.mxu0 %v2598
        %2809 = vmatprep.subr.bf16.mxu0 %v2605
        %2810 = vmatpush1.bf16.msra.mxu0 %v2604
        %2811 = vmatprep.subr.bf16.mxu0 %v2611
        %2812 = vmatpush1.bf16.msra.mxu0 %v2610
        %2813 = vmatprep.subr.bf16.mxu0 %v2617
        %2814 = vmatpush1.bf16.msra.mxu0 %v2616
        %2815 = vmatprep.subr.bf16.mxu0 %v2623
        %2816 = vmatpush1.bf16.msra.mxu0 %v2622
        %2817 = vmatprep.subr.bf16.mxu0 %v2629
        %2818 = vmatpush1.bf16.msra.mxu0 %v2628
        %2819 = vmatprep.subr.bf16.mxu0 %v2635
        %2820 = vmatpush1.bf16.msra.mxu0 %v2634
        %2821 = vmatprep.subr.bf16.mxu0 %v2715
        %2822 = vmatpush1.bf16.msra.mxu0 %v2712
        %2823 = vmatprep.subr.bf16.mxu0 0
        %2824 = vmatpush1.bf16.msra.mxu0 0
        %2825 = vmatprep.subr.bf16.mxu0 0
        %2826 = vmatpush1.bf16.msra.mxu0 0
        %2827 = vmatprep.subr.bf16.mxu0 0
        %2828 = vmatpush1.bf16.msra.mxu0 0
        %2829 = vmatprep.subr.bf16.mxu0 0
        %2830 = vmatpush1.bf16.msra.mxu0 0
        %2831 = vmatprep.subr.bf16.mxu0 0
        %2832 = vmatpush1.bf16.msra.mxu0 0
        %2833 = vmatprep.subr.bf16.mxu0 0
        %2834 = vmatpush1.bf16.msra.mxu0 0
        %2835 = vmatprep.mubr.bf16.mxu0 %v2697
        %2836 = vmatmul.mubr.bf16.gmra.mrb[0].mxu0 %v2408
        %v2837 = vpop.f32.mrb[0].mxu0
        %v2838 = vadd.f32 0.0, %v2837
        %v2839 = vpop.f32.mrb[0].mxu0
        %v2840 = vadd.f32 0.0, %v2839
        %v2841 = vpop.f32.mrb[0].mxu0
        %v2842 = vadd.f32 0.0, %v2841
        %v2843 = vpop.f32.mrb[0].mxu0
        %v2844 = vadd.f32 0.0, %v2843
        %2845 = vdwg.mxu0
        %v2848 = vunpack.c.l.b16 %v2284
        %v2849 = vunpack.c.h.b16 %v2284
        %v2850 = vunpack.c.l.b16 %v2285
        %v2851 = vunpack.c.h.b16 %v2285
        %v2852 = vpack.c.b16 %v2850, %v2848
        %v2853 = vpack.c.b16 %v2851, %v2849
        %v2912 = vunpack.c.l.b16 %v2286
        %v2913 = vunpack.c.h.b16 %v2286
        %v2914 = vunpack.c.l.b16 %v2287
        %v2915 = vunpack.c.h.b16 %v2287
        %v2916 = vunpack.c.l.b16 %v2288
        %v2917 = vunpack.c.h.b16 %v2288
        %v2918 = vunpack.c.l.b16 %v2289
        %v2919 = vunpack.c.h.b16 %v2289
        %v2920 = vunpack.c.l.b16 %v2290
        %v2921 = vunpack.c.h.b16 %v2290
        %v2922 = vunpack.c.l.b16 %v2291
        %v2923 = vunpack.c.h.b16 %v2291
        %v2924 = vunpack.c.l.b16 %v2292
        %v2925 = vunpack.c.h.b16 %v2292
        %v2926 = vunpack.c.l.b16 %v2293
        %v2927 = vunpack.c.h.b16 %v2293
        %v2928 = vunpack.c.l.b16 %v2294
        %v2929 = vunpack.c.h.b16 %v2294
        %v2930 = vunpack.c.l.b16 %v2295
        %v2931 = vunpack.c.h.b16 %v2295
        %v2932 = vunpack.c.l.b16 %v2296
        %v2933 = vunpack.c.h.b16 %v2296
        %v2934 = vunpack.c.l.b16 %v2297
        %v2935 = vunpack.c.h.b16 %v2297
        %v2936 = vunpack.c.l.b16 %v2298
        %v2937 = vunpack.c.h.b16 %v2298
        %v2938 = vunpack.c.l.b16 %v2299
        %v2939 = vunpack.c.h.b16 %v2299
        %v2940 = vunpack.c.l.b16 %v2300
        %v2941 = vunpack.c.h.b16 %v2300
        %v2942 = vunpack.c.l.b16 %v2301
        %v2943 = vunpack.c.h.b16 %v2301
        %v2944 = vunpack.c.l.b16 %v2302
        %v2945 = vunpack.c.h.b16 %v2302
        %v2946 = vunpack.c.l.b16 %v2303
        %v2947 = vunpack.c.h.b16 %v2303
        %v2948 = vunpack.c.l.b16 %v2304
        %v2949 = vunpack.c.h.b16 %v2304
        %v2950 = vunpack.c.l.b16 %v2305
        %v2951 = vunpack.c.h.b16 %v2305
        %v2952 = vunpack.c.l.b16 %v2306
        %v2953 = vunpack.c.h.b16 %v2306
        %v2954 = vunpack.c.l.b16 %v2307
        %v2955 = vunpack.c.h.b16 %v2307
        %v2956 = vunpack.c.l.b16 %v2308
        %v2957 = vunpack.c.h.b16 %v2308
        %v2958 = vunpack.c.l.b16 %v2309
        %v2959 = vunpack.c.h.b16 %v2309
        %v2960 = vunpack.c.l.b16 %v2310
        %v2961 = vunpack.c.h.b16 %v2310
        %v2962 = vunpack.c.l.b16 %v2311
        %v2963 = vunpack.c.h.b16 %v2311
        %v2964 = vunpack.c.l.b16 %v2312
        %v2965 = vunpack.c.h.b16 %v2312
        %v2966 = vunpack.c.l.b16 %v2313
        %v2967 = vunpack.c.h.b16 %v2313
        %v2968 = vunpack.c.l.b16 %v2314
        %v2969 = vunpack.c.h.b16 %v2314
        %v2970 = vunpack.c.l.b16 %v2315
        %v2971 = vunpack.c.h.b16 %v2315
        %v2972 = vunpack.c.l.b16 %v2316
        %v2973 = vunpack.c.h.b16 %v2316
        %v2974 = vunpack.c.l.b16 %v2317
        %v2975 = vunpack.c.h.b16 %v2317
        %v2976 = vunpack.c.l.b16 %v2318
        %v2977 = vunpack.c.h.b16 %v2318
        %v2978 = vunpack.c.l.b16 %v2319
        %v2979 = vunpack.c.h.b16 %v2319
        %v2980 = vunpack.c.l.b16 %v2320
        %v2981 = vunpack.c.h.b16 %v2320
        %v2982 = vunpack.c.l.b16 %v2321
        %v2983 = vunpack.c.h.b16 %v2321
        %v2984 = vunpack.c.l.b16 %v2322
        %v2985 = vunpack.c.h.b16 %v2322
        %v2986 = vunpack.c.l.b16 %v2323
        %v2987 = vunpack.c.h.b16 %v2323
        %v2988 = vunpack.c.l.b16 %v2324
        %v2989 = vunpack.c.h.b16 %v2324
        %v2990 = vunpack.c.l.b16 %v2325
        %v2991 = vunpack.c.h.b16 %v2325
        %v2992 = vunpack.c.l.b16 %v2326
        %v2993 = vunpack.c.h.b16 %v2326
        %v2994 = vunpack.c.l.b16 %v2327
        %v2995 = vunpack.c.h.b16 %v2327
        %v2996 = vunpack.c.l.b16 %v2328
        %v2997 = vunpack.c.h.b16 %v2328
        %v2998 = vunpack.c.l.b16 %v2329
        %v2999 = vunpack.c.h.b16 %v2329
        %v3000 = vunpack.c.l.b16 %v2330
        %v3001 = vunpack.c.h.b16 %v2330
        %v3002 = vunpack.c.l.b16 %v2331
        %v3003 = vunpack.c.h.b16 %v2331
        %v3004 = vunpack.c.l.b16 %v2332
        %v3005 = vunpack.c.h.b16 %v2332
        %v3006 = vunpack.c.l.b16 %v2333
        %v3007 = vunpack.c.h.b16 %v2333
        %v3008 = vunpack.c.l.b16 %v2334
        %v3009 = vunpack.c.h.b16 %v2334
        %v3010 = vunpack.c.l.b16 %v2335
        %v3011 = vunpack.c.h.b16 %v2335
        %v3012 = vunpack.c.l.b16 %v2336
        %v3013 = vunpack.c.h.b16 %v2336
        %v3014 = vunpack.c.l.b16 %v2337
        %v3015 = vunpack.c.h.b16 %v2337
        %v3016 = vunpack.c.l.b16 %v2338
        %v3017 = vunpack.c.h.b16 %v2338
        %v3018 = vunpack.c.l.b16 %v2339
        %v3019 = vunpack.c.h.b16 %v2339
        %v3020 = vunpack.c.l.b16 %v2340
        %v3021 = vunpack.c.h.b16 %v2340
        %v3022 = vunpack.c.l.b16 %v2341
        %v3023 = vunpack.c.h.b16 %v2341
        %v3024 = vunpack.c.l.b16 %v2342
        %v3025 = vunpack.c.h.b16 %v2342
        %v3026 = vpack.c.b16 %v2918, %v2912
        %v3027 = vpack.c.b16 %v2919, %v2913
        %v3028 = vpack.c.b16 %v2920, %v2914
        %v3029 = vpack.c.b16 %v2921, %v2915
        %v3030 = vpack.c.b16 %v2922, %v2916
        %v3031 = vpack.c.b16 %v2923, %v2917
        %v3032 = vpack.c.b16 %v2930, %v2924
        %v3033 = vpack.c.b16 %v2931, %v2925
        %v3034 = vpack.c.b16 %v2932, %v2926
        %v3035 = vpack.c.b16 %v2933, %v2927
        %v3036 = vpack.c.b16 %v2934, %v2928
        %v3037 = vpack.c.b16 %v2935, %v2929
        %v3038 = vpack.c.b16 %v2942, %v2936
        %v3039 = vpack.c.b16 %v2943, %v2937
        %v3040 = vpack.c.b16 %v2944, %v2938
        %v3041 = vpack.c.b16 %v2945, %v2939
        %v3042 = vpack.c.b16 %v2946, %v2940
        %v3043 = vpack.c.b16 %v2947, %v2941
        %v3044 = vpack.c.b16 %v2954, %v2948
        %v3045 = vpack.c.b16 %v2955, %v2949
        %v3046 = vpack.c.b16 %v2956, %v2950
        %v3047 = vpack.c.b16 %v2957, %v2951
        %v3048 = vpack.c.b16 %v2958, %v2952
        %v3049 = vpack.c.b16 %v2959, %v2953
        %v3050 = vpack.c.b16 %v2966, %v2960
        %v3051 = vpack.c.b16 %v2967, %v2961
        %v3052 = vpack.c.b16 %v2968, %v2962
        %v3053 = vpack.c.b16 %v2969, %v2963
        %v3054 = vpack.c.b16 %v2970, %v2964
        %v3055 = vpack.c.b16 %v2971, %v2965
        %v3056 = vpack.c.b16 %v2978, %v2972
        %v3057 = vpack.c.b16 %v2979, %v2973
        %v3058 = vpack.c.b16 %v2980, %v2974
        %v3059 = vpack.c.b16 %v2981, %v2975
        %v3060 = vpack.c.b16 %v2982, %v2976
        %v3061 = vpack.c.b16 %v2983, %v2977
        %v3062 = vpack.c.b16 %v2990, %v2984
        %v3063 = vpack.c.b16 %v2991, %v2985
        %v3064 = vpack.c.b16 %v2992, %v2986
        %v3065 = vpack.c.b16 %v2993, %v2987
        %v3066 = vpack.c.b16 %v2994, %v2988
        %v3067 = vpack.c.b16 %v2995, %v2989
        %v3068 = vpack.c.b16 %v3002, %v2996
        %v3069 = vpack.c.b16 %v3003, %v2997
        %v3070 = vpack.c.b16 %v3004, %v2998
        %v3071 = vpack.c.b16 %v3005, %v2999
        %v3072 = vpack.c.b16 %v3006, %v3000
        %v3073 = vpack.c.b16 %v3007, %v3001
        %v3074 = vpack.c.b16 %v3014, %v3008
        %v3075 = vpack.c.b16 %v3015, %v3009
        %v3076 = vpack.c.b16 %v3016, %v3010
        %v3077 = vpack.c.b16 %v3017, %v3011
        %v3078 = vpack.c.b16 %v3018, %v3012
        %v3079 = vpack.c.b16 %v3019, %v3013
        %v3080 = vpack.c.b16 %v3020, %v3020
        %v3081 = vpack.c.b16 %v3021, %v3021
        %v3082 = vpack.c.b16 %v3022, %v3022
        %v3083 = vpack.c.b16 %v3023, %v3023
        %v3084 = vpack.c.b16 %v3024, %v3024
        %v3085 = vpack.c.b16 %v3025, %v3025
        %v3141 = vsel %vm695, %v2853, 0
        %v3144 = vsel %vm699, %v3080, 0
        %v3147 = vsel %vm699, %v3081, 0
        %v3150 = vsel %vm699, %v3082, 0
        %v3153 = vsel %vm699, %v3083, 0
        %v3156 = vsel %vm699, %v3084, 0
        %v3159 = vsel %vm699, %v3085, 0
        %3161 = vmatprep.subr.bf16.mxu0 %v3027
        %3162 = vmatpush1.bf16.msra.mxu0 %v3026
        %3163 = vmatprep.subr.bf16.mxu0 %v3033
        %3164 = vmatpush1.bf16.msra.mxu0 %v3032
        %3165 = vmatprep.subr.bf16.mxu0 %v3039
        %3166 = vmatpush1.bf16.msra.mxu0 %v3038
        %3167 = vmatprep.subr.bf16.mxu0 %v3045
        %3168 = vmatpush1.bf16.msra.mxu0 %v3044
        %3169 = vmatprep.subr.bf16.mxu0 %v3051
        %3170 = vmatpush1.bf16.msra.mxu0 %v3050
        %3171 = vmatprep.subr.bf16.mxu0 %v3057
        %3172 = vmatpush1.bf16.msra.mxu0 %v3056
        %3173 = vmatprep.subr.bf16.mxu0 %v3063
        %3174 = vmatpush1.bf16.msra.mxu0 %v3062
        %3175 = vmatprep.subr.bf16.mxu0 %v3069
        %3176 = vmatpush1.bf16.msra.mxu0 %v3068
        %3177 = vmatprep.subr.bf16.mxu0 %v3075
        %3178 = vmatpush1.bf16.msra.mxu0 %v3074
        %3179 = vmatprep.subr.bf16.mxu0 %v3147
        %3180 = vmatpush1.bf16.msra.mxu0 %v3144
        %3181 = vmatprep.subr.bf16.mxu0 0
        %3182 = vmatpush1.bf16.msra.mxu0 0
        %3183 = vmatprep.subr.bf16.mxu0 0
        %3184 = vmatpush1.bf16.msra.mxu0 0
        %3185 = vmatprep.subr.bf16.mxu0 0
        %3186 = vmatpush1.bf16.msra.mxu0 0
        %3187 = vmatprep.subr.bf16.mxu0 0
        %3188 = vmatpush1.bf16.msra.mxu0 0
        %3189 = vmatprep.subr.bf16.mxu0 0
        %3190 = vmatpush1.bf16.msra.mxu0 0
        %3191 = vmatprep.subr.bf16.mxu0 0
        %3192 = vmatpush1.bf16.msra.mxu0 0
        %3193 = vmatprep.mubr.bf16.mxu0 %v3141
        %3194 = vmatmul.mubr.bf16.gmra.mrb[0].mxu0 %v2852
        %v3195 = vpop.f32.mrb[0].mxu0
        %v3196 = vadd.f32 %v2752, %v3195
        %v3197 = vpop.f32.mrb[0].mxu0
        %v3198 = vadd.f32 %v2754, %v3197
        %v3199 = vpop.f32.mrb[0].mxu0
        %v3200 = vadd.f32 %v2756, %v3199
        %v3201 = vpop.f32.mrb[0].mxu0
        %v3202 = vadd.f32 %v2758, %v3201
        %3203 = vdwg.mxu0
        %3204 = vmatprep.subr.bf16.mxu0 %v3029
        %3205 = vmatpush1.bf16.msra.mxu0 %v3028
        %3206 = vmatprep.subr.bf16.mxu0 %v3035
        %3207 = vmatpush1.bf16.msra.mxu0 %v3034
        %3208 = vmatprep.subr.bf16.mxu0 %v3041
        %3209 = vmatpush1.bf16.msra.mxu0 %v3040
        %3210 = vmatprep.subr.bf16.mxu0 %v3047
        %3211 = vmatpush1.bf16.msra.mxu0 %v3046
        %3212 = vmatprep.subr.bf16.mxu0 %v3053
        %3213 = vmatpush1.bf16.msra.mxu0 %v3052
        %3214 = vmatprep.subr.bf16.mxu0 %v3059
        %3215 = vmatpush1.bf16.msra.mxu0 %v3058
        %3216 = vmatprep.subr.bf16.mxu0 %v3065
        %3217 = vmatpush1.bf16.msra.mxu0 %v3064
        %3218 = vmatprep.subr.bf16.mxu0 %v3071
        %3219 = vmatpush1.bf16.msra.mxu0 %v3070
        %3220 = vmatprep.subr.bf16.mxu0 %v3077
        %3221 = vmatpush1.bf16.msra.mxu0 %v3076
        %3222 = vmatprep.subr.bf16.mxu0 %v3153
        %3223 = vmatpush1.bf16.msra.mxu0 %v3150
        %3224 = vmatprep.subr.bf16.mxu0 0
        %3225 = vmatpush1.bf16.msra.mxu0 0
        %3226 = vmatprep.subr.bf16.mxu0 0
        %3227 = vmatpush1.bf16.msra.mxu0 0
        %3228 = vmatprep.subr.bf16.mxu0 0
        %3229 = vmatpush1.bf16.msra.mxu0 0
        %3230 = vmatprep.subr.bf16.mxu0 0
        %3231 = vmatpush1.bf16.msra.mxu0 0
        %3232 = vmatprep.subr.bf16.mxu0 0
        %3233 = vmatpush1.bf16.msra.mxu0 0
        %3234 = vmatprep.subr.bf16.mxu0 0
        %3235 = vmatpush1.bf16.msra.mxu0 0
        %3236 = vmatprep.mubr.bf16.mxu0 %v3141
        %3237 = vmatmul.mubr.bf16.gmra.mrb[0].mxu0 %v2852
        %v3238 = vpop.f32.mrb[0].mxu0
        %v3239 = vadd.f32 %v2795, %v3238
        %v3240 = vpop.f32.mrb[0].mxu0
        %v3241 = vadd.f32 %v2797, %v3240
        %v3242 = vpop.f32.mrb[0].mxu0
        %v3243 = vadd.f32 %v2799, %v3242
        %v3244 = vpop.f32.mrb[0].mxu0
        %v3245 = vadd.f32 %v2801, %v3244
        %3246 = vdwg.mxu0
        %3247 = vmatprep.subr.bf16.mxu0 %v3031
        %3248 = vmatpush1.bf16.msra.mxu0 %v3030
        %3249 = vmatprep.subr.bf16.mxu0 %v3037
        %3250 = vmatpush1.bf16.msra.mxu0 %v3036
        %3251 = vmatprep.subr.bf16.mxu0 %v3043
        %3252 = vmatpush1.bf16.msra.mxu0 %v3042
        %3253 = vmatprep.subr.bf16.mxu0 %v3049
        %3254 = vmatpush1.bf16.msra.mxu0 %v3048
        %3255 = vmatprep.subr.bf16.mxu0 %v3055
        %3256 = vmatpush1.bf16.msra.mxu0 %v3054
        %3257 = vmatprep.subr.bf16.mxu0 %v3061
        %3258 = vmatpush1.bf16.msra.mxu0 %v3060
        %3259 = vmatprep.subr.bf16.mxu0 %v3067
        %3260 = vmatpush1.bf16.msra.mxu0 %v3066
        %3261 = vmatprep.subr.bf16.mxu0 %v3073
        %3262 = vmatpush1.bf16.msra.mxu0 %v3072
        %3263 = vmatprep.subr.bf16.mxu0 %v3079
        %3264 = vmatpush1.bf16.msra.mxu0 %v3078
        %3265 = vmatprep.subr.bf16.mxu0 %v3159
        %3266 = vmatpush1.bf16.msra.mxu0 %v3156
        %3267 = vmatprep.subr.bf16.mxu0 0
        %3268 = vmatpush1.bf16.msra.mxu0 0
        %3269 = vmatprep.subr.bf16.mxu0 0
        %3270 = vmatpush1.bf16.msra.mxu0 0
        %3271 = vmatprep.subr.bf16.mxu0 0
        %3272 = vmatpush1.bf16.msra.mxu0 0
        %3273 = vmatprep.subr.bf16.mxu0 0
        %3274 = vmatpush1.bf16.msra.mxu0 0
        %3275 = vmatprep.subr.bf16.mxu0 0
        %3276 = vmatpush1.bf16.msra.mxu0 0
        %3277 = vmatprep.subr.bf16.mxu0 0
        %3278 = vmatpush1.bf16.msra.mxu0 0
        %3279 = vmatprep.mubr.bf16.mxu0 %v3141
        %3280 = vmatmul.mubr.bf16.gmra.mrb[0].mxu0 %v2852
        %v3281 = vpop.f32.mrb[0].mxu0
        %v3282 = vadd.f32 %v2838, %v3281
        %v3283 = vpop.f32.mrb[0].mxu0
        %v3284 = vadd.f32 %v2840, %v3283
        %v3285 = vpop.f32.mrb[0].mxu0
        %v3286 = vadd.f32 %v2842, %v3285
        %v3287 = vpop.f32.mrb[0].mxu0
        %v3288 = vadd.f32 %v2844, %v3287
        %3289 = vdwg.mxu0
        %v3290 = vld [vmem:[%s274] sm:$0xff]
        %v3291 = vld [vmem:[%s274 + $0x8] sm:$0x77]
        %v3292 = vld [vmem:[%s1294] sm:$0xff]
        %v3293 = vld [vmem:[%s1294 + $0x8] sm:$0xff]
        %v3294 = vld [vmem:[%s1294 + $0x10] sm:$0xff]
        %v3295 = vld [vmem:[%s1294 + $0x18] sm:$0xff]
        %v3296 = vld [vmem:[%s1294 + $0x20] sm:$0xff]
        %v3297 = vld [vmem:[%s1294 + $0x28] sm:$0xff]
        %v3298 = vld [vmem:[%s1294 + $0x30] sm:$0xff]
        %v3299 = vld [vmem:[%s1294 + $0x38] sm:$0xff]
        %v3300 = vld [vmem:[%s1294 + $0x40] sm:$0xff]
        %v3301 = vld [vmem:[%s1294 + $0x48] sm:$0xff]
        %v3302 = vld [vmem:[%s1294 + $0x50] sm:$0xff]
        %v3303 = vld [vmem:[%s1294 + $0x58] sm:$0xff]
        %v3304 = vld [vmem:[%s1294 + $0x60] sm:$0xff]
        %v3305 = vld [vmem:[%s1294 + $0x68] sm:$0xff]
        %v3306 = vld [vmem:[%s1294 + $0x70] sm:$0xff]
        %v3307 = vld [vmem:[%s1294 + $0x78] sm:$0xff]
        %v3308 = vld [vmem:[%s1294 + $0x80] sm:$0xff]
        %v3309 = vld [vmem:[%s1294 + $0x88] sm:$0xff]
        %v3310 = vld [vmem:[%s1294 + $0x90] sm:$0xff]
        %v3311 = vld [vmem:[%s1294 + $0x98] sm:$0xff]
        %v3312 = vld [vmem:[%s1294 + $0xa0] sm:$0xff]
        %v3313 = vld [vmem:[%s1294 + $0xa8] sm:$0xff]
        %v3314 = vld [vmem:[%s1294 + $0xb0] sm:$0xff]
        %v3315 = vld [vmem:[%s1294 + $0xb8] sm:$0xff]
        %v3316 = vld [vmem:[%s1294 + $0xc0] sm:$0xff]
        %v3317 = vld [vmem:[%s1294 + $0xc8] sm:$0xff]
        %v3318 = vld [vmem:[%s1294 + $0xd0] sm:$0xff]
        %v3319 = vld [vmem:[%s1294 + $0xd8] sm:$0xff]
        %v3320 = vld [vmem:[%s1294 + $0xe0] sm:$0xff]
        %v3321 = vld [vmem:[%s1294 + $0xe8] sm:$0xff]
        %v3322 = vld [vmem:[%s1294 + $0xf0] sm:$0xff]
        %v3323 = vld [vmem:[%s1294 + $0xf8] sm:$0xff]
        %v3324 = vld [vmem:[%s1294 + $0x100] sm:$0xff]
        %v3325 = vld [vmem:[%s1294 + $0x108] sm:$0xff]
        %v3326 = vld [vmem:[%s1294 + $0x110] sm:$0xff]
        %v3327 = vld [vmem:[%s1294 + $0x118] sm:$0xff]
        %v3328 = vld [vmem:[%s1294 + $0x120] sm:$0xff]
        %v3329 = vld [vmem:[%s1294 + $0x128] sm:$0xff]
        %v3330 = vld [vmem:[%s1294 + $0x130] sm:$0xff]
        %v3331 = vld [vmem:[%s1294 + $0x138] sm:$0xff]
        %v3332 = vld [vmem:[%s1294 + $0x140] sm:$0xff]
        %v3333 = vld [vmem:[%s1294 + $0x148] sm:$0xff]
        %v3334 = vld [vmem:[%s1294 + $0x150] sm:$0xff]
        %v3335 = vld [vmem:[%s1294 + $0x158] sm:$0xff]
        %v3336 = vld [vmem:[%s1294 + $0x160] sm:$0xff]
        %v3337 = vld [vmem:[%s1294 + $0x168] sm:$0xff]
        %v3338 = vld [vmem:[%s1294 + $0x170] sm:$0xff]
        %v3339 = vld [vmem:[%s1294 + $0x178] sm:$0xff]
        %v3340 = vld [vmem:[%s1294 + $0x180] sm:$0xff]
        %v3341 = vld [vmem:[%s1294 + $0x188] sm:$0xff]
        %v3342 = vld [vmem:[%s1294 + $0x190] sm:$0xff]
        %v3343 = vld [vmem:[%s1294 + $0x198] sm:$0xff]
        %v3344 = vld [vmem:[%s1294 + $0x1a0] sm:$0xff]
        %v3345 = vld [vmem:[%s1294 + $0x1a8] sm:$0xff]
        %v3346 = vld [vmem:[%s1294 + $0x1b0] sm:$0x77]
        %v3347 = vld [vmem:[%s1294 + $0x1b8] sm:$0x77]
        %v3348 = vld [vmem:[%s1294 + $0x1c0] sm:$0x77]
        %v3351 = vunpack.c.l.b16 %v3290
        %v3352 = vunpack.c.h.b16 %v3290
        %v3353 = vunpack.c.l.b16 %v3291
        %v3354 = vunpack.c.h.b16 %v3291
        %v3355 = vpack.c.b16 %v3353, %v3351
        %v3356 = vpack.c.b16 %v3354, %v3352
        %v3358 = vshrl.u32 %v3355, 16
        %v3360 = vshll.u32 %v3355, 16
        %v3362 = vrot.slane %v3360, 1
        %v3363 = vor.u32 %v3358, %v3362
        %v3365 = vshrl.u32 %v3356, 16
        %v3367 = vshll.u32 %v3356, 16
        %v3369 = vrot.slane %v3367, 1
        %v3370 = vor.u32 %v3365, %v3369
        %v3429 = vunpack.c.l.b16 %v3292
        %v3430 = vunpack.c.h.b16 %v3292
        %v3431 = vunpack.c.l.b16 %v3293
        %v3432 = vunpack.c.h.b16 %v3293
        %v3433 = vunpack.c.l.b16 %v3294
        %v3434 = vunpack.c.h.b16 %v3294
        %v3435 = vunpack.c.l.b16 %v3295
        %v3436 = vunpack.c.h.b16 %v3295
        %v3437 = vunpack.c.l.b16 %v3296
        %v3438 = vunpack.c.h.b16 %v3296
        %v3439 = vunpack.c.l.b16 %v3297
        %v3440 = vunpack.c.h.b16 %v3297
        %v3441 = vunpack.c.l.b16 %v3298
        %v3442 = vunpack.c.h.b16 %v3298
        %v3443 = vunpack.c.l.b16 %v3299
        %v3444 = vunpack.c.h.b16 %v3299
        %v3445 = vunpack.c.l.b16 %v3300
        %v3446 = vunpack.c.h.b16 %v3300
        %v3447 = vunpack.c.l.b16 %v3301
        %v3448 = vunpack.c.h.b16 %v3301
        %v3449 = vunpack.c.l.b16 %v3302
        %v3450 = vunpack.c.h.b16 %v3302
        %v3451 = vunpack.c.l.b16 %v3303
        %v3452 = vunpack.c.h.b16 %v3303
        %v3453 = vunpack.c.l.b16 %v3304
        %v3454 = vunpack.c.h.b16 %v3304
        %v3455 = vunpack.c.l.b16 %v3305
        %v3456 = vunpack.c.h.b16 %v3305
        %v3457 = vunpack.c.l.b16 %v3306
        %v3458 = vunpack.c.h.b16 %v3306
        %v3459 = vunpack.c.l.b16 %v3307
        %v3460 = vunpack.c.h.b16 %v3307
        %v3461 = vunpack.c.l.b16 %v3308
        %v3462 = vunpack.c.h.b16 %v3308
        %v3463 = vunpack.c.l.b16 %v3309
        %v3464 = vunpack.c.h.b16 %v3309
        %v3465 = vunpack.c.l.b16 %v3310
        %v3466 = vunpack.c.h.b16 %v3310
        %v3467 = vunpack.c.l.b16 %v3311
        %v3468 = vunpack.c.h.b16 %v3311
        %v3469 = vunpack.c.l.b16 %v3312
        %v3470 = vunpack.c.h.b16 %v3312
        %v3471 = vunpack.c.l.b16 %v3313
        %v3472 = vunpack.c.h.b16 %v3313
        %v3473 = vunpack.c.l.b16 %v3314
        %v3474 = vunpack.c.h.b16 %v3314
        %v3475 = vunpack.c.l.b16 %v3315
        %v3476 = vunpack.c.h.b16 %v3315
        %v3477 = vunpack.c.l.b16 %v3316
        %v3478 = vunpack.c.h.b16 %v3316
        %v3479 = vunpack.c.l.b16 %v3317
        %v3480 = vunpack.c.h.b16 %v3317
        %v3481 = vunpack.c.l.b16 %v3318
        %v3482 = vunpack.c.h.b16 %v3318
        %v3483 = vunpack.c.l.b16 %v3319
        %v3484 = vunpack.c.h.b16 %v3319
        %v3485 = vunpack.c.l.b16 %v3320
        %v3486 = vunpack.c.h.b16 %v3320
        %v3487 = vunpack.c.l.b16 %v3321
        %v3488 = vunpack.c.h.b16 %v3321
        %v3489 = vunpack.c.l.b16 %v3322
        %v3490 = vunpack.c.h.b16 %v3322
        %v3491 = vunpack.c.l.b16 %v3323
        %v3492 = vunpack.c.h.b16 %v3323
        %v3493 = vunpack.c.l.b16 %v3324
        %v3494 = vunpack.c.h.b16 %v3324
        %v3495 = vunpack.c.l.b16 %v3325
        %v3496 = vunpack.c.h.b16 %v3325
        %v3497 = vunpack.c.l.b16 %v3326
        %v3498 = vunpack.c.h.b16 %v3326
        %v3499 = vunpack.c.l.b16 %v3327
        %v3500 = vunpack.c.h.b16 %v3327
        %v3501 = vunpack.c.l.b16 %v3328
        %v3502 = vunpack.c.h.b16 %v3328
        %v3503 = vunpack.c.l.b16 %v3329
        %v3504 = vunpack.c.h.b16 %v3329
        %v3505 = vunpack.c.l.b16 %v3330
        %v3506 = vunpack.c.h.b16 %v3330
        %v3507 = vunpack.c.l.b16 %v3331
        %v3508 = vunpack.c.h.b16 %v3331
        %v3509 = vunpack.c.l.b16 %v3332
        %v3510 = vunpack.c.h.b16 %v3332
        %v3511 = vunpack.c.l.b16 %v3333
        %v3512 = vunpack.c.h.b16 %v3333
        %v3513 = vunpack.c.l.b16 %v3334
        %v3514 = vunpack.c.h.b16 %v3334
        %v3515 = vunpack.c.l.b16 %v3335
        %v3516 = vunpack.c.h.b16 %v3335
        %v3517 = vunpack.c.l.b16 %v3336
        %v3518 = vunpack.c.h.b16 %v3336
        %v3519 = vunpack.c.l.b16 %v3337
        %v3520 = vunpack.c.h.b16 %v3337
        %v3521 = vunpack.c.l.b16 %v3338
        %v3522 = vunpack.c.h.b16 %v3338
        %v3523 = vunpack.c.l.b16 %v3339
        %v3524 = vunpack.c.h.b16 %v3339
        %v3525 = vunpack.c.l.b16 %v3340
        %v3526 = vunpack.c.h.b16 %v3340
        %v3527 = vunpack.c.l.b16 %v3341
        %v3528 = vunpack.c.h.b16 %v3341
        %v3529 = vunpack.c.l.b16 %v3342
        %v3530 = vunpack.c.h.b16 %v3342
        %v3531 = vunpack.c.l.b16 %v3343
        %v3532 = vunpack.c.h.b16 %v3343
        %v3533 = vunpack.c.l.b16 %v3344
        %v3534 = vunpack.c.h.b16 %v3344
        %v3535 = vunpack.c.l.b16 %v3345
        %v3536 = vunpack.c.h.b16 %v3345
        %v3537 = vunpack.c.l.b16 %v3346
        %v3538 = vunpack.c.h.b16 %v3346
        %v3539 = vunpack.c.l.b16 %v3347
        %v3540 = vunpack.c.h.b16 %v3347
        %v3541 = vunpack.c.l.b16 %v3348
        %v3542 = vunpack.c.h.b16 %v3348
        %v3543 = vpack.c.b16 %v3435, %v3429
        %v3544 = vpack.c.b16 %v3436, %v3430
        %v3545 = vpack.c.b16 %v3437, %v3431
        %v3546 = vpack.c.b16 %v3438, %v3432
        %v3547 = vpack.c.b16 %v3439, %v3433
        %v3548 = vpack.c.b16 %v3440, %v3434
        %v3549 = vpack.c.b16 %v3447, %v3441
        %v3550 = vpack.c.b16 %v3448, %v3442
        %v3551 = vpack.c.b16 %v3449, %v3443
        %v3552 = vpack.c.b16 %v3450, %v3444
        %v3553 = vpack.c.b16 %v3451, %v3445
        %v3554 = vpack.c.b16 %v3452, %v3446
        %v3555 = vpack.c.b16 %v3459, %v3453
        %v3556 = vpack.c.b16 %v3460, %v3454
        %v3557 = vpack.c.b16 %v3461, %v3455
        %v3558 = vpack.c.b16 %v3462, %v3456
        %v3559 = vpack.c.b16 %v3463, %v3457
        %v3560 = vpack.c.b16 %v3464, %v3458
        %v3561 = vpack.c.b16 %v3471, %v3465
        %v3562 = vpack.c.b16 %v3472, %v3466
        %v3563 = vpack.c.b16 %v3473, %v3467
        %v3564 = vpack.c.b16 %v3474, %v3468
        %v3565 = vpack.c.b16 %v3475, %v3469
        %v3566 = vpack.c.b16 %v3476, %v3470
        %v3567 = vpack.c.b16 %v3483, %v3477
        %v3568 = vpack.c.b16 %v3484, %v3478
        %v3569 = vpack.c.b16 %v3485, %v3479
        %v3570 = vpack.c.b16 %v3486, %v3480
        %v3571 = vpack.c.b16 %v3487, %v3481
        %v3572 = vpack.c.b16 %v3488, %v3482
        %v3573 = vpack.c.b16 %v3495, %v3489
        %v3574 = vpack.c.b16 %v3496, %v3490
        %v3575 = vpack.c.b16 %v3497, %v3491
        %v3576 = vpack.c.b16 %v3498, %v3492
        %v3577 = vpack.c.b16 %v3499, %v3493
        %v3578 = vpack.c.b16 %v3500, %v3494
        %v3579 = vpack.c.b16 %v3507, %v3501
        %v3580 = vpack.c.b16 %v3508, %v3502
        %v3581 = vpack.c.b16 %v3509, %v3503
        %v3582 = vpack.c.b16 %v3510, %v3504
        %v3583 = vpack.c.b16 %v3511, %v3505
        %v3584 = vpack.c.b16 %v3512, %v3506
        %v3585 = vpack.c.b16 %v3519, %v3513
        %v3586 = vpack.c.b16 %v3520, %v3514
        %v3587 = vpack.c.b16 %v3521, %v3515
        %v3588 = vpack.c.b16 %v3522, %v3516
        %v3589 = vpack.c.b16 %v3523, %v3517
        %v3590 = vpack.c.b16 %v3524, %v3518
        %v3591 = vpack.c.b16 %v3531, %v3525
        %v3592 = vpack.c.b16 %v3532, %v3526
        %v3593 = vpack.c.b16 %v3533, %v3527
        %v3594 = vpack.c.b16 %v3534, %v3528
        %v3595 = vpack.c.b16 %v3535, %v3529
        %v3596 = vpack.c.b16 %v3536, %v3530
        %v3597 = vpack.c.b16 %v3537, %v3537
        %v3598 = vpack.c.b16 %v3538, %v3538
        %v3599 = vpack.c.b16 %v3539, %v3539
        %v3600 = vpack.c.b16 %v3540, %v3540
        %v3601 = vpack.c.b16 %v3541, %v3541
        %v3602 = vpack.c.b16 %v3542, %v3542
        %v3658 = vsel %vm695, %v3370, 0
        %v3661 = vsel %vm699, %v3597, 0
        %v3664 = vsel %vm699, %v3598, 0
        %v3667 = vsel %vm699, %v3599, 0
        %v3670 = vsel %vm699, %v3600, 0
        %v3673 = vsel %vm699, %v3601, 0
        %v3676 = vsel %vm699, %v3602, 0
        %3678 = vmatprep.subr.bf16.mxu0 %v3544
        %3679 = vmatpush1.bf16.msra.mxu0 %v3543
        %3680 = vmatprep.subr.bf16.mxu0 %v3550
        %3681 = vmatpush1.bf16.msra.mxu0 %v3549
        %3682 = vmatprep.subr.bf16.mxu0 %v3556
        %3683 = vmatpush1.bf16.msra.mxu0 %v3555
        %3684 = vmatprep.subr.bf16.mxu0 %v3562
        %3685 = vmatpush1.bf16.msra.mxu0 %v3561
        %3686 = vmatprep.subr.bf16.mxu0 %v3568
        %3687 = vmatpush1.bf16.msra.mxu0 %v3567
        %3688 = vmatprep.subr.bf16.mxu0 %v3574
        %3689 = vmatpush1.bf16.msra.mxu0 %v3573
        %3690 = vmatprep.subr.bf16.mxu0 %v3580
        %3691 = vmatpush1.bf16.msra.mxu0 %v3579
        %3692 = vmatprep.subr.bf16.mxu0 %v3586
        %3693 = vmatpush1.bf16.msra.mxu0 %v3585
        %3694 = vmatprep.subr.bf16.mxu0 %v3592
        %3695 = vmatpush1.bf16.msra.mxu0 %v3591
        %3696 = vmatprep.subr.bf16.mxu0 %v3664
        %3697 = vmatpush1.bf16.msra.mxu0 %v3661
        %3698 = vmatprep.subr.bf16.mxu0 0
        %3699 = vmatpush1.bf16.msra.mxu0 0
        %3700 = vmatprep.subr.bf16.mxu0 0
        %3701 = vmatpush1.bf16.msra.mxu0 0
        %3702 = vmatprep.subr.bf16.mxu0 0
        %3703 = vmatpush1.bf16.msra.mxu0 0
        %3704 = vmatprep.subr.bf16.mxu0 0
        %3705 = vmatpush1.bf16.msra.mxu0 0
        %3706 = vmatprep.subr.bf16.mxu0 0
        %3707 = vmatpush1.bf16.msra.mxu0 0
        %3708 = vmatprep.subr.bf16.mxu0 0
        %3709 = vmatpush1.bf16.msra.mxu0 0
        %3710 = vmatprep.mubr.bf16.mxu0 %v3658
        %3711 = vmatmul.mubr.bf16.gmra.mrb[0].mxu0 %v3363
        %v3712 = vpop.f32.mrb[0].mxu0
        %v3713 = vadd.f32 0.0, %v3712
        %v3714 = vpop.f32.mrb[0].mxu0
        %v3715 = vadd.f32 0.0, %v3714
        %v3716 = vpop.f32.mrb[0].mxu0
        %v3717 = vadd.f32 0.0, %v3716
        %v3718 = vpop.f32.mrb[0].mxu0
        %v3719 = vadd.f32 0.0, %v3718
        %3720 = vdwg.mxu0
        %3721 = vmatprep.subr.bf16.mxu0 %v3546
        %3722 = vmatpush1.bf16.msra.mxu0 %v3545
        %3723 = vmatprep.subr.bf16.mxu0 %v3552
        %3724 = vmatpush1.bf16.msra.mxu0 %v3551
        %3725 = vmatprep.subr.bf16.mxu0 %v3558
        %3726 = vmatpush1.bf16.msra.mxu0 %v3557
        %3727 = vmatprep.subr.bf16.mxu0 %v3564
        %3728 = vmatpush1.bf16.msra.mxu0 %v3563
        %3729 = vmatprep.subr.bf16.mxu0 %v3570
        %3730 = vmatpush1.bf16.msra.mxu0 %v3569
        %3731 = vmatprep.subr.bf16.mxu0 %v3576
        %3732 = vmatpush1.bf16.msra.mxu0 %v3575
        %3733 = vmatprep.subr.bf16.mxu0 %v3582
        %3734 = vmatpush1.bf16.msra.mxu0 %v3581
        %3735 = vmatprep.subr.bf16.mxu0 %v3588
        %3736 = vmatpush1.bf16.msra.mxu0 %v3587
        %3737 = vmatprep.subr.bf16.mxu0 %v3594
        %3738 = vmatpush1.bf16.msra.mxu0 %v3593
        %3739 = vmatprep.subr.bf16.mxu0 %v3670
        %3740 = vmatpush1.bf16.msra.mxu0 %v3667
        %3741 = vmatprep.subr.bf16.mxu0 0
        %3742 = vmatpush1.bf16.msra.mxu0 0
        %3743 = vmatprep.subr.bf16.mxu0 0
        %3744 = vmatpush1.bf16.msra.mxu0 0
        %3745 = vmatprep.subr.bf16.mxu0 0
        %3746 = vmatpush1.bf16.msra.mxu0 0
        %3747 = vmatprep.subr.bf16.mxu0 0
        %3748 = vmatpush1.bf16.msra.mxu0 0
        %3749 = vmatprep.subr.bf16.mxu0 0
        %3750 = vmatpush1.bf16.msra.mxu0 0
        %3751 = vmatprep.subr.bf16.mxu0 0
        %3752 = vmatpush1.bf16.msra.mxu0 0
        %3753 = vmatprep.mubr.bf16.mxu0 %v3658
        %3754 = vmatmul.mubr.bf16.gmra.mrb[0].mxu0 %v3363
        %v3755 = vpop.f32.mrb[0].mxu0
        %v3756 = vadd.f32 0.0, %v3755
        %v3757 = vpop.f32.mrb[0].mxu0
        %v3758 = vadd.f32 0.0, %v3757
        %v3759 = vpop.f32.mrb[0].mxu0
        %v3760 = vadd.f32 0.0, %v3759
        %v3761 = vpop.f32.mrb[0].mxu0
        %v3762 = vadd.f32 0.0, %v3761
        %3763 = vdwg.mxu0
        %3764 = vmatprep.subr.bf16.mxu0 %v3548
        %3765 = vmatpush1.bf16.msra.mxu0 %v3547
        %3766 = vmatprep.subr.bf16.mxu0 %v3554
        %3767 = vmatpush1.bf16.msra.mxu0 %v3553
        %3768 = vmatprep.subr.bf16.mxu0 %v3560
        %3769 = vmatpush1.bf16.msra.mxu0 %v3559
        %3770 = vmatprep.subr.bf16.mxu0 %v3566
        %3771 = vmatpush1.bf16.msra.mxu0 %v3565
        %3772 = vmatprep.subr.bf16.mxu0 %v3572
        %3773 = vmatpush1.bf16.msra.mxu0 %v3571
        %3774 = vmatprep.subr.bf16.mxu0 %v3578
        %3775 = vmatpush1.bf16.msra.mxu0 %v3577
        %3776 = vmatprep.subr.bf16.mxu0 %v3584
        %3777 = vmatpush1.bf16.msra.mxu0 %v3583
        %3778 = vmatprep.subr.bf16.mxu0 %v3590
        %3779 = vmatpush1.bf16.msra.mxu0 %v3589
        %3780 = vmatprep.subr.bf16.mxu0 %v3596
        %3781 = vmatpush1.bf16.msra.mxu0 %v3595
        %3782 = vmatprep.subr.bf16.mxu0 %v3676
        %3783 = vmatpush1.bf16.msra.mxu0 %v3673
        %3784 = vmatprep.subr.bf16.mxu0 0
        %3785 = vmatpush1.bf16.msra.mxu0 0
        %3786 = vmatprep.subr.bf16.mxu0 0
        %3787 = vmatpush1.bf16.msra.mxu0 0
        %3788 = vmatprep.subr.bf16.mxu0 0
        %3789 = vmatpush1.bf16.msra.mxu0 0
        %3790 = vmatprep.subr.bf16.mxu0 0
        %3791 = vmatpush1.bf16.msra.mxu0 0
        %3792 = vmatprep.subr.bf16.mxu0 0
        %3793 = vmatpush1.bf16.msra.mxu0 0
        %3794 = vmatprep.subr.bf16.mxu0 0
        %3795 = vmatpush1.bf16.msra.mxu0 0
        %3796 = vmatprep.mubr.bf16.mxu0 %v3658
        %3797 = vmatmul.mubr.bf16.gmra.mrb[0].mxu0 %v3363
        %v3798 = vpop.f32.mrb[0].mxu0
        %v3799 = vadd.f32 0.0, %v3798
        %v3800 = vpop.f32.mrb[0].mxu0
        %v3801 = vadd.f32 0.0, %v3800
        %v3802 = vpop.f32.mrb[0].mxu0
        %v3803 = vadd.f32 0.0, %v3802
        %v3804 = vpop.f32.mrb[0].mxu0
        %v3805 = vadd.f32 0.0, %v3804
        %3806 = vdwg.mxu0
        %v3807 = vadd.f32 %v3196, %v3713
        %v3808 = vadd.f32 %v3198, %v3715
        %v3809 = vadd.f32 %v3239, %v3756
        %v3810 = vadd.f32 %v3241, %v3758
        %v3811 = vadd.f32 %v3282, %v3799
        %v3812 = vadd.f32 %v3284, %v3801
        %v3813 = vadd.f32 %v3200, %v3717
        %v3814 = vadd.f32 %v3202, %v3719
        %v3815 = vadd.f32 %v3243, %v3760
        %v3816 = vadd.f32 %v3245, %v3762
        %v3817 = vadd.f32 %v3286, %v3803
        %v3818 = vadd.f32 %v3288, %v3805
        %3819 = vmatprep.subr.bf16.mxu0 %v2583
        %3820 = vmatpush1.bf16.msra.mxu0 %v2582
        %3821 = vmatprep.subr.bf16.mxu0 %v2589
        %3822 = vmatpush1.bf16.msra.mxu0 %v2588
        %3823 = vmatprep.subr.bf16.mxu0 %v2595
        %3824 = vmatpush1.bf16.msra.mxu0 %v2594
        %3825 = vmatprep.subr.bf16.mxu0 %v2601
        %3826 = vmatpush1.bf16.msra.mxu0 %v2600
        %3827 = vmatprep.subr.bf16.mxu0 %v2607
        %3828 = vmatpush1.bf16.msra.mxu0 %v2606
        %3829 = vmatprep.subr.bf16.mxu0 %v2613
        %3830 = vmatpush1.bf16.msra.mxu0 %v2612
        %3831 = vmatprep.subr.bf16.mxu0 %v2619
        %3832 = vmatpush1.bf16.msra.mxu0 %v2618
        %3833 = vmatprep.subr.bf16.mxu0 %v2625
        %3834 = vmatpush1.bf16.msra.mxu0 %v2624
        %3835 = vmatprep.subr.bf16.mxu0 %v2631
        %3836 = vmatpush1.bf16.msra.mxu0 %v2630
        %3837 = vmatprep.subr.bf16.mxu0 %v2703
        %3838 = vmatpush1.bf16.msra.mxu0 %v2700
        %3839 = vmatprep.subr.bf16.mxu0 0
        %3840 = vmatpush1.bf16.msra.mxu0 0
        %3841 = vmatprep.subr.bf16.mxu0 0
        %3842 = vmatpush1.bf16.msra.mxu0 0
        %3843 = vmatprep.subr.bf16.mxu0 0
        %3844 = vmatpush1.bf16.msra.mxu0 0
        %3845 = vmatprep.subr.bf16.mxu0 0
        %3846 = vmatpush1.bf16.msra.mxu0 0
        %3847 = vmatprep.subr.bf16.mxu0 0
        %3848 = vmatpush1.bf16.msra.mxu0 0
        %3849 = vmatprep.subr.bf16.mxu0 0
        %3850 = vmatpush1.bf16.msra.mxu0 0
        %3851 = vmatprep.mubr.bf16.mxu0 %v3658
        %3852 = vmatmul.mubr.bf16.gmra.mrb[0].mxu0 %v3363
        %v3853 = vpop.f32.mrb[0].mxu0
        %v3854 = vadd.f32 0.0, %v3853
        %v3855 = vpop.f32.mrb[0].mxu0
        %v3856 = vadd.f32 0.0, %v3855
        %v3857 = vpop.f32.mrb[0].mxu0
        %v3858 = vadd.f32 0.0, %v3857
        %v3859 = vpop.f32.mrb[0].mxu0
        %v3860 = vadd.f32 0.0, %v3859
        %3861 = vdwg.mxu0
        %3862 = vmatprep.subr.bf16.mxu0 %v2585
        %3863 = vmatpush1.bf16.msra.mxu0 %v2584
        %3864 = vmatprep.subr.bf16.mxu0 %v2591
        %3865 = vmatpush1.bf16.msra.mxu0 %v2590
        %3866 = vmatprep.subr.bf16.mxu0 %v2597
        %3867 = vmatpush1.bf16.msra.mxu0 %v2596
        %3868 = vmatprep.subr.bf16.mxu0 %v2603
        %3869 = vmatpush1.bf16.msra.mxu0 %v2602
        %3870 = vmatprep.subr.bf16.mxu0 %v2609
        %3871 = vmatpush1.bf16.msra.mxu0 %v2608
        %3872 = vmatprep.subr.bf16.mxu0 %v2615
        %3873 = vmatpush1.bf16.msra.mxu0 %v2614
        %3874 = vmatprep.subr.bf16.mxu0 %v2621
        %3875 = vmatpush1.bf16.msra.mxu0 %v2620
        %3876 = vmatprep.subr.bf16.mxu0 %v2627
        %3877 = vmatpush1.bf16.msra.mxu0 %v2626
        %3878 = vmatprep.subr.bf16.mxu0 %v2633
        %3879 = vmatpush1.bf16.msra.mxu0 %v2632
        %3880 = vmatprep.subr.bf16.mxu0 %v2709
        %3881 = vmatpush1.bf16.msra.mxu0 %v2706
        %3882 = vmatprep.subr.bf16.mxu0 0
        %3883 = vmatpush1.bf16.msra.mxu0 0
        %3884 = vmatprep.subr.bf16.mxu0 0
        %3885 = vmatpush1.bf16.msra.mxu0 0
        %3886 = vmatprep.subr.bf16.mxu0 0
        %3887 = vmatpush1.bf16.msra.mxu0 0
        %3888 = vmatprep.subr.bf16.mxu0 0
        %3889 = vmatpush1.bf16.msra.mxu0 0
        %3890 = vmatprep.subr.bf16.mxu0 0
        %3891 = vmatpush1.bf16.msra.mxu0 0
        %3892 = vmatprep.subr.bf16.mxu0 0
        %3893 = vmatpush1.bf16.msra.mxu0 0
        %3894 = vmatprep.mubr.bf16.mxu0 %v3658
        %3895 = vmatmul.mubr.bf16.gmra.mrb[0].mxu0 %v3363
        %v3896 = vpop.f32.mrb[0].mxu0
        %v3897 = vadd.f32 0.0, %v3896
        %v3898 = vpop.f32.mrb[0].mxu0
        %v3899 = vadd.f32 0.0, %v3898
        %v3900 = vpop.f32.mrb[0].mxu0
        %v3901 = vadd.f32 0.0, %v3900
        %v3902 = vpop.f32.mrb[0].mxu0
        %v3903 = vadd.f32 0.0, %v3902
        %3904 = vdwg.mxu0
        %3905 = vmatprep.subr.bf16.mxu0 %v2587
        %3906 = vmatpush1.bf16.msra.mxu0 %v2586
        %3907 = vmatprep.subr.bf16.mxu0 %v2593
        %3908 = vmatpush1.bf16.msra.mxu0 %v2592
        %3909 = vmatprep.subr.bf16.mxu0 %v2599
        %3910 = vmatpush1.bf16.msra.mxu0 %v2598
        %3911 = vmatprep.subr.bf16.mxu0 %v2605
        %3912 = vmatpush1.bf16.msra.mxu0 %v2604
        %3913 = vmatprep.subr.bf16.mxu0 %v2611
        %3914 = vmatpush1.bf16.msra.mxu0 %v2610
        %3915 = vmatprep.subr.bf16.mxu0 %v2617
        %3916 = vmatpush1.bf16.msra.mxu0 %v2616
        %3917 = vmatprep.subr.bf16.mxu0 %v2623
        %3918 = vmatpush1.bf16.msra.mxu0 %v2622
        %3919 = vmatprep.subr.bf16.mxu0 %v2629
        %3920 = vmatpush1.bf16.msra.mxu0 %v2628
        %3921 = vmatprep.subr.bf16.mxu0 %v2635
        %3922 = vmatpush1.bf16.msra.mxu0 %v2634
        %3923 = vmatprep.subr.bf16.mxu0 %v2715
        %3924 = vmatpush1.bf16.msra.mxu0 %v2712
        %3925 = vmatprep.subr.bf16.mxu0 0
        %3926 = vmatpush1.bf16.msra.mxu0 0
        %3927 = vmatprep.subr.bf16.mxu0 0
        %3928 = vmatpush1.bf16.msra.mxu0 0
        %3929 = vmatprep.subr.bf16.mxu0 0
        %3930 = vmatpush1.bf16.msra.mxu0 0
        %3931 = vmatprep.subr.bf16.mxu0 0
        %3932 = vmatpush1.bf16.msra.mxu0 0
        %3933 = vmatprep.subr.bf16.mxu0 0
        %3934 = vmatpush1.bf16.msra.mxu0 0
        %3935 = vmatprep.subr.bf16.mxu0 0
        %3936 = vmatpush1.bf16.msra.mxu0 0
        %3937 = vmatprep.mubr.bf16.mxu0 %v3658
        %3938 = vmatmul.mubr.bf16.gmra.mrb[0].mxu0 %v3363
        %v3939 = vpop.f32.mrb[0].mxu0
        %v3940 = vadd.f32 0.0, %v3939
        %v3941 = vpop.f32.mrb[0].mxu0
        %v3942 = vadd.f32 0.0, %v3941
        %v3943 = vpop.f32.mrb[0].mxu0
        %v3944 = vadd.f32 0.0, %v3943
        %v3945 = vpop.f32.mrb[0].mxu0
        %v3946 = vadd.f32 0.0, %v3945
        %3947 = vdwg.mxu0
        %3948 = vmatprep.subr.bf16.mxu0 %v3027
        %3949 = vmatpush1.bf16.msra.mxu0 %v3026
        %3950 = vmatprep.subr.bf16.mxu0 %v3033
        %3951 = vmatpush1.bf16.msra.mxu0 %v3032
        %3952 = vmatprep.subr.bf16.mxu0 %v3039
        %3953 = vmatpush1.bf16.msra.mxu0 %v3038
        %3954 = vmatprep.subr.bf16.mxu0 %v3045
        %3955 = vmatpush1.bf16.msra.mxu0 %v3044
        %3956 = vmatprep.subr.bf16.mxu0 %v3051
        %3957 = vmatpush1.bf16.msra.mxu0 %v3050
        %3958 = vmatprep.subr.bf16.mxu0 %v3057
        %3959 = vmatpush1.bf16.msra.mxu0 %v3056
        %3960 = vmatprep.subr.bf16.mxu0 %v3063
        %3961 = vmatpush1.bf16.msra.mxu0 %v3062
        %3962 = vmatprep.subr.bf16.mxu0 %v3069
        %3963 = vmatpush1.bf16.msra.mxu0 %v3068
        %3964 = vmatprep.subr.bf16.mxu0 %v3075
        %3965 = vmatpush1.bf16.msra.mxu0 %v3074
        %3966 = vmatprep.subr.bf16.mxu0 %v3147
        %3967 = vmatpush1.bf16.msra.mxu0 %v3144
        %3968 = vmatprep.subr.bf16.mxu0 0
        %3969 = vmatpush1.bf16.msra.mxu0 0
        %3970 = vmatprep.subr.bf16.mxu0 0
        %3971 = vmatpush1.bf16.msra.mxu0 0
        %3972 = vmatprep.subr.bf16.mxu0 0
        %3973 = vmatpush1.bf16.msra.mxu0 0
        %3974 = vmatprep.subr.bf16.mxu0 0
        %3975 = vmatpush1.bf16.msra.mxu0 0
        %3976 = vmatprep.subr.bf16.mxu0 0
        %3977 = vmatpush1.bf16.msra.mxu0 0
        %3978 = vmatprep.subr.bf16.mxu0 0
        %3979 = vmatpush1.bf16.msra.mxu0 0
        %3980 = vmatprep.mubr.bf16.mxu0 %v2697
        %3981 = vmatmul.mubr.bf16.gmra.mrb[0].mxu0 %v2408
        %v3982 = vpop.f32.mrb[0].mxu0
        %v3983 = vadd.f32 %v3854, %v3982
        %v3984 = vpop.f32.mrb[0].mxu0
        %v3985 = vadd.f32 %v3856, %v3984
        %v3986 = vpop.f32.mrb[0].mxu0
        %v3987 = vadd.f32 %v3858, %v3986
        %v3988 = vpop.f32.mrb[0].mxu0
        %v3989 = vadd.f32 %v3860, %v3988
        %3990 = vdwg.mxu0
        %3991 = vmatprep.subr.bf16.mxu0 %v3029
        %3992 = vmatpush1.bf16.msra.mxu0 %v3028
        %3993 = vmatprep.subr.bf16.mxu0 %v3035
        %3994 = vmatpush1.bf16.msra.mxu0 %v3034
        %3995 = vmatprep.subr.bf16.mxu0 %v3041
        %3996 = vmatpush1.bf16.msra.mxu0 %v3040
        %3997 = vmatprep.subr.bf16.mxu0 %v3047
        %3998 = vmatpush1.bf16.msra.mxu0 %v3046
        %3999 = vmatprep.subr.bf16.mxu0 %v3053
        %4000 = vmatpush1.bf16.msra.mxu0 %v3052
        %4001 = vmatprep.subr.bf16.mxu0 %v3059
        %4002 = vmatpush1.bf16.msra.mxu0 %v3058
        %4003 = vmatprep.subr.bf16.mxu0 %v3065
        %4004 = vmatpush1.bf16.msra.mxu0 %v3064
        %4005 = vmatprep.subr.bf16.mxu0 %v3071
        %4006 = vmatpush1.bf16.msra.mxu0 %v3070
        %4007 = vmatprep.subr.bf16.mxu0 %v3077
        %4008 = vmatpush1.bf16.msra.mxu0 %v3076
        %4009 = vmatprep.subr.bf16.mxu0 %v3153
        %4010 = vmatpush1.bf16.msra.mxu0 %v3150
        %4011 = vmatprep.subr.bf16.mxu0 0
        %4012 = vmatpush1.bf16.msra.mxu0 0
        %4013 = vmatprep.subr.bf16.mxu0 0
        %4014 = vmatpush1.bf16.msra.mxu0 0
        %4015 = vmatprep.subr.bf16.mxu0 0
        %4016 = vmatpush1.bf16.msra.mxu0 0
        %4017 = vmatprep.subr.bf16.mxu0 0
        %4018 = vmatpush1.bf16.msra.mxu0 0
        %4019 = vmatprep.subr.bf16.mxu0 0
        %4020 = vmatpush1.bf16.msra.mxu0 0
        %4021 = vmatprep.subr.bf16.mxu0 0
        %4022 = vmatpush1.bf16.msra.mxu0 0
        %4023 = vmatprep.mubr.bf16.mxu0 %v2697
        %4024 = vmatmul.mubr.bf16.gmra.mrb[0].mxu0 %v2408
        %v4025 = vpop.f32.mrb[0].mxu0
        %v4026 = vadd.f32 %v3897, %v4025
        %v4027 = vpop.f32.mrb[0].mxu0
        %v4028 = vadd.f32 %v3899, %v4027
        %v4029 = vpop.f32.mrb[0].mxu0
        %v4030 = vadd.f32 %v3901, %v4029
        %v4031 = vpop.f32.mrb[0].mxu0
        %v4032 = vadd.f32 %v3903, %v4031
        %4033 = vdwg.mxu0
        %4034 = vmatprep.subr.bf16.mxu0 %v3031
        %4035 = vmatpush1.bf16.msra.mxu0 %v3030
        %4036 = vmatprep.subr.bf16.mxu0 %v3037
        %4037 = vmatpush1.bf16.msra.mxu0 %v3036
        %4038 = vmatprep.subr.bf16.mxu0 %v3043
        %4039 = vmatpush1.bf16.msra.mxu0 %v3042
        %4040 = vmatprep.subr.bf16.mxu0 %v3049
        %4041 = vmatpush1.bf16.msra.mxu0 %v3048
        %4042 = vmatprep.subr.bf16.mxu0 %v3055
        %4043 = vmatpush1.bf16.msra.mxu0 %v3054
        %4044 = vmatprep.subr.bf16.mxu0 %v3061
        %4045 = vmatpush1.bf16.msra.mxu0 %v3060
        %4046 = vmatprep.subr.bf16.mxu0 %v3067
        %4047 = vmatpush1.bf16.msra.mxu0 %v3066
        %4048 = vmatprep.subr.bf16.mxu0 %v3073
        %4049 = vmatpush1.bf16.msra.mxu0 %v3072
        %4050 = vmatprep.subr.bf16.mxu0 %v3079
        %4051 = vmatpush1.bf16.msra.mxu0 %v3078
        %4052 = vmatprep.subr.bf16.mxu0 %v3159
        %4053 = vmatpush1.bf16.msra.mxu0 %v3156
        %4054 = vmatprep.subr.bf16.mxu0 0
        %4055 = vmatpush1.bf16.msra.mxu0 0
        %4056 = vmatprep.subr.bf16.mxu0 0
        %4057 = vmatpush1.bf16.msra.mxu0 0
        %4058 = vmatprep.subr.bf16.mxu0 0
        %4059 = vmatpush1.bf16.msra.mxu0 0
        %4060 = vmatprep.subr.bf16.mxu0 0
        %4061 = vmatpush1.bf16.msra.mxu0 0
        %4062 = vmatprep.subr.bf16.mxu0 0
        %4063 = vmatpush1.bf16.msra.mxu0 0
        %4064 = vmatprep.subr.bf16.mxu0 0
        %4065 = vmatpush1.bf16.msra.mxu0 0
        %4066 = vmatprep.mubr.bf16.mxu0 %v2697
        %4067 = vmatmul.mubr.bf16.gmra.mrb[0].mxu0 %v2408
        %v4068 = vpop.f32.mrb[0].mxu0
        %v4069 = vadd.f32 %v3940, %v4068
        %v4070 = vpop.f32.mrb[0].mxu0
        %v4071 = vadd.f32 %v3942, %v4070
        %v4072 = vpop.f32.mrb[0].mxu0
        %v4073 = vadd.f32 %v3944, %v4072
        %v4074 = vpop.f32.mrb[0].mxu0
        %v4075 = vadd.f32 %v3946, %v4074
        %4076 = vdwg.mxu0
        %v4077 = vld [vmem:[%s340] sm:$0xff]
        %v4078 = vld [vmem:[%s340 + $0x8] sm:$0x77]
        %v4081 = vunpack.c.l.b16 %v4077
        %v4082 = vunpack.c.h.b16 %v4077
        %v4083 = vunpack.c.l.b16 %v4078
        %v4084 = vunpack.c.h.b16 %v4078
        %v4085 = vpack.c.b16 %v4083, %v4081
        %v4086 = vpack.c.b16 %v4084, %v4082
        %v4088 = vshrl.u32 %v4085, 16
        %v4090 = vshll.u32 %v4085, 16
        %v4092 = vrot.slane %v4090, 1
        %v4093 = vor.u32 %v4088, %v4092
        %v4095 = vshrl.u32 %v4086, 16
        %v4097 = vshll.u32 %v4086, 16
        %v4099 = vrot.slane %v4097, 1
        %v4100 = vor.u32 %v4095, %v4099
        %v4103 = vsel %vm695, %v4100, 0
        %4105 = vmatprep.subr.bf16.mxu0 %v3544
        %4106 = vmatpush1.bf16.msra.mxu0 %v3543
        %4107 = vmatprep.subr.bf16.mxu0 %v3550
        %4108 = vmatpush1.bf16.msra.mxu0 %v3549
        %4109 = vmatprep.subr.bf16.mxu0 %v3556
        %4110 = vmatpush1.bf16.msra.mxu0 %v3555
        %4111 = vmatprep.subr.bf16.mxu0 %v3562
        %4112 = vmatpush1.bf16.msra.mxu0 %v3561
        %4113 = vmatprep.subr.bf16.mxu0 %v3568
        %4114 = vmatpush1.bf16.msra.mxu0 %v3567
        %4115 = vmatprep.subr.bf16.mxu0 %v3574
        %4116 = vmatpush1.bf16.msra.mxu0 %v3573
        %4117 = vmatprep.subr.bf16.mxu0 %v3580
        %4118 = vmatpush1.bf16.msra.mxu0 %v3579
        %4119 = vmatprep.subr.bf16.mxu0 %v3586
        %4120 = vmatpush1.bf16.msra.mxu0 %v3585
        %4121 = vmatprep.subr.bf16.mxu0 %v3592
        %4122 = vmatpush1.bf16.msra.mxu0 %v3591
        %4123 = vmatprep.subr.bf16.mxu0 %v3664
        %4124 = vmatpush1.bf16.msra.mxu0 %v3661
        %4125 = vmatprep.subr.bf16.mxu0 0
        %4126 = vmatpush1.bf16.msra.mxu0 0
        %4127 = vmatprep.subr.bf16.mxu0 0
        %4128 = vmatpush1.bf16.msra.mxu0 0
        %4129 = vmatprep.subr.bf16.mxu0 0
        %4130 = vmatpush1.bf16.msra.mxu0 0
        %4131 = vmatprep.subr.bf16.mxu0 0
        %4132 = vmatpush1.bf16.msra.mxu0 0
        %4133 = vmatprep.subr.bf16.mxu0 0
        %4134 = vmatpush1.bf16.msra.mxu0 0
        %4135 = vmatprep.subr.bf16.mxu0 0
        %4136 = vmatpush1.bf16.msra.mxu0 0
        %4137 = vmatprep.mubr.bf16.mxu0 %v4103
        %4138 = vmatmul.mubr.bf16.gmra.mrb[0].mxu0 %v4093
        %v4139 = vpop.f32.mrb[0].mxu0
        %v4140 = vadd.f32 0.0, %v4139
        %v4141 = vpop.f32.mrb[0].mxu0
        %v4142 = vadd.f32 0.0, %v4141
        %v4143 = vpop.f32.mrb[0].mxu0
        %v4144 = vadd.f32 0.0, %v4143
        %v4145 = vpop.f32.mrb[0].mxu0
        %v4146 = vadd.f32 0.0, %v4145
        %4147 = vdwg.mxu0
        %4148 = vmatprep.subr.bf16.mxu0 %v3546
        %4149 = vmatpush1.bf16.msra.mxu0 %v3545
        %4150 = vmatprep.subr.bf16.mxu0 %v3552
        %4151 = vmatpush1.bf16.msra.mxu0 %v3551
        %4152 = vmatprep.subr.bf16.mxu0 %v3558
        %4153 = vmatpush1.bf16.msra.mxu0 %v3557
        %4154 = vmatprep.subr.bf16.mxu0 %v3564
        %4155 = vmatpush1.bf16.msra.mxu0 %v3563
        %4156 = vmatprep.subr.bf16.mxu0 %v3570
        %4157 = vmatpush1.bf16.msra.mxu0 %v3569
        %4158 = vmatprep.subr.bf16.mxu0 %v3576
        %4159 = vmatpush1.bf16.msra.mxu0 %v3575
        %4160 = vmatprep.subr.bf16.mxu0 %v3582
        %4161 = vmatpush1.bf16.msra.mxu0 %v3581
        %4162 = vmatprep.subr.bf16.mxu0 %v3588
        %4163 = vmatpush1.bf16.msra.mxu0 %v3587
        %4164 = vmatprep.subr.bf16.mxu0 %v3594
        %4165 = vmatpush1.bf16.msra.mxu0 %v3593
        %4166 = vmatprep.subr.bf16.mxu0 %v3670
        %4167 = vmatpush1.bf16.msra.mxu0 %v3667
        %4168 = vmatprep.subr.bf16.mxu0 0
        %4169 = vmatpush1.bf16.msra.mxu0 0
        %4170 = vmatprep.subr.bf16.mxu0 0
        %4171 = vmatpush1.bf16.msra.mxu0 0
        %4172 = vmatprep.subr.bf16.mxu0 0
        %4173 = vmatpush1.bf16.msra.mxu0 0
        %4174 = vmatprep.subr.bf16.mxu0 0
        %4175 = vmatpush1.bf16.msra.mxu0 0
        %4176 = vmatprep.subr.bf16.mxu0 0
        %4177 = vmatpush1.bf16.msra.mxu0 0
        %4178 = vmatprep.subr.bf16.mxu0 0
        %4179 = vmatpush1.bf16.msra.mxu0 0
        %4180 = vmatprep.mubr.bf16.mxu0 %v4103
        %4181 = vmatmul.mubr.bf16.gmra.mrb[0].mxu0 %v4093
        %v4182 = vpop.f32.mrb[0].mxu0
        %v4183 = vadd.f32 0.0, %v4182
        %v4184 = vpop.f32.mrb[0].mxu0
        %v4185 = vadd.f32 0.0, %v4184
        %v4186 = vpop.f32.mrb[0].mxu0
        %v4187 = vadd.f32 0.0, %v4186
        %v4188 = vpop.f32.mrb[0].mxu0
        %v4189 = vadd.f32 0.0, %v4188
        %4190 = vdwg.mxu0
        %4191 = vmatprep.subr.bf16.mxu0 %v3548
        %4192 = vmatpush1.bf16.msra.mxu0 %v3547
        %4193 = vmatprep.subr.bf16.mxu0 %v3554
        %4194 = vmatpush1.bf16.msra.mxu0 %v3553
        %4195 = vmatprep.subr.bf16.mxu0 %v3560
        %4196 = vmatpush1.bf16.msra.mxu0 %v3559
        %4197 = vmatprep.subr.bf16.mxu0 %v3566
        %4198 = vmatpush1.bf16.msra.mxu0 %v3565
        %4199 = vmatprep.subr.bf16.mxu0 %v3572
        %4200 = vmatpush1.bf16.msra.mxu0 %v3571
        %4201 = vmatprep.subr.bf16.mxu0 %v3578
        %4202 = vmatpush1.bf16.msra.mxu0 %v3577
        %4203 = vmatprep.subr.bf16.mxu0 %v3584
        %4204 = vmatpush1.bf16.msra.mxu0 %v3583
        %4205 = vmatprep.subr.bf16.mxu0 %v3590
        %4206 = vmatpush1.bf16.msra.mxu0 %v3589
        %4207 = vmatprep.subr.bf16.mxu0 %v3596
        %4208 = vmatpush1.bf16.msra.mxu0 %v3595
        %4209 = vmatprep.subr.bf16.mxu0 %v3676
        %4210 = vmatpush1.bf16.msra.mxu0 %v3673
        %4211 = vmatprep.subr.bf16.mxu0 0
        %4212 = vmatpush1.bf16.msra.mxu0 0
        %4213 = vmatprep.subr.bf16.mxu0 0
        %4214 = vmatpush1.bf16.msra.mxu0 0
        %4215 = vmatprep.subr.bf16.mxu0 0
        %4216 = vmatpush1.bf16.msra.mxu0 0
        %4217 = vmatprep.subr.bf16.mxu0 0
        %4218 = vmatpush1.bf16.msra.mxu0 0
        %4219 = vmatprep.subr.bf16.mxu0 0
        %4220 = vmatpush1.bf16.msra.mxu0 0
        %4221 = vmatprep.subr.bf16.mxu0 0
        %4222 = vmatpush1.bf16.msra.mxu0 0
        %4223 = vmatprep.mubr.bf16.mxu0 %v4103
        %4224 = vmatmul.mubr.bf16.gmra.mrb[0].mxu0 %v4093
        %v4225 = vpop.f32.mrb[0].mxu0
        %v4226 = vadd.f32 0.0, %v4225
        %v4227 = vpop.f32.mrb[0].mxu0
        %v4228 = vadd.f32 0.0, %v4227
        %v4229 = vpop.f32.mrb[0].mxu0
        %v4230 = vadd.f32 0.0, %v4229
        %v4231 = vpop.f32.mrb[0].mxu0
        %v4232 = vadd.f32 0.0, %v4231
        %4233 = vdwg.mxu0
        %v4234 = vadd.f32 %v3983, %v4140
        %v4235 = vadd.f32 %v3985, %v4142
        %v4236 = vadd.f32 %v4026, %v4183
        %v4237 = vadd.f32 %v4028, %v4185
        %v4238 = vadd.f32 %v4069, %v4226
        %v4239 = vadd.f32 %v4071, %v4228
        %v4240 = vadd.f32 %v3987, %v4144
        %v4241 = vadd.f32 %v3989, %v4146
        %v4242 = vadd.f32 %v4030, %v4187
        %v4243 = vadd.f32 %v4032, %v4189
        %v4244 = vadd.f32 %v4073, %v4230
        %v4245 = vadd.f32 %v4075, %v4232
        %v4246 = vmax.f32 %v3807, %v4234
        %v4247 = vmax.f32 %v3808, %v4235
        %v4248 = vmax.f32 %v3809, %v4236
        %v4249 = vmax.f32 %v3810, %v4237
        %v4250 = vmax.f32 %v3811, %v4238
        %v4251 = vmax.f32 %v3812, %v4239
        %v4252 = vmax.f32 %v3813, %v4240
        %v4253 = vmax.f32 %v3814, %v4241
        %v4254 = vmax.f32 %v3815, %v4242
        %v4255 = vmax.f32 %v3816, %v4243
        %v4256 = vmax.f32 %v3817, %v4244
        %v4257 = vmax.f32 %v3818, %v4245
        %v4258 = vmax.f32 %v4246, %v4249
        %v4259 = vmax.f32 %v4247, %v4250
        %v4260 = vmax.f32 %v4248, %v4251
        %v4261 = vmax.f32 %v4252, %v4255
        %v4262 = vmax.f32 %v4253, %v4256
        %v4263 = vmax.f32 %v4254, %v4257
        %v4264 = vld [vmem:[#allocation5] sm:$0x7]
        %v4266 = vlaneseq
        %v4267 = vshrl.u32 %v4266, 7
        %v4268 = vsub.s32 0, %v4267
        %v4269 = vrot.slane %v4264, %v4268
        %v4270 = vlaneseq
        %v4271 = vshrl.u32 %v4270, 7
        %v4272 = vsub.s32 1, %v4271
        %v4273 = vrot.slane %v4264, %v4272
        %v4274 = vlaneseq
        %v4275 = vshrl.u32 %v4274, 7
        %v4276 = vsub.s32 2, %v4275
        %v4277 = vrot.slane %v4264, %v4276
        %v4281 = vadd.f32 %v4258, %v4269
        %v4282 = vadd.f32 %v4259, %v4273
        %v4283 = vadd.f32 %v4260, %v4277
        %v4284 = vadd.f32 %v4261, %v4269
        %v4285 = vadd.f32 %v4262, %v4273
        %v4286 = vadd.f32 %v4263, %v4277
        %v4287 = vmax.f32 %v4281, 0.0
        %v4288 = vmax.f32 %v4282, 0.0
        %v4289 = vmax.f32 %v4283, 0.0
        %v4290 = vmax.f32 %v4284, 0.0
        %v4291 = vmax.f32 %v4285, 0.0
        %v4292 = vmax.f32 %v4286, 0.0
        %s4293 = scalar_lea.vmem [#allocation2], 72
        %4294 = vst [vmem:[%s4293] sm:$0xff] 0.0
        %4295 = vst [vmem:[%s4293 + $0x8] sm:$0xff] 0.0
        %4296 = vst [vmem:[%s4293 + $0x10] sm:$0xff] 0.0
        %4297 = vst [vmem:[%s4293 + $0x30] sm:$0xff] 0.0
        %4298 = vst [vmem:[%s4293 + $0x38] sm:$0xff] 0.0
        %4299 = vst [vmem:[%s4293 + $0x40] sm:$0xff] 0.0
        %4300 = vst [vmem:[%s4293 + $0x18] sm:$0xff] %v4287
        %4301 = vst [vmem:[%s4293 + $0x20] sm:$0xff] %v4288
        %4302 = vst [vmem:[%s4293 + $0x28] sm:$0xff] %v4289
        %4303 = vst [vmem:[%s4293 + $0x30] sm:$0xf] %v4290
        %4304 = vst [vmem:[%s4293 + $0x38] sm:$0xf] %v4291
        %4305 = vst [vmem:[%s4293 + $0x40] sm:$0xf] %v4292
        %v4306 = vpack.c.bf16 %v4290, %v4287
        %v4307 = vpack.c.bf16 %v4291, %v4288
        %v4308 = vpack.c.bf16 %v4292, %v4289
        %v4309 = vld [vmem:[%s4293] sm:$0x80]
        %v4310 = vld [vmem:[%s4293 + $0x8] sm:$0x80]
        %v4311 = vld [vmem:[%s4293 + $0x10] sm:$0x80]
        %v4312 = vld [vmem:[%s4293 + $0x18] sm:$0xff]
        %v4313 = vld [vmem:[%s4293 + $0x20] sm:$0xff]
        %v4314 = vld [vmem:[%s4293 + $0x28] sm:$0xff]
        %v4315 = vld [vmem:[%s4293 + $0x30] sm:$0x7]
        %v4316 = vld [vmem:[%s4293 + $0x38] sm:$0x7]
        %v4317 = vld [vmem:[%s4293 + $0x40] sm:$0x7]
        %v4318 = vpack.c.bf16 %v4312, %v4309
        %v4319 = vpack.c.bf16 %v4313, %v4310
        %v4320 = vpack.c.bf16 %v4314, %v4311
        %v4321 = vpack.c.bf16 %v4315, %v4315
        %v4322 = vpack.c.bf16 %v4316, %v4316
        %v4323 = vpack.c.bf16 %v4317, %v4317
        %v4324 = vld [vmem:[#allocation2 + $0x18] sm:$0xfe]
        %v4325 = vld [vmem:[#allocation2 + $0x20] sm:$0xfe]
        %v4326 = vld [vmem:[#allocation2 + $0x28] sm:$0xfe]
        %v4327 = vld [vmem:[#allocation2 + $0x30] sm:$0x1f]
        %v4328 = vld [vmem:[#allocation2 + $0x38] sm:$0x1f]
        %v4329 = vld [vmem:[#allocation2 + $0x40] sm:$0x1f]
        %v4330 = vpack.c.bf16 %v4327, %v4324
        %v4331 = vpack.c.bf16 %v4328, %v4325
        %v4332 = vpack.c.bf16 %v4329, %v4326
        %v4333 = vld [vmem:[#allocation7] sm:$0xff]
        %v4334 = vld [vmem:[#allocation7 + $0x8] sm:$0xff]
        %v4335 = vld [vmem:[#allocation7 + $0x10] sm:$0xff]
        %v4336 = vld [vmem:[#allocation7 + $0x18] sm:$0xff]
        %v4337 = vld [vmem:[#allocation7 + $0x20] sm:$0xff]
        %v4338 = vld [vmem:[#allocation7 + $0x28] sm:$0xff]
        %v4339 = vld [vmem:[#allocation7 + $0x30] sm:$0xff]
        %v4340 = vld [vmem:[#allocation7 + $0x38] sm:$0xff]
        %v4341 = vld [vmem:[#allocation7 + $0x40] sm:$0xff]
        %v4342 = vld [vmem:[#allocation7 + $0x48] sm:$0xff]
        %v4343 = vld [vmem:[#allocation7 + $0x50] sm:$0xff]
        %v4344 = vld [vmem:[#allocation7 + $0x58] sm:$0xff]
        %v4345 = vld [vmem:[#allocation7 + $0x60] sm:$0xff]
        %v4346 = vld [vmem:[#allocation7 + $0x68] sm:$0xff]
        %v4347 = vld [vmem:[#allocation7 + $0x70] sm:$0xff]
        %v4348 = vld [vmem:[#allocation7 + $0x78] sm:$0xff]
        %v4349 = vld [vmem:[#allocation7 + $0x80] sm:$0xff]
        %v4350 = vld [vmem:[#allocation7 + $0x88] sm:$0xff]
        %v4351 = vld [vmem:[#allocation7 + $0x90] sm:$0xff]
        %v4352 = vld [vmem:[#allocation7 + $0x98] sm:$0xff]
        %v4353 = vld [vmem:[#allocation7 + $0xa0] sm:$0xff]
        %v4354 = vld [vmem:[#allocation7 + $0xa8] sm:$0xff]
        %v4355 = vld [vmem:[#allocation7 + $0xb0] sm:$0xff]
        %v4356 = vld [vmem:[#allocation7 + $0xb8] sm:$0xff]
        %v4357 = vld [vmem:[#allocation7 + $0xc0] sm:$0xff]
        %v4358 = vld [vmem:[#allocation7 + $0xc8] sm:$0xff]
        %v4359 = vld [vmem:[#allocation7 + $0xd0] sm:$0xff]
        %v4360 = vld [vmem:[#allocation7 + $0xd8] sm:$0xff]
        %v4361 = vld [vmem:[#allocation7 + $0xe0] sm:$0xff]
        %v4362 = vld [vmem:[#allocation7 + $0xe8] sm:$0xff]
        %v4363 = vld [vmem:[#allocation7 + $0xf0] sm:$0xff]
        %v4364 = vld [vmem:[#allocation7 + $0xf8] sm:$0xff]
        %v4365 = vld [vmem:[#allocation7 + $0x100] sm:$0xff]
        %v4366 = vld [vmem:[#allocation7 + $0x108] sm:$0xff]
        %v4367 = vld [vmem:[#allocation7 + $0x110] sm:$0xff]
        %v4368 = vld [vmem:[#allocation7 + $0x118] sm:$0xff]
        %v4369 = vld [vmem:[#allocation7 + $0x120] sm:$0xff]
        %v4370 = vld [vmem:[#allocation7 + $0x128] sm:$0xff]
        %v4371 = vld [vmem:[#allocation7 + $0x130] sm:$0xff]
        %v4372 = vld [vmem:[#allocation7 + $0x138] sm:$0xff]
        %v4373 = vld [vmem:[#allocation7 + $0x140] sm:$0xff]
        %v4374 = vld [vmem:[#allocation7 + $0x148] sm:$0xff]
        %v4375 = vld [vmem:[#allocation7 + $0x150] sm:$0xff]
        %v4376 = vld [vmem:[#allocation7 + $0x158] sm:$0xff]
        %v4377 = vld [vmem:[#allocation7 + $0x160] sm:$0xff]
        %v4378 = vld [vmem:[#allocation7 + $0x168] sm:$0xff]
        %v4379 = vld [vmem:[#allocation7 + $0x170] sm:$0xff]
        %v4380 = vld [vmem:[#allocation7 + $0x178] sm:$0xff]
        %v4381 = vld [vmem:[#allocation7 + $0x180] sm:$0xff]
        %v4382 = vld [vmem:[#allocation7 + $0x188] sm:$0xff]
        %v4383 = vld [vmem:[#allocation7 + $0x190] sm:$0xff]
        %v4384 = vld [vmem:[#allocation7 + $0x198] sm:$0xff]
        %v4385 = vld [vmem:[#allocation7 + $0x1a0] sm:$0xff]
        %v4386 = vld [vmem:[#allocation7 + $0x1a8] sm:$0xff]
        %v4387 = vld [vmem:[#allocation7 + $0x1b0] sm:$0xff]
        %v4388 = vld [vmem:[#allocation7 + $0x1b8] sm:$0xff]
        %v4389 = vld [vmem:[#allocation7 + $0x1c0] sm:$0xff]
        %v4390 = vld [vmem:[#allocation7 + $0x1c8] sm:$0xff]
        %v4391 = vld [vmem:[#allocation7 + $0x1d0] sm:$0xff]
        %v4392 = vld [vmem:[#allocation7 + $0x1d8] sm:$0xff]
        %v4393 = vld [vmem:[#allocation7 + $0x1e0] sm:$0xff]
        %v4394 = vld [vmem:[#allocation7 + $0x1e8] sm:$0xff]
        %v4395 = vld [vmem:[#allocation7 + $0x1f0] sm:$0xff]
        %v4396 = vld [vmem:[#allocation7 + $0x1f8] sm:$0xff]
        %v4397 = vld [vmem:[#allocation7 + $0x200] sm:$0xff]
        %v4398 = vld [vmem:[#allocation7 + $0x208] sm:$0xff]
        %v4399 = vld [vmem:[#allocation7 + $0x210] sm:$0xff]
        %v4400 = vld [vmem:[#allocation7 + $0x218] sm:$0xff]
        %v4401 = vld [vmem:[#allocation7 + $0x220] sm:$0xff]
        %v4402 = vld [vmem:[#allocation7 + $0x228] sm:$0xff]
        %v4403 = vld [vmem:[#allocation7 + $0x230] sm:$0xff]
        %v4404 = vld [vmem:[#allocation7 + $0x238] sm:$0xff]
        %v4405 = vld [vmem:[#allocation7 + $0x240] sm:$0xff]
        %v4406 = vld [vmem:[#allocation7 + $0x248] sm:$0xff]
        %v4407 = vld [vmem:[#allocation7 + $0x250] sm:$0xff]
        %v4408 = vld [vmem:[#allocation7 + $0x258] sm:$0xff]
        %v4409 = vld [vmem:[#allocation7 + $0x260] sm:$0xff]
        %v4410 = vld [vmem:[#allocation7 + $0x268] sm:$0xff]
        %v4411 = vld [vmem:[#allocation7 + $0x270] sm:$0xff]
        %v4412 = vld [vmem:[#allocation7 + $0x278] sm:$0xff]
        %v4413 = vld [vmem:[#allocation7 + $0x280] sm:$0xff]
        %v4414 = vld [vmem:[#allocation7 + $0x288] sm:$0xff]
        %v4415 = vld [vmem:[#allocation7 + $0x290] sm:$0xff]
        %v4416 = vld [vmem:[#allocation7 + $0x298] sm:$0xff]
        %v4417 = vld [vmem:[#allocation7 + $0x2a0] sm:$0xff]
        %v4418 = vld [vmem:[#allocation7 + $0x2a8] sm:$0xff]
        %v4419 = vld [vmem:[#allocation7 + $0x2b0] sm:$0xff]
        %v4420 = vld [vmem:[#allocation7 + $0x2b8] sm:$0xff]
        %v4421 = vld [vmem:[#allocation7 + $0x2c0] sm:$0xff]
        %v4422 = vld [vmem:[#allocation7 + $0x2c8] sm:$0xff]
        %v4423 = vld [vmem:[#allocation7 + $0x2d0] sm:$0xff]
        %v4424 = vld [vmem:[#allocation7 + $0x2d8] sm:$0xff]
        %v4425 = vld [vmem:[#allocation7 + $0x2e0] sm:$0xff]
        %v4426 = vld [vmem:[#allocation7 + $0x2e8] sm:$0xff]
        %v4427 = vld [vmem:[#allocation7 + $0x2f0] sm:$0xff]
        %v4428 = vld [vmem:[#allocation7 + $0x2f8] sm:$0xff]
        %v4429 = vld [vmem:[#allocation7 + $0x300] sm:$0xff]
        %v4430 = vld [vmem:[#allocation7 + $0x308] sm:$0xff]
        %v4431 = vld [vmem:[#allocation7 + $0x310] sm:$0xff]
        %v4432 = vld [vmem:[#allocation7 + $0x318] sm:$0xff]
        %v4433 = vld [vmem:[#allocation7 + $0x320] sm:$0xff]
        %v4434 = vld [vmem:[#allocation7 + $0x328] sm:$0xff]
        %v4435 = vld [vmem:[#allocation7 + $0x330] sm:$0xff]
        %v4436 = vld [vmem:[#allocation7 + $0x338] sm:$0xff]
        %v4437 = vld [vmem:[#allocation7 + $0x340] sm:$0xff]
        %v4438 = vld [vmem:[#allocation7 + $0x348] sm:$0xff]
        %v4439 = vld [vmem:[#allocation7 + $0x350] sm:$0xff]
        %v4440 = vld [vmem:[#allocation7 + $0x358] sm:$0xff]
        %v4441 = vld [vmem:[#allocation7 + $0x360] sm:$0xff]
        %v4442 = vld [vmem:[#allocation7 + $0x368] sm:$0xff]
        %v4443 = vld [vmem:[#allocation7 + $0x370] sm:$0xff]
        %v4444 = vld [vmem:[#allocation7 + $0x378] sm:$0xff]
        %v4445 = vld [vmem:[#allocation7 + $0x380] sm:$0xff]
        %v4446 = vld [vmem:[#allocation7 + $0x388] sm:$0xff]
        %v4447 = vld [vmem:[#allocation7 + $0x390] sm:$0xff]
        %v4448 = vld [vmem:[#allocation7 + $0x398] sm:$0xff]
        %v4449 = vld [vmem:[#allocation7 + $0x3a0] sm:$0xff]
        %v4450 = vld [vmem:[#allocation7 + $0x3a8] sm:$0xff]
        %v4451 = vld [vmem:[#allocation7 + $0x3b0] sm:$0xff]
        %v4452 = vld [vmem:[#allocation7 + $0x3b8] sm:$0xff]
        %v4453 = vld [vmem:[#allocation7 + $0x3c0] sm:$0xff]
        %v4454 = vld [vmem:[#allocation7 + $0x3c8] sm:$0xff]
        %v4455 = vld [vmem:[#allocation7 + $0x3d0] sm:$0xff]
        %v4456 = vld [vmem:[#allocation7 + $0x3d8] sm:$0xff]
        %v4457 = vld [vmem:[#allocation7 + $0x3e0] sm:$0xff]
        %v4458 = vld [vmem:[#allocation7 + $0x3e8] sm:$0xff]
        %v4459 = vld [vmem:[#allocation7 + $0x3f0] sm:$0xff]
        %v4460 = vld [vmem:[#allocation7 + $0x3f8] sm:$0xff]
        %v4461 = vld [vmem:[#allocation7 + $0x400] sm:$0xff]
        %v4462 = vld [vmem:[#allocation7 + $0x408] sm:$0xff]
        %v4463 = vld [vmem:[#allocation7 + $0x410] sm:$0xff]
        %v4464 = vld [vmem:[#allocation7 + $0x418] sm:$0xff]
        %v4465 = vld [vmem:[#allocation7 + $0x420] sm:$0xff]
        %v4466 = vld [vmem:[#allocation7 + $0x428] sm:$0xff]
        %v4467 = vld [vmem:[#allocation7 + $0x430] sm:$0xff]
        %v4468 = vld [vmem:[#allocation7 + $0x438] sm:$0xff]
        %v4469 = vld [vmem:[#allocation7 + $0x440] sm:$0xff]
        %v4470 = vld [vmem:[#allocation7 + $0x448] sm:$0xff]
        %v4471 = vld [vmem:[#allocation7 + $0x450] sm:$0xff]
        %v4472 = vld [vmem:[#allocation7 + $0x458] sm:$0xff]
        %v4473 = vld [vmem:[#allocation7 + $0x460] sm:$0xff]
        %v4474 = vld [vmem:[#allocation7 + $0x468] sm:$0xff]
        %v4475 = vld [vmem:[#allocation7 + $0x470] sm:$0xff]
        %v4476 = vld [vmem:[#allocation7 + $0x478] sm:$0xff]
        %s4477 = scalar_lea.vmem [#allocation7], 1152
        %v4478 = vld [vmem:[%s4477] sm:$0xff]
        %v4479 = vld [vmem:[%s4477 + $0x8] sm:$0xff]
        %v4480 = vld [vmem:[%s4477 + $0x10] sm:$0xff]
        %v4481 = vld [vmem:[%s4477 + $0x18] sm:$0xff]
        %v4482 = vld [vmem:[%s4477 + $0x20] sm:$0xff]
        %v4483 = vld [vmem:[%s4477 + $0x28] sm:$0xff]
        %v4484 = vld [vmem:[%s4477 + $0x30] sm:$0xff]
        %v4485 = vld [vmem:[%s4477 + $0x38] sm:$0xff]
        %v4486 = vld [vmem:[%s4477 + $0x40] sm:$0xff]
        %v4487 = vld [vmem:[%s4477 + $0x48] sm:$0xff]
        %v4488 = vld [vmem:[%s4477 + $0x50] sm:$0xff]
        %v4489 = vld [vmem:[%s4477 + $0x58] sm:$0xff]
        %v4490 = vld [vmem:[%s4477 + $0x60] sm:$0xff]
        %v4491 = vld [vmem:[%s4477 + $0x68] sm:$0xff]
        %v4492 = vld [vmem:[%s4477 + $0x70] sm:$0xff]
        %v4493 = vld [vmem:[%s4477 + $0x78] sm:$0xff]
        %v4494 = vld [vmem:[%s4477 + $0x80] sm:$0xff]
        %v4495 = vld [vmem:[%s4477 + $0x88] sm:$0xff]
        %v4496 = vld [vmem:[%s4477 + $0x90] sm:$0xff]
        %v4497 = vld [vmem:[%s4477 + $0x98] sm:$0xff]
        %v4498 = vld [vmem:[%s4477 + $0xa0] sm:$0xff]
        %v4499 = vld [vmem:[%s4477 + $0xa8] sm:$0xff]
        %v4500 = vld [vmem:[%s4477 + $0xb0] sm:$0xff]
        %v4501 = vld [vmem:[%s4477 + $0xb8] sm:$0xff]
        %v4502 = vld [vmem:[%s4477 + $0xc0] sm:$0xff]
        %v4503 = vld [vmem:[%s4477 + $0xc8] sm:$0xff]
        %v4504 = vld [vmem:[%s4477 + $0xd0] sm:$0xff]
        %v4505 = vld [vmem:[%s4477 + $0xd8] sm:$0xff]
        %v4506 = vld [vmem:[%s4477 + $0xe0] sm:$0xff]
        %v4507 = vld [vmem:[%s4477 + $0xe8] sm:$0xff]
        %v4508 = vld [vmem:[%s4477 + $0xf0] sm:$0xff]
        %v4509 = vld [vmem:[%s4477 + $0xf8] sm:$0xff]
        %v4510 = vld [vmem:[%s4477 + $0x100] sm:$0xff]
        %v4511 = vld [vmem:[%s4477 + $0x108] sm:$0xff]
        %v4512 = vld [vmem:[%s4477 + $0x110] sm:$0xff]
        %v4513 = vld [vmem:[%s4477 + $0x118] sm:$0xff]
        %v4514 = vld [vmem:[%s4477 + $0x120] sm:$0xff]
        %v4515 = vld [vmem:[%s4477 + $0x128] sm:$0xff]
        %v4516 = vld [vmem:[%s4477 + $0x130] sm:$0xff]
        %v4517 = vld [vmem:[%s4477 + $0x138] sm:$0xff]
        %v4518 = vld [vmem:[%s4477 + $0x140] sm:$0xff]
        %v4519 = vld [vmem:[%s4477 + $0x148] sm:$0xff]
        %v4520 = vld [vmem:[%s4477 + $0x150] sm:$0xff]
        %v4521 = vld [vmem:[%s4477 + $0x158] sm:$0xff]
        %v4522 = vld [vmem:[%s4477 + $0x160] sm:$0xff]
        %v4523 = vld [vmem:[%s4477 + $0x168] sm:$0xff]
        %v4524 = vld [vmem:[%s4477 + $0x170] sm:$0xff]
        %v4525 = vld [vmem:[%s4477 + $0x178] sm:$0xff]
        %v4526 = vld [vmem:[%s4477 + $0x180] sm:$0xff]
        %v4527 = vld [vmem:[%s4477 + $0x188] sm:$0xff]
        %v4528 = vld [vmem:[%s4477 + $0x190] sm:$0xff]
        %v4529 = vld [vmem:[%s4477 + $0x198] sm:$0xff]
        %v4530 = vld [vmem:[%s4477 + $0x1a0] sm:$0xff]
        %v4531 = vld [vmem:[%s4477 + $0x1a8] sm:$0xff]
        %v4532 = vld [vmem:[%s4477 + $0x1b0] sm:$0xff]
        %v4533 = vld [vmem:[%s4477 + $0x1b8] sm:$0xff]
        %v4534 = vld [vmem:[%s4477 + $0x1c0] sm:$0xff]
        %v4535 = vld [vmem:[%s4477 + $0x1c8] sm:$0xff]
        %v4536 = vld [vmem:[%s4477 + $0x1d0] sm:$0xff]
        %v4537 = vld [vmem:[%s4477 + $0x1d8] sm:$0xff]
        %v4538 = vld [vmem:[%s4477 + $0x1e0] sm:$0xff]
        %v4539 = vld [vmem:[%s4477 + $0x1e8] sm:$0xff]
        %v4540 = vld [vmem:[%s4477 + $0x1f0] sm:$0xff]
        %v4541 = vld [vmem:[%s4477 + $0x1f8] sm:$0xff]
        %v4542 = vld [vmem:[%s4477 + $0x200] sm:$0xff]
        %v4543 = vld [vmem:[%s4477 + $0x208] sm:$0xff]
        %v4544 = vld [vmem:[%s4477 + $0x210] sm:$0xff]
        %v4545 = vld [vmem:[%s4477 + $0x218] sm:$0xff]
        %v4546 = vld [vmem:[%s4477 + $0x220] sm:$0xff]
        %v4547 = vld [vmem:[%s4477 + $0x228] sm:$0xff]
        %v4548 = vld [vmem:[%s4477 + $0x230] sm:$0xff]
        %v4549 = vld [vmem:[%s4477 + $0x238] sm:$0xff]
        %v4550 = vld [vmem:[%s4477 + $0x240] sm:$0xff]
        %v4551 = vld [vmem:[%s4477 + $0x248] sm:$0xff]
        %v4552 = vld [vmem:[%s4477 + $0x250] sm:$0xff]
        %v4553 = vld [vmem:[%s4477 + $0x258] sm:$0xff]
        %v4554 = vld [vmem:[%s4477 + $0x260] sm:$0xff]
        %v4555 = vld [vmem:[%s4477 + $0x268] sm:$0xff]
        %v4556 = vld [vmem:[%s4477 + $0x270] sm:$0xff]
        %v4557 = vld [vmem:[%s4477 + $0x278] sm:$0xff]
        %v4558 = vld [vmem:[%s4477 + $0x280] sm:$0xff]
        %v4559 = vld [vmem:[%s4477 + $0x288] sm:$0xff]
        %v4560 = vld [vmem:[%s4477 + $0x290] sm:$0xff]
        %v4561 = vld [vmem:[%s4477 + $0x298] sm:$0xff]
        %v4562 = vld [vmem:[%s4477 + $0x2a0] sm:$0xff]
        %v4563 = vld [vmem:[%s4477 + $0x2a8] sm:$0xff]
        %v4564 = vld [vmem:[%s4477 + $0x2b0] sm:$0xff]
        %v4565 = vld [vmem:[%s4477 + $0x2b8] sm:$0xff]
        %v4566 = vld [vmem:[%s4477 + $0x2c0] sm:$0xff]
        %v4567 = vld [vmem:[%s4477 + $0x2c8] sm:$0xff]
        %v4568 = vld [vmem:[%s4477 + $0x2d0] sm:$0xff]
        %v4569 = vld [vmem:[%s4477 + $0x2d8] sm:$0xff]
        %v4570 = vld [vmem:[%s4477 + $0x2e0] sm:$0xff]
        %v4571 = vld [vmem:[%s4477 + $0x2e8] sm:$0xff]
        %v4572 = vld [vmem:[%s4477 + $0x2f0] sm:$0xff]
        %v4573 = vld [vmem:[%s4477 + $0x2f8] sm:$0xff]
        %v4574 = vld [vmem:[%s4477 + $0x300] sm:$0xff]
        %v4575 = vld [vmem:[%s4477 + $0x308] sm:$0xff]
        %v4576 = vld [vmem:[%s4477 + $0x310] sm:$0xff]
        %v4577 = vld [vmem:[%s4477 + $0x318] sm:$0xff]
        %v4578 = vld [vmem:[%s4477 + $0x320] sm:$0xff]
        %v4579 = vld [vmem:[%s4477 + $0x328] sm:$0xff]
        %v4580 = vld [vmem:[%s4477 + $0x330] sm:$0xff]
        %v4581 = vld [vmem:[%s4477 + $0x338] sm:$0xff]
        %v4582 = vld [vmem:[%s4477 + $0x340] sm:$0xff]
        %v4583 = vld [vmem:[%s4477 + $0x348] sm:$0xff]
        %v4584 = vld [vmem:[%s4477 + $0x350] sm:$0xff]
        %v4585 = vld [vmem:[%s4477 + $0x358] sm:$0xff]
        %v4586 = vld [vmem:[%s4477 + $0x360] sm:$0xff]
        %v4587 = vld [vmem:[%s4477 + $0x368] sm:$0xff]
        %v4588 = vld [vmem:[%s4477 + $0x370] sm:$0xff]
        %v4589 = vld [vmem:[%s4477 + $0x378] sm:$0xff]
        %v4590 = vld [vmem:[%s4477 + $0x380] sm:$0xff]
        %v4591 = vld [vmem:[%s4477 + $0x388] sm:$0xff]
        %v4592 = vld [vmem:[%s4477 + $0x390] sm:$0xff]
        %v4593 = vld [vmem:[%s4477 + $0x398] sm:$0xff]
        %v4594 = vld [vmem:[%s4477 + $0x3a0] sm:$0xff]
        %v4595 = vld [vmem:[%s4477 + $0x3a8] sm:$0xff]
        %v4596 = vld [vmem:[%s4477 + $0x3b0] sm:$0xff]
        %v4597 = vld [vmem:[%s4477 + $0x3b8] sm:$0xff]
        %v4598 = vld [vmem:[%s4477 + $0x3c0] sm:$0xff]
        %v4599 = vld [vmem:[%s4477 + $0x3c8] sm:$0xff]
        %v4600 = vld [vmem:[%s4477 + $0x3d0] sm:$0xff]
        %v4601 = vld [vmem:[%s4477 + $0x3d8] sm:$0xff]
        %v4602 = vld [vmem:[%s4477 + $0x3e0] sm:$0xff]
        %v4603 = vld [vmem:[%s4477 + $0x3e8] sm:$0xff]
        %v4604 = vld [vmem:[%s4477 + $0x3f0] sm:$0xff]
        %v4605 = vld [vmem:[%s4477 + $0x3f8] sm:$0xff]
        %v4606 = vld [vmem:[%s4477 + $0x400] sm:$0xff]
        %v4607 = vld [vmem:[%s4477 + $0x408] sm:$0xff]
        %v4608 = vld [vmem:[%s4477 + $0x410] sm:$0xff]
        %v4609 = vld [vmem:[%s4477 + $0x418] sm:$0xff]
        %v4610 = vld [vmem:[%s4477 + $0x420] sm:$0xff]
        %v4611 = vld [vmem:[%s4477 + $0x428] sm:$0xff]
        %v4612 = vld [vmem:[%s4477 + $0x430] sm:$0xff]
        %v4613 = vld [vmem:[%s4477 + $0x438] sm:$0xff]
        %v4614 = vld [vmem:[%s4477 + $0x440] sm:$0xff]
        %v4615 = vld [vmem:[%s4477 + $0x448] sm:$0xff]
        %v4616 = vld [vmem:[%s4477 + $0x450] sm:$0xff]
        %v4617 = vld [vmem:[%s4477 + $0x458] sm:$0xff]
        %v4618 = vld [vmem:[%s4477 + $0x460] sm:$0xff]
        %v4619 = vld [vmem:[%s4477 + $0x468] sm:$0xff]
        %v4620 = vld [vmem:[%s4477 + $0x470] sm:$0xff]
        %v4621 = vld [vmem:[%s4477 + $0x478] sm:$0xff]
        %v4766 = vunpack.c.l.b16 %v4478
        %v4767 = vunpack.c.h.b16 %v4478
        %v4768 = vunpack.c.l.b16 %v4479
        %v4769 = vunpack.c.h.b16 %v4479
        %v4770 = vunpack.c.l.b16 %v4480
        %v4771 = vunpack.c.h.b16 %v4480
        %v4772 = vunpack.c.l.b16 %v4481
        %v4773 = vunpack.c.h.b16 %v4481
        %v4774 = vunpack.c.l.b16 %v4482
        %v4775 = vunpack.c.h.b16 %v4482
        %v4776 = vunpack.c.l.b16 %v4483
        %v4777 = vunpack.c.h.b16 %v4483
        %v4778 = vunpack.c.l.b16 %v4484
        %v4779 = vunpack.c.h.b16 %v4484
        %v4780 = vunpack.c.l.b16 %v4485
        %v4781 = vunpack.c.h.b16 %v4485
        %v4782 = vunpack.c.l.b16 %v4486
        %v4783 = vunpack.c.h.b16 %v4486
        %v4784 = vunpack.c.l.b16 %v4487
        %v4785 = vunpack.c.h.b16 %v4487
        %v4786 = vunpack.c.l.b16 %v4488
        %v4787 = vunpack.c.h.b16 %v4488
        %v4788 = vunpack.c.l.b16 %v4489
        %v4789 = vunpack.c.h.b16 %v4489
        %v4790 = vunpack.c.l.b16 %v4490
        %v4791 = vunpack.c.h.b16 %v4490
        %v4792 = vunpack.c.l.b16 %v4491
        %v4793 = vunpack.c.h.b16 %v4491
        %v4794 = vunpack.c.l.b16 %v4492
        %v4795 = vunpack.c.h.b16 %v4492
        %v4796 = vunpack.c.l.b16 %v4493
        %v4797 = vunpack.c.h.b16 %v4493
        %v4798 = vunpack.c.l.b16 %v4494
        %v4799 = vunpack.c.h.b16 %v4494
        %v4800 = vunpack.c.l.b16 %v4495
        %v4801 = vunpack.c.h.b16 %v4495
        %v4802 = vunpack.c.l.b16 %v4496
        %v4803 = vunpack.c.h.b16 %v4496
        %v4804 = vunpack.c.l.b16 %v4497
        %v4805 = vunpack.c.h.b16 %v4497
        %v4806 = vunpack.c.l.b16 %v4498
        %v4807 = vunpack.c.h.b16 %v4498
        %v4808 = vunpack.c.l.b16 %v4499
        %v4809 = vunpack.c.h.b16 %v4499
        %v4810 = vunpack.c.l.b16 %v4500
        %v4811 = vunpack.c.h.b16 %v4500
        %v4812 = vunpack.c.l.b16 %v4501
        %v4813 = vunpack.c.h.b16 %v4501
        %v4814 = vunpack.c.l.b16 %v4502
        %v4815 = vunpack.c.h.b16 %v4502
        %v4816 = vunpack.c.l.b16 %v4503
        %v4817 = vunpack.c.h.b16 %v4503
        %v4818 = vunpack.c.l.b16 %v4504
        %v4819 = vunpack.c.h.b16 %v4504
        %v4820 = vunpack.c.l.b16 %v4505
        %v4821 = vunpack.c.h.b16 %v4505
        %v4822 = vunpack.c.l.b16 %v4506
        %v4823 = vunpack.c.h.b16 %v4506
        %v4824 = vunpack.c.l.b16 %v4507
        %v4825 = vunpack.c.h.b16 %v4507
        %v4826 = vunpack.c.l.b16 %v4508
        %v4827 = vunpack.c.h.b16 %v4508
        %v4828 = vunpack.c.l.b16 %v4509
        %v4829 = vunpack.c.h.b16 %v4509
        %v4830 = vunpack.c.l.b16 %v4510
        %v4831 = vunpack.c.h.b16 %v4510
        %v4832 = vunpack.c.l.b16 %v4511
        %v4833 = vunpack.c.h.b16 %v4511
        %v4834 = vunpack.c.l.b16 %v4512
        %v4835 = vunpack.c.h.b16 %v4512
        %v4836 = vunpack.c.l.b16 %v4513
        %v4837 = vunpack.c.h.b16 %v4513
        %v4838 = vunpack.c.l.b16 %v4514
        %v4839 = vunpack.c.h.b16 %v4514
        %v4840 = vunpack.c.l.b16 %v4515
        %v4841 = vunpack.c.h.b16 %v4515
        %v4842 = vunpack.c.l.b16 %v4516
        %v4843 = vunpack.c.h.b16 %v4516
        %v4844 = vunpack.c.l.b16 %v4517
        %v4845 = vunpack.c.h.b16 %v4517
        %v4846 = vunpack.c.l.b16 %v4518
        %v4847 = vunpack.c.h.b16 %v4518
        %v4848 = vunpack.c.l.b16 %v4519
        %v4849 = vunpack.c.h.b16 %v4519
        %v4850 = vunpack.c.l.b16 %v4520
        %v4851 = vunpack.c.h.b16 %v4520
        %v4852 = vunpack.c.l.b16 %v4521
        %v4853 = vunpack.c.h.b16 %v4521
        %v4854 = vunpack.c.l.b16 %v4522
        %v4855 = vunpack.c.h.b16 %v4522
        %v4856 = vunpack.c.l.b16 %v4523
        %v4857 = vunpack.c.h.b16 %v4523
        %v4858 = vunpack.c.l.b16 %v4524
        %v4859 = vunpack.c.h.b16 %v4524
        %v4860 = vunpack.c.l.b16 %v4525
        %v4861 = vunpack.c.h.b16 %v4525
        %v4862 = vunpack.c.l.b16 %v4526
        %v4863 = vunpack.c.h.b16 %v4526
        %v4864 = vunpack.c.l.b16 %v4527
        %v4865 = vunpack.c.h.b16 %v4527
        %v4866 = vunpack.c.l.b16 %v4528
        %v4867 = vunpack.c.h.b16 %v4528
        %v4868 = vunpack.c.l.b16 %v4529
        %v4869 = vunpack.c.h.b16 %v4529
        %v4870 = vunpack.c.l.b16 %v4530
        %v4871 = vunpack.c.h.b16 %v4530
        %v4872 = vunpack.c.l.b16 %v4531
        %v4873 = vunpack.c.h.b16 %v4531
        %v4874 = vunpack.c.l.b16 %v4532
        %v4875 = vunpack.c.h.b16 %v4532
        %v4876 = vunpack.c.l.b16 %v4533
        %v4877 = vunpack.c.h.b16 %v4533
        %v4878 = vunpack.c.l.b16 %v4534
        %v4879 = vunpack.c.h.b16 %v4534
        %v4880 = vunpack.c.l.b16 %v4535
        %v4881 = vunpack.c.h.b16 %v4535
        %v4882 = vunpack.c.l.b16 %v4536
        %v4883 = vunpack.c.h.b16 %v4536
        %v4884 = vunpack.c.l.b16 %v4537
        %v4885 = vunpack.c.h.b16 %v4537
        %v4886 = vunpack.c.l.b16 %v4538
        %v4887 = vunpack.c.h.b16 %v4538
        %v4888 = vunpack.c.l.b16 %v4539
        %v4889 = vunpack.c.h.b16 %v4539
        %v4890 = vunpack.c.l.b16 %v4540
        %v4891 = vunpack.c.h.b16 %v4540
        %v4892 = vunpack.c.l.b16 %v4541
        %v4893 = vunpack.c.h.b16 %v4541
        %v4894 = vunpack.c.l.b16 %v4542
        %v4895 = vunpack.c.h.b16 %v4542
        %v4896 = vunpack.c.l.b16 %v4543
        %v4897 = vunpack.c.h.b16 %v4543
        %v4898 = vunpack.c.l.b16 %v4544
        %v4899 = vunpack.c.h.b16 %v4544
        %v4900 = vunpack.c.l.b16 %v4545
        %v4901 = vunpack.c.h.b16 %v4545
        %v4902 = vunpack.c.l.b16 %v4546
        %v4903 = vunpack.c.h.b16 %v4546
        %v4904 = vunpack.c.l.b16 %v4547
        %v4905 = vunpack.c.h.b16 %v4547
        %v4906 = vunpack.c.l.b16 %v4548
        %v4907 = vunpack.c.h.b16 %v4548
        %v4908 = vunpack.c.l.b16 %v4549
        %v4909 = vunpack.c.h.b16 %v4549
        %v4910 = vunpack.c.l.b16 %v4550
        %v4911 = vunpack.c.h.b16 %v4550
        %v4912 = vunpack.c.l.b16 %v4551
        %v4913 = vunpack.c.h.b16 %v4551
        %v4914 = vunpack.c.l.b16 %v4552
        %v4915 = vunpack.c.h.b16 %v4552
        %v4916 = vunpack.c.l.b16 %v4553
        %v4917 = vunpack.c.h.b16 %v4553
        %v4918 = vunpack.c.l.b16 %v4554
        %v4919 = vunpack.c.h.b16 %v4554
        %v4920 = vunpack.c.l.b16 %v4555
        %v4921 = vunpack.c.h.b16 %v4555
        %v4922 = vunpack.c.l.b16 %v4556
        %v4923 = vunpack.c.h.b16 %v4556
        %v4924 = vunpack.c.l.b16 %v4557
        %v4925 = vunpack.c.h.b16 %v4557
        %v4926 = vunpack.c.l.b16 %v4558
        %v4927 = vunpack.c.h.b16 %v4558
        %v4928 = vunpack.c.l.b16 %v4559
        %v4929 = vunpack.c.h.b16 %v4559
        %v4930 = vunpack.c.l.b16 %v4560
        %v4931 = vunpack.c.h.b16 %v4560
        %v4932 = vunpack.c.l.b16 %v4561
        %v4933 = vunpack.c.h.b16 %v4561
        %v4934 = vunpack.c.l.b16 %v4562
        %v4935 = vunpack.c.h.b16 %v4562
        %v4936 = vunpack.c.l.b16 %v4563
        %v4937 = vunpack.c.h.b16 %v4563
        %v4938 = vunpack.c.l.b16 %v4564
        %v4939 = vunpack.c.h.b16 %v4564
        %v4940 = vunpack.c.l.b16 %v4565
        %v4941 = vunpack.c.h.b16 %v4565
        %v4942 = vunpack.c.l.b16 %v4566
        %v4943 = vunpack.c.h.b16 %v4566
        %v4944 = vunpack.c.l.b16 %v4567
        %v4945 = vunpack.c.h.b16 %v4567
        %v4946 = vunpack.c.l.b16 %v4568
        %v4947 = vunpack.c.h.b16 %v4568
        %v4948 = vunpack.c.l.b16 %v4569
        %v4949 = vunpack.c.h.b16 %v4569
        %v4950 = vunpack.c.l.b16 %v4570
        %v4951 = vunpack.c.h.b16 %v4570
        %v4952 = vunpack.c.l.b16 %v4571
        %v4953 = vunpack.c.h.b16 %v4571
        %v4954 = vunpack.c.l.b16 %v4572
        %v4955 = vunpack.c.h.b16 %v4572
        %v4956 = vunpack.c.l.b16 %v4573
        %v4957 = vunpack.c.h.b16 %v4573
        %v4958 = vunpack.c.l.b16 %v4574
        %v4959 = vunpack.c.h.b16 %v4574
        %v4960 = vunpack.c.l.b16 %v4575
        %v4961 = vunpack.c.h.b16 %v4575
        %v4962 = vunpack.c.l.b16 %v4576
        %v4963 = vunpack.c.h.b16 %v4576
        %v4964 = vunpack.c.l.b16 %v4577
        %v4965 = vunpack.c.h.b16 %v4577
        %v4966 = vunpack.c.l.b16 %v4578
        %v4967 = vunpack.c.h.b16 %v4578
        %v4968 = vunpack.c.l.b16 %v4579
        %v4969 = vunpack.c.h.b16 %v4579
        %v4970 = vunpack.c.l.b16 %v4580
        %v4971 = vunpack.c.h.b16 %v4580
        %v4972 = vunpack.c.l.b16 %v4581
        %v4973 = vunpack.c.h.b16 %v4581
        %v4974 = vunpack.c.l.b16 %v4582
        %v4975 = vunpack.c.h.b16 %v4582
        %v4976 = vunpack.c.l.b16 %v4583
        %v4977 = vunpack.c.h.b16 %v4583
        %v4978 = vunpack.c.l.b16 %v4584
        %v4979 = vunpack.c.h.b16 %v4584
        %v4980 = vunpack.c.l.b16 %v4585
        %v4981 = vunpack.c.h.b16 %v4585
        %v4982 = vunpack.c.l.b16 %v4586
        %v4983 = vunpack.c.h.b16 %v4586
        %v4984 = vunpack.c.l.b16 %v4587
        %v4985 = vunpack.c.h.b16 %v4587
        %v4986 = vunpack.c.l.b16 %v4588
        %v4987 = vunpack.c.h.b16 %v4588
        %v4988 = vunpack.c.l.b16 %v4589
        %v4989 = vunpack.c.h.b16 %v4589
        %v4990 = vunpack.c.l.b16 %v4590
        %v4991 = vunpack.c.h.b16 %v4590
        %v4992 = vunpack.c.l.b16 %v4591
        %v4993 = vunpack.c.h.b16 %v4591
        %v4994 = vunpack.c.l.b16 %v4592
        %v4995 = vunpack.c.h.b16 %v4592
        %v4996 = vunpack.c.l.b16 %v4593
        %v4997 = vunpack.c.h.b16 %v4593
        %v4998 = vunpack.c.l.b16 %v4594
        %v4999 = vunpack.c.h.b16 %v4594
        %v5000 = vunpack.c.l.b16 %v4595
        %v5001 = vunpack.c.h.b16 %v4595
        %v5002 = vunpack.c.l.b16 %v4596
        %v5003 = vunpack.c.h.b16 %v4596
        %v5004 = vunpack.c.l.b16 %v4597
        %v5005 = vunpack.c.h.b16 %v4597
        %v5006 = vunpack.c.l.b16 %v4598
        %v5007 = vunpack.c.h.b16 %v4598
        %v5008 = vunpack.c.l.b16 %v4599
        %v5009 = vunpack.c.h.b16 %v4599
        %v5010 = vunpack.c.l.b16 %v4600
        %v5011 = vunpack.c.h.b16 %v4600
        %v5012 = vunpack.c.l.b16 %v4601
        %v5013 = vunpack.c.h.b16 %v4601
        %v5014 = vunpack.c.l.b16 %v4602
        %v5015 = vunpack.c.h.b16 %v4602
        %v5016 = vunpack.c.l.b16 %v4603
        %v5017 = vunpack.c.h.b16 %v4603
        %v5018 = vunpack.c.l.b16 %v4604
        %v5019 = vunpack.c.h.b16 %v4604
        %v5020 = vunpack.c.l.b16 %v4605
        %v5021 = vunpack.c.h.b16 %v4605
        %v5022 = vunpack.c.l.b16 %v4606
        %v5023 = vunpack.c.h.b16 %v4606
        %v5024 = vunpack.c.l.b16 %v4607
        %v5025 = vunpack.c.h.b16 %v4607
        %v5026 = vunpack.c.l.b16 %v4608
        %v5027 = vunpack.c.h.b16 %v4608
        %v5028 = vunpack.c.l.b16 %v4609
        %v5029 = vunpack.c.h.b16 %v4609
        %v5030 = vunpack.c.l.b16 %v4610
        %v5031 = vunpack.c.h.b16 %v4610
        %v5032 = vunpack.c.l.b16 %v4611
        %v5033 = vunpack.c.h.b16 %v4611
        %v5034 = vunpack.c.l.b16 %v4612
        %v5035 = vunpack.c.h.b16 %v4612
        %v5036 = vunpack.c.l.b16 %v4613
        %v5037 = vunpack.c.h.b16 %v4613
        %v5038 = vunpack.c.l.b16 %v4614
        %v5039 = vunpack.c.h.b16 %v4614
        %v5040 = vunpack.c.l.b16 %v4615
        %v5041 = vunpack.c.h.b16 %v4615
        %v5042 = vunpack.c.l.b16 %v4616
        %v5043 = vunpack.c.h.b16 %v4616
        %v5044 = vunpack.c.l.b16 %v4617
        %v5045 = vunpack.c.h.b16 %v4617
        %v5046 = vunpack.c.l.b16 %v4618
        %v5047 = vunpack.c.h.b16 %v4618
        %v5048 = vunpack.c.l.b16 %v4619
        %v5049 = vunpack.c.h.b16 %v4619
        %v5050 = vunpack.c.l.b16 %v4620
        %v5051 = vunpack.c.h.b16 %v4620
        %v5052 = vunpack.c.l.b16 %v4621
        %v5053 = vunpack.c.h.b16 %v4621
        %v5054 = vpack.c.b16 %v4772, %v4766
        %v5055 = vpack.c.b16 %v4773, %v4767
        %v5056 = vpack.c.b16 %v4774, %v4768
        %v5057 = vpack.c.b16 %v4775, %v4769
        %v5058 = vpack.c.b16 %v4776, %v4770
        %v5059 = vpack.c.b16 %v4777, %v4771
        %v5060 = vpack.c.b16 %v4784, %v4778
        %v5061 = vpack.c.b16 %v4785, %v4779
        %v5062 = vpack.c.b16 %v4786, %v4780
        %v5063 = vpack.c.b16 %v4787, %v4781
        %v5064 = vpack.c.b16 %v4788, %v4782
        %v5065 = vpack.c.b16 %v4789, %v4783
        %v5066 = vpack.c.b16 %v4796, %v4790
        %v5067 = vpack.c.b16 %v4797, %v4791
        %v5068 = vpack.c.b16 %v4798, %v4792
        %v5069 = vpack.c.b16 %v4799, %v4793
        %v5070 = vpack.c.b16 %v4800, %v4794
        %v5071 = vpack.c.b16 %v4801, %v4795
        %v5072 = vpack.c.b16 %v4808, %v4802
        %v5073 = vpack.c.b16 %v4809, %v4803
        %v5074 = vpack.c.b16 %v4810, %v4804
        %v5075 = vpack.c.b16 %v4811, %v4805
        %v5076 = vpack.c.b16 %v4812, %v4806
        %v5077 = vpack.c.b16 %v4813, %v4807
        %v5078 = vpack.c.b16 %v4820, %v4814
        %v5079 = vpack.c.b16 %v4821, %v4815
        %v5080 = vpack.c.b16 %v4822, %v4816
        %v5081 = vpack.c.b16 %v4823, %v4817
        %v5082 = vpack.c.b16 %v4824, %v4818
        %v5083 = vpack.c.b16 %v4825, %v4819
        %v5084 = vpack.c.b16 %v4832, %v4826
        %v5085 = vpack.c.b16 %v4833, %v4827
        %v5086 = vpack.c.b16 %v4834, %v4828
        %v5087 = vpack.c.b16 %v4835, %v4829
        %v5088 = vpack.c.b16 %v4836, %v4830
        %v5089 = vpack.c.b16 %v4837, %v4831
        %v5090 = vpack.c.b16 %v4844, %v4838
        %v5091 = vpack.c.b16 %v4845, %v4839
        %v5092 = vpack.c.b16 %v4846, %v4840
        %v5093 = vpack.c.b16 %v4847, %v4841
        %v5094 = vpack.c.b16 %v4848, %v4842
        %v5095 = vpack.c.b16 %v4849, %v4843
        %v5096 = vpack.c.b16 %v4856, %v4850
        %v5097 = vpack.c.b16 %v4857, %v4851
        %v5098 = vpack.c.b16 %v4858, %v4852
        %v5099 = vpack.c.b16 %v4859, %v4853
        %v5100 = vpack.c.b16 %v4860, %v4854
        %v5101 = vpack.c.b16 %v4861, %v4855
        %v5102 = vpack.c.b16 %v4868, %v4862
        %v5103 = vpack.c.b16 %v4869, %v4863
        %v5104 = vpack.c.b16 %v4870, %v4864
        %v5105 = vpack.c.b16 %v4871, %v4865
        %v5106 = vpack.c.b16 %v4872, %v4866
        %v5107 = vpack.c.b16 %v4873, %v4867
        %v5108 = vpack.c.b16 %v4880, %v4874
        %v5109 = vpack.c.b16 %v4881, %v4875
        %v5110 = vpack.c.b16 %v4882, %v4876
        %v5111 = vpack.c.b16 %v4883, %v4877
        %v5112 = vpack.c.b16 %v4884, %v4878
        %v5113 = vpack.c.b16 %v4885, %v4879
        %v5114 = vpack.c.b16 %v4892, %v4886
        %v5115 = vpack.c.b16 %v4893, %v4887
        %v5116 = vpack.c.b16 %v4894, %v4888
        %v5117 = vpack.c.b16 %v4895, %v4889
        %v5118 = vpack.c.b16 %v4896, %v4890
        %v5119 = vpack.c.b16 %v4897, %v4891
        %v5120 = vpack.c.b16 %v4904, %v4898
        %v5121 = vpack.c.b16 %v4905, %v4899
        %v5122 = vpack.c.b16 %v4906, %v4900
        %v5123 = vpack.c.b16 %v4907, %v4901
        %v5124 = vpack.c.b16 %v4908, %v4902
        %v5125 = vpack.c.b16 %v4909, %v4903
        %v5126 = vpack.c.b16 %v4916, %v4910
        %v5127 = vpack.c.b16 %v4917, %v4911
        %v5128 = vpack.c.b16 %v4918, %v4912
        %v5129 = vpack.c.b16 %v4919, %v4913
        %v5130 = vpack.c.b16 %v4920, %v4914
        %v5131 = vpack.c.b16 %v4921, %v4915
        %v5132 = vpack.c.b16 %v4928, %v4922
        %v5133 = vpack.c.b16 %v4929, %v4923
        %v5134 = vpack.c.b16 %v4930, %v4924
        %v5135 = vpack.c.b16 %v4931, %v4925
        %v5136 = vpack.c.b16 %v4932, %v4926
        %v5137 = vpack.c.b16 %v4933, %v4927
        %v5138 = vpack.c.b16 %v4940, %v4934
        %v5139 = vpack.c.b16 %v4941, %v4935
        %v5140 = vpack.c.b16 %v4942, %v4936
        %v5141 = vpack.c.b16 %v4943, %v4937
        %v5142 = vpack.c.b16 %v4944, %v4938
        %v5143 = vpack.c.b16 %v4945, %v4939
        %v5144 = vpack.c.b16 %v4952, %v4946
        %v5145 = vpack.c.b16 %v4953, %v4947
        %v5146 = vpack.c.b16 %v4954, %v4948
        %v5147 = vpack.c.b16 %v4955, %v4949
        %v5148 = vpack.c.b16 %v4956, %v4950
        %v5149 = vpack.c.b16 %v4957, %v4951
        %v5150 = vpack.c.b16 %v4964, %v4958
        %v5151 = vpack.c.b16 %v4965, %v4959
        %v5152 = vpack.c.b16 %v4966, %v4960
        %v5153 = vpack.c.b16 %v4967, %v4961
        %v5154 = vpack.c.b16 %v4968, %v4962
        %v5155 = vpack.c.b16 %v4969, %v4963
        %v5156 = vpack.c.b16 %v4976, %v4970
        %v5157 = vpack.c.b16 %v4977, %v4971
        %v5158 = vpack.c.b16 %v4978, %v4972
        %v5159 = vpack.c.b16 %v4979, %v4973
        %v5160 = vpack.c.b16 %v4980, %v4974
        %v5161 = vpack.c.b16 %v4981, %v4975
        %v5162 = vpack.c.b16 %v4988, %v4982
        %v5163 = vpack.c.b16 %v4989, %v4983
        %v5164 = vpack.c.b16 %v4990, %v4984
        %v5165 = vpack.c.b16 %v4991, %v4985
        %v5166 = vpack.c.b16 %v4992, %v4986
        %v5167 = vpack.c.b16 %v4993, %v4987
        %v5168 = vpack.c.b16 %v5000, %v4994
        %v5169 = vpack.c.b16 %v5001, %v4995
        %v5170 = vpack.c.b16 %v5002, %v4996
        %v5171 = vpack.c.b16 %v5003, %v4997
        %v5172 = vpack.c.b16 %v5004, %v4998
        %v5173 = vpack.c.b16 %v5005, %v4999
        %v5174 = vpack.c.b16 %v5012, %v5006
        %v5175 = vpack.c.b16 %v5013, %v5007
        %v5176 = vpack.c.b16 %v5014, %v5008
        %v5177 = vpack.c.b16 %v5015, %v5009
        %v5178 = vpack.c.b16 %v5016, %v5010
        %v5179 = vpack.c.b16 %v5017, %v5011
        %v5180 = vpack.c.b16 %v5024, %v5018
        %v5181 = vpack.c.b16 %v5025, %v5019
        %v5182 = vpack.c.b16 %v5026, %v5020
        %v5183 = vpack.c.b16 %v5027, %v5021
        %v5184 = vpack.c.b16 %v5028, %v5022
        %v5185 = vpack.c.b16 %v5029, %v5023
        %v5186 = vpack.c.b16 %v5036, %v5030
        %v5187 = vpack.c.b16 %v5037, %v5031
        %v5188 = vpack.c.b16 %v5038, %v5032
        %v5189 = vpack.c.b16 %v5039, %v5033
        %v5190 = vpack.c.b16 %v5040, %v5034
        %v5191 = vpack.c.b16 %v5041, %v5035
        %v5192 = vpack.c.b16 %v5048, %v5042
        %v5193 = vpack.c.b16 %v5049, %v5043
        %v5194 = vpack.c.b16 %v5050, %v5044
        %v5195 = vpack.c.b16 %v5051, %v5045
        %v5196 = vpack.c.b16 %v5052, %v5046
        %v5197 = vpack.c.b16 %v5053, %v5047
        %5342 = vmatprep.subr.bf16.mxu0 %v5055
        %5343 = vmatpush1.bf16.msra.mxu0 %v5054
        %5344 = vmatprep.subr.bf16.mxu0 %v5061
        %5345 = vmatpush1.bf16.msra.mxu0 %v5060
        %5346 = vmatprep.subr.bf16.mxu0 %v5067
        %5347 = vmatpush1.bf16.msra.mxu0 %v5066
        %5348 = vmatprep.subr.bf16.mxu0 %v5073
        %5349 = vmatpush1.bf16.msra.mxu0 %v5072
        %5350 = vmatprep.subr.bf16.mxu0 %v5079
        %5351 = vmatpush1.bf16.msra.mxu0 %v5078
        %5352 = vmatprep.subr.bf16.mxu0 %v5085
        %5353 = vmatpush1.bf16.msra.mxu0 %v5084
        %5354 = vmatprep.subr.bf16.mxu0 %v5091
        %5355 = vmatpush1.bf16.msra.mxu0 %v5090
        %5356 = vmatprep.subr.bf16.mxu0 %v5097
        %5357 = vmatpush1.bf16.msra.mxu0 %v5096
        %5358 = vmatprep.subr.bf16.mxu0 %v5103
        %5359 = vmatpush1.bf16.msra.mxu0 %v5102
        %5360 = vmatprep.subr.bf16.mxu0 %v5109
        %5361 = vmatpush1.bf16.msra.mxu0 %v5108
        %5362 = vmatprep.subr.bf16.mxu0 %v5115
        %5363 = vmatpush1.bf16.msra.mxu0 %v5114
        %5364 = vmatprep.subr.bf16.mxu0 %v5121
        %5365 = vmatpush1.bf16.msra.mxu0 %v5120
        %5366 = vmatprep.subr.bf16.mxu0 %v5127
        %5367 = vmatpush1.bf16.msra.mxu0 %v5126
        %5368 = vmatprep.subr.bf16.mxu0 %v5133
        %5369 = vmatpush1.bf16.msra.mxu0 %v5132
        %5370 = vmatprep.subr.bf16.mxu0 %v5139
        %5371 = vmatpush1.bf16.msra.mxu0 %v5138
        %5372 = vmatprep.subr.bf16.mxu0 %v5145
        %5373 = vmatpush1.bf16.msra.mxu0 %v5144
        %5374 = vmatprep.mubr.bf16.mxu0 %v2282
        %5375 = vmatmul.mubr.bf16.gmra.mrb[0].mxu0 %v2281
        %v5376 = vpop.f32.mrb[0].mxu0
        %v5377 = vadd.f32 0.0, %v5376
        %v5378 = vpop.f32.mrb[0].mxu0
        %v5379 = vadd.f32 0.0, %v5378
        %v5380 = vpop.f32.mrb[0].mxu0
        %v5381 = vadd.f32 0.0, %v5380
        %v5382 = vpop.f32.mrb[0].mxu0
        %v5383 = vadd.f32 0.0, %v5382
        %5384 = vdwg.mxu0
        %5385 = vmatprep.subr.bf16.mxu0 %v5151
        %5386 = vmatpush1.bf16.msra.mxu0 %v5150
        %5387 = vmatprep.subr.bf16.mxu0 %v5157
        %5388 = vmatpush1.bf16.msra.mxu0 %v5156
        %5389 = vmatprep.subr.bf16.mxu0 %v5163
        %5390 = vmatpush1.bf16.msra.mxu0 %v5162
        %5391 = vmatprep.subr.bf16.mxu0 %v5169
        %5392 = vmatpush1.bf16.msra.mxu0 %v5168
        %5393 = vmatprep.subr.bf16.mxu0 %v5175
        %5394 = vmatpush1.bf16.msra.mxu0 %v5174
        %5395 = vmatprep.subr.bf16.mxu0 %v5181
        %5396 = vmatpush1.bf16.msra.mxu0 %v5180
        %5397 = vmatprep.subr.bf16.mxu0 %v5187
        %5398 = vmatpush1.bf16.msra.mxu0 %v5186
        %5399 = vmatprep.subr.bf16.mxu0 %v5193
        %5400 = vmatpush1.bf16.msra.mxu0 %v5192
        %5401 = vmatprep.subr.bf16.mxu0 0
        %5402 = vmatpush1.bf16.msra.mxu0 0
        %5403 = vmatprep.subr.bf16.mxu0 0
        %5404 = vmatpush1.bf16.msra.mxu0 0
        %5405 = vmatprep.subr.bf16.mxu0 0
        %5406 = vmatpush1.bf16.msra.mxu0 0
        %5407 = vmatprep.subr.bf16.mxu0 0
        %5408 = vmatpush1.bf16.msra.mxu0 0
        %5409 = vmatprep.subr.bf16.mxu0 0
        %5410 = vmatpush1.bf16.msra.mxu0 0
        %5411 = vmatprep.subr.bf16.mxu0 0
        %5412 = vmatpush1.bf16.msra.mxu0 0
        %5413 = vmatprep.subr.bf16.mxu0 0
        %5414 = vmatpush1.bf16.msra.mxu0 0
        %5415 = vmatprep.subr.bf16.mxu0 0
        %5416 = vmatpush1.bf16.msra.mxu0 0
        %5417 = vmatprep.mubr.bf16.mxu0 0
        %5418 = vmatmul.mubr.bf16.gmra.mrb[0].mxu0 %v2283
        %v5419 = vpop.f32.mrb[0].mxu0
        %v5420 = vadd.f32 %v5377, %v5419
        %v5421 = vpop.f32.mrb[0].mxu0
        %v5422 = vadd.f32 %v5379, %v5421
        %v5423 = vpop.f32.mrb[0].mxu0
        %v5424 = vadd.f32 %v5381, %v5423
        %v5425 = vpop.f32.mrb[0].mxu0
        %v5426 = vadd.f32 %v5383, %v5425
        %5427 = vdwg.mxu0
        %5428 = vmatprep.subr.bf16.mxu0 %v5057
        %5429 = vmatpush1.bf16.msra.mxu0 %v5056
        %5430 = vmatprep.subr.bf16.mxu0 %v5063
        %5431 = vmatpush1.bf16.msra.mxu0 %v5062
        %5432 = vmatprep.subr.bf16.mxu0 %v5069
        %5433 = vmatpush1.bf16.msra.mxu0 %v5068
        %5434 = vmatprep.subr.bf16.mxu0 %v5075
        %5435 = vmatpush1.bf16.msra.mxu0 %v5074
        %5436 = vmatprep.subr.bf16.mxu0 %v5081
        %5437 = vmatpush1.bf16.msra.mxu0 %v5080
        %5438 = vmatprep.subr.bf16.mxu0 %v5087
        %5439 = vmatpush1.bf16.msra.mxu0 %v5086
        %5440 = vmatprep.subr.bf16.mxu0 %v5093
        %5441 = vmatpush1.bf16.msra.mxu0 %v5092
        %5442 = vmatprep.subr.bf16.mxu0 %v5099
        %5443 = vmatpush1.bf16.msra.mxu0 %v5098
        %5444 = vmatprep.subr.bf16.mxu0 %v5105
        %5445 = vmatpush1.bf16.msra.mxu0 %v5104
        %5446 = vmatprep.subr.bf16.mxu0 %v5111
        %5447 = vmatpush1.bf16.msra.mxu0 %v5110
        %5448 = vmatprep.subr.bf16.mxu0 %v5117
        %5449 = vmatpush1.bf16.msra.mxu0 %v5116
        %5450 = vmatprep.subr.bf16.mxu0 %v5123
        %5451 = vmatpush1.bf16.msra.mxu0 %v5122
        %5452 = vmatprep.subr.bf16.mxu0 %v5129
        %5453 = vmatpush1.bf16.msra.mxu0 %v5128
        %5454 = vmatprep.subr.bf16.mxu0 %v5135
        %5455 = vmatpush1.bf16.msra.mxu0 %v5134
        %5456 = vmatprep.subr.bf16.mxu0 %v5141
        %5457 = vmatpush1.bf16.msra.mxu0 %v5140
        %5458 = vmatprep.subr.bf16.mxu0 %v5147
        %5459 = vmatpush1.bf16.msra.mxu0 %v5146
        %5460 = vmatprep.mubr.bf16.mxu0 %v2282
        %5461 = vmatmul.mubr.bf16.gmra.mrb[0].mxu0 %v2281
        %v5462 = vpop.f32.mrb[0].mxu0
        %v5463 = vadd.f32 0.0, %v5462
        %v5464 = vpop.f32.mrb[0].mxu0
        %v5465 = vadd.f32 0.0, %v5464
        %v5466 = vpop.f32.mrb[0].mxu0
        %v5467 = vadd.f32 0.0, %v5466
        %v5468 = vpop.f32.mrb[0].mxu0
        %v5469 = vadd.f32 0.0, %v5468
        %5470 = vdwg.mxu0
        %5471 = vmatprep.subr.bf16.mxu0 %v5153
        %5472 = vmatpush1.bf16.msra.mxu0 %v5152
        %5473 = vmatprep.subr.bf16.mxu0 %v5159
        %5474 = vmatpush1.bf16.msra.mxu0 %v5158
        %5475 = vmatprep.subr.bf16.mxu0 %v5165
        %5476 = vmatpush1.bf16.msra.mxu0 %v5164
        %5477 = vmatprep.subr.bf16.mxu0 %v5171
        %5478 = vmatpush1.bf16.msra.mxu0 %v5170
        %5479 = vmatprep.subr.bf16.mxu0 %v5177
        %5480 = vmatpush1.bf16.msra.mxu0 %v5176
        %5481 = vmatprep.subr.bf16.mxu0 %v5183
        %5482 = vmatpush1.bf16.msra.mxu0 %v5182
        %5483 = vmatprep.subr.bf16.mxu0 %v5189
        %5484 = vmatpush1.bf16.msra.mxu0 %v5188
        %5485 = vmatprep.subr.bf16.mxu0 %v5195
        %5486 = vmatpush1.bf16.msra.mxu0 %v5194
        %5487 = vmatprep.subr.bf16.mxu0 0
        %5488 = vmatpush1.bf16.msra.mxu0 0
        %5489 = vmatprep.subr.bf16.mxu0 0
        %5490 = vmatpush1.bf16.msra.mxu0 0
        %5491 = vmatprep.subr.bf16.mxu0 0
        %5492 = vmatpush1.bf16.msra.mxu0 0
        %5493 = vmatprep.subr.bf16.mxu0 0
        %5494 = vmatpush1.bf16.msra.mxu0 0
        %5495 = vmatprep.subr.bf16.mxu0 0
        %5496 = vmatpush1.bf16.msra.mxu0 0
        %5497 = vmatprep.subr.bf16.mxu0 0
        %5498 = vmatpush1.bf16.msra.mxu0 0
        %5499 = vmatprep.subr.bf16.mxu0 0
        %5500 = vmatpush1.bf16.msra.mxu0 0
        %5501 = vmatprep.subr.bf16.mxu0 0
        %5502 = vmatpush1.bf16.msra.mxu0 0
        %5503 = vmatprep.mubr.bf16.mxu0 0
        %5504 = vmatmul.mubr.bf16.gmra.mrb[0].mxu0 %v2283
        %v5505 = vpop.f32.mrb[0].mxu0
        %v5506 = vadd.f32 %v5463, %v5505
        %v5507 = vpop.f32.mrb[0].mxu0
        %v5508 = vadd.f32 %v5465, %v5507
        %v5509 = vpop.f32.mrb[0].mxu0
        %v5510 = vadd.f32 %v5467, %v5509
        %v5511 = vpop.f32.mrb[0].mxu0
        %v5512 = vadd.f32 %v5469, %v5511
        %5513 = vdwg.mxu0
        %5514 = vmatprep.subr.bf16.mxu0 %v5059
        %5515 = vmatpush1.bf16.msra.mxu0 %v5058
        %5516 = vmatprep.subr.bf16.mxu0 %v5065
        %5517 = vmatpush1.bf16.msra.mxu0 %v5064
        %5518 = vmatprep.subr.bf16.mxu0 %v5071
        %5519 = vmatpush1.bf16.msra.mxu0 %v5070
        %5520 = vmatprep.subr.bf16.mxu0 %v5077
        %5521 = vmatpush1.bf16.msra.mxu0 %v5076
        %5522 = vmatprep.subr.bf16.mxu0 %v5083
        %5523 = vmatpush1.bf16.msra.mxu0 %v5082
        %5524 = vmatprep.subr.bf16.mxu0 %v5089
        %5525 = vmatpush1.bf16.msra.mxu0 %v5088
        %5526 = vmatprep.subr.bf16.mxu0 %v5095
        %5527 = vmatpush1.bf16.msra.mxu0 %v5094
        %5528 = vmatprep.subr.bf16.mxu0 %v5101
        %5529 = vmatpush1.bf16.msra.mxu0 %v5100
        %5530 = vmatprep.subr.bf16.mxu0 %v5107
        %5531 = vmatpush1.bf16.msra.mxu0 %v5106
        %5532 = vmatprep.subr.bf16.mxu0 %v5113
        %5533 = vmatpush1.bf16.msra.mxu0 %v5112
        %5534 = vmatprep.subr.bf16.mxu0 %v5119
        %5535 = vmatpush1.bf16.msra.mxu0 %v5118
        %5536 = vmatprep.subr.bf16.mxu0 %v5125
        %5537 = vmatpush1.bf16.msra.mxu0 %v5124
        %5538 = vmatprep.subr.bf16.mxu0 %v5131
        %5539 = vmatpush1.bf16.msra.mxu0 %v5130
        %5540 = vmatprep.subr.bf16.mxu0 %v5137
        %5541 = vmatpush1.bf16.msra.mxu0 %v5136
        %5542 = vmatprep.subr.bf16.mxu0 %v5143
        %5543 = vmatpush1.bf16.msra.mxu0 %v5142
        %5544 = vmatprep.subr.bf16.mxu0 %v5149
        %5545 = vmatpush1.bf16.msra.mxu0 %v5148
        %5546 = vmatprep.mubr.bf16.mxu0 %v2282
        %5547 = vmatmul.mubr.bf16.gmra.mrb[0].mxu0 %v2281
        %v5548 = vpop.f32.mrb[0].mxu0
        %v5549 = vadd.f32 0.0, %v5548
        %v5550 = vpop.f32.mrb[0].mxu0
        %v5551 = vadd.f32 0.0, %v5550
        %v5552 = vpop.f32.mrb[0].mxu0
        %v5553 = vadd.f32 0.0, %v5552
        %v5554 = vpop.f32.mrb[0].mxu0
        %v5555 = vadd.f32 0.0, %v5554
        %5556 = vdwg.mxu0
        %5557 = vmatprep.subr.bf16.mxu0 %v5155
        %5558 = vmatpush1.bf16.msra.mxu0 %v5154
        %5559 = vmatprep.subr.bf16.mxu0 %v5161
        %5560 = vmatpush1.bf16.msra.mxu0 %v5160
        %5561 = vmatprep.subr.bf16.mxu0 %v5167
        %5562 = vmatpush1.bf16.msra.mxu0 %v5166
        %5563 = vmatprep.subr.bf16.mxu0 %v5173
        %5564 = vmatpush1.bf16.msra.mxu0 %v5172
        %5565 = vmatprep.subr.bf16.mxu0 %v5179
        %5566 = vmatpush1.bf16.msra.mxu0 %v5178
        %5567 = vmatprep.subr.bf16.mxu0 %v5185
        %5568 = vmatpush1.bf16.msra.mxu0 %v5184
        %5569 = vmatprep.subr.bf16.mxu0 %v5191
        %5570 = vmatpush1.bf16.msra.mxu0 %v5190
        %5571 = vmatprep.subr.bf16.mxu0 %v5197
        %5572 = vmatpush1.bf16.msra.mxu0 %v5196
        %5573 = vmatprep.subr.bf16.mxu0 0
        %5574 = vmatpush1.bf16.msra.mxu0 0
        %5575 = vmatprep.subr.bf16.mxu0 0
        %5576 = vmatpush1.bf16.msra.mxu0 0
        %5577 = vmatprep.subr.bf16.mxu0 0
        %5578 = vmatpush1.bf16.msra.mxu0 0
        %5579 = vmatprep.subr.bf16.mxu0 0
        %5580 = vmatpush1.bf16.msra.mxu0 0
        %5581 = vmatprep.subr.bf16.mxu0 0
        %5582 = vmatpush1.bf16.msra.mxu0 0
        %5583 = vmatprep.subr.bf16.mxu0 0
        %5584 = vmatpush1.bf16.msra.mxu0 0
        %5585 = vmatprep.subr.bf16.mxu0 0
        %5586 = vmatpush1.bf16.msra.mxu0 0
        %5587 = vmatprep.subr.bf16.mxu0 0
        %5588 = vmatpush1.bf16.msra.mxu0 0
        %5589 = vmatprep.mubr.bf16.mxu0 0
        %5590 = vmatmul.mubr.bf16.gmra.mrb[0].mxu0 %v2283
        %v5591 = vpop.f32.mrb[0].mxu0
        %v5592 = vadd.f32 %v5549, %v5591
        %v5593 = vpop.f32.mrb[0].mxu0
        %v5594 = vadd.f32 %v5551, %v5593
        %v5595 = vpop.f32.mrb[0].mxu0
        %v5596 = vadd.f32 %v5553, %v5595
        %v5597 = vpop.f32.mrb[0].mxu0
        %v5598 = vadd.f32 %v5555, %v5597
        %5599 = vdwg.mxu0
        %vm5600 = vsmask.f32 4352
        %v5602 = vshrl.u32 %v4318, 16
        %v5604 = vrot.slane %v5602, 3
        %v5605 = vshll.u32 %v4318, 16
        %v5607 = vrot.slane %v5605, 4
        %v5608 = vor.u32 %v5604, %v5607
        %v5610 = vshrl.u32 %v4321, 16
        %v5612 = vrot.slane %v5610, 3
        %v5613 = vshll.u32 %v4321, 16
        %v5615 = vrot.slane %v5613, 4
        %v5616 = vor.u32 %v5612, %v5615
        %v5617 = vsel %vm5600, %v5608, %v5616
        %v5619 = vshrl.u32 %v4319, 16
        %v5621 = vrot.slane %v5619, 3
        %v5622 = vshll.u32 %v4319, 16
        %v5624 = vrot.slane %v5622, 4
        %v5625 = vor.u32 %v5621, %v5624
        %v5627 = vshrl.u32 %v4322, 16
        %v5629 = vrot.slane %v5627, 3
        %v5630 = vshll.u32 %v4322, 16
        %v5632 = vrot.slane %v5630, 4
        %v5633 = vor.u32 %v5629, %v5632
        %v5634 = vsel %vm5600, %v5625, %v5633
        %v5636 = vshrl.u32 %v4320, 16
        %v5638 = vrot.slane %v5636, 3
        %v5639 = vshll.u32 %v4320, 16
        %v5641 = vrot.slane %v5639, 4
        %v5642 = vor.u32 %v5638, %v5641
        %v5644 = vshrl.u32 %v4323, 16
        %v5646 = vrot.slane %v5644, 3
        %v5647 = vshll.u32 %v4323, 16
        %v5649 = vrot.slane %v5647, 4
        %v5650 = vor.u32 %v5646, %v5649
        %v5651 = vsel %vm5600, %v5642, %v5650
        %v5799 = vunpack.c.l.b16 %v4333
        %v5800 = vunpack.c.h.b16 %v4333
        %v5801 = vunpack.c.l.b16 %v4334
        %v5802 = vunpack.c.h.b16 %v4334
        %v5803 = vunpack.c.l.b16 %v4335
        %v5804 = vunpack.c.h.b16 %v4335
        %v5805 = vunpack.c.l.b16 %v4336
        %v5806 = vunpack.c.h.b16 %v4336
        %v5807 = vunpack.c.l.b16 %v4337
        %v5808 = vunpack.c.h.b16 %v4337
        %v5809 = vunpack.c.l.b16 %v4338
        %v5810 = vunpack.c.h.b16 %v4338
        %v5811 = vunpack.c.l.b16 %v4339
        %v5812 = vunpack.c.h.b16 %v4339
        %v5813 = vunpack.c.l.b16 %v4340
        %v5814 = vunpack.c.h.b16 %v4340
        %v5815 = vunpack.c.l.b16 %v4341
        %v5816 = vunpack.c.h.b16 %v4341
        %v5817 = vunpack.c.l.b16 %v4342
        %v5818 = vunpack.c.h.b16 %v4342
        %v5819 = vunpack.c.l.b16 %v4343
        %v5820 = vunpack.c.h.b16 %v4343
        %v5821 = vunpack.c.l.b16 %v4344
        %v5822 = vunpack.c.h.b16 %v4344
        %v5823 = vunpack.c.l.b16 %v4345
        %v5824 = vunpack.c.h.b16 %v4345
        %v5825 = vunpack.c.l.b16 %v4346
        %v5826 = vunpack.c.h.b16 %v4346
        %v5827 = vunpack.c.l.b16 %v4347
        %v5828 = vunpack.c.h.b16 %v4347
        %v5829 = vunpack.c.l.b16 %v4348
        %v5830 = vunpack.c.h.b16 %v4348
        %v5831 = vunpack.c.l.b16 %v4349
        %v5832 = vunpack.c.h.b16 %v4349
        %v5833 = vunpack.c.l.b16 %v4350
        %v5834 = vunpack.c.h.b16 %v4350
        %v5835 = vunpack.c.l.b16 %v4351
        %v5836 = vunpack.c.h.b16 %v4351
        %v5837 = vunpack.c.l.b16 %v4352
        %v5838 = vunpack.c.h.b16 %v4352
        %v5839 = vunpack.c.l.b16 %v4353
        %v5840 = vunpack.c.h.b16 %v4353
        %v5841 = vunpack.c.l.b16 %v4354
        %v5842 = vunpack.c.h.b16 %v4354
        %v5843 = vunpack.c.l.b16 %v4355
        %v5844 = vunpack.c.h.b16 %v4355
        %v5845 = vunpack.c.l.b16 %v4356
        %v5846 = vunpack.c.h.b16 %v4356
        %v5847 = vunpack.c.l.b16 %v4357
        %v5848 = vunpack.c.h.b16 %v4357
        %v5849 = vunpack.c.l.b16 %v4358
        %v5850 = vunpack.c.h.b16 %v4358
        %v5851 = vunpack.c.l.b16 %v4359
        %v5852 = vunpack.c.h.b16 %v4359
        %v5853 = vunpack.c.l.b16 %v4360
        %v5854 = vunpack.c.h.b16 %v4360
        %v5855 = vunpack.c.l.b16 %v4361
        %v5856 = vunpack.c.h.b16 %v4361
        %v5857 = vunpack.c.l.b16 %v4362
        %v5858 = vunpack.c.h.b16 %v4362
        %v5859 = vunpack.c.l.b16 %v4363
        %v5860 = vunpack.c.h.b16 %v4363
        %v5861 = vunpack.c.l.b16 %v4364
        %v5862 = vunpack.c.h.b16 %v4364
        %v5863 = vunpack.c.l.b16 %v4365
        %v5864 = vunpack.c.h.b16 %v4365
        %v5865 = vunpack.c.l.b16 %v4366
        %v5866 = vunpack.c.h.b16 %v4366
        %v5867 = vunpack.c.l.b16 %v4367
        %v5868 = vunpack.c.h.b16 %v4367
        %v5869 = vunpack.c.l.b16 %v4368
        %v5870 = vunpack.c.h.b16 %v4368
        %v5871 = vunpack.c.l.b16 %v4369
        %v5872 = vunpack.c.h.b16 %v4369
        %v5873 = vunpack.c.l.b16 %v4370
        %v5874 = vunpack.c.h.b16 %v4370
        %v5875 = vunpack.c.l.b16 %v4371
        %v5876 = vunpack.c.h.b16 %v4371
        %v5877 = vunpack.c.l.b16 %v4372
        %v5878 = vunpack.c.h.b16 %v4372
        %v5879 = vunpack.c.l.b16 %v4373
        %v5880 = vunpack.c.h.b16 %v4373
        %v5881 = vunpack.c.l.b16 %v4374
        %v5882 = vunpack.c.h.b16 %v4374
        %v5883 = vunpack.c.l.b16 %v4375
        %v5884 = vunpack.c.h.b16 %v4375
        %v5885 = vunpack.c.l.b16 %v4376
        %v5886 = vunpack.c.h.b16 %v4376
        %v5887 = vunpack.c.l.b16 %v4377
        %v5888 = vunpack.c.h.b16 %v4377
        %v5889 = vunpack.c.l.b16 %v4378
        %v5890 = vunpack.c.h.b16 %v4378
        %v5891 = vunpack.c.l.b16 %v4379
        %v5892 = vunpack.c.h.b16 %v4379
        %v5893 = vunpack.c.l.b16 %v4380
        %v5894 = vunpack.c.h.b16 %v4380
        %v5895 = vunpack.c.l.b16 %v4381
        %v5896 = vunpack.c.h.b16 %v4381
        %v5897 = vunpack.c.l.b16 %v4382
        %v5898 = vunpack.c.h.b16 %v4382
        %v5899 = vunpack.c.l.b16 %v4383
        %v5900 = vunpack.c.h.b16 %v4383
        %v5901 = vunpack.c.l.b16 %v4384
        %v5902 = vunpack.c.h.b16 %v4384
        %v5903 = vunpack.c.l.b16 %v4385
        %v5904 = vunpack.c.h.b16 %v4385
        %v5905 = vunpack.c.l.b16 %v4386
        %v5906 = vunpack.c.h.b16 %v4386
        %v5907 = vunpack.c.l.b16 %v4387
        %v5908 = vunpack.c.h.b16 %v4387
        %v5909 = vunpack.c.l.b16 %v4388
        %v5910 = vunpack.c.h.b16 %v4388
        %v5911 = vunpack.c.l.b16 %v4389
        %v5912 = vunpack.c.h.b16 %v4389
        %v5913 = vunpack.c.l.b16 %v4390
        %v5914 = vunpack.c.h.b16 %v4390
        %v5915 = vunpack.c.l.b16 %v4391
        %v5916 = vunpack.c.h.b16 %v4391
        %v5917 = vunpack.c.l.b16 %v4392
        %v5918 = vunpack.c.h.b16 %v4392
        %v5919 = vunpack.c.l.b16 %v4393
        %v5920 = vunpack.c.h.b16 %v4393
        %v5921 = vunpack.c.l.b16 %v4394
        %v5922 = vunpack.c.h.b16 %v4394
        %v5923 = vunpack.c.l.b16 %v4395
        %v5924 = vunpack.c.h.b16 %v4395
        %v5925 = vunpack.c.l.b16 %v4396
        %v5926 = vunpack.c.h.b16 %v4396
        %v5927 = vunpack.c.l.b16 %v4397
        %v5928 = vunpack.c.h.b16 %v4397
        %v5929 = vunpack.c.l.b16 %v4398
        %v5930 = vunpack.c.h.b16 %v4398
        %v5931 = vunpack.c.l.b16 %v4399
        %v5932 = vunpack.c.h.b16 %v4399
        %v5933 = vunpack.c.l.b16 %v4400
        %v5934 = vunpack.c.h.b16 %v4400
        %v5935 = vunpack.c.l.b16 %v4401
        %v5936 = vunpack.c.h.b16 %v4401
        %v5937 = vunpack.c.l.b16 %v4402
        %v5938 = vunpack.c.h.b16 %v4402
        %v5939 = vunpack.c.l.b16 %v4403
        %v5940 = vunpack.c.h.b16 %v4403
        %v5941 = vunpack.c.l.b16 %v4404
        %v5942 = vunpack.c.h.b16 %v4404
        %v5943 = vunpack.c.l.b16 %v4405
        %v5944 = vunpack.c.h.b16 %v4405
        %v5945 = vunpack.c.l.b16 %v4406
        %v5946 = vunpack.c.h.b16 %v4406
        %v5947 = vunpack.c.l.b16 %v4407
        %v5948 = vunpack.c.h.b16 %v4407
        %v5949 = vunpack.c.l.b16 %v4408
        %v5950 = vunpack.c.h.b16 %v4408
        %v5951 = vunpack.c.l.b16 %v4409
        %v5952 = vunpack.c.h.b16 %v4409
        %v5953 = vunpack.c.l.b16 %v4410
        %v5954 = vunpack.c.h.b16 %v4410
        %v5955 = vunpack.c.l.b16 %v4411
        %v5956 = vunpack.c.h.b16 %v4411
        %v5957 = vunpack.c.l.b16 %v4412
        %v5958 = vunpack.c.h.b16 %v4412
        %v5959 = vunpack.c.l.b16 %v4413
        %v5960 = vunpack.c.h.b16 %v4413
        %v5961 = vunpack.c.l.b16 %v4414
        %v5962 = vunpack.c.h.b16 %v4414
        %v5963 = vunpack.c.l.b16 %v4415
        %v5964 = vunpack.c.h.b16 %v4415
        %v5965 = vunpack.c.l.b16 %v4416
        %v5966 = vunpack.c.h.b16 %v4416
        %v5967 = vunpack.c.l.b16 %v4417
        %v5968 = vunpack.c.h.b16 %v4417
        %v5969 = vunpack.c.l.b16 %v4418
        %v5970 = vunpack.c.h.b16 %v4418
        %v5971 = vunpack.c.l.b16 %v4419
        %v5972 = vunpack.c.h.b16 %v4419
        %v5973 = vunpack.c.l.b16 %v4420
        %v5974 = vunpack.c.h.b16 %v4420
        %v5975 = vunpack.c.l.b16 %v4421
        %v5976 = vunpack.c.h.b16 %v4421
        %v5977 = vunpack.c.l.b16 %v4422
        %v5978 = vunpack.c.h.b16 %v4422
        %v5979 = vunpack.c.l.b16 %v4423
        %v5980 = vunpack.c.h.b16 %v4423
        %v5981 = vunpack.c.l.b16 %v4424
        %v5982 = vunpack.c.h.b16 %v4424
        %v5983 = vunpack.c.l.b16 %v4425
        %v5984 = vunpack.c.h.b16 %v4425
        %v5985 = vunpack.c.l.b16 %v4426
        %v5986 = vunpack.c.h.b16 %v4426
        %v5987 = vunpack.c.l.b16 %v4427
        %v5988 = vunpack.c.h.b16 %v4427
        %v5989 = vunpack.c.l.b16 %v4428
        %v5990 = vunpack.c.h.b16 %v4428
        %v5991 = vunpack.c.l.b16 %v4429
        %v5992 = vunpack.c.h.b16 %v4429
        %v5993 = vunpack.c.l.b16 %v4430
        %v5994 = vunpack.c.h.b16 %v4430
        %v5995 = vunpack.c.l.b16 %v4431
        %v5996 = vunpack.c.h.b16 %v4431
        %v5997 = vunpack.c.l.b16 %v4432
        %v5998 = vunpack.c.h.b16 %v4432
        %v5999 = vunpack.c.l.b16 %v4433
        %v6000 = vunpack.c.h.b16 %v4433
        %v6001 = vunpack.c.l.b16 %v4434
        %v6002 = vunpack.c.h.b16 %v4434
        %v6003 = vunpack.c.l.b16 %v4435
        %v6004 = vunpack.c.h.b16 %v4435
        %v6005 = vunpack.c.l.b16 %v4436
        %v6006 = vunpack.c.h.b16 %v4436
        %v6007 = vunpack.c.l.b16 %v4437
        %v6008 = vunpack.c.h.b16 %v4437
        %v6009 = vunpack.c.l.b16 %v4438
        %v6010 = vunpack.c.h.b16 %v4438
        %v6011 = vunpack.c.l.b16 %v4439
        %v6012 = vunpack.c.h.b16 %v4439
        %v6013 = vunpack.c.l.b16 %v4440
        %v6014 = vunpack.c.h.b16 %v4440
        %v6015 = vunpack.c.l.b16 %v4441
        %v6016 = vunpack.c.h.b16 %v4441
        %v6017 = vunpack.c.l.b16 %v4442
        %v6018 = vunpack.c.h.b16 %v4442
        %v6019 = vunpack.c.l.b16 %v4443
        %v6020 = vunpack.c.h.b16 %v4443
        %v6021 = vunpack.c.l.b16 %v4444
        %v6022 = vunpack.c.h.b16 %v4444
        %v6023 = vunpack.c.l.b16 %v4445
        %v6024 = vunpack.c.h.b16 %v4445
        %v6025 = vunpack.c.l.b16 %v4446
        %v6026 = vunpack.c.h.b16 %v4446
        %v6027 = vunpack.c.l.b16 %v4447
        %v6028 = vunpack.c.h.b16 %v4447
        %v6029 = vunpack.c.l.b16 %v4448
        %v6030 = vunpack.c.h.b16 %v4448
        %v6031 = vunpack.c.l.b16 %v4449
        %v6032 = vunpack.c.h.b16 %v4449
        %v6033 = vunpack.c.l.b16 %v4450
        %v6034 = vunpack.c.h.b16 %v4450
        %v6035 = vunpack.c.l.b16 %v4451
        %v6036 = vunpack.c.h.b16 %v4451
        %v6037 = vunpack.c.l.b16 %v4452
        %v6038 = vunpack.c.h.b16 %v4452
        %v6039 = vunpack.c.l.b16 %v4453
        %v6040 = vunpack.c.h.b16 %v4453
        %v6041 = vunpack.c.l.b16 %v4454
        %v6042 = vunpack.c.h.b16 %v4454
        %v6043 = vunpack.c.l.b16 %v4455
        %v6044 = vunpack.c.h.b16 %v4455
        %v6045 = vunpack.c.l.b16 %v4456
        %v6046 = vunpack.c.h.b16 %v4456
        %v6047 = vunpack.c.l.b16 %v4457
        %v6048 = vunpack.c.h.b16 %v4457
        %v6049 = vunpack.c.l.b16 %v4458
        %v6050 = vunpack.c.h.b16 %v4458
        %v6051 = vunpack.c.l.b16 %v4459
        %v6052 = vunpack.c.h.b16 %v4459
        %v6053 = vunpack.c.l.b16 %v4460
        %v6054 = vunpack.c.h.b16 %v4460
        %v6055 = vunpack.c.l.b16 %v4461
        %v6056 = vunpack.c.h.b16 %v4461
        %v6057 = vunpack.c.l.b16 %v4462
        %v6058 = vunpack.c.h.b16 %v4462
        %v6059 = vunpack.c.l.b16 %v4463
        %v6060 = vunpack.c.h.b16 %v4463
        %v6061 = vunpack.c.l.b16 %v4464
        %v6062 = vunpack.c.h.b16 %v4464
        %v6063 = vunpack.c.l.b16 %v4465
        %v6064 = vunpack.c.h.b16 %v4465
        %v6065 = vunpack.c.l.b16 %v4466
        %v6066 = vunpack.c.h.b16 %v4466
        %v6067 = vunpack.c.l.b16 %v4467
        %v6068 = vunpack.c.h.b16 %v4467
        %v6069 = vunpack.c.l.b16 %v4468
        %v6070 = vunpack.c.h.b16 %v4468
        %v6071 = vunpack.c.l.b16 %v4469
        %v6072 = vunpack.c.h.b16 %v4469
        %v6073 = vunpack.c.l.b16 %v4470
        %v6074 = vunpack.c.h.b16 %v4470
        %v6075 = vunpack.c.l.b16 %v4471
        %v6076 = vunpack.c.h.b16 %v4471
        %v6077 = vunpack.c.l.b16 %v4472
        %v6078 = vunpack.c.h.b16 %v4472
        %v6079 = vunpack.c.l.b16 %v4473
        %v6080 = vunpack.c.h.b16 %v4473
        %v6081 = vunpack.c.l.b16 %v4474
        %v6082 = vunpack.c.h.b16 %v4474
        %v6083 = vunpack.c.l.b16 %v4475
        %v6084 = vunpack.c.h.b16 %v4475
        %v6085 = vunpack.c.l.b16 %v4476
        %v6086 = vunpack.c.h.b16 %v4476
        %v6087 = vpack.c.b16 %v5805, %v5799
        %v6088 = vpack.c.b16 %v5806, %v5800
        %v6089 = vpack.c.b16 %v5807, %v5801
        %v6090 = vpack.c.b16 %v5808, %v5802
        %v6091 = vpack.c.b16 %v5809, %v5803
        %v6092 = vpack.c.b16 %v5810, %v5804
        %v6093 = vpack.c.b16 %v5817, %v5811
        %v6094 = vpack.c.b16 %v5818, %v5812
        %v6095 = vpack.c.b16 %v5819, %v5813
        %v6096 = vpack.c.b16 %v5820, %v5814
        %v6097 = vpack.c.b16 %v5821, %v5815
        %v6098 = vpack.c.b16 %v5822, %v5816
        %v6099 = vpack.c.b16 %v5829, %v5823
        %v6100 = vpack.c.b16 %v5830, %v5824
        %v6101 = vpack.c.b16 %v5831, %v5825
        %v6102 = vpack.c.b16 %v5832, %v5826
        %v6103 = vpack.c.b16 %v5833, %v5827
        %v6104 = vpack.c.b16 %v5834, %v5828
        %v6105 = vpack.c.b16 %v5841, %v5835
        %v6106 = vpack.c.b16 %v5842, %v5836
        %v6107 = vpack.c.b16 %v5843, %v5837
        %v6108 = vpack.c.b16 %v5844, %v5838
        %v6109 = vpack.c.b16 %v5845, %v5839
        %v6110 = vpack.c.b16 %v5846, %v5840
        %v6111 = vpack.c.b16 %v5853, %v5847
        %v6112 = vpack.c.b16 %v5854, %v5848
        %v6113 = vpack.c.b16 %v5855, %v5849
        %v6114 = vpack.c.b16 %v5856, %v5850
        %v6115 = vpack.c.b16 %v5857, %v5851
        %v6116 = vpack.c.b16 %v5858, %v5852
        %v6117 = vpack.c.b16 %v5865, %v5859
        %v6118 = vpack.c.b16 %v5866, %v5860
        %v6119 = vpack.c.b16 %v5867, %v5861
        %v6120 = vpack.c.b16 %v5868, %v5862
        %v6121 = vpack.c.b16 %v5869, %v5863
        %v6122 = vpack.c.b16 %v5870, %v5864
        %v6123 = vpack.c.b16 %v5877, %v5871
        %v6124 = vpack.c.b16 %v5878, %v5872
        %v6125 = vpack.c.b16 %v5879, %v5873
        %v6126 = vpack.c.b16 %v5880, %v5874
        %v6127 = vpack.c.b16 %v5881, %v5875
        %v6128 = vpack.c.b16 %v5882, %v5876
        %v6129 = vpack.c.b16 %v5889, %v5883
        %v6130 = vpack.c.b16 %v5890, %v5884
        %v6131 = vpack.c.b16 %v5891, %v5885
        %v6132 = vpack.c.b16 %v5892, %v5886
        %v6133 = vpack.c.b16 %v5893, %v5887
        %v6134 = vpack.c.b16 %v5894, %v5888
        %v6135 = vpack.c.b16 %v5901, %v5895
        %v6136 = vpack.c.b16 %v5902, %v5896
        %v6137 = vpack.c.b16 %v5903, %v5897
        %v6138 = vpack.c.b16 %v5904, %v5898
        %v6139 = vpack.c.b16 %v5905, %v5899
        %v6140 = vpack.c.b16 %v5906, %v5900
        %v6141 = vpack.c.b16 %v5913, %v5907
        %v6142 = vpack.c.b16 %v5914, %v5908
        %v6143 = vpack.c.b16 %v5915, %v5909
        %v6144 = vpack.c.b16 %v5916, %v5910
        %v6145 = vpack.c.b16 %v5917, %v5911
        %v6146 = vpack.c.b16 %v5918, %v5912
        %v6147 = vpack.c.b16 %v5925, %v5919
        %v6148 = vpack.c.b16 %v5926, %v5920
        %v6149 = vpack.c.b16 %v5927, %v5921
        %v6150 = vpack.c.b16 %v5928, %v5922
        %v6151 = vpack.c.b16 %v5929, %v5923
        %v6152 = vpack.c.b16 %v5930, %v5924
        %v6153 = vpack.c.b16 %v5937, %v5931
        %v6154 = vpack.c.b16 %v5938, %v5932
        %v6155 = vpack.c.b16 %v5939, %v5933
        %v6156 = vpack.c.b16 %v5940, %v5934
        %v6157 = vpack.c.b16 %v5941, %v5935
        %v6158 = vpack.c.b16 %v5942, %v5936
        %v6159 = vpack.c.b16 %v5949, %v5943
        %v6160 = vpack.c.b16 %v5950, %v5944
        %v6161 = vpack.c.b16 %v5951, %v5945
        %v6162 = vpack.c.b16 %v5952, %v5946
        %v6163 = vpack.c.b16 %v5953, %v5947
        %v6164 = vpack.c.b16 %v5954, %v5948
        %v6165 = vpack.c.b16 %v5961, %v5955
        %v6166 = vpack.c.b16 %v5962, %v5956
        %v6167 = vpack.c.b16 %v5963, %v5957
        %v6168 = vpack.c.b16 %v5964, %v5958
        %v6169 = vpack.c.b16 %v5965, %v5959
        %v6170 = vpack.c.b16 %v5966, %v5960
        %v6171 = vpack.c.b16 %v5973, %v5967
        %v6172 = vpack.c.b16 %v5974, %v5968
        %v6173 = vpack.c.b16 %v5975, %v5969
        %v6174 = vpack.c.b16 %v5976, %v5970
        %v6175 = vpack.c.b16 %v5977, %v5971
        %v6176 = vpack.c.b16 %v5978, %v5972
        %v6177 = vpack.c.b16 %v5985, %v5979
        %v6178 = vpack.c.b16 %v5986, %v5980
        %v6179 = vpack.c.b16 %v5987, %v5981
        %v6180 = vpack.c.b16 %v5988, %v5982
        %v6181 = vpack.c.b16 %v5989, %v5983
        %v6182 = vpack.c.b16 %v5990, %v5984
        %v6183 = vpack.c.b16 %v5997, %v5991
        %v6184 = vpack.c.b16 %v5998, %v5992
        %v6185 = vpack.c.b16 %v5999, %v5993
        %v6186 = vpack.c.b16 %v6000, %v5994
        %v6187 = vpack.c.b16 %v6001, %v5995
        %v6188 = vpack.c.b16 %v6002, %v5996
        %v6189 = vpack.c.b16 %v6009, %v6003
        %v6190 = vpack.c.b16 %v6010, %v6004
        %v6191 = vpack.c.b16 %v6011, %v6005
        %v6192 = vpack.c.b16 %v6012, %v6006
        %v6193 = vpack.c.b16 %v6013, %v6007
        %v6194 = vpack.c.b16 %v6014, %v6008
        %v6195 = vpack.c.b16 %v6021, %v6015
        %v6196 = vpack.c.b16 %v6022, %v6016
        %v6197 = vpack.c.b16 %v6023, %v6017
        %v6198 = vpack.c.b16 %v6024, %v6018
        %v6199 = vpack.c.b16 %v6025, %v6019
        %v6200 = vpack.c.b16 %v6026, %v6020
        %v6201 = vpack.c.b16 %v6033, %v6027
        %v6202 = vpack.c.b16 %v6034, %v6028
        %v6203 = vpack.c.b16 %v6035, %v6029
        %v6204 = vpack.c.b16 %v6036, %v6030
        %v6205 = vpack.c.b16 %v6037, %v6031
        %v6206 = vpack.c.b16 %v6038, %v6032
        %v6207 = vpack.c.b16 %v6045, %v6039
        %v6208 = vpack.c.b16 %v6046, %v6040
        %v6209 = vpack.c.b16 %v6047, %v6041
        %v6210 = vpack.c.b16 %v6048, %v6042
        %v6211 = vpack.c.b16 %v6049, %v6043
        %v6212 = vpack.c.b16 %v6050, %v6044
        %v6213 = vpack.c.b16 %v6057, %v6051
        %v6214 = vpack.c.b16 %v6058, %v6052
        %v6215 = vpack.c.b16 %v6059, %v6053
        %v6216 = vpack.c.b16 %v6060, %v6054
        %v6217 = vpack.c.b16 %v6061, %v6055
        %v6218 = vpack.c.b16 %v6062, %v6056
        %v6219 = vpack.c.b16 %v6069, %v6063
        %v6220 = vpack.c.b16 %v6070, %v6064
        %v6221 = vpack.c.b16 %v6071, %v6065
        %v6222 = vpack.c.b16 %v6072, %v6066
        %v6223 = vpack.c.b16 %v6073, %v6067
        %v6224 = vpack.c.b16 %v6074, %v6068
        %v6225 = vpack.c.b16 %v6081, %v6075
        %v6226 = vpack.c.b16 %v6082, %v6076
        %v6227 = vpack.c.b16 %v6083, %v6077
        %v6228 = vpack.c.b16 %v6084, %v6078
        %v6229 = vpack.c.b16 %v6085, %v6079
        %v6230 = vpack.c.b16 %v6086, %v6080
        %6375 = vmatprep.subr.bf16.mxu0 %v6088
        %6376 = vmatpush1.bf16.msra.mxu0 %v6087
        %6377 = vmatprep.subr.bf16.mxu0 %v6094
        %6378 = vmatpush1.bf16.msra.mxu0 %v6093
        %6379 = vmatprep.subr.bf16.mxu0 %v6100
        %6380 = vmatpush1.bf16.msra.mxu0 %v6099
        %6381 = vmatprep.subr.bf16.mxu0 %v6106
        %6382 = vmatpush1.bf16.msra.mxu0 %v6105
        %6383 = vmatprep.subr.bf16.mxu0 %v6112
        %6384 = vmatpush1.bf16.msra.mxu0 %v6111
        %6385 = vmatprep.subr.bf16.mxu0 %v6118
        %6386 = vmatpush1.bf16.msra.mxu0 %v6117
        %6387 = vmatprep.subr.bf16.mxu0 %v6124
        %6388 = vmatpush1.bf16.msra.mxu0 %v6123
        %6389 = vmatprep.subr.bf16.mxu0 %v6130
        %6390 = vmatpush1.bf16.msra.mxu0 %v6129
        %6391 = vmatprep.subr.bf16.mxu0 %v6136
        %6392 = vmatpush1.bf16.msra.mxu0 %v6135
        %6393 = vmatprep.subr.bf16.mxu0 %v6142
        %6394 = vmatpush1.bf16.msra.mxu0 %v6141
        %6395 = vmatprep.subr.bf16.mxu0 %v6148
        %6396 = vmatpush1.bf16.msra.mxu0 %v6147
        %6397 = vmatprep.subr.bf16.mxu0 %v6154
        %6398 = vmatpush1.bf16.msra.mxu0 %v6153
        %6399 = vmatprep.subr.bf16.mxu0 %v6160
        %6400 = vmatpush1.bf16.msra.mxu0 %v6159
        %6401 = vmatprep.subr.bf16.mxu0 %v6166
        %6402 = vmatpush1.bf16.msra.mxu0 %v6165
        %6403 = vmatprep.subr.bf16.mxu0 %v6172
        %6404 = vmatpush1.bf16.msra.mxu0 %v6171
        %6405 = vmatprep.subr.bf16.mxu0 %v6178
        %6406 = vmatpush1.bf16.msra.mxu0 %v6177
        %6407 = vmatprep.mubr.bf16.mxu0 %v5634
        %6408 = vmatmul.mubr.bf16.gmra.mrb[0].mxu0 %v5617
        %v6409 = vpop.f32.mrb[0].mxu0
        %v6410 = vadd.f32 %v5420, %v6409
        %v6411 = vpop.f32.mrb[0].mxu0
        %v6412 = vadd.f32 %v5422, %v6411
        %v6413 = vpop.f32.mrb[0].mxu0
        %v6414 = vadd.f32 %v5424, %v6413
        %v6415 = vpop.f32.mrb[0].mxu0
        %v6416 = vadd.f32 %v5426, %v6415
        %6417 = vdwg.mxu0
        %6418 = vmatprep.subr.bf16.mxu0 %v6184
        %6419 = vmatpush1.bf16.msra.mxu0 %v6183
        %6420 = vmatprep.subr.bf16.mxu0 %v6190
        %6421 = vmatpush1.bf16.msra.mxu0 %v6189
        %6422 = vmatprep.subr.bf16.mxu0 %v6196
        %6423 = vmatpush1.bf16.msra.mxu0 %v6195
        %6424 = vmatprep.subr.bf16.mxu0 %v6202
        %6425 = vmatpush1.bf16.msra.mxu0 %v6201
        %6426 = vmatprep.subr.bf16.mxu0 %v6208
        %6427 = vmatpush1.bf16.msra.mxu0 %v6207
        %6428 = vmatprep.subr.bf16.mxu0 %v6214
        %6429 = vmatpush1.bf16.msra.mxu0 %v6213
        %6430 = vmatprep.subr.bf16.mxu0 %v6220
        %6431 = vmatpush1.bf16.msra.mxu0 %v6219
        %6432 = vmatprep.subr.bf16.mxu0 %v6226
        %6433 = vmatpush1.bf16.msra.mxu0 %v6225
        %6434 = vmatprep.subr.bf16.mxu0 0
        %6435 = vmatpush1.bf16.msra.mxu0 0
        %6436 = vmatprep.subr.bf16.mxu0 0
        %6437 = vmatpush1.bf16.msra.mxu0 0
        %6438 = vmatprep.subr.bf16.mxu0 0
        %6439 = vmatpush1.bf16.msra.mxu0 0
        %6440 = vmatprep.subr.bf16.mxu0 0
        %6441 = vmatpush1.bf16.msra.mxu0 0
        %6442 = vmatprep.subr.bf16.mxu0 0
        %6443 = vmatpush1.bf16.msra.mxu0 0
        %6444 = vmatprep.subr.bf16.mxu0 0
        %6445 = vmatpush1.bf16.msra.mxu0 0
        %6446 = vmatprep.subr.bf16.mxu0 0
        %6447 = vmatpush1.bf16.msra.mxu0 0
        %6448 = vmatprep.subr.bf16.mxu0 0
        %6449 = vmatpush1.bf16.msra.mxu0 0
        %6450 = vmatprep.mubr.bf16.mxu0 0
        %6451 = vmatmul.mubr.bf16.gmra.mrb[0].mxu0 %v5651
        %v6452 = vpop.f32.mrb[0].mxu0
        %v6453 = vadd.f32 %v6410, %v6452
        %v6454 = vpop.f32.mrb[0].mxu0
        %v6455 = vadd.f32 %v6412, %v6454
        %v6456 = vpop.f32.mrb[0].mxu0
        %v6457 = vadd.f32 %v6414, %v6456
        %v6458 = vpop.f32.mrb[0].mxu0
        %v6459 = vadd.f32 %v6416, %v6458
        %6460 = vdwg.mxu0
        %6461 = vmatprep.subr.bf16.mxu0 %v6090
        %6462 = vmatpush1.bf16.msra.mxu0 %v6089
        %6463 = vmatprep.subr.bf16.mxu0 %v6096
        %6464 = vmatpush1.bf16.msra.mxu0 %v6095
        %6465 = vmatprep.subr.bf16.mxu0 %v6102
        %6466 = vmatpush1.bf16.msra.mxu0 %v6101
        %6467 = vmatprep.subr.bf16.mxu0 %v6108
        %6468 = vmatpush1.bf16.msra.mxu0 %v6107
        %6469 = vmatprep.subr.bf16.mxu0 %v6114
        %6470 = vmatpush1.bf16.msra.mxu0 %v6113
        %6471 = vmatprep.subr.bf16.mxu0 %v6120
        %6472 = vmatpush1.bf16.msra.mxu0 %v6119
        %6473 = vmatprep.subr.bf16.mxu0 %v6126
        %6474 = vmatpush1.bf16.msra.mxu0 %v6125
        %6475 = vmatprep.subr.bf16.mxu0 %v6132
        %6476 = vmatpush1.bf16.msra.mxu0 %v6131
        %6477 = vmatprep.subr.bf16.mxu0 %v6138
        %6478 = vmatpush1.bf16.msra.mxu0 %v6137
        %6479 = vmatprep.subr.bf16.mxu0 %v6144
        %6480 = vmatpush1.bf16.msra.mxu0 %v6143
        %6481 = vmatprep.subr.bf16.mxu0 %v6150
        %6482 = vmatpush1.bf16.msra.mxu0 %v6149
        %6483 = vmatprep.subr.bf16.mxu0 %v6156
        %6484 = vmatpush1.bf16.msra.mxu0 %v6155
        %6485 = vmatprep.subr.bf16.mxu0 %v6162
        %6486 = vmatpush1.bf16.msra.mxu0 %v6161
        %6487 = vmatprep.subr.bf16.mxu0 %v6168
        %6488 = vmatpush1.bf16.msra.mxu0 %v6167
        %6489 = vmatprep.subr.bf16.mxu0 %v6174
        %6490 = vmatpush1.bf16.msra.mxu0 %v6173
        %6491 = vmatprep.subr.bf16.mxu0 %v6180
        %6492 = vmatpush1.bf16.msra.mxu0 %v6179
        %6493 = vmatprep.mubr.bf16.mxu0 %v5634
        %6494 = vmatmul.mubr.bf16.gmra.mrb[0].mxu0 %v5617
        %v6495 = vpop.f32.mrb[0].mxu0
        %v6496 = vadd.f32 %v5506, %v6495
        %v6497 = vpop.f32.mrb[0].mxu0
        %v6498 = vadd.f32 %v5508, %v6497
        %v6499 = vpop.f32.mrb[0].mxu0
        %v6500 = vadd.f32 %v5510, %v6499
        %v6501 = vpop.f32.mrb[0].mxu0
        %v6502 = vadd.f32 %v5512, %v6501
        %6503 = vdwg.mxu0
        %6504 = vmatprep.subr.bf16.mxu0 %v6186
        %6505 = vmatpush1.bf16.msra.mxu0 %v6185
        %6506 = vmatprep.subr.bf16.mxu0 %v6192
        %6507 = vmatpush1.bf16.msra.mxu0 %v6191
        %6508 = vmatprep.subr.bf16.mxu0 %v6198
        %6509 = vmatpush1.bf16.msra.mxu0 %v6197
        %6510 = vmatprep.subr.bf16.mxu0 %v6204
        %6511 = vmatpush1.bf16.msra.mxu0 %v6203
        %6512 = vmatprep.subr.bf16.mxu0 %v6210
        %6513 = vmatpush1.bf16.msra.mxu0 %v6209
        %6514 = vmatprep.subr.bf16.mxu0 %v6216
        %6515 = vmatpush1.bf16.msra.mxu0 %v6215
        %6516 = vmatprep.subr.bf16.mxu0 %v6222
        %6517 = vmatpush1.bf16.msra.mxu0 %v6221
        %6518 = vmatprep.subr.bf16.mxu0 %v6228
        %6519 = vmatpush1.bf16.msra.mxu0 %v6227
        %6520 = vmatprep.subr.bf16.mxu0 0
        %6521 = vmatpush1.bf16.msra.mxu0 0
        %6522 = vmatprep.subr.bf16.mxu0 0
        %6523 = vmatpush1.bf16.msra.mxu0 0
        %6524 = vmatprep.subr.bf16.mxu0 0
        %6525 = vmatpush1.bf16.msra.mxu0 0
        %6526 = vmatprep.subr.bf16.mxu0 0
        %6527 = vmatpush1.bf16.msra.mxu0 0
        %6528 = vmatprep.subr.bf16.mxu0 0
        %6529 = vmatpush1.bf16.msra.mxu0 0
        %6530 = vmatprep.subr.bf16.mxu0 0
        %6531 = vmatpush1.bf16.msra.mxu0 0
        %6532 = vmatprep.subr.bf16.mxu0 0
        %6533 = vmatpush1.bf16.msra.mxu0 0
        %6534 = vmatprep.subr.bf16.mxu0 0
        %6535 = vmatpush1.bf16.msra.mxu0 0
        %6536 = vmatprep.mubr.bf16.mxu0 0
        %6537 = vmatmul.mubr.bf16.gmra.mrb[0].mxu0 %v5651
        %v6538 = vpop.f32.mrb[0].mxu0
        %v6539 = vadd.f32 %v6496, %v6538
        %v6540 = vpop.f32.mrb[0].mxu0
        %v6541 = vadd.f32 %v6498, %v6540
        %v6542 = vpop.f32.mrb[0].mxu0
        %v6543 = vadd.f32 %v6500, %v6542
        %v6544 = vpop.f32.mrb[0].mxu0
        %v6545 = vadd.f32 %v6502, %v6544
        %6546 = vdwg.mxu0
        %6547 = vmatprep.subr.bf16.mxu0 %v6092
        %6548 = vmatpush1.bf16.msra.mxu0 %v6091
        %6549 = vmatprep.subr.bf16.mxu0 %v6098
        %6550 = vmatpush1.bf16.msra.mxu0 %v6097
        %6551 = vmatprep.subr.bf16.mxu0 %v6104
        %6552 = vmatpush1.bf16.msra.mxu0 %v6103
        %6553 = vmatprep.subr.bf16.mxu0 %v6110
        %6554 = vmatpush1.bf16.msra.mxu0 %v6109
        %6555 = vmatprep.subr.bf16.mxu0 %v6116
        %6556 = vmatpush1.bf16.msra.mxu0 %v6115
        %6557 = vmatprep.subr.bf16.mxu0 %v6122
        %6558 = vmatpush1.bf16.msra.mxu0 %v6121
        %6559 = vmatprep.subr.bf16.mxu0 %v6128
        %6560 = vmatpush1.bf16.msra.mxu0 %v6127
        %6561 = vmatprep.subr.bf16.mxu0 %v6134
        %6562 = vmatpush1.bf16.msra.mxu0 %v6133
        %6563 = vmatprep.subr.bf16.mxu0 %v6140
        %6564 = vmatpush1.bf16.msra.mxu0 %v6139
        %6565 = vmatprep.subr.bf16.mxu0 %v6146
        %6566 = vmatpush1.bf16.msra.mxu0 %v6145
        %6567 = vmatprep.subr.bf16.mxu0 %v6152
        %6568 = vmatpush1.bf16.msra.mxu0 %v6151
        %6569 = vmatprep.subr.bf16.mxu0 %v6158
        %6570 = vmatpush1.bf16.msra.mxu0 %v6157
        %6571 = vmatprep.subr.bf16.mxu0 %v6164
        %6572 = vmatpush1.bf16.msra.mxu0 %v6163
        %6573 = vmatprep.subr.bf16.mxu0 %v6170
        %6574 = vmatpush1.bf16.msra.mxu0 %v6169
        %6575 = vmatprep.subr.bf16.mxu0 %v6176
        %6576 = vmatpush1.bf16.msra.mxu0 %v6175
        %6577 = vmatprep.subr.bf16.mxu0 %v6182
        %6578 = vmatpush1.bf16.msra.mxu0 %v6181
        %6579 = vmatprep.mubr.bf16.mxu0 %v5634
        %6580 = vmatmul.mubr.bf16.gmra.mrb[0].mxu0 %v5617
        %v6581 = vpop.f32.mrb[0].mxu0
        %v6582 = vadd.f32 %v5592, %v6581
        %v6583 = vpop.f32.mrb[0].mxu0
        %v6584 = vadd.f32 %v5594, %v6583
        %v6585 = vpop.f32.mrb[0].mxu0
        %v6586 = vadd.f32 %v5596, %v6585
        %v6587 = vpop.f32.mrb[0].mxu0
        %v6588 = vadd.f32 %v5598, %v6587
        %6589 = vdwg.mxu0
        %6590 = vmatprep.subr.bf16.mxu0 %v6188
        %6591 = vmatpush1.bf16.msra.mxu0 %v6187
        %6592 = vmatprep.subr.bf16.mxu0 %v6194
        %6593 = vmatpush1.bf16.msra.mxu0 %v6193
        %6594 = vmatprep.subr.bf16.mxu0 %v6200
        %6595 = vmatpush1.bf16.msra.mxu0 %v6199
        %6596 = vmatprep.subr.bf16.mxu0 %v6206
        %6597 = vmatpush1.bf16.msra.mxu0 %v6205
        %6598 = vmatprep.subr.bf16.mxu0 %v6212
        %6599 = vmatpush1.bf16.msra.mxu0 %v6211
        %6600 = vmatprep.subr.bf16.mxu0 %v6218
        %6601 = vmatpush1.bf16.msra.mxu0 %v6217
        %6602 = vmatprep.subr.bf16.mxu0 %v6224
        %6603 = vmatpush1.bf16.msra.mxu0 %v6223
        %6604 = vmatprep.subr.bf16.mxu0 %v6230
        %6605 = vmatpush1.bf16.msra.mxu0 %v6229
        %6606 = vmatprep.subr.bf16.mxu0 0
        %6607 = vmatpush1.bf16.msra.mxu0 0
        %6608 = vmatprep.subr.bf16.mxu0 0
        %6609 = vmatpush1.bf16.msra.mxu0 0
        %6610 = vmatprep.subr.bf16.mxu0 0
        %6611 = vmatpush1.bf16.msra.mxu0 0
        %6612 = vmatprep.subr.bf16.mxu0 0
        %6613 = vmatpush1.bf16.msra.mxu0 0
        %6614 = vmatprep.subr.bf16.mxu0 0
        %6615 = vmatpush1.bf16.msra.mxu0 0
        %6616 = vmatprep.subr.bf16.mxu0 0
        %6617 = vmatpush1.bf16.msra.mxu0 0
        %6618 = vmatprep.subr.bf16.mxu0 0
        %6619 = vmatpush1.bf16.msra.mxu0 0
        %6620 = vmatprep.subr.bf16.mxu0 0
        %6621 = vmatpush1.bf16.msra.mxu0 0
        %6622 = vmatprep.mubr.bf16.mxu0 0
        %6623 = vmatmul.mubr.bf16.gmra.mrb[0].mxu0 %v5651
        %v6624 = vpop.f32.mrb[0].mxu0
        %v6625 = vadd.f32 %v6582, %v6624
        %v6626 = vpop.f32.mrb[0].mxu0
        %v6627 = vadd.f32 %v6584, %v6626
        %v6628 = vpop.f32.mrb[0].mxu0
        %v6629 = vadd.f32 %v6586, %v6628
        %v6630 = vpop.f32.mrb[0].mxu0
        %v6631 = vadd.f32 %v6588, %v6630
        %6632 = vdwg.mxu0
        %s6633 = scalar_lea.vmem [#allocation7], 2304
        %v6634 = vld [vmem:[%s6633] sm:$0xff]
        %v6635 = vld [vmem:[%s6633 + $0x8] sm:$0xff]
        %v6636 = vld [vmem:[%s6633 + $0x10] sm:$0xff]
        %v6637 = vld [vmem:[%s6633 + $0x18] sm:$0xff]
        %v6638 = vld [vmem:[%s6633 + $0x20] sm:$0xff]
        %v6639 = vld [vmem:[%s6633 + $0x28] sm:$0xff]
        %v6640 = vld [vmem:[%s6633 + $0x30] sm:$0xff]
        %v6641 = vld [vmem:[%s6633 + $0x38] sm:$0xff]
        %v6642 = vld [vmem:[%s6633 + $0x40] sm:$0xff]
        %v6643 = vld [vmem:[%s6633 + $0x48] sm:$0xff]
        %v6644 = vld [vmem:[%s6633 + $0x50] sm:$0xff]
        %v6645 = vld [vmem:[%s6633 + $0x58] sm:$0xff]
        %v6646 = vld [vmem:[%s6633 + $0x60] sm:$0xff]
        %v6647 = vld [vmem:[%s6633 + $0x68] sm:$0xff]
        %v6648 = vld [vmem:[%s6633 + $0x70] sm:$0xff]
        %v6649 = vld [vmem:[%s6633 + $0x78] sm:$0xff]
        %v6650 = vld [vmem:[%s6633 + $0x80] sm:$0xff]
        %v6651 = vld [vmem:[%s6633 + $0x88] sm:$0xff]
        %v6652 = vld [vmem:[%s6633 + $0x90] sm:$0xff]
        %v6653 = vld [vmem:[%s6633 + $0x98] sm:$0xff]
        %v6654 = vld [vmem:[%s6633 + $0xa0] sm:$0xff]
        %v6655 = vld [vmem:[%s6633 + $0xa8] sm:$0xff]
        %v6656 = vld [vmem:[%s6633 + $0xb0] sm:$0xff]
        %v6657 = vld [vmem:[%s6633 + $0xb8] sm:$0xff]
        %v6658 = vld [vmem:[%s6633 + $0xc0] sm:$0xff]
        %v6659 = vld [vmem:[%s6633 + $0xc8] sm:$0xff]
        %v6660 = vld [vmem:[%s6633 + $0xd0] sm:$0xff]
        %v6661 = vld [vmem:[%s6633 + $0xd8] sm:$0xff]
        %v6662 = vld [vmem:[%s6633 + $0xe0] sm:$0xff]
        %v6663 = vld [vmem:[%s6633 + $0xe8] sm:$0xff]
        %v6664 = vld [vmem:[%s6633 + $0xf0] sm:$0xff]
        %v6665 = vld [vmem:[%s6633 + $0xf8] sm:$0xff]
        %v6666 = vld [vmem:[%s6633 + $0x100] sm:$0xff]
        %v6667 = vld [vmem:[%s6633 + $0x108] sm:$0xff]
        %v6668 = vld [vmem:[%s6633 + $0x110] sm:$0xff]
        %v6669 = vld [vmem:[%s6633 + $0x118] sm:$0xff]
        %v6670 = vld [vmem:[%s6633 + $0x120] sm:$0xff]
        %v6671 = vld [vmem:[%s6633 + $0x128] sm:$0xff]
        %v6672 = vld [vmem:[%s6633 + $0x130] sm:$0xff]
        %v6673 = vld [vmem:[%s6633 + $0x138] sm:$0xff]
        %v6674 = vld [vmem:[%s6633 + $0x140] sm:$0xff]
        %v6675 = vld [vmem:[%s6633 + $0x148] sm:$0xff]
        %v6676 = vld [vmem:[%s6633 + $0x150] sm:$0xff]
        %v6677 = vld [vmem:[%s6633 + $0x158] sm:$0xff]
        %v6678 = vld [vmem:[%s6633 + $0x160] sm:$0xff]
        %v6679 = vld [vmem:[%s6633 + $0x168] sm:$0xff]
        %v6680 = vld [vmem:[%s6633 + $0x170] sm:$0xff]
        %v6681 = vld [vmem:[%s6633 + $0x178] sm:$0xff]
        %v6682 = vld [vmem:[%s6633 + $0x180] sm:$0xff]
        %v6683 = vld [vmem:[%s6633 + $0x188] sm:$0xff]
        %v6684 = vld [vmem:[%s6633 + $0x190] sm:$0xff]
        %v6685 = vld [vmem:[%s6633 + $0x198] sm:$0xff]
        %v6686 = vld [vmem:[%s6633 + $0x1a0] sm:$0xff]
        %v6687 = vld [vmem:[%s6633 + $0x1a8] sm:$0xff]
        %v6688 = vld [vmem:[%s6633 + $0x1b0] sm:$0xff]
        %v6689 = vld [vmem:[%s6633 + $0x1b8] sm:$0xff]
        %v6690 = vld [vmem:[%s6633 + $0x1c0] sm:$0xff]
        %v6691 = vld [vmem:[%s6633 + $0x1c8] sm:$0xff]
        %v6692 = vld [vmem:[%s6633 + $0x1d0] sm:$0xff]
        %v6693 = vld [vmem:[%s6633 + $0x1d8] sm:$0xff]
        %v6694 = vld [vmem:[%s6633 + $0x1e0] sm:$0xff]
        %v6695 = vld [vmem:[%s6633 + $0x1e8] sm:$0xff]
        %v6696 = vld [vmem:[%s6633 + $0x1f0] sm:$0xff]
        %v6697 = vld [vmem:[%s6633 + $0x1f8] sm:$0xff]
        %v6698 = vld [vmem:[%s6633 + $0x200] sm:$0xff]
        %v6699 = vld [vmem:[%s6633 + $0x208] sm:$0xff]
        %v6700 = vld [vmem:[%s6633 + $0x210] sm:$0xff]
        %v6701 = vld [vmem:[%s6633 + $0x218] sm:$0xff]
        %v6702 = vld [vmem:[%s6633 + $0x220] sm:$0xff]
        %v6703 = vld [vmem:[%s6633 + $0x228] sm:$0xff]
        %v6704 = vld [vmem:[%s6633 + $0x230] sm:$0xff]
        %v6705 = vld [vmem:[%s6633 + $0x238] sm:$0xff]
        %v6706 = vld [vmem:[%s6633 + $0x240] sm:$0xff]
        %v6707 = vld [vmem:[%s6633 + $0x248] sm:$0xff]
        %v6708 = vld [vmem:[%s6633 + $0x250] sm:$0xff]
        %v6709 = vld [vmem:[%s6633 + $0x258] sm:$0xff]
        %v6710 = vld [vmem:[%s6633 + $0x260] sm:$0xff]
        %v6711 = vld [vmem:[%s6633 + $0x268] sm:$0xff]
        %v6712 = vld [vmem:[%s6633 + $0x270] sm:$0xff]
        %v6713 = vld [vmem:[%s6633 + $0x278] sm:$0xff]
        %v6714 = vld [vmem:[%s6633 + $0x280] sm:$0xff]
        %v6715 = vld [vmem:[%s6633 + $0x288] sm:$0xff]
        %v6716 = vld [vmem:[%s6633 + $0x290] sm:$0xff]
        %v6717 = vld [vmem:[%s6633 + $0x298] sm:$0xff]
        %v6718 = vld [vmem:[%s6633 + $0x2a0] sm:$0xff]
        %v6719 = vld [vmem:[%s6633 + $0x2a8] sm:$0xff]
        %v6720 = vld [vmem:[%s6633 + $0x2b0] sm:$0xff]
        %v6721 = vld [vmem:[%s6633 + $0x2b8] sm:$0xff]
        %v6722 = vld [vmem:[%s6633 + $0x2c0] sm:$0xff]
        %v6723 = vld [vmem:[%s6633 + $0x2c8] sm:$0xff]
        %v6724 = vld [vmem:[%s6633 + $0x2d0] sm:$0xff]
        %v6725 = vld [vmem:[%s6633 + $0x2d8] sm:$0xff]
        %v6726 = vld [vmem:[%s6633 + $0x2e0] sm:$0xff]
        %v6727 = vld [vmem:[%s6633 + $0x2e8] sm:$0xff]
        %v6728 = vld [vmem:[%s6633 + $0x2f0] sm:$0xff]
        %v6729 = vld [vmem:[%s6633 + $0x2f8] sm:$0xff]
        %v6730 = vld [vmem:[%s6633 + $0x300] sm:$0xff]
        %v6731 = vld [vmem:[%s6633 + $0x308] sm:$0xff]
        %v6732 = vld [vmem:[%s6633 + $0x310] sm:$0xff]
        %v6733 = vld [vmem:[%s6633 + $0x318] sm:$0xff]
        %v6734 = vld [vmem:[%s6633 + $0x320] sm:$0xff]
        %v6735 = vld [vmem:[%s6633 + $0x328] sm:$0xff]
        %v6736 = vld [vmem:[%s6633 + $0x330] sm:$0xff]
        %v6737 = vld [vmem:[%s6633 + $0x338] sm:$0xff]
        %v6738 = vld [vmem:[%s6633 + $0x340] sm:$0xff]
        %v6739 = vld [vmem:[%s6633 + $0x348] sm:$0xff]
        %v6740 = vld [vmem:[%s6633 + $0x350] sm:$0xff]
        %v6741 = vld [vmem:[%s6633 + $0x358] sm:$0xff]
        %v6742 = vld [vmem:[%s6633 + $0x360] sm:$0xff]
        %v6743 = vld [vmem:[%s6633 + $0x368] sm:$0xff]
        %v6744 = vld [vmem:[%s6633 + $0x370] sm:$0xff]
        %v6745 = vld [vmem:[%s6633 + $0x378] sm:$0xff]
        %v6746 = vld [vmem:[%s6633 + $0x380] sm:$0xff]
        %v6747 = vld [vmem:[%s6633 + $0x388] sm:$0xff]
        %v6748 = vld [vmem:[%s6633 + $0x390] sm:$0xff]
        %v6749 = vld [vmem:[%s6633 + $0x398] sm:$0xff]
        %v6750 = vld [vmem:[%s6633 + $0x3a0] sm:$0xff]
        %v6751 = vld [vmem:[%s6633 + $0x3a8] sm:$0xff]
        %v6752 = vld [vmem:[%s6633 + $0x3b0] sm:$0xff]
        %v6753 = vld [vmem:[%s6633 + $0x3b8] sm:$0xff]
        %v6754 = vld [vmem:[%s6633 + $0x3c0] sm:$0xff]
        %v6755 = vld [vmem:[%s6633 + $0x3c8] sm:$0xff]
        %v6756 = vld [vmem:[%s6633 + $0x3d0] sm:$0xff]
        %v6757 = vld [vmem:[%s6633 + $0x3d8] sm:$0xff]
        %v6758 = vld [vmem:[%s6633 + $0x3e0] sm:$0xff]
        %v6759 = vld [vmem:[%s6633 + $0x3e8] sm:$0xff]
        %v6760 = vld [vmem:[%s6633 + $0x3f0] sm:$0xff]
        %v6761 = vld [vmem:[%s6633 + $0x3f8] sm:$0xff]
        %v6762 = vld [vmem:[%s6633 + $0x400] sm:$0xff]
        %v6763 = vld [vmem:[%s6633 + $0x408] sm:$0xff]
        %v6764 = vld [vmem:[%s6633 + $0x410] sm:$0xff]
        %v6765 = vld [vmem:[%s6633 + $0x418] sm:$0xff]
        %v6766 = vld [vmem:[%s6633 + $0x420] sm:$0xff]
        %v6767 = vld [vmem:[%s6633 + $0x428] sm:$0xff]
        %v6768 = vld [vmem:[%s6633 + $0x430] sm:$0xff]
        %v6769 = vld [vmem:[%s6633 + $0x438] sm:$0xff]
        %v6770 = vld [vmem:[%s6633 + $0x440] sm:$0xff]
        %v6771 = vld [vmem:[%s6633 + $0x448] sm:$0xff]
        %v6772 = vld [vmem:[%s6633 + $0x450] sm:$0xff]
        %v6773 = vld [vmem:[%s6633 + $0x458] sm:$0xff]
        %v6774 = vld [vmem:[%s6633 + $0x460] sm:$0xff]
        %v6775 = vld [vmem:[%s6633 + $0x468] sm:$0xff]
        %v6776 = vld [vmem:[%s6633 + $0x470] sm:$0xff]
        %v6777 = vld [vmem:[%s6633 + $0x478] sm:$0xff]
        %v6922 = vunpack.c.l.b16 %v6634
        %v6923 = vunpack.c.h.b16 %v6634
        %v6924 = vunpack.c.l.b16 %v6635
        %v6925 = vunpack.c.h.b16 %v6635
        %v6926 = vunpack.c.l.b16 %v6636
        %v6927 = vunpack.c.h.b16 %v6636
        %v6928 = vunpack.c.l.b16 %v6637
        %v6929 = vunpack.c.h.b16 %v6637
        %v6930 = vunpack.c.l.b16 %v6638
        %v6931 = vunpack.c.h.b16 %v6638
        %v6932 = vunpack.c.l.b16 %v6639
        %v6933 = vunpack.c.h.b16 %v6639
        %v6934 = vunpack.c.l.b16 %v6640
        %v6935 = vunpack.c.h.b16 %v6640
        %v6936 = vunpack.c.l.b16 %v6641
        %v6937 = vunpack.c.h.b16 %v6641
        %v6938 = vunpack.c.l.b16 %v6642
        %v6939 = vunpack.c.h.b16 %v6642
        %v6940 = vunpack.c.l.b16 %v6643
        %v6941 = vunpack.c.h.b16 %v6643
        %v6942 = vunpack.c.l.b16 %v6644
        %v6943 = vunpack.c.h.b16 %v6644
        %v6944 = vunpack.c.l.b16 %v6645
        %v6945 = vunpack.c.h.b16 %v6645
        %v6946 = vunpack.c.l.b16 %v6646
        %v6947 = vunpack.c.h.b16 %v6646
        %v6948 = vunpack.c.l.b16 %v6647
        %v6949 = vunpack.c.h.b16 %v6647
        %v6950 = vunpack.c.l.b16 %v6648
        %v6951 = vunpack.c.h.b16 %v6648
        %v6952 = vunpack.c.l.b16 %v6649
        %v6953 = vunpack.c.h.b16 %v6649
        %v6954 = vunpack.c.l.b16 %v6650
        %v6955 = vunpack.c.h.b16 %v6650
        %v6956 = vunpack.c.l.b16 %v6651
        %v6957 = vunpack.c.h.b16 %v6651
        %v6958 = vunpack.c.l.b16 %v6652
        %v6959 = vunpack.c.h.b16 %v6652
        %v6960 = vunpack.c.l.b16 %v6653
        %v6961 = vunpack.c.h.b16 %v6653
        %v6962 = vunpack.c.l.b16 %v6654
        %v6963 = vunpack.c.h.b16 %v6654
        %v6964 = vunpack.c.l.b16 %v6655
        %v6965 = vunpack.c.h.b16 %v6655
        %v6966 = vunpack.c.l.b16 %v6656
        %v6967 = vunpack.c.h.b16 %v6656
        %v6968 = vunpack.c.l.b16 %v6657
        %v6969 = vunpack.c.h.b16 %v6657
        %v6970 = vunpack.c.l.b16 %v6658
        %v6971 = vunpack.c.h.b16 %v6658
        %v6972 = vunpack.c.l.b16 %v6659
        %v6973 = vunpack.c.h.b16 %v6659
        %v6974 = vunpack.c.l.b16 %v6660
        %v6975 = vunpack.c.h.b16 %v6660
        %v6976 = vunpack.c.l.b16 %v6661
        %v6977 = vunpack.c.h.b16 %v6661
        %v6978 = vunpack.c.l.b16 %v6662
        %v6979 = vunpack.c.h.b16 %v6662
        %v6980 = vunpack.c.l.b16 %v6663
        %v6981 = vunpack.c.h.b16 %v6663
        %v6982 = vunpack.c.l.b16 %v6664
        %v6983 = vunpack.c.h.b16 %v6664
        %v6984 = vunpack.c.l.b16 %v6665
        %v6985 = vunpack.c.h.b16 %v6665
        %v6986 = vunpack.c.l.b16 %v6666
        %v6987 = vunpack.c.h.b16 %v6666
        %v6988 = vunpack.c.l.b16 %v6667
        %v6989 = vunpack.c.h.b16 %v6667
        %v6990 = vunpack.c.l.b16 %v6668
        %v6991 = vunpack.c.h.b16 %v6668
        %v6992 = vunpack.c.l.b16 %v6669
        %v6993 = vunpack.c.h.b16 %v6669
        %v6994 = vunpack.c.l.b16 %v6670
        %v6995 = vunpack.c.h.b16 %v6670
        %v6996 = vunpack.c.l.b16 %v6671
        %v6997 = vunpack.c.h.b16 %v6671
        %v6998 = vunpack.c.l.b16 %v6672
        %v6999 = vunpack.c.h.b16 %v6672
        %v7000 = vunpack.c.l.b16 %v6673
        %v7001 = vunpack.c.h.b16 %v6673
        %v7002 = vunpack.c.l.b16 %v6674
        %v7003 = vunpack.c.h.b16 %v6674
        %v7004 = vunpack.c.l.b16 %v6675
        %v7005 = vunpack.c.h.b16 %v6675
        %v7006 = vunpack.c.l.b16 %v6676
        %v7007 = vunpack.c.h.b16 %v6676
        %v7008 = vunpack.c.l.b16 %v6677
        %v7009 = vunpack.c.h.b16 %v6677
        %v7010 = vunpack.c.l.b16 %v6678
        %v7011 = vunpack.c.h.b16 %v6678
        %v7012 = vunpack.c.l.b16 %v6679
        %v7013 = vunpack.c.h.b16 %v6679
        %v7014 = vunpack.c.l.b16 %v6680
        %v7015 = vunpack.c.h.b16 %v6680
        %v7016 = vunpack.c.l.b16 %v6681
        %v7017 = vunpack.c.h.b16 %v6681
        %v7018 = vunpack.c.l.b16 %v6682
        %v7019 = vunpack.c.h.b16 %v6682
        %v7020 = vunpack.c.l.b16 %v6683
        %v7021 = vunpack.c.h.b16 %v6683
        %v7022 = vunpack.c.l.b16 %v6684
        %v7023 = vunpack.c.h.b16 %v6684
        %v7024 = vunpack.c.l.b16 %v6685
        %v7025 = vunpack.c.h.b16 %v6685
        %v7026 = vunpack.c.l.b16 %v6686
        %v7027 = vunpack.c.h.b16 %v6686
        %v7028 = vunpack.c.l.b16 %v6687
        %v7029 = vunpack.c.h.b16 %v6687
        %v7030 = vunpack.c.l.b16 %v6688
        %v7031 = vunpack.c.h.b16 %v6688
        %v7032 = vunpack.c.l.b16 %v6689
        %v7033 = vunpack.c.h.b16 %v6689
        %v7034 = vunpack.c.l.b16 %v6690
        %v7035 = vunpack.c.h.b16 %v6690
        %v7036 = vunpack.c.l.b16 %v6691
        %v7037 = vunpack.c.h.b16 %v6691
        %v7038 = vunpack.c.l.b16 %v6692
        %v7039 = vunpack.c.h.b16 %v6692
        %v7040 = vunpack.c.l.b16 %v6693
        %v7041 = vunpack.c.h.b16 %v6693
        %v7042 = vunpack.c.l.b16 %v6694
        %v7043 = vunpack.c.h.b16 %v6694
        %v7044 = vunpack.c.l.b16 %v6695
        %v7045 = vunpack.c.h.b16 %v6695
        %v7046 = vunpack.c.l.b16 %v6696
        %v7047 = vunpack.c.h.b16 %v6696
        %v7048 = vunpack.c.l.b16 %v6697
        %v7049 = vunpack.c.h.b16 %v6697
        %v7050 = vunpack.c.l.b16 %v6698
        %v7051 = vunpack.c.h.b16 %v6698
        %v7052 = vunpack.c.l.b16 %v6699
        %v7053 = vunpack.c.h.b16 %v6699
        %v7054 = vunpack.c.l.b16 %v6700
        %v7055 = vunpack.c.h.b16 %v6700
        %v7056 = vunpack.c.l.b16 %v6701
        %v7057 = vunpack.c.h.b16 %v6701
        %v7058 = vunpack.c.l.b16 %v6702
        %v7059 = vunpack.c.h.b16 %v6702
        %v7060 = vunpack.c.l.b16 %v6703
        %v7061 = vunpack.c.h.b16 %v6703
        %v7062 = vunpack.c.l.b16 %v6704
        %v7063 = vunpack.c.h.b16 %v6704
        %v7064 = vunpack.c.l.b16 %v6705
        %v7065 = vunpack.c.h.b16 %v6705
        %v7066 = vunpack.c.l.b16 %v6706
        %v7067 = vunpack.c.h.b16 %v6706
        %v7068 = vunpack.c.l.b16 %v6707
        %v7069 = vunpack.c.h.b16 %v6707
        %v7070 = vunpack.c.l.b16 %v6708
        %v7071 = vunpack.c.h.b16 %v6708
        %v7072 = vunpack.c.l.b16 %v6709
        %v7073 = vunpack.c.h.b16 %v6709
        %v7074 = vunpack.c.l.b16 %v6710
        %v7075 = vunpack.c.h.b16 %v6710
        %v7076 = vunpack.c.l.b16 %v6711
        %v7077 = vunpack.c.h.b16 %v6711
        %v7078 = vunpack.c.l.b16 %v6712
        %v7079 = vunpack.c.h.b16 %v6712
        %v7080 = vunpack.c.l.b16 %v6713
        %v7081 = vunpack.c.h.b16 %v6713
        %v7082 = vunpack.c.l.b16 %v6714
        %v7083 = vunpack.c.h.b16 %v6714
        %v7084 = vunpack.c.l.b16 %v6715
        %v7085 = vunpack.c.h.b16 %v6715
        %v7086 = vunpack.c.l.b16 %v6716
        %v7087 = vunpack.c.h.b16 %v6716
        %v7088 = vunpack.c.l.b16 %v6717
        %v7089 = vunpack.c.h.b16 %v6717
        %v7090 = vunpack.c.l.b16 %v6718
        %v7091 = vunpack.c.h.b16 %v6718
        %v7092 = vunpack.c.l.b16 %v6719
        %v7093 = vunpack.c.h.b16 %v6719
        %v7094 = vunpack.c.l.b16 %v6720
        %v7095 = vunpack.c.h.b16 %v6720
        %v7096 = vunpack.c.l.b16 %v6721
        %v7097 = vunpack.c.h.b16 %v6721
        %v7098 = vunpack.c.l.b16 %v6722
        %v7099 = vunpack.c.h.b16 %v6722
        %v7100 = vunpack.c.l.b16 %v6723
        %v7101 = vunpack.c.h.b16 %v6723
        %v7102 = vunpack.c.l.b16 %v6724
        %v7103 = vunpack.c.h.b16 %v6724
        %v7104 = vunpack.c.l.b16 %v6725
        %v7105 = vunpack.c.h.b16 %v6725
        %v7106 = vunpack.c.l.b16 %v6726
        %v7107 = vunpack.c.h.b16 %v6726
        %v7108 = vunpack.c.l.b16 %v6727
        %v7109 = vunpack.c.h.b16 %v6727
        %v7110 = vunpack.c.l.b16 %v6728
        %v7111 = vunpack.c.h.b16 %v6728
        %v7112 = vunpack.c.l.b16 %v6729
        %v7113 = vunpack.c.h.b16 %v6729
        %v7114 = vunpack.c.l.b16 %v6730
        %v7115 = vunpack.c.h.b16 %v6730
        %v7116 = vunpack.c.l.b16 %v6731
        %v7117 = vunpack.c.h.b16 %v6731
        %v7118 = vunpack.c.l.b16 %v6732
        %v7119 = vunpack.c.h.b16 %v6732
        %v7120 = vunpack.c.l.b16 %v6733
        %v7121 = vunpack.c.h.b16 %v6733
        %v7122 = vunpack.c.l.b16 %v6734
        %v7123 = vunpack.c.h.b16 %v6734
        %v7124 = vunpack.c.l.b16 %v6735
        %v7125 = vunpack.c.h.b16 %v6735
        %v7126 = vunpack.c.l.b16 %v6736
        %v7127 = vunpack.c.h.b16 %v6736
        %v7128 = vunpack.c.l.b16 %v6737
        %v7129 = vunpack.c.h.b16 %v6737
        %v7130 = vunpack.c.l.b16 %v6738
        %v7131 = vunpack.c.h.b16 %v6738
        %v7132 = vunpack.c.l.b16 %v6739
        %v7133 = vunpack.c.h.b16 %v6739
        %v7134 = vunpack.c.l.b16 %v6740
        %v7135 = vunpack.c.h.b16 %v6740
        %v7136 = vunpack.c.l.b16 %v6741
        %v7137 = vunpack.c.h.b16 %v6741
        %v7138 = vunpack.c.l.b16 %v6742
        %v7139 = vunpack.c.h.b16 %v6742
        %v7140 = vunpack.c.l.b16 %v6743
        %v7141 = vunpack.c.h.b16 %v6743
        %v7142 = vunpack.c.l.b16 %v6744
        %v7143 = vunpack.c.h.b16 %v6744
        %v7144 = vunpack.c.l.b16 %v6745
        %v7145 = vunpack.c.h.b16 %v6745
        %v7146 = vunpack.c.l.b16 %v6746
        %v7147 = vunpack.c.h.b16 %v6746
        %v7148 = vunpack.c.l.b16 %v6747
        %v7149 = vunpack.c.h.b16 %v6747
        %v7150 = vunpack.c.l.b16 %v6748
        %v7151 = vunpack.c.h.b16 %v6748
        %v7152 = vunpack.c.l.b16 %v6749
        %v7153 = vunpack.c.h.b16 %v6749
        %v7154 = vunpack.c.l.b16 %v6750
        %v7155 = vunpack.c.h.b16 %v6750
        %v7156 = vunpack.c.l.b16 %v6751
        %v7157 = vunpack.c.h.b16 %v6751
        %v7158 = vunpack.c.l.b16 %v6752
        %v7159 = vunpack.c.h.b16 %v6752
        %v7160 = vunpack.c.l.b16 %v6753
        %v7161 = vunpack.c.h.b16 %v6753
        %v7162 = vunpack.c.l.b16 %v6754
        %v7163 = vunpack.c.h.b16 %v6754
        %v7164 = vunpack.c.l.b16 %v6755
        %v7165 = vunpack.c.h.b16 %v6755
        %v7166 = vunpack.c.l.b16 %v6756
        %v7167 = vunpack.c.h.b16 %v6756
        %v7168 = vunpack.c.l.b16 %v6757
        %v7169 = vunpack.c.h.b16 %v6757
        %v7170 = vunpack.c.l.b16 %v6758
        %v7171 = vunpack.c.h.b16 %v6758
        %v7172 = vunpack.c.l.b16 %v6759
        %v7173 = vunpack.c.h.b16 %v6759
        %v7174 = vunpack.c.l.b16 %v6760
        %v7175 = vunpack.c.h.b16 %v6760
        %v7176 = vunpack.c.l.b16 %v6761
        %v7177 = vunpack.c.h.b16 %v6761
        %v7178 = vunpack.c.l.b16 %v6762
        %v7179 = vunpack.c.h.b16 %v6762
        %v7180 = vunpack.c.l.b16 %v6763
        %v7181 = vunpack.c.h.b16 %v6763
        %v7182 = vunpack.c.l.b16 %v6764
        %v7183 = vunpack.c.h.b16 %v6764
        %v7184 = vunpack.c.l.b16 %v6765
        %v7185 = vunpack.c.h.b16 %v6765
        %v7186 = vunpack.c.l.b16 %v6766
        %v7187 = vunpack.c.h.b16 %v6766
        %v7188 = vunpack.c.l.b16 %v6767
        %v7189 = vunpack.c.h.b16 %v6767
        %v7190 = vunpack.c.l.b16 %v6768
        %v7191 = vunpack.c.h.b16 %v6768
        %v7192 = vunpack.c.l.b16 %v6769
        %v7193 = vunpack.c.h.b16 %v6769
        %v7194 = vunpack.c.l.b16 %v6770
        %v7195 = vunpack.c.h.b16 %v6770
        %v7196 = vunpack.c.l.b16 %v6771
        %v7197 = vunpack.c.h.b16 %v6771
        %v7198 = vunpack.c.l.b16 %v6772
        %v7199 = vunpack.c.h.b16 %v6772
        %v7200 = vunpack.c.l.b16 %v6773
        %v7201 = vunpack.c.h.b16 %v6773
        %v7202 = vunpack.c.l.b16 %v6774
        %v7203 = vunpack.c.h.b16 %v6774
        %v7204 = vunpack.c.l.b16 %v6775
        %v7205 = vunpack.c.h.b16 %v6775
        %v7206 = vunpack.c.l.b16 %v6776
        %v7207 = vunpack.c.h.b16 %v6776
        %v7208 = vunpack.c.l.b16 %v6777
        %v7209 = vunpack.c.h.b16 %v6777
        %v7210 = vpack.c.b16 %v6928, %v6922
        %v7211 = vpack.c.b16 %v6929, %v6923
        %v7212 = vpack.c.b16 %v6930, %v6924
        %v7213 = vpack.c.b16 %v6931, %v6925
        %v7214 = vpack.c.b16 %v6932, %v6926
        %v7215 = vpack.c.b16 %v6933, %v6927
        %v7216 = vpack.c.b16 %v6940, %v6934
        %v7217 = vpack.c.b16 %v6941, %v6935
        %v7218 = vpack.c.b16 %v6942, %v6936
        %v7219 = vpack.c.b16 %v6943, %v6937
        %v7220 = vpack.c.b16 %v6944, %v6938
        %v7221 = vpack.c.b16 %v6945, %v6939
        %v7222 = vpack.c.b16 %v6952, %v6946
        %v7223 = vpack.c.b16 %v6953, %v6947
        %v7224 = vpack.c.b16 %v6954, %v6948
        %v7225 = vpack.c.b16 %v6955, %v6949
        %v7226 = vpack.c.b16 %v6956, %v6950
        %v7227 = vpack.c.b16 %v6957, %v6951
        %v7228 = vpack.c.b16 %v6964, %v6958
        %v7229 = vpack.c.b16 %v6965, %v6959
        %v7230 = vpack.c.b16 %v6966, %v6960
        %v7231 = vpack.c.b16 %v6967, %v6961
        %v7232 = vpack.c.b16 %v6968, %v6962
        %v7233 = vpack.c.b16 %v6969, %v6963
        %v7234 = vpack.c.b16 %v6976, %v6970
        %v7235 = vpack.c.b16 %v6977, %v6971
        %v7236 = vpack.c.b16 %v6978, %v6972
        %v7237 = vpack.c.b16 %v6979, %v6973
        %v7238 = vpack.c.b16 %v6980, %v6974
        %v7239 = vpack.c.b16 %v6981, %v6975
        %v7240 = vpack.c.b16 %v6988, %v6982
        %v7241 = vpack.c.b16 %v6989, %v6983
        %v7242 = vpack.c.b16 %v6990, %v6984
        %v7243 = vpack.c.b16 %v6991, %v6985
        %v7244 = vpack.c.b16 %v6992, %v6986
        %v7245 = vpack.c.b16 %v6993, %v6987
        %v7246 = vpack.c.b16 %v7000, %v6994
        %v7247 = vpack.c.b16 %v7001, %v6995
        %v7248 = vpack.c.b16 %v7002, %v6996
        %v7249 = vpack.c.b16 %v7003, %v6997
        %v7250 = vpack.c.b16 %v7004, %v6998
        %v7251 = vpack.c.b16 %v7005, %v6999
        %v7252 = vpack.c.b16 %v7012, %v7006
        %v7253 = vpack.c.b16 %v7013, %v7007
        %v7254 = vpack.c.b16 %v7014, %v7008
        %v7255 = vpack.c.b16 %v7015, %v7009
        %v7256 = vpack.c.b16 %v7016, %v7010
        %v7257 = vpack.c.b16 %v7017, %v7011
        %v7258 = vpack.c.b16 %v7024, %v7018
        %v7259 = vpack.c.b16 %v7025, %v7019
        %v7260 = vpack.c.b16 %v7026, %v7020
        %v7261 = vpack.c.b16 %v7027, %v7021
        %v7262 = vpack.c.b16 %v7028, %v7022
        %v7263 = vpack.c.b16 %v7029, %v7023
        %v7264 = vpack.c.b16 %v7036, %v7030
        %v7265 = vpack.c.b16 %v7037, %v7031
        %v7266 = vpack.c.b16 %v7038, %v7032
        %v7267 = vpack.c.b16 %v7039, %v7033
        %v7268 = vpack.c.b16 %v7040, %v7034
        %v7269 = vpack.c.b16 %v7041, %v7035
        %v7270 = vpack.c.b16 %v7048, %v7042
        %v7271 = vpack.c.b16 %v7049, %v7043
        %v7272 = vpack.c.b16 %v7050, %v7044
        %v7273 = vpack.c.b16 %v7051, %v7045
        %v7274 = vpack.c.b16 %v7052, %v7046
        %v7275 = vpack.c.b16 %v7053, %v7047
        %v7276 = vpack.c.b16 %v7060, %v7054
        %v7277 = vpack.c.b16 %v7061, %v7055
        %v7278 = vpack.c.b16 %v7062, %v7056
        %v7279 = vpack.c.b16 %v7063, %v7057
        %v7280 = vpack.c.b16 %v7064, %v7058
        %v7281 = vpack.c.b16 %v7065, %v7059
        %v7282 = vpack.c.b16 %v7072, %v7066
        %v7283 = vpack.c.b16 %v7073, %v7067
        %v7284 = vpack.c.b16 %v7074, %v7068
        %v7285 = vpack.c.b16 %v7075, %v7069
        %v7286 = vpack.c.b16 %v7076, %v7070
        %v7287 = vpack.c.b16 %v7077, %v7071
        %v7288 = vpack.c.b16 %v7084, %v7078
        %v7289 = vpack.c.b16 %v7085, %v7079
        %v7290 = vpack.c.b16 %v7086, %v7080
        %v7291 = vpack.c.b16 %v7087, %v7081
        %v7292 = vpack.c.b16 %v7088, %v7082
        %v7293 = vpack.c.b16 %v7089, %v7083
        %v7294 = vpack.c.b16 %v7096, %v7090
        %v7295 = vpack.c.b16 %v7097, %v7091
        %v7296 = vpack.c.b16 %v7098, %v7092
        %v7297 = vpack.c.b16 %v7099, %v7093
        %v7298 = vpack.c.b16 %v7100, %v7094
        %v7299 = vpack.c.b16 %v7101, %v7095
        %v7300 = vpack.c.b16 %v7108, %v7102
        %v7301 = vpack.c.b16 %v7109, %v7103
        %v7302 = vpack.c.b16 %v7110, %v7104
        %v7303 = vpack.c.b16 %v7111, %v7105
        %v7304 = vpack.c.b16 %v7112, %v7106
        %v7305 = vpack.c.b16 %v7113, %v7107
        %v7306 = vpack.c.b16 %v7120, %v7114
        %v7307 = vpack.c.b16 %v7121, %v7115
        %v7308 = vpack.c.b16 %v7122, %v7116
        %v7309 = vpack.c.b16 %v7123, %v7117
        %v7310 = vpack.c.b16 %v7124, %v7118
        %v7311 = vpack.c.b16 %v7125, %v7119
        %v7312 = vpack.c.b16 %v7132, %v7126
        %v7313 = vpack.c.b16 %v7133, %v7127
        %v7314 = vpack.c.b16 %v7134, %v7128
        %v7315 = vpack.c.b16 %v7135, %v7129
        %v7316 = vpack.c.b16 %v7136, %v7130
        %v7317 = vpack.c.b16 %v7137, %v7131
        %v7318 = vpack.c.b16 %v7144, %v7138
        %v7319 = vpack.c.b16 %v7145, %v7139
        %v7320 = vpack.c.b16 %v7146, %v7140
        %v7321 = vpack.c.b16 %v7147, %v7141
        %v7322 = vpack.c.b16 %v7148, %v7142
        %v7323 = vpack.c.b16 %v7149, %v7143
        %v7324 = vpack.c.b16 %v7156, %v7150
        %v7325 = vpack.c.b16 %v7157, %v7151
        %v7326 = vpack.c.b16 %v7158, %v7152
        %v7327 = vpack.c.b16 %v7159, %v7153
        %v7328 = vpack.c.b16 %v7160, %v7154
        %v7329 = vpack.c.b16 %v7161, %v7155
        %v7330 = vpack.c.b16 %v7168, %v7162
        %v7331 = vpack.c.b16 %v7169, %v7163
        %v7332 = vpack.c.b16 %v7170, %v7164
        %v7333 = vpack.c.b16 %v7171, %v7165
        %v7334 = vpack.c.b16 %v7172, %v7166
        %v7335 = vpack.c.b16 %v7173, %v7167
        %v7336 = vpack.c.b16 %v7180, %v7174
        %v7337 = vpack.c.b16 %v7181, %v7175
        %v7338 = vpack.c.b16 %v7182, %v7176
        %v7339 = vpack.c.b16 %v7183, %v7177
        %v7340 = vpack.c.b16 %v7184, %v7178
        %v7341 = vpack.c.b16 %v7185, %v7179
        %v7342 = vpack.c.b16 %v7192, %v7186
        %v7343 = vpack.c.b16 %v7193, %v7187
        %v7344 = vpack.c.b16 %v7194, %v7188
        %v7345 = vpack.c.b16 %v7195, %v7189
        %v7346 = vpack.c.b16 %v7196, %v7190
        %v7347 = vpack.c.b16 %v7197, %v7191
        %v7348 = vpack.c.b16 %v7204, %v7198
        %v7349 = vpack.c.b16 %v7205, %v7199
        %v7350 = vpack.c.b16 %v7206, %v7200
        %v7351 = vpack.c.b16 %v7207, %v7201
        %v7352 = vpack.c.b16 %v7208, %v7202
        %v7353 = vpack.c.b16 %v7209, %v7203
        %7498 = vmatprep.subr.bf16.mxu0 %v7211
        %7499 = vmatpush1.bf16.msra.mxu0 %v7210
        %7500 = vmatprep.subr.bf16.mxu0 %v7217
        %7501 = vmatpush1.bf16.msra.mxu0 %v7216
        %7502 = vmatprep.subr.bf16.mxu0 %v7223
        %7503 = vmatpush1.bf16.msra.mxu0 %v7222
        %7504 = vmatprep.subr.bf16.mxu0 %v7229
        %7505 = vmatpush1.bf16.msra.mxu0 %v7228
        %7506 = vmatprep.subr.bf16.mxu0 %v7235
        %7507 = vmatpush1.bf16.msra.mxu0 %v7234
        %7508 = vmatprep.subr.bf16.mxu0 %v7241
        %7509 = vmatpush1.bf16.msra.mxu0 %v7240
        %7510 = vmatprep.subr.bf16.mxu0 %v7247
        %7511 = vmatpush1.bf16.msra.mxu0 %v7246
        %7512 = vmatprep.subr.bf16.mxu0 %v7253
        %7513 = vmatpush1.bf16.msra.mxu0 %v7252
        %7514 = vmatprep.subr.bf16.mxu0 %v7259
        %7515 = vmatpush1.bf16.msra.mxu0 %v7258
        %7516 = vmatprep.subr.bf16.mxu0 %v7265
        %7517 = vmatpush1.bf16.msra.mxu0 %v7264
        %7518 = vmatprep.subr.bf16.mxu0 %v7271
        %7519 = vmatpush1.bf16.msra.mxu0 %v7270
        %7520 = vmatprep.subr.bf16.mxu0 %v7277
        %7521 = vmatpush1.bf16.msra.mxu0 %v7276
        %7522 = vmatprep.subr.bf16.mxu0 %v7283
        %7523 = vmatpush1.bf16.msra.mxu0 %v7282
        %7524 = vmatprep.subr.bf16.mxu0 %v7289
        %7525 = vmatpush1.bf16.msra.mxu0 %v7288
        %7526 = vmatprep.subr.bf16.mxu0 %v7295
        %7527 = vmatpush1.bf16.msra.mxu0 %v7294
        %7528 = vmatprep.subr.bf16.mxu0 %v7301
        %7529 = vmatpush1.bf16.msra.mxu0 %v7300
        %7530 = vmatprep.mubr.bf16.mxu0 %v4307
        %7531 = vmatmul.mubr.bf16.gmra.mrb[0].mxu0 %v4306
        %v7532 = vpop.f32.mrb[0].mxu0
        %v7533 = vadd.f32 0.0, %v7532
        %v7534 = vpop.f32.mrb[0].mxu0
        %v7535 = vadd.f32 0.0, %v7534
        %v7536 = vpop.f32.mrb[0].mxu0
        %v7537 = vadd.f32 0.0, %v7536
        %v7538 = vpop.f32.mrb[0].mxu0
        %v7539 = vadd.f32 0.0, %v7538
        %7540 = vdwg.mxu0
        %7541 = vmatprep.subr.bf16.mxu0 %v7307
        %7542 = vmatpush1.bf16.msra.mxu0 %v7306
        %7543 = vmatprep.subr.bf16.mxu0 %v7313
        %7544 = vmatpush1.bf16.msra.mxu0 %v7312
        %7545 = vmatprep.subr.bf16.mxu0 %v7319
        %7546 = vmatpush1.bf16.msra.mxu0 %v7318
        %7547 = vmatprep.subr.bf16.mxu0 %v7325
        %7548 = vmatpush1.bf16.msra.mxu0 %v7324
        %7549 = vmatprep.subr.bf16.mxu0 %v7331
        %7550 = vmatpush1.bf16.msra.mxu0 %v7330
        %7551 = vmatprep.subr.bf16.mxu0 %v7337
        %7552 = vmatpush1.bf16.msra.mxu0 %v7336
        %7553 = vmatprep.subr.bf16.mxu0 %v7343
        %7554 = vmatpush1.bf16.msra.mxu0 %v7342
        %7555 = vmatprep.subr.bf16.mxu0 %v7349
        %7556 = vmatpush1.bf16.msra.mxu0 %v7348
        %7557 = vmatprep.subr.bf16.mxu0 0
        %7558 = vmatpush1.bf16.msra.mxu0 0
        %7559 = vmatprep.subr.bf16.mxu0 0
        %7560 = vmatpush1.bf16.msra.mxu0 0
        %7561 = vmatprep.subr.bf16.mxu0 0
        %7562 = vmatpush1.bf16.msra.mxu0 0
        %7563 = vmatprep.subr.bf16.mxu0 0
        %7564 = vmatpush1.bf16.msra.mxu0 0
        %7565 = vmatprep.subr.bf16.mxu0 0
        %7566 = vmatpush1.bf16.msra.mxu0 0
        %7567 = vmatprep.subr.bf16.mxu0 0
        %7568 = vmatpush1.bf16.msra.mxu0 0
        %7569 = vmatprep.subr.bf16.mxu0 0
        %7570 = vmatpush1.bf16.msra.mxu0 0
        %7571 = vmatprep.subr.bf16.mxu0 0
        %7572 = vmatpush1.bf16.msra.mxu0 0
        %7573 = vmatprep.mubr.bf16.mxu0 0
        %7574 = vmatmul.mubr.bf16.gmra.mrb[0].mxu0 %v4308
        %v7575 = vpop.f32.mrb[0].mxu0
        %v7576 = vadd.f32 %v7533, %v7575
        %v7577 = vpop.f32.mrb[0].mxu0
        %v7578 = vadd.f32 %v7535, %v7577
        %v7579 = vpop.f32.mrb[0].mxu0
        %v7580 = vadd.f32 %v7537, %v7579
        %v7581 = vpop.f32.mrb[0].mxu0
        %v7582 = vadd.f32 %v7539, %v7581
        %7583 = vdwg.mxu0
        %7584 = vmatprep.subr.bf16.mxu0 %v7213
        %7585 = vmatpush1.bf16.msra.mxu0 %v7212
        %7586 = vmatprep.subr.bf16.mxu0 %v7219
        %7587 = vmatpush1.bf16.msra.mxu0 %v7218
        %7588 = vmatprep.subr.bf16.mxu0 %v7225
        %7589 = vmatpush1.bf16.msra.mxu0 %v7224
        %7590 = vmatprep.subr.bf16.mxu0 %v7231
        %7591 = vmatpush1.bf16.msra.mxu0 %v7230
        %7592 = vmatprep.subr.bf16.mxu0 %v7237
        %7593 = vmatpush1.bf16.msra.mxu0 %v7236
        %7594 = vmatprep.subr.bf16.mxu0 %v7243
        %7595 = vmatpush1.bf16.msra.mxu0 %v7242
        %7596 = vmatprep.subr.bf16.mxu0 %v7249
        %7597 = vmatpush1.bf16.msra.mxu0 %v7248
        %7598 = vmatprep.subr.bf16.mxu0 %v7255
        %7599 = vmatpush1.bf16.msra.mxu0 %v7254
        %7600 = vmatprep.subr.bf16.mxu0 %v7261
        %7601 = vmatpush1.bf16.msra.mxu0 %v7260
        %7602 = vmatprep.subr.bf16.mxu0 %v7267
        %7603 = vmatpush1.bf16.msra.mxu0 %v7266
        %7604 = vmatprep.subr.bf16.mxu0 %v7273
        %7605 = vmatpush1.bf16.msra.mxu0 %v7272
        %7606 = vmatprep.subr.bf16.mxu0 %v7279
        %7607 = vmatpush1.bf16.msra.mxu0 %v7278
        %7608 = vmatprep.subr.bf16.mxu0 %v7285
        %7609 = vmatpush1.bf16.msra.mxu0 %v7284
        %7610 = vmatprep.subr.bf16.mxu0 %v7291
        %7611 = vmatpush1.bf16.msra.mxu0 %v7290
        %7612 = vmatprep.subr.bf16.mxu0 %v7297
        %7613 = vmatpush1.bf16.msra.mxu0 %v7296
        %7614 = vmatprep.subr.bf16.mxu0 %v7303
        %7615 = vmatpush1.bf16.msra.mxu0 %v7302
        %7616 = vmatprep.mubr.bf16.mxu0 %v4307
        %7617 = vmatmul.mubr.bf16.gmra.mrb[0].mxu0 %v4306
        %v7618 = vpop.f32.mrb[0].mxu0
        %v7619 = vadd.f32 0.0, %v7618
        %v7620 = vpop.f32.mrb[0].mxu0
        %v7621 = vadd.f32 0.0, %v7620
        %v7622 = vpop.f32.mrb[0].mxu0
        %v7623 = vadd.f32 0.0, %v7622
        %v7624 = vpop.f32.mrb[0].mxu0
        %v7625 = vadd.f32 0.0, %v7624
        %7626 = vdwg.mxu0
        %7627 = vmatprep.subr.bf16.mxu0 %v7309
        %7628 = vmatpush1.bf16.msra.mxu0 %v7308
        %7629 = vmatprep.subr.bf16.mxu0 %v7315
        %7630 = vmatpush1.bf16.msra.mxu0 %v7314
        %7631 = vmatprep.subr.bf16.mxu0 %v7321
        %7632 = vmatpush1.bf16.msra.mxu0 %v7320
        %7633 = vmatprep.subr.bf16.mxu0 %v7327
        %7634 = vmatpush1.bf16.msra.mxu0 %v7326
        %7635 = vmatprep.subr.bf16.mxu0 %v7333
        %7636 = vmatpush1.bf16.msra.mxu0 %v7332
        %7637 = vmatprep.subr.bf16.mxu0 %v7339
        %7638 = vmatpush1.bf16.msra.mxu0 %v7338
        %7639 = vmatprep.subr.bf16.mxu0 %v7345
        %7640 = vmatpush1.bf16.msra.mxu0 %v7344
        %7641 = vmatprep.subr.bf16.mxu0 %v7351
        %7642 = vmatpush1.bf16.msra.mxu0 %v7350
        %7643 = vmatprep.subr.bf16.mxu0 0
        %7644 = vmatpush1.bf16.msra.mxu0 0
        %7645 = vmatprep.subr.bf16.mxu0 0
        %7646 = vmatpush1.bf16.msra.mxu0 0
        %7647 = vmatprep.subr.bf16.mxu0 0
        %7648 = vmatpush1.bf16.msra.mxu0 0
        %7649 = vmatprep.subr.bf16.mxu0 0
        %7650 = vmatpush1.bf16.msra.mxu0 0
        %7651 = vmatprep.subr.bf16.mxu0 0
        %7652 = vmatpush1.bf16.msra.mxu0 0
        %7653 = vmatprep.subr.bf16.mxu0 0
        %7654 = vmatpush1.bf16.msra.mxu0 0
        %7655 = vmatprep.subr.bf16.mxu0 0
        %7656 = vmatpush1.bf16.msra.mxu0 0
        %7657 = vmatprep.subr.bf16.mxu0 0
        %7658 = vmatpush1.bf16.msra.mxu0 0
        %7659 = vmatprep.mubr.bf16.mxu0 0
        %7660 = vmatmul.mubr.bf16.gmra.mrb[0].mxu0 %v4308
        %v7661 = vpop.f32.mrb[0].mxu0
        %v7662 = vadd.f32 %v7619, %v7661
        %v7663 = vpop.f32.mrb[0].mxu0
        %v7664 = vadd.f32 %v7621, %v7663
        %v7665 = vpop.f32.mrb[0].mxu0
        %v7666 = vadd.f32 %v7623, %v7665
        %v7667 = vpop.f32.mrb[0].mxu0
        %v7668 = vadd.f32 %v7625, %v7667
        %7669 = vdwg.mxu0
        %7670 = vmatprep.subr.bf16.mxu0 %v7215
        %7671 = vmatpush1.bf16.msra.mxu0 %v7214
        %7672 = vmatprep.subr.bf16.mxu0 %v7221
        %7673 = vmatpush1.bf16.msra.mxu0 %v7220
        %7674 = vmatprep.subr.bf16.mxu0 %v7227
        %7675 = vmatpush1.bf16.msra.mxu0 %v7226
        %7676 = vmatprep.subr.bf16.mxu0 %v7233
        %7677 = vmatpush1.bf16.msra.mxu0 %v7232
        %7678 = vmatprep.subr.bf16.mxu0 %v7239
        %7679 = vmatpush1.bf16.msra.mxu0 %v7238
        %7680 = vmatprep.subr.bf16.mxu0 %v7245
        %7681 = vmatpush1.bf16.msra.mxu0 %v7244
        %7682 = vmatprep.subr.bf16.mxu0 %v7251
        %7683 = vmatpush1.bf16.msra.mxu0 %v7250
        %7684 = vmatprep.subr.bf16.mxu0 %v7257
        %7685 = vmatpush1.bf16.msra.mxu0 %v7256
        %7686 = vmatprep.subr.bf16.mxu0 %v7263
        %7687 = vmatpush1.bf16.msra.mxu0 %v7262
        %7688 = vmatprep.subr.bf16.mxu0 %v7269
        %7689 = vmatpush1.bf16.msra.mxu0 %v7268
        %7690 = vmatprep.subr.bf16.mxu0 %v7275
        %7691 = vmatpush1.bf16.msra.mxu0 %v7274
        %7692 = vmatprep.subr.bf16.mxu0 %v7281
        %7693 = vmatpush1.bf16.msra.mxu0 %v7280
        %7694 = vmatprep.subr.bf16.mxu0 %v7287
        %7695 = vmatpush1.bf16.msra.mxu0 %v7286
        %7696 = vmatprep.subr.bf16.mxu0 %v7293
        %7697 = vmatpush1.bf16.msra.mxu0 %v7292
        %7698 = vmatprep.subr.bf16.mxu0 %v7299
        %7699 = vmatpush1.bf16.msra.mxu0 %v7298
        %7700 = vmatprep.subr.bf16.mxu0 %v7305
        %7701 = vmatpush1.bf16.msra.mxu0 %v7304
        %7702 = vmatprep.mubr.bf16.mxu0 %v4307
        %7703 = vmatmul.mubr.bf16.gmra.mrb[0].mxu0 %v4306
        %v7704 = vpop.f32.mrb[0].mxu0
        %v7705 = vadd.f32 0.0, %v7704
        %v7706 = vpop.f32.mrb[0].mxu0
        %v7707 = vadd.f32 0.0, %v7706
        %v7708 = vpop.f32.mrb[0].mxu0
        %v7709 = vadd.f32 0.0, %v7708
        %v7710 = vpop.f32.mrb[0].mxu0
        %v7711 = vadd.f32 0.0, %v7710
        %7712 = vdwg.mxu0
        %7713 = vmatprep.subr.bf16.mxu0 %v7311
        %7714 = vmatpush1.bf16.msra.mxu0 %v7310
        %7715 = vmatprep.subr.bf16.mxu0 %v7317
        %7716 = vmatpush1.bf16.msra.mxu0 %v7316
        %7717 = vmatprep.subr.bf16.mxu0 %v7323
        %7718 = vmatpush1.bf16.msra.mxu0 %v7322
        %7719 = vmatprep.subr.bf16.mxu0 %v7329
        %7720 = vmatpush1.bf16.msra.mxu0 %v7328
        %7721 = vmatprep.subr.bf16.mxu0 %v7335
        %7722 = vmatpush1.bf16.msra.mxu0 %v7334
        %7723 = vmatprep.subr.bf16.mxu0 %v7341
        %7724 = vmatpush1.bf16.msra.mxu0 %v7340
        %7725 = vmatprep.subr.bf16.mxu0 %v7347
        %7726 = vmatpush1.bf16.msra.mxu0 %v7346
        %7727 = vmatprep.subr.bf16.mxu0 %v7353
        %7728 = vmatpush1.bf16.msra.mxu0 %v7352
        %7729 = vmatprep.subr.bf16.mxu0 0
        %7730 = vmatpush1.bf16.msra.mxu0 0
        %7731 = vmatprep.subr.bf16.mxu0 0
        %7732 = vmatpush1.bf16.msra.mxu0 0
        %7733 = vmatprep.subr.bf16.mxu0 0
        %7734 = vmatpush1.bf16.msra.mxu0 0
        %7735 = vmatprep.subr.bf16.mxu0 0
        %7736 = vmatpush1.bf16.msra.mxu0 0
        %7737 = vmatprep.subr.bf16.mxu0 0
        %7738 = vmatpush1.bf16.msra.mxu0 0
        %7739 = vmatprep.subr.bf16.mxu0 0
        %7740 = vmatpush1.bf16.msra.mxu0 0
        %7741 = vmatprep.subr.bf16.mxu0 0
        %7742 = vmatpush1.bf16.msra.mxu0 0
        %7743 = vmatprep.subr.bf16.mxu0 0
        %7744 = vmatpush1.bf16.msra.mxu0 0
        %7745 = vmatprep.mubr.bf16.mxu0 0
        %7746 = vmatmul.mubr.bf16.gmra.mrb[0].mxu0 %v4308
        %v7747 = vpop.f32.mrb[0].mxu0
        %v7748 = vadd.f32 %v7705, %v7747
        %v7749 = vpop.f32.mrb[0].mxu0
        %v7750 = vadd.f32 %v7707, %v7749
        %v7751 = vpop.f32.mrb[0].mxu0
        %v7752 = vadd.f32 %v7709, %v7751
        %v7753 = vpop.f32.mrb[0].mxu0
        %v7754 = vadd.f32 %v7711, %v7753
        %7755 = vdwg.mxu0
        %v7756 = vadd.f32 %v6453, %v7576
        %v7757 = vadd.f32 %v6455, %v7578
        %v7758 = vadd.f32 %v6539, %v7662
        %v7759 = vadd.f32 %v6541, %v7664
        %v7760 = vadd.f32 %v6625, %v7748
        %v7761 = vadd.f32 %v6627, %v7750
        %v7762 = vadd.f32 %v6457, %v7580
        %v7763 = vadd.f32 %v6459, %v7582
        %v7764 = vadd.f32 %v6543, %v7666
        %v7765 = vadd.f32 %v6545, %v7668
        %v7766 = vadd.f32 %v6629, %v7752
        %v7767 = vadd.f32 %v6631, %v7754
        %7768 = vmatprep.subr.bf16.mxu0 %v5055
        %7769 = vmatpush1.bf16.msra.mxu0 %v5054
        %7770 = vmatprep.subr.bf16.mxu0 %v5061
        %7771 = vmatpush1.bf16.msra.mxu0 %v5060
        %7772 = vmatprep.subr.bf16.mxu0 %v5067
        %7773 = vmatpush1.bf16.msra.mxu0 %v5066
        %7774 = vmatprep.subr.bf16.mxu0 %v5073
        %7775 = vmatpush1.bf16.msra.mxu0 %v5072
        %7776 = vmatprep.subr.bf16.mxu0 %v5079
        %7777 = vmatpush1.bf16.msra.mxu0 %v5078
        %7778 = vmatprep.subr.bf16.mxu0 %v5085
        %7779 = vmatpush1.bf16.msra.mxu0 %v5084
        %7780 = vmatprep.subr.bf16.mxu0 %v5091
        %7781 = vmatpush1.bf16.msra.mxu0 %v5090
        %7782 = vmatprep.subr.bf16.mxu0 %v5097
        %7783 = vmatpush1.bf16.msra.mxu0 %v5096
        %7784 = vmatprep.subr.bf16.mxu0 %v5103
        %7785 = vmatpush1.bf16.msra.mxu0 %v5102
        %7786 = vmatprep.subr.bf16.mxu0 %v5109
        %7787 = vmatpush1.bf16.msra.mxu0 %v5108
        %7788 = vmatprep.subr.bf16.mxu0 %v5115
        %7789 = vmatpush1.bf16.msra.mxu0 %v5114
        %7790 = vmatprep.subr.bf16.mxu0 %v5121
        %7791 = vmatpush1.bf16.msra.mxu0 %v5120
        %7792 = vmatprep.subr.bf16.mxu0 %v5127
        %7793 = vmatpush1.bf16.msra.mxu0 %v5126
        %7794 = vmatprep.subr.bf16.mxu0 %v5133
        %7795 = vmatpush1.bf16.msra.mxu0 %v5132
        %7796 = vmatprep.subr.bf16.mxu0 %v5139
        %7797 = vmatpush1.bf16.msra.mxu0 %v5138
        %7798 = vmatprep.subr.bf16.mxu0 %v5145
        %7799 = vmatpush1.bf16.msra.mxu0 %v5144
        %7800 = vmatprep.mubr.bf16.mxu0 %v4307
        %7801 = vmatmul.mubr.bf16.gmra.mrb[0].mxu0 %v4306
        %v7802 = vpop.f32.mrb[0].mxu0
        %v7803 = vadd.f32 0.0, %v7802
        %v7804 = vpop.f32.mrb[0].mxu0
        %v7805 = vadd.f32 0.0, %v7804
        %v7806 = vpop.f32.mrb[0].mxu0
        %v7807 = vadd.f32 0.0, %v7806
        %v7808 = vpop.f32.mrb[0].mxu0
        %v7809 = vadd.f32 0.0, %v7808
        %7810 = vdwg.mxu0
        %7811 = vmatprep.subr.bf16.mxu0 %v5151
        %7812 = vmatpush1.bf16.msra.mxu0 %v5150
        %7813 = vmatprep.subr.bf16.mxu0 %v5157
        %7814 = vmatpush1.bf16.msra.mxu0 %v5156
        %7815 = vmatprep.subr.bf16.mxu0 %v5163
        %7816 = vmatpush1.bf16.msra.mxu0 %v5162
        %7817 = vmatprep.subr.bf16.mxu0 %v5169
        %7818 = vmatpush1.bf16.msra.mxu0 %v5168
        %7819 = vmatprep.subr.bf16.mxu0 %v5175
        %7820 = vmatpush1.bf16.msra.mxu0 %v5174
        %7821 = vmatprep.subr.bf16.mxu0 %v5181
        %7822 = vmatpush1.bf16.msra.mxu0 %v5180
        %7823 = vmatprep.subr.bf16.mxu0 %v5187
        %7824 = vmatpush1.bf16.msra.mxu0 %v5186
        %7825 = vmatprep.subr.bf16.mxu0 %v5193
        %7826 = vmatpush1.bf16.msra.mxu0 %v5192
        %7827 = vmatprep.subr.bf16.mxu0 0
        %7828 = vmatpush1.bf16.msra.mxu0 0
        %7829 = vmatprep.subr.bf16.mxu0 0
        %7830 = vmatpush1.bf16.msra.mxu0 0
        %7831 = vmatprep.subr.bf16.mxu0 0
        %7832 = vmatpush1.bf16.msra.mxu0 0
        %7833 = vmatprep.subr.bf16.mxu0 0
        %7834 = vmatpush1.bf16.msra.mxu0 0
        %7835 = vmatprep.subr.bf16.mxu0 0
        %7836 = vmatpush1.bf16.msra.mxu0 0
        %7837 = vmatprep.subr.bf16.mxu0 0
        %7838 = vmatpush1.bf16.msra.mxu0 0
        %7839 = vmatprep.subr.bf16.mxu0 0
        %7840 = vmatpush1.bf16.msra.mxu0 0
        %7841 = vmatprep.subr.bf16.mxu0 0
        %7842 = vmatpush1.bf16.msra.mxu0 0
        %7843 = vmatprep.mubr.bf16.mxu0 0
        %7844 = vmatmul.mubr.bf16.gmra.mrb[0].mxu0 %v4308
        %v7845 = vpop.f32.mrb[0].mxu0
        %v7846 = vadd.f32 %v7803, %v7845
        %v7847 = vpop.f32.mrb[0].mxu0
        %v7848 = vadd.f32 %v7805, %v7847
        %v7849 = vpop.f32.mrb[0].mxu0
        %v7850 = vadd.f32 %v7807, %v7849
        %v7851 = vpop.f32.mrb[0].mxu0
        %v7852 = vadd.f32 %v7809, %v7851
        %7853 = vdwg.mxu0
        %7854 = vmatprep.subr.bf16.mxu0 %v5057
        %7855 = vmatpush1.bf16.msra.mxu0 %v5056
        %7856 = vmatprep.subr.bf16.mxu0 %v5063
        %7857 = vmatpush1.bf16.msra.mxu0 %v5062
        %7858 = vmatprep.subr.bf16.mxu0 %v5069
        %7859 = vmatpush1.bf16.msra.mxu0 %v5068
        %7860 = vmatprep.subr.bf16.mxu0 %v5075
        %7861 = vmatpush1.bf16.msra.mxu0 %v5074
        %7862 = vmatprep.subr.bf16.mxu0 %v5081
        %7863 = vmatpush1.bf16.msra.mxu0 %v5080
        %7864 = vmatprep.subr.bf16.mxu0 %v5087
        %7865 = vmatpush1.bf16.msra.mxu0 %v5086
        %7866 = vmatprep.subr.bf16.mxu0 %v5093
        %7867 = vmatpush1.bf16.msra.mxu0 %v5092
        %7868 = vmatprep.subr.bf16.mxu0 %v5099
        %7869 = vmatpush1.bf16.msra.mxu0 %v5098
        %7870 = vmatprep.subr.bf16.mxu0 %v5105
        %7871 = vmatpush1.bf16.msra.mxu0 %v5104
        %7872 = vmatprep.subr.bf16.mxu0 %v5111
        %7873 = vmatpush1.bf16.msra.mxu0 %v5110
        %7874 = vmatprep.subr.bf16.mxu0 %v5117
        %7875 = vmatpush1.bf16.msra.mxu0 %v5116
        %7876 = vmatprep.subr.bf16.mxu0 %v5123
        %7877 = vmatpush1.bf16.msra.mxu0 %v5122
        %7878 = vmatprep.subr.bf16.mxu0 %v5129
        %7879 = vmatpush1.bf16.msra.mxu0 %v5128
        %7880 = vmatprep.subr.bf16.mxu0 %v5135
        %7881 = vmatpush1.bf16.msra.mxu0 %v5134
        %7882 = vmatprep.subr.bf16.mxu0 %v5141
        %7883 = vmatpush1.bf16.msra.mxu0 %v5140
        %7884 = vmatprep.subr.bf16.mxu0 %v5147
        %7885 = vmatpush1.bf16.msra.mxu0 %v5146
        %7886 = vmatprep.mubr.bf16.mxu0 %v4307
        %7887 = vmatmul.mubr.bf16.gmra.mrb[0].mxu0 %v4306
        %v7888 = vpop.f32.mrb[0].mxu0
        %v7889 = vadd.f32 0.0, %v7888
        %v7890 = vpop.f32.mrb[0].mxu0
        %v7891 = vadd.f32 0.0, %v7890
        %v7892 = vpop.f32.mrb[0].mxu0
        %v7893 = vadd.f32 0.0, %v7892
        %v7894 = vpop.f32.mrb[0].mxu0
        %v7895 = vadd.f32 0.0, %v7894
        %7896 = vdwg.mxu0
        %7897 = vmatprep.subr.bf16.mxu0 %v5153
        %7898 = vmatpush1.bf16.msra.mxu0 %v5152
        %7899 = vmatprep.subr.bf16.mxu0 %v5159
        %7900 = vmatpush1.bf16.msra.mxu0 %v5158
        %7901 = vmatprep.subr.bf16.mxu0 %v5165
        %7902 = vmatpush1.bf16.msra.mxu0 %v5164
        %7903 = vmatprep.subr.bf16.mxu0 %v5171
        %7904 = vmatpush1.bf16.msra.mxu0 %v5170
        %7905 = vmatprep.subr.bf16.mxu0 %v5177
        %7906 = vmatpush1.bf16.msra.mxu0 %v5176
        %7907 = vmatprep.subr.bf16.mxu0 %v5183
        %7908 = vmatpush1.bf16.msra.mxu0 %v5182
        %7909 = vmatprep.subr.bf16.mxu0 %v5189
        %7910 = vmatpush1.bf16.msra.mxu0 %v5188
        %7911 = vmatprep.subr.bf16.mxu0 %v5195
        %7912 = vmatpush1.bf16.msra.mxu0 %v5194
        %7913 = vmatprep.subr.bf16.mxu0 0
        %7914 = vmatpush1.bf16.msra.mxu0 0
        %7915 = vmatprep.subr.bf16.mxu0 0
        %7916 = vmatpush1.bf16.msra.mxu0 0
        %7917 = vmatprep.subr.bf16.mxu0 0
        %7918 = vmatpush1.bf16.msra.mxu0 0
        %7919 = vmatprep.subr.bf16.mxu0 0
        %7920 = vmatpush1.bf16.msra.mxu0 0
        %7921 = vmatprep.subr.bf16.mxu0 0
        %7922 = vmatpush1.bf16.msra.mxu0 0
        %7923 = vmatprep.subr.bf16.mxu0 0
        %7924 = vmatpush1.bf16.msra.mxu0 0
        %7925 = vmatprep.subr.bf16.mxu0 0
        %7926 = vmatpush1.bf16.msra.mxu0 0
        %7927 = vmatprep.subr.bf16.mxu0 0
        %7928 = vmatpush1.bf16.msra.mxu0 0
        %7929 = vmatprep.mubr.bf16.mxu0 0
        %7930 = vmatmul.mubr.bf16.gmra.mrb[0].mxu0 %v4308
        %v7931 = vpop.f32.mrb[0].mxu0
        %v7932 = vadd.f32 %v7889, %v7931
        %v7933 = vpop.f32.mrb[0].mxu0
        %v7934 = vadd.f32 %v7891, %v7933
        %v7935 = vpop.f32.mrb[0].mxu0
        %v7936 = vadd.f32 %v7893, %v7935
        %v7937 = vpop.f32.mrb[0].mxu0
        %v7938 = vadd.f32 %v7895, %v7937
        %7939 = vdwg.mxu0
        %7940 = vmatprep.subr.bf16.mxu0 %v5059
        %7941 = vmatpush1.bf16.msra.mxu0 %v5058
        %7942 = vmatprep.subr.bf16.mxu0 %v5065
        %7943 = vmatpush1.bf16.msra.mxu0 %v5064
        %7944 = vmatprep.subr.bf16.mxu0 %v5071
        %7945 = vmatpush1.bf16.msra.mxu0 %v5070
        %7946 = vmatprep.subr.bf16.mxu0 %v5077
        %7947 = vmatpush1.bf16.msra.mxu0 %v5076
        %7948 = vmatprep.subr.bf16.mxu0 %v5083
        %7949 = vmatpush1.bf16.msra.mxu0 %v5082
        %7950 = vmatprep.subr.bf16.mxu0 %v5089
        %7951 = vmatpush1.bf16.msra.mxu0 %v5088
        %7952 = vmatprep.subr.bf16.mxu0 %v5095
        %7953 = vmatpush1.bf16.msra.mxu0 %v5094
        %7954 = vmatprep.subr.bf16.mxu0 %v5101
        %7955 = vmatpush1.bf16.msra.mxu0 %v5100
        %7956 = vmatprep.subr.bf16.mxu0 %v5107
        %7957 = vmatpush1.bf16.msra.mxu0 %v5106
        %7958 = vmatprep.subr.bf16.mxu0 %v5113
        %7959 = vmatpush1.bf16.msra.mxu0 %v5112
        %7960 = vmatprep.subr.bf16.mxu0 %v5119
        %7961 = vmatpush1.bf16.msra.mxu0 %v5118
        %7962 = vmatprep.subr.bf16.mxu0 %v5125
        %7963 = vmatpush1.bf16.msra.mxu0 %v5124
        %7964 = vmatprep.subr.bf16.mxu0 %v5131
        %7965 = vmatpush1.bf16.msra.mxu0 %v5130
        %7966 = vmatprep.subr.bf16.mxu0 %v5137
        %7967 = vmatpush1.bf16.msra.mxu0 %v5136
        %7968 = vmatprep.subr.bf16.mxu0 %v5143
        %7969 = vmatpush1.bf16.msra.mxu0 %v5142
        %7970 = vmatprep.subr.bf16.mxu0 %v5149
        %7971 = vmatpush1.bf16.msra.mxu0 %v5148
        %7972 = vmatprep.mubr.bf16.mxu0 %v4307
        %7973 = vmatmul.mubr.bf16.gmra.mrb[0].mxu0 %v4306
        %v7974 = vpop.f32.mrb[0].mxu0
        %v7975 = vadd.f32 0.0, %v7974
        %v7976 = vpop.f32.mrb[0].mxu0
        %v7977 = vadd.f32 0.0, %v7976
        %v7978 = vpop.f32.mrb[0].mxu0
        %v7979 = vadd.f32 0.0, %v7978
        %v7980 = vpop.f32.mrb[0].mxu0
        %v7981 = vadd.f32 0.0, %v7980
        %7982 = vdwg.mxu0
        %7983 = vmatprep.subr.bf16.mxu0 %v5155
        %7984 = vmatpush1.bf16.msra.mxu0 %v5154
        %7985 = vmatprep.subr.bf16.mxu0 %v5161
        %7986 = vmatpush1.bf16.msra.mxu0 %v5160
        %7987 = vmatprep.subr.bf16.mxu0 %v5167
        %7988 = vmatpush1.bf16.msra.mxu0 %v5166
        %7989 = vmatprep.subr.bf16.mxu0 %v5173
        %7990 = vmatpush1.bf16.msra.mxu0 %v5172
        %7991 = vmatprep.subr.bf16.mxu0 %v5179
        %7992 = vmatpush1.bf16.msra.mxu0 %v5178
        %7993 = vmatprep.subr.bf16.mxu0 %v5185
        %7994 = vmatpush1.bf16.msra.mxu0 %v5184
        %7995 = vmatprep.subr.bf16.mxu0 %v5191
        %7996 = vmatpush1.bf16.msra.mxu0 %v5190
        %7997 = vmatprep.subr.bf16.mxu0 %v5197
        %7998 = vmatpush1.bf16.msra.mxu0 %v5196
        %7999 = vmatprep.subr.bf16.mxu0 0
        %8000 = vmatpush1.bf16.msra.mxu0 0
        %8001 = vmatprep.subr.bf16.mxu0 0
        %8002 = vmatpush1.bf16.msra.mxu0 0
        %8003 = vmatprep.subr.bf16.mxu0 0
        %8004 = vmatpush1.bf16.msra.mxu0 0
        %8005 = vmatprep.subr.bf16.mxu0 0
        %8006 = vmatpush1.bf16.msra.mxu0 0
        %8007 = vmatprep.subr.bf16.mxu0 0
        %8008 = vmatpush1.bf16.msra.mxu0 0
        %8009 = vmatprep.subr.bf16.mxu0 0
        %8010 = vmatpush1.bf16.msra.mxu0 0
        %8011 = vmatprep.subr.bf16.mxu0 0
        %8012 = vmatpush1.bf16.msra.mxu0 0
        %8013 = vmatprep.subr.bf16.mxu0 0
        %8014 = vmatpush1.bf16.msra.mxu0 0
        %8015 = vmatprep.mubr.bf16.mxu0 0
        %8016 = vmatmul.mubr.bf16.gmra.mrb[0].mxu0 %v4308
        %v8017 = vpop.f32.mrb[0].mxu0
        %v8018 = vadd.f32 %v7975, %v8017
        %v8019 = vpop.f32.mrb[0].mxu0
        %v8020 = vadd.f32 %v7977, %v8019
        %v8021 = vpop.f32.mrb[0].mxu0
        %v8022 = vadd.f32 %v7979, %v8021
        %v8023 = vpop.f32.mrb[0].mxu0
        %v8024 = vadd.f32 %v7981, %v8023
        %8025 = vdwg.mxu0
        %8026 = vmatprep.subr.bf16.mxu0 %v6088
        %8027 = vmatpush1.bf16.msra.mxu0 %v6087
        %8028 = vmatprep.subr.bf16.mxu0 %v6094
        %8029 = vmatpush1.bf16.msra.mxu0 %v6093
        %8030 = vmatprep.subr.bf16.mxu0 %v6100
        %8031 = vmatpush1.bf16.msra.mxu0 %v6099
        %8032 = vmatprep.subr.bf16.mxu0 %v6106
        %8033 = vmatpush1.bf16.msra.mxu0 %v6105
        %8034 = vmatprep.subr.bf16.mxu0 %v6112
        %8035 = vmatpush1.bf16.msra.mxu0 %v6111
        %8036 = vmatprep.subr.bf16.mxu0 %v6118
        %8037 = vmatpush1.bf16.msra.mxu0 %v6117
        %8038 = vmatprep.subr.bf16.mxu0 %v6124
        %8039 = vmatpush1.bf16.msra.mxu0 %v6123
        %8040 = vmatprep.subr.bf16.mxu0 %v6130
        %8041 = vmatpush1.bf16.msra.mxu0 %v6129
        %8042 = vmatprep.subr.bf16.mxu0 %v6136
        %8043 = vmatpush1.bf16.msra.mxu0 %v6135
        %8044 = vmatprep.subr.bf16.mxu0 %v6142
        %8045 = vmatpush1.bf16.msra.mxu0 %v6141
        %8046 = vmatprep.subr.bf16.mxu0 %v6148
        %8047 = vmatpush1.bf16.msra.mxu0 %v6147
        %8048 = vmatprep.subr.bf16.mxu0 %v6154
        %8049 = vmatpush1.bf16.msra.mxu0 %v6153
        %8050 = vmatprep.subr.bf16.mxu0 %v6160
        %8051 = vmatpush1.bf16.msra.mxu0 %v6159
        %8052 = vmatprep.subr.bf16.mxu0 %v6166
        %8053 = vmatpush1.bf16.msra.mxu0 %v6165
        %8054 = vmatprep.subr.bf16.mxu0 %v6172
        %8055 = vmatpush1.bf16.msra.mxu0 %v6171
        %8056 = vmatprep.subr.bf16.mxu0 %v6178
        %8057 = vmatpush1.bf16.msra.mxu0 %v6177
        %8058 = vmatprep.mubr.bf16.mxu0 %v2282
        %8059 = vmatmul.mubr.bf16.gmra.mrb[0].mxu0 %v2281
        %v8060 = vpop.f32.mrb[0].mxu0
        %v8061 = vadd.f32 %v7846, %v8060
        %v8062 = vpop.f32.mrb[0].mxu0
        %v8063 = vadd.f32 %v7848, %v8062
        %v8064 = vpop.f32.mrb[0].mxu0
        %v8065 = vadd.f32 %v7850, %v8064
        %v8066 = vpop.f32.mrb[0].mxu0
        %v8067 = vadd.f32 %v7852, %v8066
        %8068 = vdwg.mxu0
        %8069 = vmatprep.subr.bf16.mxu0 %v6184
        %8070 = vmatpush1.bf16.msra.mxu0 %v6183
        %8071 = vmatprep.subr.bf16.mxu0 %v6190
        %8072 = vmatpush1.bf16.msra.mxu0 %v6189
        %8073 = vmatprep.subr.bf16.mxu0 %v6196
        %8074 = vmatpush1.bf16.msra.mxu0 %v6195
        %8075 = vmatprep.subr.bf16.mxu0 %v6202
        %8076 = vmatpush1.bf16.msra.mxu0 %v6201
        %8077 = vmatprep.subr.bf16.mxu0 %v6208
        %8078 = vmatpush1.bf16.msra.mxu0 %v6207
        %8079 = vmatprep.subr.bf16.mxu0 %v6214
        %8080 = vmatpush1.bf16.msra.mxu0 %v6213
        %8081 = vmatprep.subr.bf16.mxu0 %v6220
        %8082 = vmatpush1.bf16.msra.mxu0 %v6219
        %8083 = vmatprep.subr.bf16.mxu0 %v6226
        %8084 = vmatpush1.bf16.msra.mxu0 %v6225
        %8085 = vmatprep.subr.bf16.mxu0 0
        %8086 = vmatpush1.bf16.msra.mxu0 0
        %8087 = vmatprep.subr.bf16.mxu0 0
        %8088 = vmatpush1.bf16.msra.mxu0 0
        %8089 = vmatprep.subr.bf16.mxu0 0
        %8090 = vmatpush1.bf16.msra.mxu0 0
        %8091 = vmatprep.subr.bf16.mxu0 0
        %8092 = vmatpush1.bf16.msra.mxu0 0
        %8093 = vmatprep.subr.bf16.mxu0 0
        %8094 = vmatpush1.bf16.msra.mxu0 0
        %8095 = vmatprep.subr.bf16.mxu0 0
        %8096 = vmatpush1.bf16.msra.mxu0 0
        %8097 = vmatprep.subr.bf16.mxu0 0
        %8098 = vmatpush1.bf16.msra.mxu0 0
        %8099 = vmatprep.subr.bf16.mxu0 0
        %8100 = vmatpush1.bf16.msra.mxu0 0
        %8101 = vmatprep.mubr.bf16.mxu0 0
        %8102 = vmatmul.mubr.bf16.gmra.mrb[0].mxu0 %v2283
        %v8103 = vpop.f32.mrb[0].mxu0
        %v8104 = vadd.f32 %v8061, %v8103
        %v8105 = vpop.f32.mrb[0].mxu0
        %v8106 = vadd.f32 %v8063, %v8105
        %v8107 = vpop.f32.mrb[0].mxu0
        %v8108 = vadd.f32 %v8065, %v8107
        %v8109 = vpop.f32.mrb[0].mxu0
        %v8110 = vadd.f32 %v8067, %v8109
        %8111 = vdwg.mxu0
        %8112 = vmatprep.subr.bf16.mxu0 %v6090
        %8113 = vmatpush1.bf16.msra.mxu0 %v6089
        %8114 = vmatprep.subr.bf16.mxu0 %v6096
        %8115 = vmatpush1.bf16.msra.mxu0 %v6095
        %8116 = vmatprep.subr.bf16.mxu0 %v6102
        %8117 = vmatpush1.bf16.msra.mxu0 %v6101
        %8118 = vmatprep.subr.bf16.mxu0 %v6108
        %8119 = vmatpush1.bf16.msra.mxu0 %v6107
        %8120 = vmatprep.subr.bf16.mxu0 %v6114
        %8121 = vmatpush1.bf16.msra.mxu0 %v6113
        %8122 = vmatprep.subr.bf16.mxu0 %v6120
        %8123 = vmatpush1.bf16.msra.mxu0 %v6119
        %8124 = vmatprep.subr.bf16.mxu0 %v6126
        %8125 = vmatpush1.bf16.msra.mxu0 %v6125
        %8126 = vmatprep.subr.bf16.mxu0 %v6132
        %8127 = vmatpush1.bf16.msra.mxu0 %v6131
        %8128 = vmatprep.subr.bf16.mxu0 %v6138
        %8129 = vmatpush1.bf16.msra.mxu0 %v6137
        %8130 = vmatprep.subr.bf16.mxu0 %v6144
        %8131 = vmatpush1.bf16.msra.mxu0 %v6143
        %8132 = vmatprep.subr.bf16.mxu0 %v6150
        %8133 = vmatpush1.bf16.msra.mxu0 %v6149
        %8134 = vmatprep.subr.bf16.mxu0 %v6156
        %8135 = vmatpush1.bf16.msra.mxu0 %v6155
        %8136 = vmatprep.subr.bf16.mxu0 %v6162
        %8137 = vmatpush1.bf16.msra.mxu0 %v6161
        %8138 = vmatprep.subr.bf16.mxu0 %v6168
        %8139 = vmatpush1.bf16.msra.mxu0 %v6167
        %8140 = vmatprep.subr.bf16.mxu0 %v6174
        %8141 = vmatpush1.bf16.msra.mxu0 %v6173
        %8142 = vmatprep.subr.bf16.mxu0 %v6180
        %8143 = vmatpush1.bf16.msra.mxu0 %v6179
        %8144 = vmatprep.mubr.bf16.mxu0 %v2282
        %8145 = vmatmul.mubr.bf16.gmra.mrb[0].mxu0 %v2281
        %v8146 = vpop.f32.mrb[0].mxu0
        %v8147 = vadd.f32 %v7932, %v8146
        %v8148 = vpop.f32.mrb[0].mxu0
        %v8149 = vadd.f32 %v7934, %v8148
        %v8150 = vpop.f32.mrb[0].mxu0
        %v8151 = vadd.f32 %v7936, %v8150
        %v8152 = vpop.f32.mrb[0].mxu0
        %v8153 = vadd.f32 %v7938, %v8152
        %8154 = vdwg.mxu0
        %8155 = vmatprep.subr.bf16.mxu0 %v6186
        %8156 = vmatpush1.bf16.msra.mxu0 %v6185
        %8157 = vmatprep.subr.bf16.mxu0 %v6192
        %8158 = vmatpush1.bf16.msra.mxu0 %v6191
        %8159 = vmatprep.subr.bf16.mxu0 %v6198
        %8160 = vmatpush1.bf16.msra.mxu0 %v6197
        %8161 = vmatprep.subr.bf16.mxu0 %v6204
        %8162 = vmatpush1.bf16.msra.mxu0 %v6203
        %8163 = vmatprep.subr.bf16.mxu0 %v6210
        %8164 = vmatpush1.bf16.msra.mxu0 %v6209
        %8165 = vmatprep.subr.bf16.mxu0 %v6216
        %8166 = vmatpush1.bf16.msra.mxu0 %v6215
        %8167 = vmatprep.subr.bf16.mxu0 %v6222
        %8168 = vmatpush1.bf16.msra.mxu0 %v6221
        %8169 = vmatprep.subr.bf16.mxu0 %v6228
        %8170 = vmatpush1.bf16.msra.mxu0 %v6227
        %8171 = vmatprep.subr.bf16.mxu0 0
        %8172 = vmatpush1.bf16.msra.mxu0 0
        %8173 = vmatprep.subr.bf16.mxu0 0
        %8174 = vmatpush1.bf16.msra.mxu0 0
        %8175 = vmatprep.subr.bf16.mxu0 0
        %8176 = vmatpush1.bf16.msra.mxu0 0
        %8177 = vmatprep.subr.bf16.mxu0 0
        %8178 = vmatpush1.bf16.msra.mxu0 0
        %8179 = vmatprep.subr.bf16.mxu0 0
        %8180 = vmatpush1.bf16.msra.mxu0 0
        %8181 = vmatprep.subr.bf16.mxu0 0
        %8182 = vmatpush1.bf16.msra.mxu0 0
        %8183 = vmatprep.subr.bf16.mxu0 0
        %8184 = vmatpush1.bf16.msra.mxu0 0
        %8185 = vmatprep.subr.bf16.mxu0 0
        %8186 = vmatpush1.bf16.msra.mxu0 0
        %8187 = vmatprep.mubr.bf16.mxu0 0
        %8188 = vmatmul.mubr.bf16.gmra.mrb[0].mxu0 %v2283
        %v8189 = vpop.f32.mrb[0].mxu0
        %v8190 = vadd.f32 %v8147, %v8189
        %v8191 = vpop.f32.mrb[0].mxu0
        %v8192 = vadd.f32 %v8149, %v8191
        %v8193 = vpop.f32.mrb[0].mxu0
        %v8194 = vadd.f32 %v8151, %v8193
        %v8195 = vpop.f32.mrb[0].mxu0
        %v8196 = vadd.f32 %v8153, %v8195
        %8197 = vdwg.mxu0
        %8198 = vmatprep.subr.bf16.mxu0 %v6092
        %8199 = vmatpush1.bf16.msra.mxu0 %v6091
        %8200 = vmatprep.subr.bf16.mxu0 %v6098
        %8201 = vmatpush1.bf16.msra.mxu0 %v6097
        %8202 = vmatprep.subr.bf16.mxu0 %v6104
        %8203 = vmatpush1.bf16.msra.mxu0 %v6103
        %8204 = vmatprep.subr.bf16.mxu0 %v6110
        %8205 = vmatpush1.bf16.msra.mxu0 %v6109
        %8206 = vmatprep.subr.bf16.mxu0 %v6116
        %8207 = vmatpush1.bf16.msra.mxu0 %v6115
        %8208 = vmatprep.subr.bf16.mxu0 %v6122
        %8209 = vmatpush1.bf16.msra.mxu0 %v6121
        %8210 = vmatprep.subr.bf16.mxu0 %v6128
        %8211 = vmatpush1.bf16.msra.mxu0 %v6127
        %8212 = vmatprep.subr.bf16.mxu0 %v6134
        %8213 = vmatpush1.bf16.msra.mxu0 %v6133
        %8214 = vmatprep.subr.bf16.mxu0 %v6140
        %8215 = vmatpush1.bf16.msra.mxu0 %v6139
        %8216 = vmatprep.subr.bf16.mxu0 %v6146
        %8217 = vmatpush1.bf16.msra.mxu0 %v6145
        %8218 = vmatprep.subr.bf16.mxu0 %v6152
        %8219 = vmatpush1.bf16.msra.mxu0 %v6151
        %8220 = vmatprep.subr.bf16.mxu0 %v6158
        %8221 = vmatpush1.bf16.msra.mxu0 %v6157
        %8222 = vmatprep.subr.bf16.mxu0 %v6164
        %8223 = vmatpush1.bf16.msra.mxu0 %v6163
        %8224 = vmatprep.subr.bf16.mxu0 %v6170
        %8225 = vmatpush1.bf16.msra.mxu0 %v6169
        %8226 = vmatprep.subr.bf16.mxu0 %v6176
        %8227 = vmatpush1.bf16.msra.mxu0 %v6175
        %8228 = vmatprep.subr.bf16.mxu0 %v6182
        %8229 = vmatpush1.bf16.msra.mxu0 %v6181
        %8230 = vmatprep.mubr.bf16.mxu0 %v2282
        %8231 = vmatmul.mubr.bf16.gmra.mrb[0].mxu0 %v2281
        %v8232 = vpop.f32.mrb[0].mxu0
        %v8233 = vadd.f32 %v8018, %v8232
        %v8234 = vpop.f32.mrb[0].mxu0
        %v8235 = vadd.f32 %v8020, %v8234
        %v8236 = vpop.f32.mrb[0].mxu0
        %v8237 = vadd.f32 %v8022, %v8236
        %v8238 = vpop.f32.mrb[0].mxu0
        %v8239 = vadd.f32 %v8024, %v8238
        %8240 = vdwg.mxu0
        %8241 = vmatprep.subr.bf16.mxu0 %v6188
        %8242 = vmatpush1.bf16.msra.mxu0 %v6187
        %8243 = vmatprep.subr.bf16.mxu0 %v6194
        %8244 = vmatpush1.bf16.msra.mxu0 %v6193
        %8245 = vmatprep.subr.bf16.mxu0 %v6200
        %8246 = vmatpush1.bf16.msra.mxu0 %v6199
        %8247 = vmatprep.subr.bf16.mxu0 %v6206
        %8248 = vmatpush1.bf16.msra.mxu0 %v6205
        %8249 = vmatprep.subr.bf16.mxu0 %v6212
        %8250 = vmatpush1.bf16.msra.mxu0 %v6211
        %8251 = vmatprep.subr.bf16.mxu0 %v6218
        %8252 = vmatpush1.bf16.msra.mxu0 %v6217
        %8253 = vmatprep.subr.bf16.mxu0 %v6224
        %8254 = vmatpush1.bf16.msra.mxu0 %v6223
        %8255 = vmatprep.subr.bf16.mxu0 %v6230
        %8256 = vmatpush1.bf16.msra.mxu0 %v6229
        %8257 = vmatprep.subr.bf16.mxu0 0
        %8258 = vmatpush1.bf16.msra.mxu0 0
        %8259 = vmatprep.subr.bf16.mxu0 0
        %8260 = vmatpush1.bf16.msra.mxu0 0
        %8261 = vmatprep.subr.bf16.mxu0 0
        %8262 = vmatpush1.bf16.msra.mxu0 0
        %8263 = vmatprep.subr.bf16.mxu0 0
        %8264 = vmatpush1.bf16.msra.mxu0 0
        %8265 = vmatprep.subr.bf16.mxu0 0
        %8266 = vmatpush1.bf16.msra.mxu0 0
        %8267 = vmatprep.subr.bf16.mxu0 0
        %8268 = vmatpush1.bf16.msra.mxu0 0
        %8269 = vmatprep.subr.bf16.mxu0 0
        %8270 = vmatpush1.bf16.msra.mxu0 0
        %8271 = vmatprep.subr.bf16.mxu0 0
        %8272 = vmatpush1.bf16.msra.mxu0 0
        %8273 = vmatprep.mubr.bf16.mxu0 0
        %8274 = vmatmul.mubr.bf16.gmra.mrb[0].mxu0 %v2283
        %v8275 = vpop.f32.mrb[0].mxu0
        %v8276 = vadd.f32 %v8233, %v8275
        %v8277 = vpop.f32.mrb[0].mxu0
        %v8278 = vadd.f32 %v8235, %v8277
        %v8279 = vpop.f32.mrb[0].mxu0
        %v8280 = vadd.f32 %v8237, %v8279
        %v8281 = vpop.f32.mrb[0].mxu0
        %v8282 = vadd.f32 %v8239, %v8281
        %8283 = vdwg.mxu0
        %v8285 = vshrl.u32 %v4330, 16
        %v8287 = vshll.u32 %v4330, 16
        %v8289 = vrot.slane %v8287, 1
        %v8290 = vor.u32 %v8285, %v8289
        %v8292 = vshrl.u32 %v4331, 16
        %v8294 = vshll.u32 %v4331, 16
        %v8296 = vrot.slane %v8294, 1
        %v8297 = vor.u32 %v8292, %v8296
        %v8299 = vshrl.u32 %v4332, 16
        %v8301 = vshll.u32 %v4332, 16
        %v8303 = vrot.slane %v8301, 1
        %v8304 = vor.u32 %v8299, %v8303
        %8308 = vmatprep.subr.bf16.mxu0 %v7211
        %8309 = vmatpush1.bf16.msra.mxu0 %v7210
        %8310 = vmatprep.subr.bf16.mxu0 %v7217
        %8311 = vmatpush1.bf16.msra.mxu0 %v7216
        %8312 = vmatprep.subr.bf16.mxu0 %v7223
        %8313 = vmatpush1.bf16.msra.mxu0 %v7222
        %8314 = vmatprep.subr.bf16.mxu0 %v7229
        %8315 = vmatpush1.bf16.msra.mxu0 %v7228
        %8316 = vmatprep.subr.bf16.mxu0 %v7235
        %8317 = vmatpush1.bf16.msra.mxu0 %v7234
        %8318 = vmatprep.subr.bf16.mxu0 %v7241
        %8319 = vmatpush1.bf16.msra.mxu0 %v7240
        %8320 = vmatprep.subr.bf16.mxu0 %v7247
        %8321 = vmatpush1.bf16.msra.mxu0 %v7246
        %8322 = vmatprep.subr.bf16.mxu0 %v7253
        %8323 = vmatpush1.bf16.msra.mxu0 %v7252
        %8324 = vmatprep.subr.bf16.mxu0 %v7259
        %8325 = vmatpush1.bf16.msra.mxu0 %v7258
        %8326 = vmatprep.subr.bf16.mxu0 %v7265
        %8327 = vmatpush1.bf16.msra.mxu0 %v7264
        %8328 = vmatprep.subr.bf16.mxu0 %v7271
        %8329 = vmatpush1.bf16.msra.mxu0 %v7270
        %8330 = vmatprep.subr.bf16.mxu0 %v7277
        %8331 = vmatpush1.bf16.msra.mxu0 %v7276
        %8332 = vmatprep.subr.bf16.mxu0 %v7283
        %8333 = vmatpush1.bf16.msra.mxu0 %v7282
        %8334 = vmatprep.subr.bf16.mxu0 %v7289
        %8335 = vmatpush1.bf16.msra.mxu0 %v7288
        %8336 = vmatprep.subr.bf16.mxu0 %v7295
        %8337 = vmatpush1.bf16.msra.mxu0 %v7294
        %8338 = vmatprep.subr.bf16.mxu0 %v7301
        %8339 = vmatpush1.bf16.msra.mxu0 %v7300
        %8340 = vmatprep.mubr.bf16.mxu0 %v8297
        %8341 = vmatmul.mubr.bf16.gmra.mrb[0].mxu0 %v8290
        %v8342 = vpop.f32.mrb[0].mxu0
        %v8343 = vadd.f32 0.0, %v8342
        %v8344 = vpop.f32.mrb[0].mxu0
        %v8345 = vadd.f32 0.0, %v8344
        %v8346 = vpop.f32.mrb[0].mxu0
        %v8347 = vadd.f32 0.0, %v8346
        %v8348 = vpop.f32.mrb[0].mxu0
        %v8349 = vadd.f32 0.0, %v8348
        %8350 = vdwg.mxu0
        %8351 = vmatprep.subr.bf16.mxu0 %v7307
        %8352 = vmatpush1.bf16.msra.mxu0 %v7306
        %8353 = vmatprep.subr.bf16.mxu0 %v7313
        %8354 = vmatpush1.bf16.msra.mxu0 %v7312
        %8355 = vmatprep.subr.bf16.mxu0 %v7319
        %8356 = vmatpush1.bf16.msra.mxu0 %v7318
        %8357 = vmatprep.subr.bf16.mxu0 %v7325
        %8358 = vmatpush1.bf16.msra.mxu0 %v7324
        %8359 = vmatprep.subr.bf16.mxu0 %v7331
        %8360 = vmatpush1.bf16.msra.mxu0 %v7330
        %8361 = vmatprep.subr.bf16.mxu0 %v7337
        %8362 = vmatpush1.bf16.msra.mxu0 %v7336
        %8363 = vmatprep.subr.bf16.mxu0 %v7343
        %8364 = vmatpush1.bf16.msra.mxu0 %v7342
        %8365 = vmatprep.subr.bf16.mxu0 %v7349
        %8366 = vmatpush1.bf16.msra.mxu0 %v7348
        %8367 = vmatprep.subr.bf16.mxu0 0
        %8368 = vmatpush1.bf16.msra.mxu0 0
        %8369 = vmatprep.subr.bf16.mxu0 0
        %8370 = vmatpush1.bf16.msra.mxu0 0
        %8371 = vmatprep.subr.bf16.mxu0 0
        %8372 = vmatpush1.bf16.msra.mxu0 0
        %8373 = vmatprep.subr.bf16.mxu0 0
        %8374 = vmatpush1.bf16.msra.mxu0 0
        %8375 = vmatprep.subr.bf16.mxu0 0
        %8376 = vmatpush1.bf16.msra.mxu0 0
        %8377 = vmatprep.subr.bf16.mxu0 0
        %8378 = vmatpush1.bf16.msra.mxu0 0
        %8379 = vmatprep.subr.bf16.mxu0 0
        %8380 = vmatpush1.bf16.msra.mxu0 0
        %8381 = vmatprep.subr.bf16.mxu0 0
        %8382 = vmatpush1.bf16.msra.mxu0 0
        %8383 = vmatprep.mubr.bf16.mxu0 0
        %8384 = vmatmul.mubr.bf16.gmra.mrb[0].mxu0 %v8304
        %v8385 = vpop.f32.mrb[0].mxu0
        %v8386 = vadd.f32 %v8343, %v8385
        %v8387 = vpop.f32.mrb[0].mxu0
        %v8388 = vadd.f32 %v8345, %v8387
        %v8389 = vpop.f32.mrb[0].mxu0
        %v8390 = vadd.f32 %v8347, %v8389
        %v8391 = vpop.f32.mrb[0].mxu0
        %v8392 = vadd.f32 %v8349, %v8391
        %8393 = vdwg.mxu0
        %8394 = vmatprep.subr.bf16.mxu0 %v7213
        %8395 = vmatpush1.bf16.msra.mxu0 %v7212
        %8396 = vmatprep.subr.bf16.mxu0 %v7219
        %8397 = vmatpush1.bf16.msra.mxu0 %v7218
        %8398 = vmatprep.subr.bf16.mxu0 %v7225
        %8399 = vmatpush1.bf16.msra.mxu0 %v7224
        %8400 = vmatprep.subr.bf16.mxu0 %v7231
        %8401 = vmatpush1.bf16.msra.mxu0 %v7230
        %8402 = vmatprep.subr.bf16.mxu0 %v7237
        %8403 = vmatpush1.bf16.msra.mxu0 %v7236
        %8404 = vmatprep.subr.bf16.mxu0 %v7243
        %8405 = vmatpush1.bf16.msra.mxu0 %v7242
        %8406 = vmatprep.subr.bf16.mxu0 %v7249
        %8407 = vmatpush1.bf16.msra.mxu0 %v7248
        %8408 = vmatprep.subr.bf16.mxu0 %v7255
        %8409 = vmatpush1.bf16.msra.mxu0 %v7254
        %8410 = vmatprep.subr.bf16.mxu0 %v7261
        %8411 = vmatpush1.bf16.msra.mxu0 %v7260
        %8412 = vmatprep.subr.bf16.mxu0 %v7267
        %8413 = vmatpush1.bf16.msra.mxu0 %v7266
        %8414 = vmatprep.subr.bf16.mxu0 %v7273
        %8415 = vmatpush1.bf16.msra.mxu0 %v7272
        %8416 = vmatprep.subr.bf16.mxu0 %v7279
        %8417 = vmatpush1.bf16.msra.mxu0 %v7278
        %8418 = vmatprep.subr.bf16.mxu0 %v7285
        %8419 = vmatpush1.bf16.msra.mxu0 %v7284
        %8420 = vmatprep.subr.bf16.mxu0 %v7291
        %8421 = vmatpush1.bf16.msra.mxu0 %v7290
        %8422 = vmatprep.subr.bf16.mxu0 %v7297
        %8423 = vmatpush1.bf16.msra.mxu0 %v7296
        %8424 = vmatprep.subr.bf16.mxu0 %v7303
        %8425 = vmatpush1.bf16.msra.mxu0 %v7302
        %8426 = vmatprep.mubr.bf16.mxu0 %v8297
        %8427 = vmatmul.mubr.bf16.gmra.mrb[0].mxu0 %v8290
        %v8428 = vpop.f32.mrb[0].mxu0
        %v8429 = vadd.f32 0.0, %v8428
        %v8430 = vpop.f32.mrb[0].mxu0
        %v8431 = vadd.f32 0.0, %v8430
        %v8432 = vpop.f32.mrb[0].mxu0
        %v8433 = vadd.f32 0.0, %v8432
        %v8434 = vpop.f32.mrb[0].mxu0
        %v8435 = vadd.f32 0.0, %v8434
        %8436 = vdwg.mxu0
        %8437 = vmatprep.subr.bf16.mxu0 %v7309
        %8438 = vmatpush1.bf16.msra.mxu0 %v7308
        %8439 = vmatprep.subr.bf16.mxu0 %v7315
        %8440 = vmatpush1.bf16.msra.mxu0 %v7314
        %8441 = vmatprep.subr.bf16.mxu0 %v7321
        %8442 = vmatpush1.bf16.msra.mxu0 %v7320
        %8443 = vmatprep.subr.bf16.mxu0 %v7327
        %8444 = vmatpush1.bf16.msra.mxu0 %v7326
        %8445 = vmatprep.subr.bf16.mxu0 %v7333
        %8446 = vmatpush1.bf16.msra.mxu0 %v7332
        %8447 = vmatprep.subr.bf16.mxu0 %v7339
        %8448 = vmatpush1.bf16.msra.mxu0 %v7338
        %8449 = vmatprep.subr.bf16.mxu0 %v7345
        %8450 = vmatpush1.bf16.msra.mxu0 %v7344
        %8451 = vmatprep.subr.bf16.mxu0 %v7351
        %8452 = vmatpush1.bf16.msra.mxu0 %v7350
        %8453 = vmatprep.subr.bf16.mxu0 0
        %8454 = vmatpush1.bf16.msra.mxu0 0
        %8455 = vmatprep.subr.bf16.mxu0 0
        %8456 = vmatpush1.bf16.msra.mxu0 0
        %8457 = vmatprep.subr.bf16.mxu0 0
        %8458 = vmatpush1.bf16.msra.mxu0 0
        %8459 = vmatprep.subr.bf16.mxu0 0
        %8460 = vmatpush1.bf16.msra.mxu0 0
        %8461 = vmatprep.subr.bf16.mxu0 0
        %8462 = vmatpush1.bf16.msra.mxu0 0
        %8463 = vmatprep.subr.bf16.mxu0 0
        %8464 = vmatpush1.bf16.msra.mxu0 0
        %8465 = vmatprep.subr.bf16.mxu0 0
        %8466 = vmatpush1.bf16.msra.mxu0 0
        %8467 = vmatprep.subr.bf16.mxu0 0
        %8468 = vmatpush1.bf16.msra.mxu0 0
        %8469 = vmatprep.mubr.bf16.mxu0 0
        %8470 = vmatmul.mubr.bf16.gmra.mrb[0].mxu0 %v8304
        %v8471 = vpop.f32.mrb[0].mxu0
        %v8472 = vadd.f32 %v8429, %v8471
        %v8473 = vpop.f32.mrb[0].mxu0
        %v8474 = vadd.f32 %v8431, %v8473
        %v8475 = vpop.f32.mrb[0].mxu0
        %v8476 = vadd.f32 %v8433, %v8475
        %v8477 = vpop.f32.mrb[0].mxu0
        %v8478 = vadd.f32 %v8435, %v8477
        %8479 = vdwg.mxu0
        %8480 = vmatprep.subr.bf16.mxu0 %v7215
        %8481 = vmatpush1.bf16.msra.mxu0 %v7214
        %8482 = vmatprep.subr.bf16.mxu0 %v7221
        %8483 = vmatpush1.bf16.msra.mxu0 %v7220
        %8484 = vmatprep.subr.bf16.mxu0 %v7227
        %8485 = vmatpush1.bf16.msra.mxu0 %v7226
        %8486 = vmatprep.subr.bf16.mxu0 %v7233
        %8487 = vmatpush1.bf16.msra.mxu0 %v7232
        %8488 = vmatprep.subr.bf16.mxu0 %v7239
        %8489 = vmatpush1.bf16.msra.mxu0 %v7238
        %8490 = vmatprep.subr.bf16.mxu0 %v7245
        %8491 = vmatpush1.bf16.msra.mxu0 %v7244
        %8492 = vmatprep.subr.bf16.mxu0 %v7251
        %8493 = vmatpush1.bf16.msra.mxu0 %v7250
        %8494 = vmatprep.subr.bf16.mxu0 %v7257
        %8495 = vmatpush1.bf16.msra.mxu0 %v7256
        %8496 = vmatprep.subr.bf16.mxu0 %v7263
        %8497 = vmatpush1.bf16.msra.mxu0 %v7262
        %8498 = vmatprep.subr.bf16.mxu0 %v7269
        %8499 = vmatpush1.bf16.msra.mxu0 %v7268
        %8500 = vmatprep.subr.bf16.mxu0 %v7275
        %8501 = vmatpush1.bf16.msra.mxu0 %v7274
        %8502 = vmatprep.subr.bf16.mxu0 %v7281
        %8503 = vmatpush1.bf16.msra.mxu0 %v7280
        %8504 = vmatprep.subr.bf16.mxu0 %v7287
        %8505 = vmatpush1.bf16.msra.mxu0 %v7286
        %8506 = vmatprep.subr.bf16.mxu0 %v7293
        %8507 = vmatpush1.bf16.msra.mxu0 %v7292
        %8508 = vmatprep.subr.bf16.mxu0 %v7299
        %8509 = vmatpush1.bf16.msra.mxu0 %v7298
        %8510 = vmatprep.subr.bf16.mxu0 %v7305
        %8511 = vmatpush1.bf16.msra.mxu0 %v7304
        %8512 = vmatprep.mubr.bf16.mxu0 %v8297
        %8513 = vmatmul.mubr.bf16.gmra.mrb[0].mxu0 %v8290
        %v8514 = vpop.f32.mrb[0].mxu0
        %v8515 = vadd.f32 0.0, %v8514
        %v8516 = vpop.f32.mrb[0].mxu0
        %v8517 = vadd.f32 0.0, %v8516
        %v8518 = vpop.f32.mrb[0].mxu0
        %v8519 = vadd.f32 0.0, %v8518
        %v8520 = vpop.f32.mrb[0].mxu0
        %v8521 = vadd.f32 0.0, %v8520
        %8522 = vdwg.mxu0
        %8523 = vmatprep.subr.bf16.mxu0 %v7311
        %8524 = vmatpush1.bf16.msra.mxu0 %v7310
        %8525 = vmatprep.subr.bf16.mxu0 %v7317
        %8526 = vmatpush1.bf16.msra.mxu0 %v7316
        %8527 = vmatprep.subr.bf16.mxu0 %v7323
        %8528 = vmatpush1.bf16.msra.mxu0 %v7322
        %8529 = vmatprep.subr.bf16.mxu0 %v7329
        %8530 = vmatpush1.bf16.msra.mxu0 %v7328
        %8531 = vmatprep.subr.bf16.mxu0 %v7335
        %8532 = vmatpush1.bf16.msra.mxu0 %v7334
        %8533 = vmatprep.subr.bf16.mxu0 %v7341
        %8534 = vmatpush1.bf16.msra.mxu0 %v7340
        %8535 = vmatprep.subr.bf16.mxu0 %v7347
        %8536 = vmatpush1.bf16.msra.mxu0 %v7346
        %8537 = vmatprep.subr.bf16.mxu0 %v7353
        %8538 = vmatpush1.bf16.msra.mxu0 %v7352
        %8539 = vmatprep.subr.bf16.mxu0 0
        %8540 = vmatpush1.bf16.msra.mxu0 0
        %8541 = vmatprep.subr.bf16.mxu0 0
        %8542 = vmatpush1.bf16.msra.mxu0 0
        %8543 = vmatprep.subr.bf16.mxu0 0
        %8544 = vmatpush1.bf16.msra.mxu0 0
        %8545 = vmatprep.subr.bf16.mxu0 0
        %8546 = vmatpush1.bf16.msra.mxu0 0
        %8547 = vmatprep.subr.bf16.mxu0 0
        %8548 = vmatpush1.bf16.msra.mxu0 0
        %8549 = vmatprep.subr.bf16.mxu0 0
        %8550 = vmatpush1.bf16.msra.mxu0 0
        %8551 = vmatprep.subr.bf16.mxu0 0
        %8552 = vmatpush1.bf16.msra.mxu0 0
        %8553 = vmatprep.subr.bf16.mxu0 0
        %8554 = vmatpush1.bf16.msra.mxu0 0
        %8555 = vmatprep.mubr.bf16.mxu0 0
        %8556 = vmatmul.mubr.bf16.gmra.mrb[0].mxu0 %v8304
        %v8557 = vpop.f32.mrb[0].mxu0
        %v8558 = vadd.f32 %v8515, %v8557
        %v8559 = vpop.f32.mrb[0].mxu0
        %v8560 = vadd.f32 %v8517, %v8559
        %v8561 = vpop.f32.mrb[0].mxu0
        %v8562 = vadd.f32 %v8519, %v8561
        %v8563 = vpop.f32.mrb[0].mxu0
        %v8564 = vadd.f32 %v8521, %v8563
        %8565 = vdwg.mxu0
        %v8566 = vadd.f32 %v8104, %v8386
        %v8567 = vadd.f32 %v8106, %v8388
        %v8568 = vadd.f32 %v8190, %v8472
        %v8569 = vadd.f32 %v8192, %v8474
        %v8570 = vadd.f32 %v8276, %v8558
        %v8571 = vadd.f32 %v8278, %v8560
        %v8572 = vadd.f32 %v8108, %v8390
        %v8573 = vadd.f32 %v8110, %v8392
        %v8574 = vadd.f32 %v8194, %v8476
        %v8575 = vadd.f32 %v8196, %v8478
        %v8576 = vadd.f32 %v8280, %v8562
        %v8577 = vadd.f32 %v8282, %v8564
        %v8578 = vmax.f32 %v7756, %v8566
        %v8579 = vmax.f32 %v7757, %v8567
        %v8580 = vmax.f32 %v7758, %v8568
        %v8581 = vmax.f32 %v7759, %v8569
        %v8582 = vmax.f32 %v7760, %v8570
        %v8583 = vmax.f32 %v7761, %v8571
        %v8584 = vmax.f32 %v7762, %v8572
        %v8585 = vmax.f32 %v7763, %v8573
        %v8586 = vmax.f32 %v7764, %v8574
        %v8587 = vmax.f32 %v7765, %v8575
        %v8588 = vmax.f32 %v7766, %v8576
        %v8589 = vmax.f32 %v7767, %v8577
        %v8590 = vmax.f32 %v8578, %v8581
        %v8591 = vmax.f32 %v8579, %v8582
        %v8592 = vmax.f32 %v8580, %v8583
        %v8593 = vmax.f32 %v8584, %v8587
        %v8594 = vmax.f32 %v8585, %v8588
        %v8595 = vmax.f32 %v8586, %v8589
        %v8596 = vld [vmem:[#allocation8] sm:$0x7]
        %v8598 = vlaneseq
        %v8599 = vshrl.u32 %v8598, 7
        %v8600 = vsub.s32 0, %v8599
        %v8601 = vrot.slane %v8596, %v8600
        %v8602 = vlaneseq
        %v8603 = vshrl.u32 %v8602, 7
        %v8604 = vsub.s32 1, %v8603
        %v8605 = vrot.slane %v8596, %v8604
        %v8606 = vlaneseq
        %v8607 = vshrl.u32 %v8606, 7
        %v8608 = vsub.s32 2, %v8607
        %v8609 = vrot.slane %v8596, %v8608
        %v8613 = vadd.f32 %v8590, %v8601
        %v8614 = vadd.f32 %v8591, %v8605
        %v8615 = vadd.f32 %v8592, %v8609
        %v8616 = vadd.f32 %v8593, %v8601
        %v8617 = vadd.f32 %v8594, %v8605
        %v8618 = vadd.f32 %v8595, %v8609
        %v8619 = vmax.f32 %v8613, 0.0
        %v8620 = vmax.f32 %v8614, 0.0
        %v8621 = vmax.f32 %v8615, 0.0
        %v8622 = vmax.f32 %v8616, 0.0
        %v8623 = vmax.f32 %v8617, 0.0
        %v8624 = vmax.f32 %v8618, 0.0
        %v8625 = vpack.c.bf16 %v8622, %v8619
        %v8626 = vpack.c.bf16 %v8623, %v8620
        %v8627 = vpack.c.bf16 %v8624, %v8621
        %v8631 = vunpack.c.l.b16 %v8625
        %v8632 = vunpack.c.l.b16 %v8626
        %v8633 = vunpack.c.l.b16 %v8627
        %v8634 = vunpack.c.h.b16 %v8625
        %v8635 = vunpack.c.h.b16 %v8626
        %v8636 = vunpack.c.h.b16 %v8627
        %v8637 = vpack.c.b16 %v8632, %v8631
        %v8638 = vpack.c.b16 %v8633, %v8633
        %v8639 = vpack.c.b16 %v8635, %v8634
        %v8640 = vpack.c.b16 %v8636, %v8636
        %8645 = vst [vmem:[%s279] sm:$0xff] %v8637
        %8646 = vst [vmem:[%s279 + $0x8] sm:$0xf] %v8638
        %8647 = vst [vmem:[%s279 + $0xc] sm:$0x33] %v8639
        %8648 = vst [vmem:[%s279 + $0x14] sm:$0x3] %v8640
        %p8649 = scmp.lt.s32.totalorder %s19, 1
        %s8650 = scalar_select %p8649, %s19, 1
        %s8651 = smul.addr %s8650, 6
        %s8652 = smul.addr %s8651, 4
        %s8653 = scalar_lea.vmem %s5, %s8652
        // Predicated region
        $region57: #{rbg_conv_forward.2} parent=39 // pred_check
          %p8654 = pneg %p147
        $region58: #{rbg_conv_forward.2} parent=39 // pred_check_branch
          %8656 = sbr.rel (%p8654) target = $region60
        $region59: #{rbg_conv_forward.2} parent=39 // pred_region
          _
        $region60: #{rbg_conv_forward.2} parent=39 // pred_fallthru
          _
      $region40: #{rbg_conv_forward.2} parent=5 // pred_fallthru
        _
      %p8657 = scmp.le.s32.totalorder 2, %s14
      // Predicated region
      $region61: #{rbg_conv_forward.2} parent=5 // pred_check
        %p8658 = pneg %p8657
      $region62: #{rbg_conv_forward.2} parent=5 // pred_check_branch
        %8660 = sbr.rel (%p8658) target = $region64
      $region63: #{rbg_conv_forward.2} parent=5 // pred_region
        %s8661 = ssub.s32 %s14, 2
        // Predicated region
        $region65: #{rbg_conv_forward.2} parent=63 // pred_check
          %p8662 = pneg %p153
        $region66: #{rbg_conv_forward.2} parent=63 // pred_check_branch
          %8664 = sbr.rel (%p8662) target = $region68
        $region67: #{rbg_conv_forward.2} parent=63 // pred_region
          %p8665 = scmp.lt.s32.totalorder %s20, 1
          %s8666 = scalar_select %p8665, %s20, 1
          %s8667 = smul.addr %s8666, 6
          %s8668 = smul.addr %s8667, 4
          %s8669 = scalar_lea.vmem %s5, %s8668
        $region68: #{rbg_conv_forward.2} parent=63 // pred_fallthru
          _
      $region64: #{rbg_conv_forward.2} parent=5 // pred_fallthru
        _
    $region6: #{rbg_conv_forward.2} parent=1 // loop_footer
      %s18 = sadd.s32 1, %s14
    $region7: #{rbg_conv_forward.2} parent=1 // loop_footer_branch
      %13 = sbr.rel target = $region3
    $region8: #{rbg_conv_forward.2} parent=1 // loop_exit
      _
    %8670 = vsyncpa [#allocation4], 1
    %s8671 = scalar_lea.sflag [#allocation4], 1
    %8672 = vsyncpa %s8671, 1
    %8673 = vsyncpa [#allocation6], 1
    %8674 = vsyncpa [#allocation9], 1

</llo_original>
